<compile_context>
chip_gen: v5e
topology: v5e:2x2
jax: 0.10.0
libtpu: 0.0.40
codegen_flags: <defaults>
</compile_context>

<pallas_src>
import functools

import jax
import jax.numpy as jnp
from jax.experimental import pallas as pl
from jax.experimental.pallas import tpu as pltpu


# ---------------------------------------------------------------------------
# Fused kernel: whole IFA forward for NB images per grid step.
# Layout: channels on sublanes, NB * H*(W+4) row-gutter lanes (lane-dense).
# ---------------------------------------------------------------------------
def _ifa_kernel(x_ref, w1_ref, b1_ref, wA_ref, bA_ref, wB_ref, bB_ref,
                wC_ref, bC_ref, bns_ref, bnb_ref, gmask_ref,
                o_ref, pad_ref, stk_ref, *, C, H, W, NB, S, SLAB):
    GUT = 2                                   # gutter columns each side of a row
    Wg = W + 2 * GUT
    HWg = H * Wg                              # per-image lane width

    gmask = gmask_ref[...]                    # (1, NB*HWg): 1 inside image cols, 0 in gutters

    # Re-zero only the halo lanes of the line buffer (interior lanes are fully
    # overwritten below).  Cheap (2*NB small stores) and correct even if the
    # "parallel" grid axis is sharded across TensorCores.
    for n in range(NB):
        pad_ref[:, n * SLAB:n * SLAB + S] = jnp.zeros((3 * C, S), jnp.float32)
        pad_ref[:, n * SLAB + S + HWg:(n + 1) * SLAB] = (
            jnp.zeros((3 * C, SLAB - S - HWg), jnp.float32))

    def to_pad(val, row0, rows):
        """Store a (rows, NB*HWg) value into the interior lanes of pad rows."""
        for n in range(NB):
            pad_ref[row0:row0 + rows, n * SLAB + S:n * SLAB + S + HWg] = (
                val[:, n * HWg:(n + 1) * HWg])

    def conv_stage(cin, K, w_ref, b_ref):
        """'same' KxK conv of pad rows [0, cin) as ONE tap-stacked matmul."""
        P = K // 2
        for i in range(K):                    # VMEM im2col: copy shifted windows
            for j in range(K):
                s = (i - P) * Wg + (j - P)    # flat lane shift of this tap
                r0 = (i * K + j) * cin
                for n in range(NB):
                    stk_ref[r0:r0 + cin, n * HWg:(n + 1) * HWg] = (
                        pad_ref[0:cin, n * SLAB + S + s:n * SLAB + S + s + HWg])
        return jnp.dot(w_ref[...], stk_ref[0:K * K * cin, :],
                       preferred_element_type=jnp.float32) + b_ref[...]

    # conv1 (1x1): x_compressed = W1 @ x + b1 (gutter lanes re-zeroed by mask)
    xc = (jnp.dot(w1_ref[...], x_ref[0], preferred_element_type=jnp.float32)
          + b1_ref[...]) * gmask                                     # (C, L)

    # stage 1: [f3 ; f5] = [conv3 | conv5](x_compressed)  — one 5x5 matmul
    to_pad(xc, 0, C)
    fc = conv_stage(C, 5, wA_ref, bA_ref) * gmask                    # (2C, L)

    # stage 2: [conv3_2 | conv5_2]([f3; f5]), f_35 = product of the two halves
    to_pad(fc, 0, 2 * C)
    g = conv_stage(2 * C, 5, wB_ref, bB_ref)                         # (2C, L)
    f35 = (g[0:C] * g[C:2 * C]) * gmask                              # (C, L)

    # stage 3: crb = BN(ReLU(conv3x3(cat([f3, f5, f_35]))))
    to_pad(f35, 2 * C, C)                    # f3/f5 already live in pad rows [0, 2C)
    agg = conv_stage(3 * C, 3, wC_ref, bC_ref)                       # (C, L)
    agg = jnp.maximum(agg, 0.0) * bns_ref[...] + bnb_ref[...]        # ReLU + BN (eval)

    # residual; gutter lanes are sliced off in the wrapper
    o_ref[0] = xc + agg


# ---------------------------------------------------------------------------
# Wrapper: layout/weight packing + pallas_call
# ---------------------------------------------------------------------------
def ifa_forward(x_nchw, params):
    """IntraLayerFeatureAggregation forward. x_nchw: (N, C, H, W) float32."""
    N, Ci, H, W = x_nchw.shape
    C = params['conv1_w'].shape[0]                      # out_channels
    assert Ci == params['conv1_w'].shape[1]
    # The PyTorch forward only type-checks when in_channels == out_channels.
    assert Ci == C, "IFA forward requires in_channels == out_channels"

    GUT = 2                                             # max |dj| of a 5x5 tap
    Wg = W + 2 * GUT
    HWg = H * Wg
    # Flat halo (per image slab) >= largest 5x5 tap shift, rounded to 128 lanes.
    S = ((2 * Wg + 2 + 127) // 128) * 128
    # Per-image slab width of the line buffer, rounded to 128 lanes.
    SLAB = ((HWg + 2 * S + 127) // 128) * 128
    # Images per grid step (amortizes per-step overhead, widens matmul lanes).
    NB = next(nb for nb in (4, 2, 1) if N % nb == 0)
    G = N // NB
    L = NB * HWg

    # ---- activations: NCHW -> row-gutter layout, NB images per lane slab ----
    x32 = x_nchw.astype(jnp.float32)
    x_g = jnp.pad(x32, ((0, 0), (0, 0), (0, 0), (GUT, GUT))).reshape(N, Ci, HWg)
    x_packed = x_g.reshape(G, NB, Ci, HWg).transpose(0, 2, 1, 3).reshape(G, Ci, L)

    # ---- weights: tap-stacked matmul operands (Cout, K*K*Cin) ----
    def embed55(w):                                     # center a 3x3 kernel in 5x5
        return jnp.pad(w, ((0, 0), (0, 0), (1, 1), (1, 1)))

    def tap_stack(w):                                   # (Co,Ci,K,K) -> (Co, K*K*Ci)
        co, ci, k, _ = w.shape
        return jnp.transpose(w, (0, 2, 3, 1)).reshape(co, k * k * ci)

    w1 = params['conv1_w'][:, :, 0, 0]                                   # (C, C)
    b1 = params['conv1_b'][:, None]
    wA = tap_stack(jnp.concatenate([embed55(params['conv3_w']),
                                    params['conv5_w']], axis=0))         # (2C, 25C)
    bA = jnp.concatenate([params['conv3_b'], params['conv5_b']])[:, None]
    wB = tap_stack(jnp.concatenate([embed55(params['conv3_2_w']),
                                    params['conv5_2_w']], axis=0))       # (2C, 50C)
    bB = jnp.concatenate([params['conv3_2_b'], params['conv5_2_b']])[:, None]
    wC = tap_stack(params['crb_w'])                                      # (C, 27C)
    bC = params['crb_b'][:, None]
    scale = params['bn_gamma'] * jax.lax.rsqrt(params['bn_var'] + 1e-5)
    bns = scale[:, None]
    bnb = (params['bn_beta'] - params['bn_mean'] * scale)[:, None]

    # ---- gutter mask over the packed lane axis (zero on the gutter columns) ----
    col = jnp.arange(HWg, dtype=jnp.int32) % Wg
    gmask = jnp.tile(((col >= GUT) & (col < GUT + W)).astype(jnp.float32),
                     NB)[None, :]                                        # (1, L)

    def cmap2(shape):
        return pl.BlockSpec(shape, lambda g: (0, 0))

    kern = functools.partial(_ifa_kernel, C=C, H=H, W=W, NB=NB, S=S, SLAB=SLAB)
    out = pl.pallas_call(
        kern,
        out_shape=jax.ShapeDtypeStruct((G, C, L), jnp.float32),
        grid=(G,),
        in_specs=[
            pl.BlockSpec((1, Ci, L), lambda g: (g, 0, 0)),   # NB images / step
            cmap2((C, Ci)), cmap2((C, 1)),                   # conv1
            cmap2((2 * C, 25 * C)), cmap2((2 * C, 1)),       # [conv3 | conv5]
            cmap2((2 * C, 50 * C)), cmap2((2 * C, 1)),       # [conv3_2 | conv5_2]
            cmap2((C, 27 * C)), cmap2((C, 1)),               # crb conv
            cmap2((C, 1)), cmap2((C, 1)),                    # BN scale / shift
            cmap2((1, L)),                                   # gutter mask
        ],
        out_specs=pl.BlockSpec((1, C, L), lambda g: (g, 0, 0)),
        scratch_shapes=[pltpu.VMEM((3 * C, NB * SLAB), jnp.float32),   # line buffer
                        pltpu.VMEM((50 * C, L), jnp.float32)],         # tap stack
        compiler_params=pltpu.CompilerParams(
            dimension_semantics=("parallel",),
            vmem_limit_bytes=32 * 1024 * 1024),
    )(x_packed, w1, b1, wA, bA, wB, bB, wC, bC, bns, bnb, gmask)

    out = out.reshape(G, C, NB, HWg).transpose(0, 2, 1, 3).reshape(N, C, H, Wg)
    return out[..., GUT:GUT + W]


# ---------------------------------------------------------------------------
# Pure-JAX reference (XLA convs) for in-script validation
# ---------------------------------------------------------------------------
def ifa_reference(x, p):
    def conv(inp, w, b, pad):
        y = jax.lax.conv_general_dilated(
            inp, w, (1, 1), [(pad, pad), (pad, pad)],
            dimension_numbers=('NCHW', 'OIHW', 'NCHW'),
            precision=jax.lax.Precision.HIGHEST)
        return y + b[None, :, None, None]

    xc = conv(x, p['conv1_w'], p['conv1_b'], 0)
    f3 = conv(xc, p['conv3_w'], p['conv3_b'], 1)
    f5 = conv(xc, p['conv5_w'], p['conv5_b'], 2)
    fcomb = jnp.concatenate([f3, f5], axis=1)
    f33 = conv(fcomb, p['conv3_2_w'], p['conv3_2_b'], 1)
    f55 = conv(fcomb, p['conv5_2_w'], p['conv5_2_b'], 2)
    f35 = f33 * f55
    agg = conv(jnp.concatenate([f3, f5, f35], axis=1), p['crb_w'], p['crb_b'], 1)
    agg = jnp.maximum(agg, 0.0)
    scale = p['bn_gamma'] * jax.lax.rsqrt(p['bn_var'] + 1e-5)
    shift = p['bn_beta'] - p['bn_mean'] * scale
    agg = agg * scale[None, :, None, None] + shift[None, :, None, None]
    return xc + agg


# ---------------------------------------------------------------------------
# Deterministic parameters (PyTorch (Cout, Cin, kH, kW) convention)
# ---------------------------------------------------------------------------
def make_params(key, c):
    keys = iter(jax.random.split(key, 16))

    def conv_p(cout, cin, k):
        fan = float(cin * k * k)
        w = jax.random.normal(next(keys), (cout, cin, k, k), jnp.float32) * (fan ** -0.5)
        b = 0.1 * jax.random.normal(next(keys), (cout,), jnp.float32)
        return w, b

    p = {}
    p['conv1_w'], p['conv1_b'] = conv_p(c, c, 1)
    p['conv3_w'], p['conv3_b'] = conv_p(c, c, 3)
    p['conv5_w'], p['conv5_b'] = conv_p(c, c, 5)
    p['conv3_2_w'], p['conv3_2_b'] = conv_p(c, 2 * c, 3)
    p['conv5_2_w'], p['conv5_2_b'] = conv_p(c, 2 * c, 5)
    p['crb_w'], p['crb_b'] = conv_p(c, 3 * c, 3)
    p['bn_gamma'] = 1.0 + 0.1 * jax.random.normal(next(keys), (c,), jnp.float32)
    p['bn_beta'] = 0.1 * jax.random.normal(next(keys), (c,), jnp.float32)
    p['bn_mean'] = 0.1 * jax.random.normal(next(keys), (c,), jnp.float32)
    p['bn_var'] = jnp.abs(1.0 + 0.1 * jax.random.normal(next(keys), (c,), jnp.float32))
    return p


if __name__ == "__main__":
    C = 8                       # in_channels == out_channels (required by the forward)
    B, H, W = 2, 16, 16

    params = make_params(jax.random.PRNGKey(0), C)
    x = jax.random.normal(jax.random.PRNGKey(0), (B, C, H, W), jnp.float32)

    fwd = jax.jit(ifa_forward)
    y = fwd(x, params)
    jax.block_until_ready(y)

    y_ref = jax.jit(ifa_reference)(x, params)
    jax.block_until_ready(y_ref)

    assert y.shape == (B, C, H, W), y.shape
    assert bool(jnp.all(jnp.isfinite(y)))
    err = float(jnp.max(jnp.abs(y - y_ref)))
    ref = float(jnp.max(jnp.abs(y_ref)))
    # 3% of max|ref|: tight enough to catch tap/layout indexing regressions
    # (those produce O(1) relative errors) while tolerating MXU f32-pass rounding.
    assert err <= 3e-2 * ref + 1e-3, (err, ref)
    print("KERNEL_OK")
</pallas_src>

<mosaic_0001>
module attributes {stable_mosaic.version = 11 : i64} {
  func.func @_ifa_kernel(%arg0: i32, %arg1: memref<1x8x640xf32, #tpu.memory_space<vmem>>, %arg2: memref<8x8xf32, #tpu.memory_space<vmem>>, %arg3: memref<8x1xf32, #tpu.memory_space<vmem>>, %arg4: memref<16x200xf32, #tpu.memory_space<vmem>>, %arg5: memref<16x1xf32, #tpu.memory_space<vmem>>, %arg6: memref<16x400xf32, #tpu.memory_space<vmem>>, %arg7: memref<16x1xf32, #tpu.memory_space<vmem>>, %arg8: memref<8x216xf32, #tpu.memory_space<vmem>>, %arg9: memref<8x1xf32, #tpu.memory_space<vmem>>, %arg10: memref<8x1xf32, #tpu.memory_space<vmem>>, %arg11: memref<8x1xf32, #tpu.memory_space<vmem>>, %arg12: memref<1x640xf32, #tpu.memory_space<vmem>>, %arg13: memref<1x8x640xf32, #tpu.memory_space<vmem>>, %arg14: memref<24x1280xf32, #tpu.memory_space<vmem>>, %arg15: memref<400x640xf32, #tpu.memory_space<vmem>>) attributes {dimension_semantics = [#tpu.dimension_semantics<parallel>], iteration_bounds = array<i64: 1>, scalar_prefetch = 0 : i64, scratch_operands = 2 : i64, tpu.core_type = #tpu.core_type<tc>, window_params = [{transform_indices = @transform_0, window_bounds = array<i64: 1, 8, 640>}, {pipeline_mode = #tpu.pipeline_mode<synchronous>, transform_indices = @transform_1, window_bounds = array<i64: 8, 8>}, {pipeline_mode = #tpu.pipeline_mode<synchronous>, transform_indices = @transform_2, window_bounds = array<i64: 8, 1>}, {pipeline_mode = #tpu.pipeline_mode<synchronous>, transform_indices = @transform_3, window_bounds = array<i64: 16, 200>}, {pipeline_mode = #tpu.pipeline_mode<synchronous>, transform_indices = @transform_4, window_bounds = array<i64: 16, 1>}, {pipeline_mode = #tpu.pipeline_mode<synchronous>, transform_indices = @transform_5, window_bounds = array<i64: 16, 400>}, {pipeline_mode = #tpu.pipeline_mode<synchronous>, transform_indices = @transform_6, window_bounds = array<i64: 16, 1>}, {pipeline_mode = #tpu.pipeline_mode<synchronous>, transform_indices = @transform_7, window_bounds = array<i64: 8, 216>}, {pipeline_mode = #tpu.pipeline_mode<synchronous>, transform_indices = @transform_8, window_bounds = array<i64: 8, 1>}, {pipeline_mode = #tpu.pipeline_mode<synchronous>, transform_indices = @transform_9, window_bounds = array<i64: 8, 1>}, {pipeline_mode = #tpu.pipeline_mode<synchronous>, transform_indices = @transform_10, window_bounds = array<i64: 8, 1>}, {pipeline_mode = #tpu.pipeline_mode<synchronous>, transform_indices = @transform_11, window_bounds = array<i64: 1, 640>}, {transform_indices = @transform_12, window_bounds = array<i64: 1, 8, 640>}]} {
    %c0 = arith.constant 0 : index
    %c0_0 = arith.constant 0 : index
    %0 = vector.load %arg12[%c0, %c0_0] : memref<1x640xf32, #tpu.memory_space<vmem>>, vector<1x640xf32>
    %cst = arith.constant 0.000000e+00 : f32
    %1 = vector.broadcast %cst : f32 to vector<24x128xf32>
    %c0_1 = arith.constant 0 : index
    %c0_2 = arith.constant 0 : index
    %2 = vector.load %arg14[%c0_1, %c0_2] : memref<24x1280xf32, #tpu.memory_space<vmem>>, vector<24x128xf32>
    tpu.vector_store %arg14[%c0_1, %c0_2], %1 {strides = array<i32>} : memref<24x1280xf32, #tpu.memory_space<vmem>>, vector<24x128xf32>,
    %cst_3 = arith.constant 0.000000e+00 : f32
    %3 = vector.broadcast %cst_3 : f32 to vector<24x192xf32>
    %c0_4 = arith.constant 0 : index
    %c448 = arith.constant 448 : index
    %4 = vector.load %arg14[%c0_4, %c448] : memref<24x1280xf32, #tpu.memory_space<vmem>>, vector<24x192xf32>
    tpu.vector_store %arg14[%c0_4, %c448], %3 {strides = array<i32>} : memref<24x1280xf32, #tpu.memory_space<vmem>>, vector<24x192xf32>,
    %cst_5 = arith.constant 0.000000e+00 : f32
    %5 = vector.broadcast %cst_5 : f32 to vector<24x128xf32>
    %c0_6 = arith.constant 0 : index
    %c640 = arith.constant 640 : index
    %6 = vector.load %arg14[%c0_6, %c640] : memref<24x1280xf32, #tpu.memory_space<vmem>>, vector<24x128xf32>
    tpu.vector_store %arg14[%c0_6, %c640], %5 {strides = array<i32>} : memref<24x1280xf32, #tpu.memory_space<vmem>>, vector<24x128xf32>,
    %cst_7 = arith.constant 0.000000e+00 : f32
    %7 = vector.broadcast %cst_7 : f32 to vector<24x192xf32>
    %c0_8 = arith.constant 0 : index
    %c1088 = arith.constant 1088 : index
    %8 = vector.load %arg14[%c0_8, %c1088] : memref<24x1280xf32, #tpu.memory_space<vmem>>, vector<24x192xf32>
    tpu.vector_store %arg14[%c0_8, %c1088], %7 {strides = array<i32>} : memref<24x1280xf32, #tpu.memory_space<vmem>>, vector<24x192xf32>,
    %c0_9 = arith.constant 0 : index
    %c0_10 = arith.constant 0 : index
    %9 = vector.load %arg2[%c0_9, %c0_10] : memref<8x8xf32, #tpu.memory_space<vmem>>, vector<8x8xf32>
    %c0_11 = arith.constant 0 : index
    %c0_12 = arith.constant 0 : index
    %c0_13 = arith.constant 0 : index
    %10 = vector.load %arg1[%c0_11, %c0_12, %c0_13] : memref<1x8x640xf32, #tpu.memory_space<vmem>>, vector<1x8x640xf32>
    %11 = vector.shape_cast %10 : vector<1x8x640xf32> to vector<8x640xf32>
    %cst_14 = arith.constant dense<0.000000e+00> : vector<8x640xf32>
    %12 = tpu.matmul %9, %11, %cst_14 {dimension_numbers = #tpu.dot_dimension_numbers<[1], [0], [0], [1], [0, 0, 1, 1], [], []>} : vector<8x8xf32>, vector<8x640xf32>, vector<8x640xf32> -> vector<8x640xf32>
    %c0_15 = arith.constant 0 : index
    %c0_16 = arith.constant 0 : index
    %13 = vector.load %arg3[%c0_15, %c0_16] : memref<8x1xf32, #tpu.memory_space<vmem>>, vector<8x1xf32>
    %14 = vector.broadcast %13 : vector<8x1xf32> to vector<8x640xf32>
    %15 = arith.addf %12, %14 : vector<8x640xf32>
    %16 = vector.broadcast %0 : vector<1x640xf32> to vector<8x640xf32>
    %17 = arith.mulf %15, %16 : vector<8x640xf32>
    %18 = vector.extract_strided_slice %17 {offsets = [0, 0], sizes = [8, 320], strides = [1, 1]} : vector<8x640xf32> to vector<8x320xf32>
    %c0_17 = arith.constant 0 : index
    %c128 = arith.constant 128 : index
    %19 = vector.load %arg14[%c0_17, %c128] : memref<24x1280xf32, #tpu.memory_space<vmem>>, vector<8x320xf32>
    tpu.vector_store %arg14[%c0_17, %c128], %18 {strides = array<i32>} : memref<24x1280xf32, #tpu.memory_space<vmem>>, vector<8x320xf32>,
    %20 = vector.extract_strided_slice %17 {offsets = [0, 320], sizes = [8, 320], strides = [1, 1]} : vector<8x640xf32> to vector<8x320xf32>
    %c0_18 = arith.constant 0 : index
    %c768 = arith.constant 768 : index
    %21 = vector.load %arg14[%c0_18, %c768] : memref<24x1280xf32, #tpu.memory_space<vmem>>, vector<8x320xf32>
    tpu.vector_store %arg14[%c0_18, %c768], %20 {strides = array<i32>} : memref<24x1280xf32, #tpu.memory_space<vmem>>, vector<8x320xf32>,
    %c0_19 = arith.constant 0 : index
    %c86 = arith.constant 86 : index
    %22 = vector.load %arg14[%c0_19, %c86] : memref<24x1280xf32, #tpu.memory_space<vmem>>, vector<8x320xf32>
    %c0_20 = arith.constant 0 : index
    %c0_21 = arith.constant 0 : index
    %23 = vector.load %arg15[%c0_20, %c0_21] : memref<400x640xf32, #tpu.memory_space<vmem>>, vector<8x320xf32>
    tpu.vector_store %arg15[%c0_20, %c0_21], %22 {strides = array<i32>} : memref<400x640xf32, #tpu.memory_space<vmem>>, vector<8x320xf32>,
    %c0_22 = arith.constant 0 : index
    %c726 = arith.constant 726 : index
    %24 = vector.load %arg14[%c0_22, %c726] : memref<24x1280xf32, #tpu.memory_space<vmem>>, vector<8x320xf32>
    %c0_23 = arith.constant 0 : index
    %c320 = arith.constant 320 : index
    %25 = vector.load %arg15[%c0_23, %c320] : memref<400x640xf32, #tpu.memory_space<vmem>>, vector<8x320xf32>
    tpu.vector_store %arg15[%c0_23, %c320], %24 {strides = array<i32>} : memref<400x640xf32, #tpu.memory_space<vmem>>, vector<8x320xf32>,
    %c0_24 = arith.constant 0 : index
    %c87 = arith.constant 87 : index
    %26 = vector.load %arg14[%c0_24, %c87] : memref<24x1280xf32, #tpu.memory_space<vmem>>, vector<8x320xf32>
    %c8 = arith.constant 8 : index
    %c0_25 = arith.constant 0 : index
    %27 = vector.load %arg15[%c8, %c0_25] : memref<400x640xf32, #tpu.memory_space<vmem>>, vector<8x320xf32>
    tpu.vector_store %arg15[%c8, %c0_25], %26 {strides = array<i32>} : memref<400x640xf32, #tpu.memory_space<vmem>>, vector<8x320xf32>,
    %c0_26 = arith.constant 0 : index
    %c727 = arith.constant 727 : index
    %28 = vector.load %arg14[%c0_26, %c727] : memref<24x1280xf32, #tpu.memory_space<vmem>>, vector<8x320xf32>
    %c8_27 = arith.constant 8 : index
    %c320_28 = arith.constant 320 : index
    %29 = vector.load %arg15[%c8_27, %c320_28] : memref<400x640xf32, #tpu.memory_space<vmem>>, vector<8x320xf32>
    tpu.vector_store %arg15[%c8_27, %c320_28], %28 {strides = array<i32>} : memref<400x640xf32, #tpu.memory_space<vmem>>, vector<8x320xf32>,
    %c0_29 = arith.constant 0 : index
    %c88 = arith.constant 88 : index
    %30 = vector.load %arg14[%c0_29, %c88] : memref<24x1280xf32, #tpu.memory_space<vmem>>, vector<8x320xf32>
    %c16 = arith.constant 16 : index
    %c0_30 = arith.constant 0 : index
    %31 = vector.load %arg15[%c16, %c0_30] : memref<400x640xf32, #tpu.memory_space<vmem>>, vector<8x320xf32>
    tpu.vector_store %arg15[%c16, %c0_30], %30 {strides = array<i32>} : memref<400x640xf32, #tpu.memory_space<vmem>>, vector<8x320xf32>,
    %c0_31 = arith.constant 0 : index
    %c728 = arith.constant 728 : index
    %32 = vector.load %arg14[%c0_31, %c728] : memref<24x1280xf32, #tpu.memory_space<vmem>>, vector<8x320xf32>
    %c16_32 = arith.constant 16 : index
    %c320_33 = arith.constant 320 : index
    %33 = vector.load %arg15[%c16_32, %c320_33] : memref<400x640xf32, #tpu.memory_space<vmem>>, vector<8x320xf32>
    tpu.vector_store %arg15[%c16_32, %c320_33], %32 {strides = array<i32>} : memref<400x640xf32, #tpu.memory_space<vmem>>, vector<8x320xf32>,
    %c0_34 = arith.constant 0 : index
    %c89 = arith.constant 89 : index
    %34 = vector.load %arg14[%c0_34, %c89] : memref<24x1280xf32, #tpu.memory_space<vmem>>, vector<8x320xf32>
    %c24 = arith.constant 24 : index
    %c0_35 = arith.constant 0 : index
    %35 = vector.load %arg15[%c24, %c0_35] : memref<400x640xf32, #tpu.memory_space<vmem>>, vector<8x320xf32>
    tpu.vector_store %arg15[%c24, %c0_35], %34 {strides = array<i32>} : memref<400x640xf32, #tpu.memory_space<vmem>>, vector<8x320xf32>,
    %c0_36 = arith.constant 0 : index
    %c729 = arith.constant 729 : index
    %36 = vector.load %arg14[%c0_36, %c729] : memref<24x1280xf32, #tpu.memory_space<vmem>>, vector<8x320xf32>
    %c24_37 = arith.constant 24 : index
    %c320_38 = arith.constant 320 : index
    %37 = vector.load %arg15[%c24_37, %c320_38] : memref<400x640xf32, #tpu.memory_space<vmem>>, vector<8x320xf32>
    tpu.vector_store %arg15[%c24_37, %c320_38], %36 {strides = array<i32>} : memref<400x640xf32, #tpu.memory_space<vmem>>, vector<8x320xf32>,
    %c0_39 = arith.constant 0 : index
    %c90 = arith.constant 90 : index
    %38 = vector.load %arg14[%c0_39, %c90] : memref<24x1280xf32, #tpu.memory_space<vmem>>, vector<8x320xf32>
    %c32 = arith.constant 32 : index
    %c0_40 = arith.constant 0 : index
    %39 = vector.load %arg15[%c32, %c0_40] : memref<400x640xf32, #tpu.memory_space<vmem>>, vector<8x320xf32>
    tpu.vector_store %arg15[%c32, %c0_40], %38 {strides = array<i32>} : memref<400x640xf32, #tpu.memory_space<vmem>>, vector<8x320xf32>,
    %c0_41 = arith.constant 0 : index
    %c730 = arith.constant 730 : index
    %40 = vector.load %arg14[%c0_41, %c730] : memref<24x1280xf32, #tpu.memory_space<vmem>>, vector<8x320xf32>
    %c32_42 = arith.constant 32 : index
    %c320_43 = arith.constant 320 : index
    %41 = vector.load %arg15[%c32_42, %c320_43] : memref<400x640xf32, #tpu.memory_space<vmem>>, vector<8x320xf32>
    tpu.vector_store %arg15[%c32_42, %c320_43], %40 {strides = array<i32>} : memref<400x640xf32, #tpu.memory_space<vmem>>, vector<8x320xf32>,
    %c0_44 = arith.constant 0 : index
    %c106 = arith.constant 106 : index
    %42 = vector.load %arg14[%c0_44, %c106] : memref<24x1280xf32, #tpu.memory_space<vmem>>, vector<8x320xf32>
    %c40 = arith.constant 40 : index
    %c0_45 = arith.constant 0 : index
    %43 = vector.load %arg15[%c40, %c0_45] : memref<400x640xf32, #tpu.memory_space<vmem>>, vector<8x320xf32>
    tpu.vector_store %arg15[%c40, %c0_45], %42 {strides = array<i32>} : memref<400x640xf32, #tpu.memory_space<vmem>>, vector<8x320xf32>,
    %c0_46 = arith.constant 0 : index
    %c746 = arith.constant 746 : index
    %44 = vector.load %arg14[%c0_46, %c746] : memref<24x1280xf32, #tpu.memory_space<vmem>>, vector<8x320xf32>
    %c40_47 = arith.constant 40 : index
    %c320_48 = arith.constant 320 : index
    %45 = vector.load %arg15[%c40_47, %c320_48] : memref<400x640xf32, #tpu.memory_space<vmem>>, vector<8x320xf32>
    tpu.vector_store %arg15[%c40_47, %c320_48], %44 {strides = array<i32>} : memref<400x640xf32, #tpu.memory_space<vmem>>, vector<8x320xf32>,
    %c0_49 = arith.constant 0 : index
    %c107 = arith.constant 107 : index
    %46 = vector.load %arg14[%c0_49, %c107] : memref<24x1280xf32, #tpu.memory_space<vmem>>, vector<8x320xf32>
    %c48 = arith.constant 48 : index
    %c0_50 = arith.constant 0 : index
    %47 = vector.load %arg15[%c48, %c0_50] : memref<400x640xf32, #tpu.memory_space<vmem>>, vector<8x320xf32>
    tpu.vector_store %arg15[%c48, %c0_50], %46 {strides = array<i32>} : memref<400x640xf32, #tpu.memory_space<vmem>>, vector<8x320xf32>,
    %c0_51 = arith.constant 0 : index
    %c747 = arith.constant 747 : index
    %48 = vector.load %arg14[%c0_51, %c747] : memref<24x1280xf32, #tpu.memory_space<vmem>>, vector<8x320xf32>
    %c48_52 = arith.constant 48 : index
    %c320_53 = arith.constant 320 : index
    %49 = vector.load %arg15[%c48_52, %c320_53] : memref<400x640xf32, #tpu.memory_space<vmem>>, vector<8x320xf32>
    tpu.vector_store %arg15[%c48_52, %c320_53], %48 {strides = array<i32>} : memref<400x640xf32, #tpu.memory_space<vmem>>, vector<8x320xf32>,
    %c0_54 = arith.constant 0 : index
    %c108 = arith.constant 108 : index
    %50 = vector.load %arg14[%c0_54, %c108] : memref<24x1280xf32, #tpu.memory_space<vmem>>, vector<8x320xf32>
    %c56 = arith.constant 56 : index
    %c0_55 = arith.constant 0 : index
    %51 = vector.load %arg15[%c56, %c0_55] : memref<400x640xf32, #tpu.memory_space<vmem>>, vector<8x320xf32>
    tpu.vector_store %arg15[%c56, %c0_55], %50 {strides = array<i32>} : memref<400x640xf32, #tpu.memory_space<vmem>>, vector<8x320xf32>,
    %c0_56 = arith.constant 0 : index
    %c748 = arith.constant 748 : index
    %52 = vector.load %arg14[%c0_56, %c748] : memref<24x1280xf32, #tpu.memory_space<vmem>>, vector<8x320xf32>
    %c56_57 = arith.constant 56 : index
    %c320_58 = arith.constant 320 : index
    %53 = vector.load %arg15[%c56_57, %c320_58] : memref<400x640xf32, #tpu.memory_space<vmem>>, vector<8x320xf32>
    tpu.vector_store %arg15[%c56_57, %c320_58], %52 {strides = array<i32>} : memref<400x640xf32, #tpu.memory_space<vmem>>, vector<8x320xf32>,
    %c0_59 = arith.constant 0 : index
    %c109 = arith.constant 109 : index
    %54 = vector.load %arg14[%c0_59, %c109] : memref<24x1280xf32, #tpu.memory_space<vmem>>, vector<8x320xf32>
    %c64 = arith.constant 64 : index
    %c0_60 = arith.constant 0 : index
    %55 = vector.load %arg15[%c64, %c0_60] : memref<400x640xf32, #tpu.memory_space<vmem>>, vector<8x320xf32>
    tpu.vector_store %arg15[%c64, %c0_60], %54 {strides = array<i32>} : memref<400x640xf32, #tpu.memory_space<vmem>>, vector<8x320xf32>,
    %c0_61 = arith.constant 0 : index
    %c749 = arith.constant 749 : index
    %56 = vector.load %arg14[%c0_61, %c749] : memref<24x1280xf32, #tpu.memory_space<vmem>>, vector<8x320xf32>
    %c64_62 = arith.constant 64 : index
    %c320_63 = arith.constant 320 : index
    %57 = vector.load %arg15[%c64_62, %c320_63] : memref<400x640xf32, #tpu.memory_space<vmem>>, vector<8x320xf32>
    tpu.vector_store %arg15[%c64_62, %c320_63], %56 {strides = array<i32>} : memref<400x640xf32, #tpu.memory_space<vmem>>, vector<8x320xf32>,
    %c0_64 = arith.constant 0 : index
    %c110 = arith.constant 110 : index
    %58 = vector.load %arg14[%c0_64, %c110] : memref<24x1280xf32, #tpu.memory_space<vmem>>, vector<8x320xf32>
    %c72 = arith.constant 72 : index
    %c0_65 = arith.constant 0 : index
    %59 = vector.load %arg15[%c72, %c0_65] : memref<400x640xf32, #tpu.memory_space<vmem>>, vector<8x320xf32>
    tpu.vector_store %arg15[%c72, %c0_65], %58 {strides = array<i32>} : memref<400x640xf32, #tpu.memory_space<vmem>>, vector<8x320xf32>,
    %c0_66 = arith.constant 0 : index
    %c750 = arith.constant 750 : index
    %60 = vector.load %arg14[%c0_66, %c750] : memref<24x1280xf32, #tpu.memory_space<vmem>>, vector<8x320xf32>
    %c72_67 = arith.constant 72 : index
    %c320_68 = arith.constant 320 : index
    %61 = vector.load %arg15[%c72_67, %c320_68] : memref<400x640xf32, #tpu.memory_space<vmem>>, vector<8x320xf32>
    tpu.vector_store %arg15[%c72_67, %c320_68], %60 {strides = array<i32>} : memref<400x640xf32, #tpu.memory_space<vmem>>, vector<8x320xf32>,
    %c0_69 = arith.constant 0 : index
    %c126 = arith.constant 126 : index
    %62 = vector.load %arg14[%c0_69, %c126] : memref<24x1280xf32, #tpu.memory_space<vmem>>, vector<8x320xf32>
    %c80 = arith.constant 80 : index
    %c0_70 = arith.constant 0 : index
    %63 = vector.load %arg15[%c80, %c0_70] : memref<400x640xf32, #tpu.memory_space<vmem>>, vector<8x320xf32>
    tpu.vector_store %arg15[%c80, %c0_70], %62 {strides = array<i32>} : memref<400x640xf32, #tpu.memory_space<vmem>>, vector<8x320xf32>,
    %c0_71 = arith.constant 0 : index
    %c766 = arith.constant 766 : index
    %64 = vector.load %arg14[%c0_71, %c766] : memref<24x1280xf32, #tpu.memory_space<vmem>>, vector<8x320xf32>
    %c80_72 = arith.constant 80 : index
    %c320_73 = arith.constant 320 : index
    %65 = vector.load %arg15[%c80_72, %c320_73] : memref<400x640xf32, #tpu.memory_space<vmem>>, vector<8x320xf32>
    tpu.vector_store %arg15[%c80_72, %c320_73], %64 {strides = array<i32>} : memref<400x640xf32, #tpu.memory_space<vmem>>, vector<8x320xf32>,
    %c0_74 = arith.constant 0 : index
    %c127 = arith.constant 127 : index
    %66 = vector.load %arg14[%c0_74, %c127] : memref<24x1280xf32, #tpu.memory_space<vmem>>, vector<8x320xf32>
    %c88_75 = arith.constant 88 : index
    %c0_76 = arith.constant 0 : index
    %67 = vector.load %arg15[%c88_75, %c0_76] : memref<400x640xf32, #tpu.memory_space<vmem>>, vector<8x320xf32>
    tpu.vector_store %arg15[%c88_75, %c0_76], %66 {strides = array<i32>} : memref<400x640xf32, #tpu.memory_space<vmem>>, vector<8x320xf32>,
    %c0_77 = arith.constant 0 : index
    %c767 = arith.constant 767 : index
    %68 = vector.load %arg14[%c0_77, %c767] : memref<24x1280xf32, #tpu.memory_space<vmem>>, vector<8x320xf32>
    %c88_78 = arith.constant 88 : index
    %c320_79 = arith.constant 320 : index
    %69 = vector.load %arg15[%c88_78, %c320_79] : memref<400x640xf32, #tpu.memory_space<vmem>>, vector<8x320xf32>
    tpu.vector_store %arg15[%c88_78, %c320_79], %68 {strides = array<i32>} : memref<400x640xf32, #tpu.memory_space<vmem>>, vector<8x320xf32>,
    %c0_80 = arith.constant 0 : index
    %c128_81 = arith.constant 128 : index
    %70 = vector.load %arg14[%c0_80, %c128_81] : memref<24x1280xf32, #tpu.memory_space<vmem>>, vector<8x320xf32>
    %c96 = arith.constant 96 : index
    %c0_82 = arith.constant 0 : index
    %71 = vector.load %arg15[%c96, %c0_82] : memref<400x640xf32, #tpu.memory_space<vmem>>, vector<8x320xf32>
    tpu.vector_store %arg15[%c96, %c0_82], %70 {strides = array<i32>} : memref<400x640xf32, #tpu.memory_space<vmem>>, vector<8x320xf32>,
    %c0_83 = arith.constant 0 : index
    %c768_84 = arith.constant 768 : index
    %72 = vector.load %arg14[%c0_83, %c768_84] : memref<24x1280xf32, #tpu.memory_space<vmem>>, vector<8x320xf32>
    %c96_85 = arith.constant 96 : index
    %c320_86 = arith.constant 320 : index
    %73 = vector.load %arg15[%c96_85, %c320_86] : memref<400x640xf32, #tpu.memory_space<vmem>>, vector<8x320xf32>
    tpu.vector_store %arg15[%c96_85, %c320_86], %72 {strides = array<i32>} : memref<400x640xf32, #tpu.memory_space<vmem>>, vector<8x320xf32>,
    %c0_87 = arith.constant 0 : index
    %c129 = arith.constant 129 : index
    %74 = vector.load %arg14[%c0_87, %c129] : memref<24x1280xf32, #tpu.memory_space<vmem>>, vector<8x320xf32>
    %c104 = arith.constant 104 : index
    %c0_88 = arith.constant 0 : index
    %75 = vector.load %arg15[%c104, %c0_88] : memref<400x640xf32, #tpu.memory_space<vmem>>, vector<8x320xf32>
    tpu.vector_store %arg15[%c104, %c0_88], %74 {strides = array<i32>} : memref<400x640xf32, #tpu.memory_space<vmem>>, vector<8x320xf32>,
    %c0_89 = arith.constant 0 : index
    %c769 = arith.constant 769 : index
    %76 = vector.load %arg14[%c0_89, %c769] : memref<24x1280xf32, #tpu.memory_space<vmem>>, vector<8x320xf32>
    %c104_90 = arith.constant 104 : index
    %c320_91 = arith.constant 320 : index
    %77 = vector.load %arg15[%c104_90, %c320_91] : memref<400x640xf32, #tpu.memory_space<vmem>>, vector<8x320xf32>
    tpu.vector_store %arg15[%c104_90, %c320_91], %76 {strides = array<i32>} : memref<400x640xf32, #tpu.memory_space<vmem>>, vector<8x320xf32>,
    %c0_92 = arith.constant 0 : index
    %c130 = arith.constant 130 : index
    %78 = vector.load %arg14[%c0_92, %c130] : memref<24x1280xf32, #tpu.memory_space<vmem>>, vector<8x320xf32>
    %c112 = arith.constant 112 : index
    %c0_93 = arith.constant 0 : index
    %79 = vector.load %arg15[%c112, %c0_93] : memref<400x640xf32, #tpu.memory_space<vmem>>, vector<8x320xf32>
    tpu.vector_store %arg15[%c112, %c0_93], %78 {strides = array<i32>} : memref<400x640xf32, #tpu.memory_space<vmem>>, vector<8x320xf32>,
    %c0_94 = arith.constant 0 : index
    %c770 = arith.constant 770 : index
    %80 = vector.load %arg14[%c0_94, %c770] : memref<24x1280xf32, #tpu.memory_space<vmem>>, vector<8x320xf32>
    %c112_95 = arith.constant 112 : index
    %c320_96 = arith.constant 320 : index
    %81 = vector.load %arg15[%c112_95, %c320_96] : memref<400x640xf32, #tpu.memory_space<vmem>>, vector<8x320xf32>
    tpu.vector_store %arg15[%c112_95, %c320_96], %80 {strides = array<i32>} : memref<400x640xf32, #tpu.memory_space<vmem>>, vector<8x320xf32>,
    %c0_97 = arith.constant 0 : index
    %c146 = arith.constant 146 : index
    %82 = vector.load %arg14[%c0_97, %c146] : memref<24x1280xf32, #tpu.memory_space<vmem>>, vector<8x320xf32>
    %c120 = arith.constant 120 : index
    %c0_98 = arith.constant 0 : index
    %83 = vector.load %arg15[%c120, %c0_98] : memref<400x640xf32, #tpu.memory_space<vmem>>, vector<8x320xf32>
    tpu.vector_store %arg15[%c120, %c0_98], %82 {strides = array<i32>} : memref<400x640xf32, #tpu.memory_space<vmem>>, vector<8x320xf32>,
    %c0_99 = arith.constant 0 : index
    %c786 = arith.constant 786 : index
    %84 = vector.load %arg14[%c0_99, %c786] : memref<24x1280xf32, #tpu.memory_space<vmem>>, vector<8x320xf32>
    %c120_100 = arith.constant 120 : index
    %c320_101 = arith.constant 320 : index
    %85 = vector.load %arg15[%c120_100, %c320_101] : memref<400x640xf32, #tpu.memory_space<vmem>>, vector<8x320xf32>
    tpu.vector_store %arg15[%c120_100, %c320_101], %84 {strides = array<i32>} : memref<400x640xf32, #tpu.memory_space<vmem>>, vector<8x320xf32>,
    %c0_102 = arith.constant 0 : index
    %c147 = arith.constant 147 : index
    %86 = vector.load %arg14[%c0_102, %c147] : memref<24x1280xf32, #tpu.memory_space<vmem>>, vector<8x320xf32>
    %c128_103 = arith.constant 128 : index
    %c0_104 = arith.constant 0 : index
    %87 = vector.load %arg15[%c128_103, %c0_104] : memref<400x640xf32, #tpu.memory_space<vmem>>, vector<8x320xf32>
    tpu.vector_store %arg15[%c128_103, %c0_104], %86 {strides = array<i32>} : memref<400x640xf32, #tpu.memory_space<vmem>>, vector<8x320xf32>,
    %c0_105 = arith.constant 0 : index
    %c787 = arith.constant 787 : index
    %88 = vector.load %arg14[%c0_105, %c787] : memref<24x1280xf32, #tpu.memory_space<vmem>>, vector<8x320xf32>
    %c128_106 = arith.constant 128 : index
    %c320_107 = arith.constant 320 : index
    %89 = vector.load %arg15[%c128_106, %c320_107] : memref<400x640xf32, #tpu.memory_space<vmem>>, vector<8x320xf32>
    tpu.vector_store %arg15[%c128_106, %c320_107], %88 {strides = array<i32>} : memref<400x640xf32, #tpu.memory_space<vmem>>, vector<8x320xf32>,
    %c0_108 = arith.constant 0 : index
    %c148 = arith.constant 148 : index
    %90 = vector.load %arg14[%c0_108, %c148] : memref<24x1280xf32, #tpu.memory_space<vmem>>, vector<8x320xf32>
    %c136 = arith.constant 136 : index
    %c0_109 = arith.constant 0 : index
    %91 = vector.load %arg15[%c136, %c0_109] : memref<400x640xf32, #tpu.memory_space<vmem>>, vector<8x320xf32>
    tpu.vector_store %arg15[%c136, %c0_109], %90 {strides = array<i32>} : memref<400x640xf32, #tpu.memory_space<vmem>>, vector<8x320xf32>,
    %c0_110 = arith.constant 0 : index
    %c788 = arith.constant 788 : index
    %92 = vector.load %arg14[%c0_110, %c788] : memref<24x1280xf32, #tpu.memory_space<vmem>>, vector<8x320xf32>
    %c136_111 = arith.constant 136 : index
    %c320_112 = arith.constant 320 : index
    %93 = vector.load %arg15[%c136_111, %c320_112] : memref<400x640xf32, #tpu.memory_space<vmem>>, vector<8x320xf32>
    tpu.vector_store %arg15[%c136_111, %c320_112], %92 {strides = array<i32>} : memref<400x640xf32, #tpu.memory_space<vmem>>, vector<8x320xf32>,
    %c0_113 = arith.constant 0 : index
    %c149 = arith.constant 149 : index
    %94 = vector.load %arg14[%c0_113, %c149] : memref<24x1280xf32, #tpu.memory_space<vmem>>, vector<8x320xf32>
    %c144 = arith.constant 144 : index
    %c0_114 = arith.constant 0 : index
    %95 = vector.load %arg15[%c144, %c0_114] : memref<400x640xf32, #tpu.memory_space<vmem>>, vector<8x320xf32>
    tpu.vector_store %arg15[%c144, %c0_114], %94 {strides = array<i32>} : memref<400x640xf32, #tpu.memory_space<vmem>>, vector<8x320xf32>,
    %c0_115 = arith.constant 0 : index
    %c789 = arith.constant 789 : index
    %96 = vector.load %arg14[%c0_115, %c789] : memref<24x1280xf32, #tpu.memory_space<vmem>>, vector<8x320xf32>
    %c144_116 = arith.constant 144 : index
    %c320_117 = arith.constant 320 : index
    %97 = vector.load %arg15[%c144_116, %c320_117] : memref<400x640xf32, #tpu.memory_space<vmem>>, vector<8x320xf32>
    tpu.vector_store %arg15[%c144_116, %c320_117], %96 {strides = array<i32>} : memref<400x640xf32, #tpu.memory_space<vmem>>, vector<8x320xf32>,
    %c0_118 = arith.constant 0 : index
    %c150 = arith.constant 150 : index
    %98 = vector.load %arg14[%c0_118, %c150] : memref<24x1280xf32, #tpu.memory_space<vmem>>, vector<8x320xf32>
    %c152 = arith.constant 152 : index
    %c0_119 = arith.constant 0 : index
    %99 = vector.load %arg15[%c152, %c0_119] : memref<400x640xf32, #tpu.memory_space<vmem>>, vector<8x320xf32>
    tpu.vector_store %arg15[%c152, %c0_119], %98 {strides = array<i32>} : memref<400x640xf32, #tpu.memory_space<vmem>>, vector<8x320xf32>,
    %c0_120 = arith.constant 0 : index
    %c790 = arith.constant 790 : index
    %100 = vector.load %arg14[%c0_120, %c790] : memref<24x1280xf32, #tpu.memory_space<vmem>>, vector<8x320xf32>
    %c152_121 = arith.constant 152 : index
    %c320_122 = arith.constant 320 : index
    %101 = vector.load %arg15[%c152_121, %c320_122] : memref<400x640xf32, #tpu.memory_space<vmem>>, vector<8x320xf32>
    tpu.vector_store %arg15[%c152_121, %c320_122], %100 {strides = array<i32>} : memref<400x640xf32, #tpu.memory_space<vmem>>, vector<8x320xf32>,
    %c0_123 = arith.constant 0 : index
    %c166 = arith.constant 166 : index
    %102 = vector.load %arg14[%c0_123, %c166] : memref<24x1280xf32, #tpu.memory_space<vmem>>, vector<8x320xf32>
    %c160 = arith.constant 160 : index
    %c0_124 = arith.constant 0 : index
    %103 = vector.load %arg15[%c160, %c0_124] : memref<400x640xf32, #tpu.memory_space<vmem>>, vector<8x320xf32>
    tpu.vector_store %arg15[%c160, %c0_124], %102 {strides = array<i32>} : memref<400x640xf32, #tpu.memory_space<vmem>>, vector<8x320xf32>,
    %c0_125 = arith.constant 0 : index
    %c806 = arith.constant 806 : index
    %104 = vector.load %arg14[%c0_125, %c806] : memref<24x1280xf32, #tpu.memory_space<vmem>>, vector<8x320xf32>
    %c160_126 = arith.constant 160 : index
    %c320_127 = arith.constant 320 : index
    %105 = vector.load %arg15[%c160_126, %c320_127] : memref<400x640xf32, #tpu.memory_space<vmem>>, vector<8x320xf32>
    tpu.vector_store %arg15[%c160_126, %c320_127], %104 {strides = array<i32>} : memref<400x640xf32, #tpu.memory_space<vmem>>, vector<8x320xf32>,
    %c0_128 = arith.constant 0 : index
    %c167 = arith.constant 167 : index
    %106 = vector.load %arg14[%c0_128, %c167] : memref<24x1280xf32, #tpu.memory_space<vmem>>, vector<8x320xf32>
    %c168 = arith.constant 168 : index
    %c0_129 = arith.constant 0 : index
    %107 = vector.load %arg15[%c168, %c0_129] : memref<400x640xf32, #tpu.memory_space<vmem>>, vector<8x320xf32>
    tpu.vector_store %arg15[%c168, %c0_129], %106 {strides = array<i32>} : memref<400x640xf32, #tpu.memory_space<vmem>>, vector<8x320xf32>,
    %c0_130 = arith.constant 0 : index
    %c807 = arith.constant 807 : index
    %108 = vector.load %arg14[%c0_130, %c807] : memref<24x1280xf32, #tpu.memory_space<vmem>>, vector<8x320xf32>
    %c168_131 = arith.constant 168 : index
    %c320_132 = arith.constant 320 : index
    %109 = vector.load %arg15[%c168_131, %c320_132] : memref<400x640xf32, #tpu.memory_space<vmem>>, vector<8x320xf32>
    tpu.vector_store %arg15[%c168_131, %c320_132], %108 {strides = array<i32>} : memref<400x640xf32, #tpu.memory_space<vmem>>, vector<8x320xf32>,
    %c0_133 = arith.constant 0 : index
    %c168_134 = arith.constant 168 : index
    %110 = vector.load %arg14[%c0_133, %c168_134] : memref<24x1280xf32, #tpu.memory_space<vmem>>, vector<8x320xf32>
    %c176 = arith.constant 176 : index
    %c0_135 = arith.constant 0 : index
    %111 = vector.load %arg15[%c176, %c0_135] : memref<400x640xf32, #tpu.memory_space<vmem>>, vector<8x320xf32>
    tpu.vector_store %arg15[%c176, %c0_135], %110 {strides = array<i32>} : memref<400x640xf32, #tpu.memory_space<vmem>>, vector<8x320xf32>,
    %c0_136 = arith.constant 0 : index
    %c808 = arith.constant 808 : index
    %112 = vector.load %arg14[%c0_136, %c808] : memref<24x1280xf32, #tpu.memory_space<vmem>>, vector<8x320xf32>
    %c176_137 = arith.constant 176 : index
    %c320_138 = arith.constant 320 : index
    %113 = vector.load %arg15[%c176_137, %c320_138] : memref<400x640xf32, #tpu.memory_space<vmem>>, vector<8x320xf32>
    tpu.vector_store %arg15[%c176_137, %c320_138], %112 {strides = array<i32>} : memref<400x640xf32, #tpu.memory_space<vmem>>, vector<8x320xf32>,
    %c0_139 = arith.constant 0 : index
    %c169 = arith.constant 169 : index
    %114 = vector.load %arg14[%c0_139, %c169] : memref<24x1280xf32, #tpu.memory_space<vmem>>, vector<8x320xf32>
    %c184 = arith.constant 184 : index
    %c0_140 = arith.constant 0 : index
    %115 = vector.load %arg15[%c184, %c0_140] : memref<400x640xf32, #tpu.memory_space<vmem>>, vector<8x320xf32>
    tpu.vector_store %arg15[%c184, %c0_140], %114 {strides = array<i32>} : memref<400x640xf32, #tpu.memory_space<vmem>>, vector<8x320xf32>,
    %c0_141 = arith.constant 0 : index
    %c809 = arith.constant 809 : index
    %116 = vector.load %arg14[%c0_141, %c809] : memref<24x1280xf32, #tpu.memory_space<vmem>>, vector<8x320xf32>
    %c184_142 = arith.constant 184 : index
    %c320_143 = arith.constant 320 : index
    %117 = vector.load %arg15[%c184_142, %c320_143] : memref<400x640xf32, #tpu.memory_space<vmem>>, vector<8x320xf32>
    tpu.vector_store %arg15[%c184_142, %c320_143], %116 {strides = array<i32>} : memref<400x640xf32, #tpu.memory_space<vmem>>, vector<8x320xf32>,
    %c0_144 = arith.constant 0 : index
    %c170 = arith.constant 170 : index
    %118 = vector.load %arg14[%c0_144, %c170] : memref<24x1280xf32, #tpu.memory_space<vmem>>, vector<8x320xf32>
    %c192 = arith.constant 192 : index
    %c0_145 = arith.constant 0 : index
    %119 = vector.load %arg15[%c192, %c0_145] : memref<400x640xf32, #tpu.memory_space<vmem>>, vector<8x320xf32>
    tpu.vector_store %arg15[%c192, %c0_145], %118 {strides = array<i32>} : memref<400x640xf32, #tpu.memory_space<vmem>>, vector<8x320xf32>,
    %c0_146 = arith.constant 0 : index
    %c810 = arith.constant 810 : index
    %120 = vector.load %arg14[%c0_146, %c810] : memref<24x1280xf32, #tpu.memory_space<vmem>>, vector<8x320xf32>
    %c192_147 = arith.constant 192 : index
    %c320_148 = arith.constant 320 : index
    %121 = vector.load %arg15[%c192_147, %c320_148] : memref<400x640xf32, #tpu.memory_space<vmem>>, vector<8x320xf32>
    tpu.vector_store %arg15[%c192_147, %c320_148], %120 {strides = array<i32>} : memref<400x640xf32, #tpu.memory_space<vmem>>, vector<8x320xf32>,
    %c0_149 = arith.constant 0 : index
    %c0_150 = arith.constant 0 : index
    %122 = vector.load %arg4[%c0_149, %c0_150] : memref<16x200xf32, #tpu.memory_space<vmem>>, vector<16x200xf32>
    %c0_151 = arith.constant 0 : index
    %c0_152 = arith.constant 0 : index
    %123 = vector.load %arg15[%c0_151, %c0_152] : memref<400x640xf32, #tpu.memory_space<vmem>>, vector<200x640xf32>
    %cst_153 = arith.constant dense<0.000000e+00> : vector<16x640xf32>
    %124 = tpu.matmul %122, %123, %cst_153 {dimension_numbers = #tpu.dot_dimension_numbers<[1], [0], [0], [1], [0, 0, 1, 1], [], []>} : vector<16x200xf32>, vector<200x640xf32>, vector<16x640xf32> -> vector<16x640xf32>
    %c0_154 = arith.constant 0 : index
    %c0_155 = arith.constant 0 : index
    %125 = vector.load %arg5[%c0_154, %c0_155] : memref<16x1xf32, #tpu.memory_space<vmem>>, vector<16x1xf32>
    %126 = vector.broadcast %125 : vector<16x1xf32> to vector<16x640xf32>
    %127 = arith.addf %124, %126 : vector<16x640xf32>
    %128 = vector.broadcast %0 : vector<1x640xf32> to vector<16x640xf32>
    %129 = arith.mulf %127, %128 : vector<16x640xf32>
    %130 = vector.extract_strided_slice %129 {offsets = [0, 0], sizes = [16, 320], strides = [1, 1]} : vector<16x640xf32> to vector<16x320xf32>
    %c0_156 = arith.constant 0 : index
    %c128_157 = arith.constant 128 : index
    %131 = vector.load %arg14[%c0_156, %c128_157] : memref<24x1280xf32, #tpu.memory_space<vmem>>, vector<16x320xf32>
    tpu.vector_store %arg14[%c0_156, %c128_157], %130 {strides = array<i32>} : memref<24x1280xf32, #tpu.memory_space<vmem>>, vector<16x320xf32>,
    %132 = vector.extract_strided_slice %129 {offsets = [0, 320], sizes = [16, 320], strides = [1, 1]} : vector<16x640xf32> to vector<16x320xf32>
    %c0_158 = arith.constant 0 : index
    %c768_159 = arith.constant 768 : index
    %133 = vector.load %arg14[%c0_158, %c768_159] : memref<24x1280xf32, #tpu.memory_space<vmem>>, vector<16x320xf32>
    tpu.vector_store %arg14[%c0_158, %c768_159], %132 {strides = array<i32>} : memref<24x1280xf32, #tpu.memory_space<vmem>>, vector<16x320xf32>,
    %c0_160 = arith.constant 0 : index
    %c86_161 = arith.constant 86 : index
    %134 = vector.load %arg14[%c0_160, %c86_161] : memref<24x1280xf32, #tpu.memory_space<vmem>>, vector<16x320xf32>
    %c0_162 = arith.constant 0 : index
    %c0_163 = arith.constant 0 : index
    %135 = vector.load %arg15[%c0_162, %c0_163] : memref<400x640xf32, #tpu.memory_space<vmem>>, vector<16x320xf32>
    tpu.vector_store %arg15[%c0_162, %c0_163], %134 {strides = array<i32>} : memref<400x640xf32, #tpu.memory_space<vmem>>, vector<16x320xf32>,
    %c0_164 = arith.constant 0 : index
    %c726_165 = arith.constant 726 : index
    %136 = vector.load %arg14[%c0_164, %c726_165] : memref<24x1280xf32, #tpu.memory_space<vmem>>, vector<16x320xf32>
    %c0_166 = arith.constant 0 : index
    %c320_167 = arith.constant 320 : index
    %137 = vector.load %arg15[%c0_166, %c320_167] : memref<400x640xf32, #tpu.memory_space<vmem>>, vector<16x320xf32>
    tpu.vector_store %arg15[%c0_166, %c320_167], %136 {strides = array<i32>} : memref<400x640xf32, #tpu.memory_space<vmem>>, vector<16x320xf32>,
    %c0_168 = arith.constant 0 : index
    %c87_169 = arith.constant 87 : index
    %138 = vector.load %arg14[%c0_168, %c87_169] : memref<24x1280xf32, #tpu.memory_space<vmem>>, vector<16x320xf32>
    %c16_170 = arith.constant 16 : index
    %c0_171 = arith.constant 0 : index
    %139 = vector.load %arg15[%c16_170, %c0_171] : memref<400x640xf32, #tpu.memory_space<vmem>>, vector<16x320xf32>
    tpu.vector_store %arg15[%c16_170, %c0_171], %138 {strides = array<i32>} : memref<400x640xf32, #tpu.memory_space<vmem>>, vector<16x320xf32>,
    %c0_172 = arith.constant 0 : index
    %c727_173 = arith.constant 727 : index
    %140 = vector.load %arg14[%c0_172, %c727_173] : memref<24x1280xf32, #tpu.memory_space<vmem>>, vector<16x320xf32>
    %c16_174 = arith.constant 16 : index
    %c320_175 = arith.constant 320 : index
    %141 = vector.load %arg15[%c16_174, %c320_175] : memref<400x640xf32, #tpu.memory_space<vmem>>, vector<16x320xf32>
    tpu.vector_store %arg15[%c16_174, %c320_175], %140 {strides = array<i32>} : memref<400x640xf32, #tpu.memory_space<vmem>>, vector<16x320xf32>,
    %c0_176 = arith.constant 0 : index
    %c88_177 = arith.constant 88 : index
    %142 = vector.load %arg14[%c0_176, %c88_177] : memref<24x1280xf32, #tpu.memory_space<vmem>>, vector<16x320xf32>
    %c32_178 = arith.constant 32 : index
    %c0_179 = arith.constant 0 : index
    %143 = vector.load %arg15[%c32_178, %c0_179] : memref<400x640xf32, #tpu.memory_space<vmem>>, vector<16x320xf32>
    tpu.vector_store %arg15[%c32_178, %c0_179], %142 {strides = array<i32>} : memref<400x640xf32, #tpu.memory_space<vmem>>, vector<16x320xf32>,
    %c0_180 = arith.constant 0 : index
    %c728_181 = arith.constant 728 : index
    %144 = vector.load %arg14[%c0_180, %c728_181] : memref<24x1280xf32, #tpu.memory_space<vmem>>, vector<16x320xf32>
    %c32_182 = arith.constant 32 : index
    %c320_183 = arith.constant 320 : index
    %145 = vector.load %arg15[%c32_182, %c320_183] : memref<400x640xf32, #tpu.memory_space<vmem>>, vector<16x320xf32>
    tpu.vector_store %arg15[%c32_182, %c320_183], %144 {strides = array<i32>} : memref<400x640xf32, #tpu.memory_space<vmem>>, vector<16x320xf32>,
    %c0_184 = arith.constant 0 : index
    %c89_185 = arith.constant 89 : index
    %146 = vector.load %arg14[%c0_184, %c89_185] : memref<24x1280xf32, #tpu.memory_space<vmem>>, vector<16x320xf32>
    %c48_186 = arith.constant 48 : index
    %c0_187 = arith.constant 0 : index
    %147 = vector.load %arg15[%c48_186, %c0_187] : memref<400x640xf32, #tpu.memory_space<vmem>>, vector<16x320xf32>
    tpu.vector_store %arg15[%c48_186, %c0_187], %146 {strides = array<i32>} : memref<400x640xf32, #tpu.memory_space<vmem>>, vector<16x320xf32>,
    %c0_188 = arith.constant 0 : index
    %c729_189 = arith.constant 729 : index
    %148 = vector.load %arg14[%c0_188, %c729_189] : memref<24x1280xf32, #tpu.memory_space<vmem>>, vector<16x320xf32>
    %c48_190 = arith.constant 48 : index
    %c320_191 = arith.constant 320 : index
    %149 = vector.load %arg15[%c48_190, %c320_191] : memref<400x640xf32, #tpu.memory_space<vmem>>, vector<16x320xf32>
    tpu.vector_store %arg15[%c48_190, %c320_191], %148 {strides = array<i32>} : memref<400x640xf32, #tpu.memory_space<vmem>>, vector<16x320xf32>,
    %c0_192 = arith.constant 0 : index
    %c90_193 = arith.constant 90 : index
    %150 = vector.load %arg14[%c0_192, %c90_193] : memref<24x1280xf32, #tpu.memory_space<vmem>>, vector<16x320xf32>
    %c64_194 = arith.constant 64 : index
    %c0_195 = arith.constant 0 : index
    %151 = vector.load %arg15[%c64_194, %c0_195] : memref<400x640xf32, #tpu.memory_space<vmem>>, vector<16x320xf32>
    tpu.vector_store %arg15[%c64_194, %c0_195], %150 {strides = array<i32>} : memref<400x640xf32, #tpu.memory_space<vmem>>, vector<16x320xf32>,
    %c0_196 = arith.constant 0 : index
    %c730_197 = arith.constant 730 : index
    %152 = vector.load %arg14[%c0_196, %c730_197] : memref<24x1280xf32, #tpu.memory_space<vmem>>, vector<16x320xf32>
    %c64_198 = arith.constant 64 : index
    %c320_199 = arith.constant 320 : index
    %153 = vector.load %arg15[%c64_198, %c320_199] : memref<400x640xf32, #tpu.memory_space<vmem>>, vector<16x320xf32>
    tpu.vector_store %arg15[%c64_198, %c320_199], %152 {strides = array<i32>} : memref<400x640xf32, #tpu.memory_space<vmem>>, vector<16x320xf32>,
    %c0_200 = arith.constant 0 : index
    %c106_201 = arith.constant 106 : index
    %154 = vector.load %arg14[%c0_200, %c106_201] : memref<24x1280xf32, #tpu.memory_space<vmem>>, vector<16x320xf32>
    %c80_202 = arith.constant 80 : index
    %c0_203 = arith.constant 0 : index
    %155 = vector.load %arg15[%c80_202, %c0_203] : memref<400x640xf32, #tpu.memory_space<vmem>>, vector<16x320xf32>
    tpu.vector_store %arg15[%c80_202, %c0_203], %154 {strides = array<i32>} : memref<400x640xf32, #tpu.memory_space<vmem>>, vector<16x320xf32>,
    %c0_204 = arith.constant 0 : index
    %c746_205 = arith.constant 746 : index
    %156 = vector.load %arg14[%c0_204, %c746_205] : memref<24x1280xf32, #tpu.memory_space<vmem>>, vector<16x320xf32>
    %c80_206 = arith.constant 80 : index
    %c320_207 = arith.constant 320 : index
    %157 = vector.load %arg15[%c80_206, %c320_207] : memref<400x640xf32, #tpu.memory_space<vmem>>, vector<16x320xf32>
    tpu.vector_store %arg15[%c80_206, %c320_207], %156 {strides = array<i32>} : memref<400x640xf32, #tpu.memory_space<vmem>>, vector<16x320xf32>,
    %c0_208 = arith.constant 0 : index
    %c107_209 = arith.constant 107 : index
    %158 = vector.load %arg14[%c0_208, %c107_209] : memref<24x1280xf32, #tpu.memory_space<vmem>>, vector<16x320xf32>
    %c96_210 = arith.constant 96 : index
    %c0_211 = arith.constant 0 : index
    %159 = vector.load %arg15[%c96_210, %c0_211] : memref<400x640xf32, #tpu.memory_space<vmem>>, vector<16x320xf32>
    tpu.vector_store %arg15[%c96_210, %c0_211], %158 {strides = array<i32>} : memref<400x640xf32, #tpu.memory_space<vmem>>, vector<16x320xf32>,
    %c0_212 = arith.constant 0 : index
    %c747_213 = arith.constant 747 : index
    %160 = vector.load %arg14[%c0_212, %c747_213] : memref<24x1280xf32, #tpu.memory_space<vmem>>, vector<16x320xf32>
    %c96_214 = arith.constant 96 : index
    %c320_215 = arith.constant 320 : index
    %161 = vector.load %arg15[%c96_214, %c320_215] : memref<400x640xf32, #tpu.memory_space<vmem>>, vector<16x320xf32>
    tpu.vector_store %arg15[%c96_214, %c320_215], %160 {strides = array<i32>} : memref<400x640xf32, #tpu.memory_space<vmem>>, vector<16x320xf32>,
    %c0_216 = arith.constant 0 : index
    %c108_217 = arith.constant 108 : index
    %162 = vector.load %arg14[%c0_216, %c108_217] : memref<24x1280xf32, #tpu.memory_space<vmem>>, vector<16x320xf32>
    %c112_218 = arith.constant 112 : index
    %c0_219 = arith.constant 0 : index
    %163 = vector.load %arg15[%c112_218, %c0_219] : memref<400x640xf32, #tpu.memory_space<vmem>>, vector<16x320xf32>
    tpu.vector_store %arg15[%c112_218, %c0_219], %162 {strides = array<i32>} : memref<400x640xf32, #tpu.memory_space<vmem>>, vector<16x320xf32>,
    %c0_220 = arith.constant 0 : index
    %c748_221 = arith.constant 748 : index
    %164 = vector.load %arg14[%c0_220, %c748_221] : memref<24x1280xf32, #tpu.memory_space<vmem>>, vector<16x320xf32>
    %c112_222 = arith.constant 112 : index
    %c320_223 = arith.constant 320 : index
    %165 = vector.load %arg15[%c112_222, %c320_223] : memref<400x640xf32, #tpu.memory_space<vmem>>, vector<16x320xf32>
    tpu.vector_store %arg15[%c112_222, %c320_223], %164 {strides = array<i32>} : memref<400x640xf32, #tpu.memory_space<vmem>>, vector<16x320xf32>,
    %c0_224 = arith.constant 0 : index
    %c109_225 = arith.constant 109 : index
    %166 = vector.load %arg14[%c0_224, %c109_225] : memref<24x1280xf32, #tpu.memory_space<vmem>>, vector<16x320xf32>
    %c128_226 = arith.constant 128 : index
    %c0_227 = arith.constant 0 : index
    %167 = vector.load %arg15[%c128_226, %c0_227] : memref<400x640xf32, #tpu.memory_space<vmem>>, vector<16x320xf32>
    tpu.vector_store %arg15[%c128_226, %c0_227], %166 {strides = array<i32>} : memref<400x640xf32, #tpu.memory_space<vmem>>, vector<16x320xf32>,
    %c0_228 = arith.constant 0 : index
    %c749_229 = arith.constant 749 : index
    %168 = vector.load %arg14[%c0_228, %c749_229] : memref<24x1280xf32, #tpu.memory_space<vmem>>, vector<16x320xf32>
    %c128_230 = arith.constant 128 : index
    %c320_231 = arith.constant 320 : index
    %169 = vector.load %arg15[%c128_230, %c320_231] : memref<400x640xf32, #tpu.memory_space<vmem>>, vector<16x320xf32>
    tpu.vector_store %arg15[%c128_230, %c320_231], %168 {strides = array<i32>} : memref<400x640xf32, #tpu.memory_space<vmem>>, vector<16x320xf32>,
    %c0_232 = arith.constant 0 : index
    %c110_233 = arith.constant 110 : index
    %170 = vector.load %arg14[%c0_232, %c110_233] : memref<24x1280xf32, #tpu.memory_space<vmem>>, vector<16x320xf32>
    %c144_234 = arith.constant 144 : index
    %c0_235 = arith.constant 0 : index
    %171 = vector.load %arg15[%c144_234, %c0_235] : memref<400x640xf32, #tpu.memory_space<vmem>>, vector<16x320xf32>
    tpu.vector_store %arg15[%c144_234, %c0_235], %170 {strides = array<i32>} : memref<400x640xf32, #tpu.memory_space<vmem>>, vector<16x320xf32>,
    %c0_236 = arith.constant 0 : index
    %c750_237 = arith.constant 750 : index
    %172 = vector.load %arg14[%c0_236, %c750_237] : memref<24x1280xf32, #tpu.memory_space<vmem>>, vector<16x320xf32>
    %c144_238 = arith.constant 144 : index
    %c320_239 = arith.constant 320 : index
    %173 = vector.load %arg15[%c144_238, %c320_239] : memref<400x640xf32, #tpu.memory_space<vmem>>, vector<16x320xf32>
    tpu.vector_store %arg15[%c144_238, %c320_239], %172 {strides = array<i32>} : memref<400x640xf32, #tpu.memory_space<vmem>>, vector<16x320xf32>,
    %c0_240 = arith.constant 0 : index
    %c126_241 = arith.constant 126 : index
    %174 = vector.load %arg14[%c0_240, %c126_241] : memref<24x1280xf32, #tpu.memory_space<vmem>>, vector<16x320xf32>
    %c160_242 = arith.constant 160 : index
    %c0_243 = arith.constant 0 : index
    %175 = vector.load %arg15[%c160_242, %c0_243] : memref<400x640xf32, #tpu.memory_space<vmem>>, vector<16x320xf32>
    tpu.vector_store %arg15[%c160_242, %c0_243], %174 {strides = array<i32>} : memref<400x640xf32, #tpu.memory_space<vmem>>, vector<16x320xf32>,
    %c0_244 = arith.constant 0 : index
    %c766_245 = arith.constant 766 : index
    %176 = vector.load %arg14[%c0_244, %c766_245] : memref<24x1280xf32, #tpu.memory_space<vmem>>, vector<16x320xf32>
    %c160_246 = arith.constant 160 : index
    %c320_247 = arith.constant 320 : index
    %177 = vector.load %arg15[%c160_246, %c320_247] : memref<400x640xf32, #tpu.memory_space<vmem>>, vector<16x320xf32>
    tpu.vector_store %arg15[%c160_246, %c320_247], %176 {strides = array<i32>} : memref<400x640xf32, #tpu.memory_space<vmem>>, vector<16x320xf32>,
    %c0_248 = arith.constant 0 : index
    %c127_249 = arith.constant 127 : index
    %178 = vector.load %arg14[%c0_248, %c127_249] : memref<24x1280xf32, #tpu.memory_space<vmem>>, vector<16x320xf32>
    %c176_250 = arith.constant 176 : index
    %c0_251 = arith.constant 0 : index
    %179 = vector.load %arg15[%c176_250, %c0_251] : memref<400x640xf32, #tpu.memory_space<vmem>>, vector<16x320xf32>
    tpu.vector_store %arg15[%c176_250, %c0_251], %178 {strides = array<i32>} : memref<400x640xf32, #tpu.memory_space<vmem>>, vector<16x320xf32>,
    %c0_252 = arith.constant 0 : index
    %c767_253 = arith.constant 767 : index
    %180 = vector.load %arg14[%c0_252, %c767_253] : memref<24x1280xf32, #tpu.memory_space<vmem>>, vector<16x320xf32>
    %c176_254 = arith.constant 176 : index
    %c320_255 = arith.constant 320 : index
    %181 = vector.load %arg15[%c176_254, %c320_255] : memref<400x640xf32, #tpu.memory_space<vmem>>, vector<16x320xf32>
    tpu.vector_store %arg15[%c176_254, %c320_255], %180 {strides = array<i32>} : memref<400x640xf32, #tpu.memory_space<vmem>>, vector<16x320xf32>,
    %c0_256 = arith.constant 0 : index
    %c128_257 = arith.constant 128 : index
    %182 = vector.load %arg14[%c0_256, %c128_257] : memref<24x1280xf32, #tpu.memory_space<vmem>>, vector<16x320xf32>
    %c192_258 = arith.constant 192 : index
    %c0_259 = arith.constant 0 : index
    %183 = vector.load %arg15[%c192_258, %c0_259] : memref<400x640xf32, #tpu.memory_space<vmem>>, vector<16x320xf32>
    tpu.vector_store %arg15[%c192_258, %c0_259], %182 {strides = array<i32>} : memref<400x640xf32, #tpu.memory_space<vmem>>, vector<16x320xf32>,
    %c0_260 = arith.constant 0 : index
    %c768_261 = arith.constant 768 : index
    %184 = vector.load %arg14[%c0_260, %c768_261] : memref<24x1280xf32, #tpu.memory_space<vmem>>, vector<16x320xf32>
    %c192_262 = arith.constant 192 : index
    %c320_263 = arith.constant 320 : index
    %185 = vector.load %arg15[%c192_262, %c320_263] : memref<400x640xf32, #tpu.memory_space<vmem>>, vector<16x320xf32>
    tpu.vector_store %arg15[%c192_262, %c320_263], %184 {strides = array<i32>} : memref<400x640xf32, #tpu.memory_space<vmem>>, vector<16x320xf32>,
    %c0_264 = arith.constant 0 : index
    %c129_265 = arith.constant 129 : index
    %186 = vector.load %arg14[%c0_264, %c129_265] : memref<24x1280xf32, #tpu.memory_space<vmem>>, vector<16x320xf32>
    %c208 = arith.constant 208 : index
    %c0_266 = arith.constant 0 : index
    %187 = vector.load %arg15[%c208, %c0_266] : memref<400x640xf32, #tpu.memory_space<vmem>>, vector<16x320xf32>
    tpu.vector_store %arg15[%c208, %c0_266], %186 {strides = array<i32>} : memref<400x640xf32, #tpu.memory_space<vmem>>, vector<16x320xf32>,
    %c0_267 = arith.constant 0 : index
    %c769_268 = arith.constant 769 : index
    %188 = vector.load %arg14[%c0_267, %c769_268] : memref<24x1280xf32, #tpu.memory_space<vmem>>, vector<16x320xf32>
    %c208_269 = arith.constant 208 : index
    %c320_270 = arith.constant 320 : index
    %189 = vector.load %arg15[%c208_269, %c320_270] : memref<400x640xf32, #tpu.memory_space<vmem>>, vector<16x320xf32>
    tpu.vector_store %arg15[%c208_269, %c320_270], %188 {strides = array<i32>} : memref<400x640xf32, #tpu.memory_space<vmem>>, vector<16x320xf32>,
    %c0_271 = arith.constant 0 : index
    %c130_272 = arith.constant 130 : index
    %190 = vector.load %arg14[%c0_271, %c130_272] : memref<24x1280xf32, #tpu.memory_space<vmem>>, vector<16x320xf32>
    %c224 = arith.constant 224 : index
    %c0_273 = arith.constant 0 : index
    %191 = vector.load %arg15[%c224, %c0_273] : memref<400x640xf32, #tpu.memory_space<vmem>>, vector<16x320xf32>
    tpu.vector_store %arg15[%c224, %c0_273], %190 {strides = array<i32>} : memref<400x640xf32, #tpu.memory_space<vmem>>, vector<16x320xf32>,
    %c0_274 = arith.constant 0 : index
    %c770_275 = arith.constant 770 : index
    %192 = vector.load %arg14[%c0_274, %c770_275] : memref<24x1280xf32, #tpu.memory_space<vmem>>, vector<16x320xf32>
    %c224_276 = arith.constant 224 : index
    %c320_277 = arith.constant 320 : index
    %193 = vector.load %arg15[%c224_276, %c320_277] : memref<400x640xf32, #tpu.memory_space<vmem>>, vector<16x320xf32>
    tpu.vector_store %arg15[%c224_276, %c320_277], %192 {strides = array<i32>} : memref<400x640xf32, #tpu.memory_space<vmem>>, vector<16x320xf32>,
    %c0_278 = arith.constant 0 : index
    %c146_279 = arith.constant 146 : index
    %194 = vector.load %arg14[%c0_278, %c146_279] : memref<24x1280xf32, #tpu.memory_space<vmem>>, vector<16x320xf32>
    %c240 = arith.constant 240 : index
    %c0_280 = arith.constant 0 : index
    %195 = vector.load %arg15[%c240, %c0_280] : memref<400x640xf32, #tpu.memory_space<vmem>>, vector<16x320xf32>
    tpu.vector_store %arg15[%c240, %c0_280], %194 {strides = array<i32>} : memref<400x640xf32, #tpu.memory_space<vmem>>, vector<16x320xf32>,
    %c0_281 = arith.constant 0 : index
    %c786_282 = arith.constant 786 : index
    %196 = vector.load %arg14[%c0_281, %c786_282] : memref<24x1280xf32, #tpu.memory_space<vmem>>, vector<16x320xf32>
    %c240_283 = arith.constant 240 : index
    %c320_284 = arith.constant 320 : index
    %197 = vector.load %arg15[%c240_283, %c320_284] : memref<400x640xf32, #tpu.memory_space<vmem>>, vector<16x320xf32>
    tpu.vector_store %arg15[%c240_283, %c320_284], %196 {strides = array<i32>} : memref<400x640xf32, #tpu.memory_space<vmem>>, vector<16x320xf32>,
    %c0_285 = arith.constant 0 : index
    %c147_286 = arith.constant 147 : index
    %198 = vector.load %arg14[%c0_285, %c147_286] : memref<24x1280xf32, #tpu.memory_space<vmem>>, vector<16x320xf32>
    %c256 = arith.constant 256 : index
    %c0_287 = arith.constant 0 : index
    %199 = vector.load %arg15[%c256, %c0_287] : memref<400x640xf32, #tpu.memory_space<vmem>>, vector<16x320xf32>
    tpu.vector_store %arg15[%c256, %c0_287], %198 {strides = array<i32>} : memref<400x640xf32, #tpu.memory_space<vmem>>, vector<16x320xf32>,
    %c0_288 = arith.constant 0 : index
    %c787_289 = arith.constant 787 : index
    %200 = vector.load %arg14[%c0_288, %c787_289] : memref<24x1280xf32, #tpu.memory_space<vmem>>, vector<16x320xf32>
    %c256_290 = arith.constant 256 : index
    %c320_291 = arith.constant 320 : index
    %201 = vector.load %arg15[%c256_290, %c320_291] : memref<400x640xf32, #tpu.memory_space<vmem>>, vector<16x320xf32>
    tpu.vector_store %arg15[%c256_290, %c320_291], %200 {strides = array<i32>} : memref<400x640xf32, #tpu.memory_space<vmem>>, vector<16x320xf32>,
    %c0_292 = arith.constant 0 : index
    %c148_293 = arith.constant 148 : index
    %202 = vector.load %arg14[%c0_292, %c148_293] : memref<24x1280xf32, #tpu.memory_space<vmem>>, vector<16x320xf32>
    %c272 = arith.constant 272 : index
    %c0_294 = arith.constant 0 : index
    %203 = vector.load %arg15[%c272, %c0_294] : memref<400x640xf32, #tpu.memory_space<vmem>>, vector<16x320xf32>
    tpu.vector_store %arg15[%c272, %c0_294], %202 {strides = array<i32>} : memref<400x640xf32, #tpu.memory_space<vmem>>, vector<16x320xf32>,
    %c0_295 = arith.constant 0 : index
    %c788_296 = arith.constant 788 : index
    %204 = vector.load %arg14[%c0_295, %c788_296] : memref<24x1280xf32, #tpu.memory_space<vmem>>, vector<16x320xf32>
    %c272_297 = arith.constant 272 : index
    %c320_298 = arith.constant 320 : index
    %205 = vector.load %arg15[%c272_297, %c320_298] : memref<400x640xf32, #tpu.memory_space<vmem>>, vector<16x320xf32>
    tpu.vector_store %arg15[%c272_297, %c320_298], %204 {strides = array<i32>} : memref<400x640xf32, #tpu.memory_space<vmem>>, vector<16x320xf32>,
    %c0_299 = arith.constant 0 : index
    %c149_300 = arith.constant 149 : index
    %206 = vector.load %arg14[%c0_299, %c149_300] : memref<24x1280xf32, #tpu.memory_space<vmem>>, vector<16x320xf32>
    %c288 = arith.constant 288 : index
    %c0_301 = arith.constant 0 : index
    %207 = vector.load %arg15[%c288, %c0_301] : memref<400x640xf32, #tpu.memory_space<vmem>>, vector<16x320xf32>
    tpu.vector_store %arg15[%c288, %c0_301], %206 {strides = array<i32>} : memref<400x640xf32, #tpu.memory_space<vmem>>, vector<16x320xf32>,
    %c0_302 = arith.constant 0 : index
    %c789_303 = arith.constant 789 : index
    %208 = vector.load %arg14[%c0_302, %c789_303] : memref<24x1280xf32, #tpu.memory_space<vmem>>, vector<16x320xf32>
    %c288_304 = arith.constant 288 : index
    %c320_305 = arith.constant 320 : index
    %209 = vector.load %arg15[%c288_304, %c320_305] : memref<400x640xf32, #tpu.memory_space<vmem>>, vector<16x320xf32>
    tpu.vector_store %arg15[%c288_304, %c320_305], %208 {strides = array<i32>} : memref<400x640xf32, #tpu.memory_space<vmem>>, vector<16x320xf32>,
    %c0_306 = arith.constant 0 : index
    %c150_307 = arith.constant 150 : index
    %210 = vector.load %arg14[%c0_306, %c150_307] : memref<24x1280xf32, #tpu.memory_space<vmem>>, vector<16x320xf32>
    %c304 = arith.constant 304 : index
    %c0_308 = arith.constant 0 : index
    %211 = vector.load %arg15[%c304, %c0_308] : memref<400x640xf32, #tpu.memory_space<vmem>>, vector<16x320xf32>
    tpu.vector_store %arg15[%c304, %c0_308], %210 {strides = array<i32>} : memref<400x640xf32, #tpu.memory_space<vmem>>, vector<16x320xf32>,
    %c0_309 = arith.constant 0 : index
    %c790_310 = arith.constant 790 : index
    %212 = vector.load %arg14[%c0_309, %c790_310] : memref<24x1280xf32, #tpu.memory_space<vmem>>, vector<16x320xf32>
    %c304_311 = arith.constant 304 : index
    %c320_312 = arith.constant 320 : index
    %213 = vector.load %arg15[%c304_311, %c320_312] : memref<400x640xf32, #tpu.memory_space<vmem>>, vector<16x320xf32>
    tpu.vector_store %arg15[%c304_311, %c320_312], %212 {strides = array<i32>} : memref<400x640xf32, #tpu.memory_space<vmem>>, vector<16x320xf32>,
    %c0_313 = arith.constant 0 : index
    %c166_314 = arith.constant 166 : index
    %214 = vector.load %arg14[%c0_313, %c166_314] : memref<24x1280xf32, #tpu.memory_space<vmem>>, vector<16x320xf32>
    %c320_315 = arith.constant 320 : index
    %c0_316 = arith.constant 0 : index
    %215 = vector.load %arg15[%c320_315, %c0_316] : memref<400x640xf32, #tpu.memory_space<vmem>>, vector<16x320xf32>
    tpu.vector_store %arg15[%c320_315, %c0_316], %214 {strides = array<i32>} : memref<400x640xf32, #tpu.memory_space<vmem>>, vector<16x320xf32>,
    %c0_317 = arith.constant 0 : index
    %c806_318 = arith.constant 806 : index
    %216 = vector.load %arg14[%c0_317, %c806_318] : memref<24x1280xf32, #tpu.memory_space<vmem>>, vector<16x320xf32>
    %c320_319 = arith.constant 320 : index
    %c320_320 = arith.constant 320 : index
    %217 = vector.load %arg15[%c320_319, %c320_320] : memref<400x640xf32, #tpu.memory_space<vmem>>, vector<16x320xf32>
    tpu.vector_store %arg15[%c320_319, %c320_320], %216 {strides = array<i32>} : memref<400x640xf32, #tpu.memory_space<vmem>>, vector<16x320xf32>,
    %c0_321 = arith.constant 0 : index
    %c167_322 = arith.constant 167 : index
    %218 = vector.load %arg14[%c0_321, %c167_322] : memref<24x1280xf32, #tpu.memory_space<vmem>>, vector<16x320xf32>
    %c336 = arith.constant 336 : index
    %c0_323 = arith.constant 0 : index
    %219 = vector.load %arg15[%c336, %c0_323] : memref<400x640xf32, #tpu.memory_space<vmem>>, vector<16x320xf32>
    tpu.vector_store %arg15[%c336, %c0_323], %218 {strides = array<i32>} : memref<400x640xf32, #tpu.memory_space<vmem>>, vector<16x320xf32>,
    %c0_324 = arith.constant 0 : index
    %c807_325 = arith.constant 807 : index
    %220 = vector.load %arg14[%c0_324, %c807_325] : memref<24x1280xf32, #tpu.memory_space<vmem>>, vector<16x320xf32>
    %c336_326 = arith.constant 336 : index
    %c320_327 = arith.constant 320 : index
    %221 = vector.load %arg15[%c336_326, %c320_327] : memref<400x640xf32, #tpu.memory_space<vmem>>, vector<16x320xf32>
    tpu.vector_store %arg15[%c336_326, %c320_327], %220 {strides = array<i32>} : memref<400x640xf32, #tpu.memory_space<vmem>>, vector<16x320xf32>,
    %c0_328 = arith.constant 0 : index
    %c168_329 = arith.constant 168 : index
    %222 = vector.load %arg14[%c0_328, %c168_329] : memref<24x1280xf32, #tpu.memory_space<vmem>>, vector<16x320xf32>
    %c352 = arith.constant 352 : index
    %c0_330 = arith.constant 0 : index
    %223 = vector.load %arg15[%c352, %c0_330] : memref<400x640xf32, #tpu.memory_space<vmem>>, vector<16x320xf32>
    tpu.vector_store %arg15[%c352, %c0_330], %222 {strides = array<i32>} : memref<400x640xf32, #tpu.memory_space<vmem>>, vector<16x320xf32>,
    %c0_331 = arith.constant 0 : index
    %c808_332 = arith.constant 808 : index
    %224 = vector.load %arg14[%c0_331, %c808_332] : memref<24x1280xf32, #tpu.memory_space<vmem>>, vector<16x320xf32>
    %c352_333 = arith.constant 352 : index
    %c320_334 = arith.constant 320 : index
    %225 = vector.load %arg15[%c352_333, %c320_334] : memref<400x640xf32, #tpu.memory_space<vmem>>, vector<16x320xf32>
    tpu.vector_store %arg15[%c352_333, %c320_334], %224 {strides = array<i32>} : memref<400x640xf32, #tpu.memory_space<vmem>>, vector<16x320xf32>,
    %c0_335 = arith.constant 0 : index
    %c169_336 = arith.constant 169 : index
    %226 = vector.load %arg14[%c0_335, %c169_336] : memref<24x1280xf32, #tpu.memory_space<vmem>>, vector<16x320xf32>
    %c368 = arith.constant 368 : index
    %c0_337 = arith.constant 0 : index
    %227 = vector.load %arg15[%c368, %c0_337] : memref<400x640xf32, #tpu.memory_space<vmem>>, vector<16x320xf32>
    tpu.vector_store %arg15[%c368, %c0_337], %226 {strides = array<i32>} : memref<400x640xf32, #tpu.memory_space<vmem>>, vector<16x320xf32>,
    %c0_338 = arith.constant 0 : index
    %c809_339 = arith.constant 809 : index
    %228 = vector.load %arg14[%c0_338, %c809_339] : memref<24x1280xf32, #tpu.memory_space<vmem>>, vector<16x320xf32>
    %c368_340 = arith.constant 368 : index
    %c320_341 = arith.constant 320 : index
    %229 = vector.load %arg15[%c368_340, %c320_341] : memref<400x640xf32, #tpu.memory_space<vmem>>, vector<16x320xf32>
    tpu.vector_store %arg15[%c368_340, %c320_341], %228 {strides = array<i32>} : memref<400x640xf32, #tpu.memory_space<vmem>>, vector<16x320xf32>,
    %c0_342 = arith.constant 0 : index
    %c170_343 = arith.constant 170 : index
    %230 = vector.load %arg14[%c0_342, %c170_343] : memref<24x1280xf32, #tpu.memory_space<vmem>>, vector<16x320xf32>
    %c384 = arith.constant 384 : index
    %c0_344 = arith.constant 0 : index
    %231 = vector.load %arg15[%c384, %c0_344] : memref<400x640xf32, #tpu.memory_space<vmem>>, vector<16x320xf32>
    tpu.vector_store %arg15[%c384, %c0_344], %230 {strides = array<i32>} : memref<400x640xf32, #tpu.memory_space<vmem>>, vector<16x320xf32>,
    %c0_345 = arith.constant 0 : index
    %c810_346 = arith.constant 810 : index
    %232 = vector.load %arg14[%c0_345, %c810_346] : memref<24x1280xf32, #tpu.memory_space<vmem>>, vector<16x320xf32>
    %c384_347 = arith.constant 384 : index
    %c320_348 = arith.constant 320 : index
    %233 = vector.load %arg15[%c384_347, %c320_348] : memref<400x640xf32, #tpu.memory_space<vmem>>, vector<16x320xf32>
    tpu.vector_store %arg15[%c384_347, %c320_348], %232 {strides = array<i32>} : memref<400x640xf32, #tpu.memory_space<vmem>>, vector<16x320xf32>,
    %c0_349 = arith.constant 0 : index
    %c0_350 = arith.constant 0 : index
    %234 = vector.load %arg6[%c0_349, %c0_350] : memref<16x400xf32, #tpu.memory_space<vmem>>, vector<16x400xf32>
    %c0_351 = arith.constant 0 : index
    %c0_352 = arith.constant 0 : index
    %235 = vector.load %arg15[%c0_351, %c0_352] : memref<400x640xf32, #tpu.memory_space<vmem>>, vector<400x640xf32>
    %cst_353 = arith.constant dense<0.000000e+00> : vector<16x640xf32>
    %236 = tpu.matmul %234, %235, %cst_353 {dimension_numbers = #tpu.dot_dimension_numbers<[1], [0], [0], [1], [0, 0, 1, 1], [], []>} : vector<16x400xf32>, vector<400x640xf32>, vector<16x640xf32> -> vector<16x640xf32>
    %c0_354 = arith.constant 0 : index
    %c0_355 = arith.constant 0 : index
    %237 = vector.load %arg7[%c0_354, %c0_355] : memref<16x1xf32, #tpu.memory_space<vmem>>, vector<16x1xf32>
    %238 = vector.broadcast %237 : vector<16x1xf32> to vector<16x640xf32>
    %239 = arith.addf %236, %238 : vector<16x640xf32>
    %240 = vector.extract_strided_slice %239 {offsets = [0, 0], sizes = [8, 640], strides = [1, 1]} : vector<16x640xf32> to vector<8x640xf32>
    %241 = vector.extract_strided_slice %239 {offsets = [8, 0], sizes = [8, 640], strides = [1, 1]} : vector<16x640xf32> to vector<8x640xf32>
    %242 = arith.mulf %240, %241 : vector<8x640xf32>
    %243 = vector.broadcast %0 : vector<1x640xf32> to vector<8x640xf32>
    %244 = arith.mulf %242, %243 : vector<8x640xf32>
    %245 = vector.extract_strided_slice %244 {offsets = [0, 0], sizes = [8, 320], strides = [1, 1]} : vector<8x640xf32> to vector<8x320xf32>
    %c16_356 = arith.constant 16 : index
    %c128_357 = arith.constant 128 : index
    %246 = vector.load %arg14[%c16_356, %c128_357] : memref<24x1280xf32, #tpu.memory_space<vmem>>, vector<8x320xf32>
    tpu.vector_store %arg14[%c16_356, %c128_357], %245 {strides = array<i32>} : memref<24x1280xf32, #tpu.memory_space<vmem>>, vector<8x320xf32>,
    %247 = vector.extract_strided_slice %244 {offsets = [0, 320], sizes = [8, 320], strides = [1, 1]} : vector<8x640xf32> to vector<8x320xf32>
    %c16_358 = arith.constant 16 : index
    %c768_359 = arith.constant 768 : index
    %248 = vector.load %arg14[%c16_358, %c768_359] : memref<24x1280xf32, #tpu.memory_space<vmem>>, vector<8x320xf32>
    tpu.vector_store %arg14[%c16_358, %c768_359], %247 {strides = array<i32>} : memref<24x1280xf32, #tpu.memory_space<vmem>>, vector<8x320xf32>,
    %c0_360 = arith.constant 0 : index
    %c107_361 = arith.constant 107 : index
    %249 = vector.load %arg14[%c0_360, %c107_361] : memref<24x1280xf32, #tpu.memory_space<vmem>>, vector<24x320xf32>
    %c0_362 = arith.constant 0 : index
    %c0_363 = arith.constant 0 : index
    %250 = vector.load %arg15[%c0_362, %c0_363] : memref<400x640xf32, #tpu.memory_space<vmem>>, vector<24x320xf32>
    tpu.vector_store %arg15[%c0_362, %c0_363], %249 {strides = array<i32>} : memref<400x640xf32, #tpu.memory_space<vmem>>, vector<24x320xf32>,
    %c0_364 = arith.constant 0 : index
    %c747_365 = arith.constant 747 : index
    %251 = vector.load %arg14[%c0_364, %c747_365] : memref<24x1280xf32, #tpu.memory_space<vmem>>, vector<24x320xf32>
    %c0_366 = arith.constant 0 : index
    %c320_367 = arith.constant 320 : index
    %252 = vector.load %arg15[%c0_366, %c320_367] : memref<400x640xf32, #tpu.memory_space<vmem>>, vector<24x320xf32>
    tpu.vector_store %arg15[%c0_366, %c320_367], %251 {strides = array<i32>} : memref<400x640xf32, #tpu.memory_space<vmem>>, vector<24x320xf32>,
    %c0_368 = arith.constant 0 : index
    %c108_369 = arith.constant 108 : index
    %253 = vector.load %arg14[%c0_368, %c108_369] : memref<24x1280xf32, #tpu.memory_space<vmem>>, vector<24x320xf32>
    %c24_370 = arith.constant 24 : index
    %c0_371 = arith.constant 0 : index
    %254 = vector.load %arg15[%c24_370, %c0_371] : memref<400x640xf32, #tpu.memory_space<vmem>>, vector<24x320xf32>
    tpu.vector_store %arg15[%c24_370, %c0_371], %253 {strides = array<i32>} : memref<400x640xf32, #tpu.memory_space<vmem>>, vector<24x320xf32>,
    %c0_372 = arith.constant 0 : index
    %c748_373 = arith.constant 748 : index
    %255 = vector.load %arg14[%c0_372, %c748_373] : memref<24x1280xf32, #tpu.memory_space<vmem>>, vector<24x320xf32>
    %c24_374 = arith.constant 24 : index
    %c320_375 = arith.constant 320 : index
    %256 = vector.load %arg15[%c24_374, %c320_375] : memref<400x640xf32, #tpu.memory_space<vmem>>, vector<24x320xf32>
    tpu.vector_store %arg15[%c24_374, %c320_375], %255 {strides = array<i32>} : memref<400x640xf32, #tpu.memory_space<vmem>>, vector<24x320xf32>,
    %c0_376 = arith.constant 0 : index
    %c109_377 = arith.constant 109 : index
    %257 = vector.load %arg14[%c0_376, %c109_377] : memref<24x1280xf32, #tpu.memory_space<vmem>>, vector<24x320xf32>
    %c48_378 = arith.constant 48 : index
    %c0_379 = arith.constant 0 : index
    %258 = vector.load %arg15[%c48_378, %c0_379] : memref<400x640xf32, #tpu.memory_space<vmem>>, vector<24x320xf32>
    tpu.vector_store %arg15[%c48_378, %c0_379], %257 {strides = array<i32>} : memref<400x640xf32, #tpu.memory_space<vmem>>, vector<24x320xf32>,
    %c0_380 = arith.constant 0 : index
    %c749_381 = arith.constant 749 : index
    %259 = vector.load %arg14[%c0_380, %c749_381] : memref<24x1280xf32, #tpu.memory_space<vmem>>, vector<24x320xf32>
    %c48_382 = arith.constant 48 : index
    %c320_383 = arith.constant 320 : index
    %260 = vector.load %arg15[%c48_382, %c320_383] : memref<400x640xf32, #tpu.memory_space<vmem>>, vector<24x320xf32>
    tpu.vector_store %arg15[%c48_382, %c320_383], %259 {strides = array<i32>} : memref<400x640xf32, #tpu.memory_space<vmem>>, vector<24x320xf32>,
    %c0_384 = arith.constant 0 : index
    %c127_385 = arith.constant 127 : index
    %261 = vector.load %arg14[%c0_384, %c127_385] : memref<24x1280xf32, #tpu.memory_space<vmem>>, vector<24x320xf32>
    %c72_386 = arith.constant 72 : index
    %c0_387 = arith.constant 0 : index
    %262 = vector.load %arg15[%c72_386, %c0_387] : memref<400x640xf32, #tpu.memory_space<vmem>>, vector<24x320xf32>
    tpu.vector_store %arg15[%c72_386, %c0_387], %261 {strides = array<i32>} : memref<400x640xf32, #tpu.memory_space<vmem>>, vector<24x320xf32>,
    %c0_388 = arith.constant 0 : index
    %c767_389 = arith.constant 767 : index
    %263 = vector.load %arg14[%c0_388, %c767_389] : memref<24x1280xf32, #tpu.memory_space<vmem>>, vector<24x320xf32>
    %c72_390 = arith.constant 72 : index
    %c320_391 = arith.constant 320 : index
    %264 = vector.load %arg15[%c72_390, %c320_391] : memref<400x640xf32, #tpu.memory_space<vmem>>, vector<24x320xf32>
    tpu.vector_store %arg15[%c72_390, %c320_391], %263 {strides = array<i32>} : memref<400x640xf32, #tpu.memory_space<vmem>>, vector<24x320xf32>,
    %c0_392 = arith.constant 0 : index
    %c128_393 = arith.constant 128 : index
    %265 = vector.load %arg14[%c0_392, %c128_393] : memref<24x1280xf32, #tpu.memory_space<vmem>>, vector<24x320xf32>
    %c96_394 = arith.constant 96 : index
    %c0_395 = arith.constant 0 : index
    %266 = vector.load %arg15[%c96_394, %c0_395] : memref<400x640xf32, #tpu.memory_space<vmem>>, vector<24x320xf32>
    tpu.vector_store %arg15[%c96_394, %c0_395], %265 {strides = array<i32>} : memref<400x640xf32, #tpu.memory_space<vmem>>, vector<24x320xf32>,
    %c0_396 = arith.constant 0 : index
    %c768_397 = arith.constant 768 : index
    %267 = vector.load %arg14[%c0_396, %c768_397] : memref<24x1280xf32, #tpu.memory_space<vmem>>, vector<24x320xf32>
    %c96_398 = arith.constant 96 : index
    %c320_399 = arith.constant 320 : index
    %268 = vector.load %arg15[%c96_398, %c320_399] : memref<400x640xf32, #tpu.memory_space<vmem>>, vector<24x320xf32>
    tpu.vector_store %arg15[%c96_398, %c320_399], %267 {strides = array<i32>} : memref<400x640xf32, #tpu.memory_space<vmem>>, vector<24x320xf32>,
    %c0_400 = arith.constant 0 : index
    %c129_401 = arith.constant 129 : index
    %269 = vector.load %arg14[%c0_400, %c129_401] : memref<24x1280xf32, #tpu.memory_space<vmem>>, vector<24x320xf32>
    %c120_402 = arith.constant 120 : index
    %c0_403 = arith.constant 0 : index
    %270 = vector.load %arg15[%c120_402, %c0_403] : memref<400x640xf32, #tpu.memory_space<vmem>>, vector<24x320xf32>
    tpu.vector_store %arg15[%c120_402, %c0_403], %269 {strides = array<i32>} : memref<400x640xf32, #tpu.memory_space<vmem>>, vector<24x320xf32>,
    %c0_404 = arith.constant 0 : index
    %c769_405 = arith.constant 769 : index
    %271 = vector.load %arg14[%c0_404, %c769_405] : memref<24x1280xf32, #tpu.memory_space<vmem>>, vector<24x320xf32>
    %c120_406 = arith.constant 120 : index
    %c320_407 = arith.constant 320 : index
    %272 = vector.load %arg15[%c120_406, %c320_407] : memref<400x640xf32, #tpu.memory_space<vmem>>, vector<24x320xf32>
    tpu.vector_store %arg15[%c120_406, %c320_407], %271 {strides = array<i32>} : memref<400x640xf32, #tpu.memory_space<vmem>>, vector<24x320xf32>,
    %c0_408 = arith.constant 0 : index
    %c147_409 = arith.constant 147 : index
    %273 = vector.load %arg14[%c0_408, %c147_409] : memref<24x1280xf32, #tpu.memory_space<vmem>>, vector<24x320xf32>
    %c144_410 = arith.constant 144 : index
    %c0_411 = arith.constant 0 : index
    %274 = vector.load %arg15[%c144_410, %c0_411] : memref<400x640xf32, #tpu.memory_space<vmem>>, vector<24x320xf32>
    tpu.vector_store %arg15[%c144_410, %c0_411], %273 {strides = array<i32>} : memref<400x640xf32, #tpu.memory_space<vmem>>, vector<24x320xf32>,
    %c0_412 = arith.constant 0 : index
    %c787_413 = arith.constant 787 : index
    %275 = vector.load %arg14[%c0_412, %c787_413] : memref<24x1280xf32, #tpu.memory_space<vmem>>, vector<24x320xf32>
    %c144_414 = arith.constant 144 : index
    %c320_415 = arith.constant 320 : index
    %276 = vector.load %arg15[%c144_414, %c320_415] : memref<400x640xf32, #tpu.memory_space<vmem>>, vector<24x320xf32>
    tpu.vector_store %arg15[%c144_414, %c320_415], %275 {strides = array<i32>} : memref<400x640xf32, #tpu.memory_space<vmem>>, vector<24x320xf32>,
    %c0_416 = arith.constant 0 : index
    %c148_417 = arith.constant 148 : index
    %277 = vector.load %arg14[%c0_416, %c148_417] : memref<24x1280xf32, #tpu.memory_space<vmem>>, vector<24x320xf32>
    %c168_418 = arith.constant 168 : index
    %c0_419 = arith.constant 0 : index
    %278 = vector.load %arg15[%c168_418, %c0_419] : memref<400x640xf32, #tpu.memory_space<vmem>>, vector<24x320xf32>
    tpu.vector_store %arg15[%c168_418, %c0_419], %277 {strides = array<i32>} : memref<400x640xf32, #tpu.memory_space<vmem>>, vector<24x320xf32>,
    %c0_420 = arith.constant 0 : index
    %c788_421 = arith.constant 788 : index
    %279 = vector.load %arg14[%c0_420, %c788_421] : memref<24x1280xf32, #tpu.memory_space<vmem>>, vector<24x320xf32>
    %c168_422 = arith.constant 168 : index
    %c320_423 = arith.constant 320 : index
    %280 = vector.load %arg15[%c168_422, %c320_423] : memref<400x640xf32, #tpu.memory_space<vmem>>, vector<24x320xf32>
    tpu.vector_store %arg15[%c168_422, %c320_423], %279 {strides = array<i32>} : memref<400x640xf32, #tpu.memory_space<vmem>>, vector<24x320xf32>,
    %c0_424 = arith.constant 0 : index
    %c149_425 = arith.constant 149 : index
    %281 = vector.load %arg14[%c0_424, %c149_425] : memref<24x1280xf32, #tpu.memory_space<vmem>>, vector<24x320xf32>
    %c192_426 = arith.constant 192 : index
    %c0_427 = arith.constant 0 : index
    %282 = vector.load %arg15[%c192_426, %c0_427] : memref<400x640xf32, #tpu.memory_space<vmem>>, vector<24x320xf32>
    tpu.vector_store %arg15[%c192_426, %c0_427], %281 {strides = array<i32>} : memref<400x640xf32, #tpu.memory_space<vmem>>, vector<24x320xf32>,
    %c0_428 = arith.constant 0 : index
    %c789_429 = arith.constant 789 : index
    %283 = vector.load %arg14[%c0_428, %c789_429] : memref<24x1280xf32, #tpu.memory_space<vmem>>, vector<24x320xf32>
    %c192_430 = arith.constant 192 : index
    %c320_431 = arith.constant 320 : index
    %284 = vector.load %arg15[%c192_430, %c320_431] : memref<400x640xf32, #tpu.memory_space<vmem>>, vector<24x320xf32>
    tpu.vector_store %arg15[%c192_430, %c320_431], %283 {strides = array<i32>} : memref<400x640xf32, #tpu.memory_space<vmem>>, vector<24x320xf32>,
    %c0_432 = arith.constant 0 : index
    %c0_433 = arith.constant 0 : index
    %285 = vector.load %arg8[%c0_432, %c0_433] : memref<8x216xf32, #tpu.memory_space<vmem>>, vector<8x216xf32>
    %c0_434 = arith.constant 0 : index
    %c0_435 = arith.constant 0 : index
    %286 = vector.load %arg15[%c0_434, %c0_435] : memref<400x640xf32, #tpu.memory_space<vmem>>, vector<216x640xf32>
    %cst_436 = arith.constant dense<0.000000e+00> : vector<8x640xf32>
    %287 = tpu.matmul %285, %286, %cst_436 {dimension_numbers = #tpu.dot_dimension_numbers<[1], [0], [0], [1], [0, 0, 1, 1], [], []>} : vector<8x216xf32>, vector<216x640xf32>, vector<8x640xf32> -> vector<8x640xf32>
    %c0_437 = arith.constant 0 : index
    %c0_438 = arith.constant 0 : index
    %288 = vector.load %arg9[%c0_437, %c0_438] : memref<8x1xf32, #tpu.memory_space<vmem>>, vector<8x1xf32>
    %289 = vector.broadcast %288 : vector<8x1xf32> to vector<8x640xf32>
    %290 = arith.addf %287, %289 : vector<8x640xf32>
    %cst_439 = arith.constant 0.000000e+00 : f32
    %291 = vector.broadcast %cst_439 : f32 to vector<8x640xf32>
    %292 = arith.maximumf %290, %291 : vector<8x640xf32>
    %c0_440 = arith.constant 0 : index
    %c0_441 = arith.constant 0 : index
    %293 = vector.load %arg10[%c0_440, %c0_441] : memref<8x1xf32, #tpu.memory_space<vmem>>, vector<8x1xf32>
    %294 = vector.broadcast %293 : vector<8x1xf32> to vector<8x640xf32>
    %295 = arith.mulf %292, %294 : vector<8x640xf32>
    %c0_442 = arith.constant 0 : index
    %c0_443 = arith.constant 0 : index
    %296 = vector.load %arg11[%c0_442, %c0_443] : memref<8x1xf32, #tpu.memory_space<vmem>>, vector<8x1xf32>
    %297 = vector.broadcast %296 : vector<8x1xf32> to vector<8x640xf32>
    %298 = arith.addf %295, %297 : vector<8x640xf32>
    %299 = arith.addf %17, %298 : vector<8x640xf32>
    %c0_444 = arith.constant 0 : index
    %c0_445 = arith.constant 0 : index
    %c0_446 = arith.constant 0 : index
    %300 = vector.load %arg13[%c0_444, %c0_445, %c0_446] : memref<1x8x640xf32, #tpu.memory_space<vmem>>, vector<1x8x640xf32>
    %301 = vector.shape_cast %300 : vector<1x8x640xf32> to vector<8x640xf32>
    %302 = vector.shape_cast %299 : vector<8x640xf32> to vector<1x8x640xf32>
    tpu.vector_store %arg13[%c0_444, %c0_445, %c0_446], %302 {strides = array<i32>} : memref<1x8x640xf32, #tpu.memory_space<vmem>>, vector<1x8x640xf32>,
    return
  }
  func.func @transform_0(%arg0: i32) -> (i32, i32, i32) {
    %c0_i32 = arith.constant 0 : i32
    %c0_i32_0 = arith.constant 0 : i32
    %c0_i32_1 = arith.constant 0 : i32
    return %arg0, %c0_i32, %c0_i32_0 : i32, i32, i32
  }
  func.func @transform_1(%arg0: i32) -> (i32, i32) {
    %c0_i32 = arith.constant 0 : i32
    %c0_i32_0 = arith.constant 0 : i32
    %c0_i32_1 = arith.constant 0 : i32
    return %c0_i32, %c0_i32_0 : i32, i32
  }
  func.func @transform_2(%arg0: i32) -> (i32, i32) {
    %c0_i32 = arith.constant 0 : i32
    %c0_i32_0 = arith.constant 0 : i32
    %c0_i32_1 = arith.constant 0 : i32
    return %c0_i32, %c0_i32_0 : i32, i32
  }
  func.func @transform_3(%arg0: i32) -> (i32, i32) {
    %c0_i32 = arith.constant 0 : i32
    %c0_i32_0 = arith.constant 0 : i32
    %c0_i32_1 = arith.constant 0 : i32
    return %c0_i32, %c0_i32_0 : i32, i32
  }
  func.func @transform_4(%arg0: i32) -> (i32, i32) {
    %c0_i32 = arith.constant 0 : i32
    %c0_i32_0 = arith.constant 0 : i32
    %c0_i32_1 = arith.constant 0 : i32
    return %c0_i32, %c0_i32_0 : i32, i32
  }
  func.func @transform_5(%arg0: i32) -> (i32, i32) {
    %c0_i32 = arith.constant 0 : i32
    %c0_i32_0 = arith.constant 0 : i32
    %c0_i32_1 = arith.constant 0 : i32
    return %c0_i32, %c0_i32_0 : i32, i32
  }
  func.func @transform_6(%arg0: i32) -> (i32, i32) {
    %c0_i32 = arith.constant 0 : i32
    %c0_i32_0 = arith.constant 0 : i32
    %c0_i32_1 = arith.constant 0 : i32
    return %c0_i32, %c0_i32_0 : i32, i32
  }
  func.func @transform_7(%arg0: i32) -> (i32, i32) {
    %c0_i32 = arith.constant 0 : i32
    %c0_i32_0 = arith.constant 0 : i32
    %c0_i32_1 = arith.constant 0 : i32
    return %c0_i32, %c0_i32_0 : i32, i32
  }
  func.func @transform_8(%arg0: i32) -> (i32, i32) {
    %c0_i32 = arith.constant 0 : i32
    %c0_i32_0 = arith.constant 0 : i32
    %c0_i32_1 = arith.constant 0 : i32
    return %c0_i32, %c0_i32_0 : i32, i32
  }
  func.func @transform_9(%arg0: i32) -> (i32, i32) {
    %c0_i32 = arith.constant 0 : i32
    %c0_i32_0 = arith.constant 0 : i32
    %c0_i32_1 = arith.constant 0 : i32
    return %c0_i32, %c0_i32_0 : i32, i32
  }
  func.func @transform_10(%arg0: i32) -> (i32, i32) {
    %c0_i32 = arith.constant 0 : i32
    %c0_i32_0 = arith.constant 0 : i32
    %c0_i32_1 = arith.constant 0 : i32
    return %c0_i32, %c0_i32_0 : i32, i32
  }
  func.func @transform_11(%arg0: i32) -> (i32, i32) {
    %c0_i32 = arith.constant 0 : i32
    %c0_i32_0 = arith.constant 0 : i32
    %c0_i32_1 = arith.constant 0 : i32
    return %c0_i32, %c0_i32_0 : i32, i32
  }
  func.func @transform_12(%arg0: i32) -> (i32, i32, i32) {
    %c0_i32 = arith.constant 0 : i32
    %c0_i32_0 = arith.constant 0 : i32
    %c0_i32_1 = arith.constant 0 : i32
    return %arg0, %c0_i32, %c0_i32_0 : i32, i32, i32
  }
}

</mosaic_0001>

<llo_original>
// kernel: tile.8
$region0: #{tile.8}
  #allocation0 [shape = 's32[1]{0}', space=sflag, size = 0x4, scoped, tag = 'scoped memory for tile.8']
  %s0 = inlined_call_operand.vmem [shape: f32[320], index: 0, kind: input, shape index: {}]
  %s1 = inlined_call_operand.vmem [shape: f32[2,320], index: 1, kind: output, shape index: {}]
  // Predicated region
  $region2: #{tile.8} parent=0 // pred_check
    _
  $region3: #{tile.8} parent=0 // pred_check_branch
    %3 = sbr.rel (0) target = $region5
  $region4: #{tile.8} parent=0 // pred_region
    _
  $region5: #{tile.8} parent=0 // pred_fallthru
    _
  %v4 = vld [vmem:[%s0] ss:$0 sm:$0xff]
  %5 = vst [vmem:[%s1] sm:$0x3] %v4
  %s6 = scalar_lea.vmem %s0, 1
  %v7 = vld [vmem:[%s6] ss:$0 sm:$0xff]
  %s8 = scalar_lea.vmem %s1, 2
  %9 = vst [vmem:[%s8] sm:$0x3] %v7
  %s10 = scalar_lea.vmem %s0, 2
  %v11 = vld [vmem:[%s10] ss:$0 sm:$0xff]
  %s12 = scalar_lea.vmem %s1, 4
  %13 = vst [vmem:[%s12] sm:$0x3] %v11

// kernel: tile.9
$region0: #{tile.9}
  %s0 = inlined_call_operand.vmem [shape: f32[2,320], index: 0, kind: input, shape index: {}]
  %s1 = inlined_call_operand.vmem [shape: f32[1,640], index: 1, kind: output, shape index: {}]
  $region1: #{tile.9} parent=0
    #allocation0 [shape = 'u8[20480]{0}', space=vmem, size = 0x5000, scoped, tag = 'scoped mem for output reshape']
    #allocation1 [shape = 'u8[12288]{0}', space=vmem, size = 0x3000, scoped, tag = 'scoped mem for input reshape']
    %s3 = ssub.s32 4, 1
    %s4 = scalar_lea.vmem %s0, 4
    %v5 = vld [vmem:[%s4] sm:%s3]
    %s6 = scalar_lea.vmem [#allocation1], 16
    %7 = vst [vmem:[%s6] sm:%s3] %v5
    %s8 = scalar_lea.vmem %s0, 2
    %v9 = vld [vmem:[%s8] sm:%s3]
    %s10 = scalar_lea.vmem [#allocation1], 8
    %11 = vst [vmem:[%s10] sm:%s3] %v9
    %v12 = vld [vmem:[%s0] sm:%s3]
    %13 = vst [vmem:[#allocation1] sm:%s3] %v12
    %s14 = scalar_lea.vmem [#allocation1], 16
    %v15 = vld [vmem:[%s14] sm:$0x1]
    %vm16 = vcmask 523264
    %s17 = scalar_lea.vmem [#allocation0], 16
    %18 = vst.msk [vmem:[%s17] sm:$0x1] %vm16, %v15
    %s19 = smov 3
    %v20 = vld [vmem:[#allocation1] ss:$8 sm:%s19]
    %21 = vst [vmem:[#allocation0] ss:$8 sm:$0x3] %v20
    %s22 = scalar_lea.vmem [#allocation1], 9
    %s23 = smov 3
    %v24 = vld [vmem:[%s22] ss:$-8 sm:%s23]
    %s25 = scalar_lea.vmem [#allocation1], 17
    %s26 = smov 3
    %v27 = vld [vmem:[%s25] ss:$-16 sm:%s26]
    %s28 = scalar_lea.vmem [#allocation1], 7
    %v29 = vld [vmem:[%s28] sm:$0x4]
    %vm30 = vcmask 1042434
    %v31 = vsel %vm30, %v29, %v27
    %vm32 = vcmask 523264
    %v33 = vsel %vm32, %v31, %v24
    %34 = vrot.lane.b32.xlu0 %v33, 64
    %v35 = vpop.permute.xlu0 %34
    %vm36 = vcmask 523264
    %s37 = scalar_lea.vmem [#allocation0], 32
    %38 = vst.msk [vmem:[%s37] ss:$-8 sm:$0x3] %vm36, %v35
    %vm39 = vcmask 1048064
    %s40 = scalar_lea.vmem [#allocation0], 32
    %41 = vst.msk [vmem:[%s40] ss:$-16 sm:$0x3] %vm39, %v35
    %s42 = scalar_lea.vmem [#allocation0], 22
    %43 = vst.msk [vmem:[%s42] sm:$0x4] %vm39, %v35
    %s45 = ssub.s32 2, 1
    %v46 = vld [vmem:[#allocation0] sm:%s45]
    %s48 = ssub.s32 2, 1
    %49 = vst [vmem:[%s1] sm:%s48] %v46
    %s50 = scalar_lea.vmem [#allocation0], 8
    %v51 = vld [vmem:[%s50] sm:%s45]
    %s53 = ssub.s32 2, 1
    %s54 = scalar_lea.vmem %s1, 1
    %55 = vst [vmem:[%s54] sm:%s53] %v51
    %s56 = scalar_lea.vmem [#allocation0], 16
    %v57 = vld [vmem:[%s56] sm:%s45]
    %s59 = ssub.s32 2, 1
    %s60 = scalar_lea.vmem %s1, 2
    %61 = vst [vmem:[%s60] sm:%s59] %v57
    %s62 = scalar_lea.vmem [#allocation0], 24
    %v63 = vld [vmem:[%s62] sm:%s45]
    %s65 = ssub.s32 2, 1
    %s66 = scalar_lea.vmem %s1, 3
    %67 = vst [vmem:[%s66] sm:%s65] %v63
    %s68 = scalar_lea.vmem [#allocation0], 32
    %v69 = vld [vmem:[%s68] sm:%s45]
    %s71 = ssub.s32 2, 1
    %s72 = scalar_lea.vmem %s1, 4
    %73 = vst [vmem:[%s72] sm:%s71] %v69

// kernel: ifa_forward.1
$region0: #{ifa_forward.1}
  #allocation0 [shape = 'u32[]', space=smem, size = 0x4, offset = 0x4, fixed_abs, tag = 'smem constant byte address 0x4 - core index']
  #allocation1 [shape = 'u32[72,128]{1,0:T(1,128)}', space=vmem, size = 0x9000, scoped, tag = 'internal scratch']
  #allocation2 [shape = 'f32[24,1280]{1,0:T(8,128)}', space=vmem, size = 0x1e000, scoped, tag = 'scratch operand']
  #allocation3 [shape = 'f32[400,640]{1,0:T(8,128)}', space=vmem, size = 0xfa000, scoped, tag = 'scratch operand']
  %s0 = inlined_call_operand.vmem [shape: f32[1,8,640], index: 0, kind: input, shape index: {}]
  %s1 = inlined_call_operand.vmem [shape: f32[8,8], index: 1, kind: input, shape index: {}]
  %s2 = inlined_call_operand.vmem [shape: f32[8,1], index: 2, kind: input, shape index: {}]
  %s3 = inlined_call_operand.vmem [shape: f32[16,200], index: 3, kind: input, shape index: {}]
  %s4 = inlined_call_operand.vmem [shape: f32[16,1], index: 4, kind: input, shape index: {}]
  %s5 = inlined_call_operand.vmem [shape: f32[16,400], index: 5, kind: input, shape index: {}]
  %s6 = inlined_call_operand.vmem [shape: f32[16,1], index: 6, kind: input, shape index: {}]
  %s7 = inlined_call_operand.vmem [shape: f32[8,216], index: 7, kind: input, shape index: {}]
  %s8 = inlined_call_operand.vmem [shape: f32[8,1], index: 8, kind: input, shape index: {}]
  %s9 = inlined_call_operand.vmem [shape: f32[8,1], index: 9, kind: input, shape index: {}]
  %s10 = inlined_call_operand.vmem [shape: f32[8,1], index: 10, kind: input, shape index: {}]
  %s11 = inlined_call_operand.vmem [shape: f32[1,640], index: 11, kind: input, shape index: {}]
  %s12 = inlined_call_operand.vmem [shape: f32[1,8,640], index: 12, kind: output, shape index: {}]
  %s13 = sld [smem:[#allocation0]]
  $region58: #{ifa_forward.1} parent=0
    _
  %s15 = ssub.s32 1, %s13
  %s16 = scalar_select 0, %s15, %s13
  // Predicated region
  $region2: #{ifa_forward.1} parent=0 // pred_check
    _
  $region3: #{ifa_forward.1} parent=0 // pred_check_branch
    %18 = sbr.rel (0) target = $region5
  $region4: #{ifa_forward.1} parent=0 // pred_region
    _
  $region5: #{ifa_forward.1} parent=0 // pred_fallthru
    _
  // Predicated region
  $region6: #{ifa_forward.1} parent=0 // pred_check
    _
  $region7: #{ifa_forward.1} parent=0 // pred_check_branch
    %20 = sbr.rel (0) target = $region9
  $region8: #{ifa_forward.1} parent=0 // pred_region
    _
  $region9: #{ifa_forward.1} parent=0 // pred_fallthru
    _
  // Predicated region
  $region10: #{ifa_forward.1} parent=0 // pred_check
    _
  $region11: #{ifa_forward.1} parent=0 // pred_check_branch
    %22 = sbr.rel (0) target = $region13
  $region12: #{ifa_forward.1} parent=0 // pred_region
    _
  $region13: #{ifa_forward.1} parent=0 // pred_fallthru
    _
  // Predicated region
  $region14: #{ifa_forward.1} parent=0 // pred_check
    _
  $region15: #{ifa_forward.1} parent=0 // pred_check_branch
    %24 = sbr.rel (0) target = $region17
  $region16: #{ifa_forward.1} parent=0 // pred_region
    _
  $region17: #{ifa_forward.1} parent=0 // pred_fallthru
    _
  // Predicated region
  $region18: #{ifa_forward.1} parent=0 // pred_check
    _
  $region19: #{ifa_forward.1} parent=0 // pred_check_branch
    %26 = sbr.rel (0) target = $region21
  $region20: #{ifa_forward.1} parent=0 // pred_region
    _
  $region21: #{ifa_forward.1} parent=0 // pred_fallthru
    _
  // Predicated region
  $region22: #{ifa_forward.1} parent=0 // pred_check
    _
  $region23: #{ifa_forward.1} parent=0 // pred_check_branch
    %28 = sbr.rel (0) target = $region25
  $region24: #{ifa_forward.1} parent=0 // pred_region
    _
  $region25: #{ifa_forward.1} parent=0 // pred_fallthru
    _
  // Predicated region
  $region26: #{ifa_forward.1} parent=0 // pred_check
    _
  $region27: #{ifa_forward.1} parent=0 // pred_check_branch
    %30 = sbr.rel (0) target = $region29
  $region28: #{ifa_forward.1} parent=0 // pred_region
    _
  $region29: #{ifa_forward.1} parent=0 // pred_fallthru
    _
  // Predicated region
  $region30: #{ifa_forward.1} parent=0 // pred_check
    _
  $region31: #{ifa_forward.1} parent=0 // pred_check_branch
    %32 = sbr.rel (0) target = $region33
  $region32: #{ifa_forward.1} parent=0 // pred_region
    _
  $region33: #{ifa_forward.1} parent=0 // pred_fallthru
    _
  // Predicated region
  $region34: #{ifa_forward.1} parent=0 // pred_check
    _
  $region35: #{ifa_forward.1} parent=0 // pred_check_branch
    %34 = sbr.rel (0) target = $region37
  $region36: #{ifa_forward.1} parent=0 // pred_region
    _
  $region37: #{ifa_forward.1} parent=0 // pred_fallthru
    _
  // Predicated region
  $region38: #{ifa_forward.1} parent=0 // pred_check
    _
  $region39: #{ifa_forward.1} parent=0 // pred_check_branch
    %36 = sbr.rel (0) target = $region41
  $region40: #{ifa_forward.1} parent=0 // pred_region
    _
  $region41: #{ifa_forward.1} parent=0 // pred_fallthru
    _
  // Predicated region
  $region42: #{ifa_forward.1} parent=0 // pred_check
    _
  $region43: #{ifa_forward.1} parent=0 // pred_check_branch
    %38 = sbr.rel (0) target = $region45
  $region44: #{ifa_forward.1} parent=0 // pred_region
    _
  $region45: #{ifa_forward.1} parent=0 // pred_fallthru
    _
  // Predicated region
  $region46: #{ifa_forward.1} parent=0 // pred_check
    _
  $region47: #{ifa_forward.1} parent=0 // pred_check_branch
    %40 = sbr.rel (0) target = $region49
  $region48: #{ifa_forward.1} parent=0 // pred_region
    _
  $region49: #{ifa_forward.1} parent=0 // pred_fallthru
    _
  %v41 = vld [vmem:[%s11] sm:$0x1f]
  %42 = vst [vmem:[#allocation2] sm:$0xff] 0.0
  %43 = vst [vmem:[#allocation2 + $0x50] sm:$0xff] 0.0
  %44 = vst [vmem:[#allocation2 + $0xa0] sm:$0xff] 0.0
  %vm45 = vcmask 1048064
  %46 = vst.msk [vmem:[#allocation2 + $0x18] sm:$0xff] %vm45, 0.0
  %47 = vst [vmem:[#allocation2 + $0x20] sm:$0xff] 0.0
  %48 = vst.msk [vmem:[#allocation2 + $0x68] sm:$0xff] %vm45, 0.0
  %49 = vst [vmem:[#allocation2 + $0x70] sm:$0xff] 0.0
  %50 = vst.msk [vmem:[#allocation2 + $0xb8] sm:$0xff] %vm45, 0.0
  %51 = vst [vmem:[#allocation2 + $0xc0] sm:$0xff] 0.0
  %52 = vst [vmem:[#allocation2 + $0x28] sm:$0xff] 0.0
  %53 = vst [vmem:[#allocation2 + $0x78] sm:$0xff] 0.0
  %54 = vst [vmem:[#allocation2 + $0xc8] sm:$0xff] 0.0
  %55 = vst.msk [vmem:[#allocation2 + $0x40] sm:$0xff] %vm45, 0.0
  %56 = vst [vmem:[#allocation2 + $0x48] sm:$0xff] 0.0
  %57 = vst.msk [vmem:[#allocation2 + $0x90] sm:$0xff] %vm45, 0.0
  %58 = vst [vmem:[#allocation2 + $0x98] sm:$0xff] 0.0
  %59 = vst.msk [vmem:[#allocation2 + $0xe0] sm:$0xff] %vm45, 0.0
  %60 = vst [vmem:[#allocation2 + $0xe8] sm:$0xff] 0.0
  %v61 = vld [vmem:[%s1] sm:$0xff]
  %v62 = vld [vmem:[%s0] sm:$0xff]
  %v63 = vld [vmem:[%s0 + $0x8] sm:$0xff]
  %v64 = vld [vmem:[%s0 + $0x10] sm:$0xff]
  %v65 = vld [vmem:[%s0 + $0x18] sm:$0xff]
  %v66 = vld [vmem:[%s0 + $0x20] sm:$0xff]
  %v67 = vld [vmem:[%s2] sm:$0xff]
  %69 = vset.pattern.permute.xlu0 0
  %70 = vperm.xlu0 %69, %v67
  %v71 = vpop.permute.xlu0 %70
  %vm73 = vcmask 64512
  %v75 = vsel %vm73, %v61, 0
  %77 = vmatpush.msra.mxu0 0.0
  %78 = vmatpush.msra.mxu0 0.0
  %79 = vmatpush.msra.mxu0 0.0
  %80 = vmatpush.msra.mxu0 0.0
  %81 = vmatpush.msra.mxu0 0.0
  %82 = vmatpush.msra.mxu0 0.0
  %83 = vmatpush.msra.mxu0 0.0
  %84 = vmatpush.msra.mxu0 0.0
  %85 = vmatpush.msra.mxu0 0.0
  %86 = vmatpush.msra.mxu0 0.0
  %87 = vmatpush.msra.mxu0 0.0
  %88 = vmatpush.msra.mxu0 0.0
  %89 = vmatpush.msra.mxu0 0.0
  %90 = vmatpush.msra.mxu0 0.0
  %91 = vmatpush.msra.mxu0 0.0
  %92 = vmatpush.msra.mxu0 %v62
  %93 = vmatmul.f32.gmra.mxu0 %v75
  %v94 = vpop.f32.mrf.mxu0
  %v95 = vadd.f32 %v71, %v94
  %96 = vdwg.mxu0
  %97 = vmatpush.msra.mxu0 0.0
  %98 = vmatpush.msra.mxu0 0.0
  %99 = vmatpush.msra.mxu0 0.0
  %100 = vmatpush.msra.mxu0 0.0
  %101 = vmatpush.msra.mxu0 0.0
  %102 = vmatpush.msra.mxu0 0.0
  %103 = vmatpush.msra.mxu0 0.0
  %104 = vmatpush.msra.mxu0 0.0
  %105 = vmatpush.msra.mxu0 0.0
  %106 = vmatpush.msra.mxu0 0.0
  %107 = vmatpush.msra.mxu0 0.0
  %108 = vmatpush.msra.mxu0 0.0
  %109 = vmatpush.msra.mxu0 0.0
  %110 = vmatpush.msra.mxu0 0.0
  %111 = vmatpush.msra.mxu0 0.0
  %112 = vmatpush.msra.mxu0 %v63
  %113 = vmatmul.f32.gmra.mxu0 %v75
  %v114 = vpop.f32.mrf.mxu0
  %v115 = vadd.f32 %v71, %v114
  %116 = vdwg.mxu0
  %117 = vmatpush.msra.mxu0 0.0
  %118 = vmatpush.msra.mxu0 0.0
  %119 = vmatpush.msra.mxu0 0.0
  %120 = vmatpush.msra.mxu0 0.0
  %121 = vmatpush.msra.mxu0 0.0
  %122 = vmatpush.msra.mxu0 0.0
  %123 = vmatpush.msra.mxu0 0.0
  %124 = vmatpush.msra.mxu0 0.0
  %125 = vmatpush.msra.mxu0 0.0
  %126 = vmatpush.msra.mxu0 0.0
  %127 = vmatpush.msra.mxu0 0.0
  %128 = vmatpush.msra.mxu0 0.0
  %129 = vmatpush.msra.mxu0 0.0
  %130 = vmatpush.msra.mxu0 0.0
  %131 = vmatpush.msra.mxu0 0.0
  %132 = vmatpush.msra.mxu0 %v64
  %133 = vmatmul.f32.gmra.mxu0 %v75
  %v134 = vpop.f32.mrf.mxu0
  %v135 = vadd.f32 %v71, %v134
  %136 = vdwg.mxu0
  %137 = vmatpush.msra.mxu0 0.0
  %138 = vmatpush.msra.mxu0 0.0
  %139 = vmatpush.msra.mxu0 0.0
  %140 = vmatpush.msra.mxu0 0.0
  %141 = vmatpush.msra.mxu0 0.0
  %142 = vmatpush.msra.mxu0 0.0
  %143 = vmatpush.msra.mxu0 0.0
  %144 = vmatpush.msra.mxu0 0.0
  %145 = vmatpush.msra.mxu0 0.0
  %146 = vmatpush.msra.mxu0 0.0
  %147 = vmatpush.msra.mxu0 0.0
  %148 = vmatpush.msra.mxu0 0.0
  %149 = vmatpush.msra.mxu0 0.0
  %150 = vmatpush.msra.mxu0 0.0
  %151 = vmatpush.msra.mxu0 0.0
  %152 = vmatpush.msra.mxu0 %v65
  %153 = vmatmul.f32.gmra.mxu0 %v75
  %v154 = vpop.f32.mrf.mxu0
  %v155 = vadd.f32 %v71, %v154
  %156 = vdwg.mxu0
  %157 = vmatpush.msra.mxu0 0.0
  %158 = vmatpush.msra.mxu0 0.0
  %159 = vmatpush.msra.mxu0 0.0
  %160 = vmatpush.msra.mxu0 0.0
  %161 = vmatpush.msra.mxu0 0.0
  %162 = vmatpush.msra.mxu0 0.0
  %163 = vmatpush.msra.mxu0 0.0
  %164 = vmatpush.msra.mxu0 0.0
  %165 = vmatpush.msra.mxu0 0.0
  %166 = vmatpush.msra.mxu0 0.0
  %167 = vmatpush.msra.mxu0 0.0
  %168 = vmatpush.msra.mxu0 0.0
  %169 = vmatpush.msra.mxu0 0.0
  %170 = vmatpush.msra.mxu0 0.0
  %171 = vmatpush.msra.mxu0 0.0
  %172 = vmatpush.msra.mxu0 %v66
  %173 = vmatmul.f32.gmra.mxu0 %v75
  %v174 = vpop.f32.mrf.mxu0
  %v175 = vadd.f32 %v71, %v174
  %176 = vdwg.mxu0
  %v178 = vperm.slane %v41, 0
  %v179 = vperm.slane %v41, 1
  %v180 = vperm.slane %v41, 2
  %v181 = vperm.slane %v41, 3
  %v182 = vperm.slane %v41, 4
  %v188 = vmul.f32 %v95, %v178
  %v189 = vmul.f32 %v115, %v179
  %v190 = vmul.f32 %v135, %v180
  %v191 = vmul.f32 %v155, %v181
  %v192 = vmul.f32 %v175, %v182
  %193 = vst [vmem:[#allocation2 + $0x8] sm:$0xff] %v188
  %194 = vst [vmem:[#allocation2 + $0x10] sm:$0xff] %v189
  %vm195 = vcmask 523264
  %196 = vst.msk [vmem:[#allocation2 + $0x18] sm:$0xff] %vm195, %v190
  %200 = vrot.lane.b32.xlu0 %v190, 64
  %v201 = vpop.permute.xlu0 %200
  %202 = vrot.lane.b32.xlu0 %v191, 64
  %v203 = vpop.permute.xlu0 %202
  %204 = vrot.lane.b32.xlu0 %v192, 64
  %v205 = vpop.permute.xlu0 %204
  %v206 = vsel %vm195, %v201, %v203
  %v207 = vsel %vm195, %v203, %v205
  %211 = vst [vmem:[#allocation2 + $0x30] sm:$0xff] %v206
  %212 = vst [vmem:[#allocation2 + $0x38] sm:$0xff] %v207
  %213 = vst.msk [vmem:[#allocation2 + $0x40] sm:$0xff] %vm195, %v205
  %v214 = vld [vmem:[#allocation2] sm:$0xff]
  %v215 = vld [vmem:[#allocation2 + $0x8] sm:$0xff]
  %v216 = vld [vmem:[#allocation2 + $0x10] sm:$0xff]
  %v217 = vld [vmem:[#allocation2 + $0x18] sm:$0xff]
  %222 = vrot.lane.b32.xlu0 %v214, 42
  %v223 = vpop.permute.xlu0 %222
  %224 = vrot.lane.b32.xlu0 %v215, 42
  %v225 = vpop.permute.xlu0 %224
  %226 = vrot.lane.b32.xlu0 %v216, 42
  %v227 = vpop.permute.xlu0 %226
  %228 = vrot.lane.b32.xlu0 %v217, 42
  %v229 = vpop.permute.xlu0 %228
  %vm230 = vcmask 343040
  %v231 = vsel %vm230, %v223, %v225
  %v232 = vsel %vm230, %v225, %v227
  %v233 = vsel %vm230, %v227, %v229
  %237 = vst [vmem:[#allocation3] sm:$0xff] %v231
  %238 = vst [vmem:[#allocation3 + $0x8] sm:$0xff] %v232
  %239 = vst.msk [vmem:[#allocation3 + $0x10] sm:$0xff] %vm195, %v233
  %v240 = vld [vmem:[#allocation2 + $0x28] sm:$0xff]
  %v241 = vld [vmem:[#allocation2 + $0x30] sm:$0xff]
  %v242 = vld [vmem:[#allocation2 + $0x38] sm:$0xff]
  %v243 = vld [vmem:[#allocation2 + $0x40] sm:$0xff]
  %248 = vrot.lane.b32.xlu0 %v240, 106
  %v249 = vpop.permute.xlu0 %248
  %250 = vrot.lane.b32.xlu0 %v241, 106
  %v251 = vpop.permute.xlu0 %250
  %252 = vrot.lane.b32.xlu0 %v242, 106
  %v253 = vpop.permute.xlu0 %252
  %254 = vrot.lane.b32.xlu0 %v243, 106
  %v255 = vpop.permute.xlu0 %254
  %vm256 = vcmask 867328
  %v257 = vsel %vm256, %v249, %v251
  %v258 = vsel %vm256, %v251, %v253
  %v259 = vsel %vm256, %v253, %v255
  %263 = vst.msk [vmem:[#allocation3 + $0x10] sm:$0xff] %vm45, %v257
  %264 = vst [vmem:[#allocation3 + $0x18] sm:$0xff] %v258
  %265 = vst [vmem:[#allocation3 + $0x20] sm:$0xff] %v259
  %v266 = vld [vmem:[#allocation2] sm:$0xff]
  %v267 = vld [vmem:[#allocation2 + $0x8] sm:$0xff]
  %v268 = vld [vmem:[#allocation2 + $0x10] sm:$0xff]
  %v269 = vld [vmem:[#allocation2 + $0x18] sm:$0xff]
  %274 = vrot.lane.b32.xlu0 %v266, 41
  %v275 = vpop.permute.xlu0 %274
  %276 = vrot.lane.b32.xlu0 %v267, 41
  %v277 = vpop.permute.xlu0 %276
  %278 = vrot.lane.b32.xlu0 %v268, 41
  %v279 = vpop.permute.xlu0 %278
  %280 = vrot.lane.b32.xlu0 %v269, 41
  %v281 = vpop.permute.xlu0 %280
  %vm282 = vcmask 334848
  %v283 = vsel %vm282, %v275, %v277
  %v284 = vsel %vm282, %v277, %v279
  %v285 = vsel %vm282, %v279, %v281
  %289 = vst [vmem:[#allocation3 + $0x28] sm:$0xff] %v283
  %290 = vst [vmem:[#allocation3 + $0x30] sm:$0xff] %v284
  %291 = vst.msk [vmem:[#allocation3 + $0x38] sm:$0xff] %vm195, %v285
  %v292 = vld [vmem:[#allocation2 + $0x28] sm:$0xff]
  %v293 = vld [vmem:[#allocation2 + $0x30] sm:$0xff]
  %v294 = vld [vmem:[#allocation2 + $0x38] sm:$0xff]
  %v295 = vld [vmem:[#allocation2 + $0x40] sm:$0xff]
  %300 = vrot.lane.b32.xlu0 %v292, 105
  %v301 = vpop.permute.xlu0 %300
  %302 = vrot.lane.b32.xlu0 %v293, 105
  %v303 = vpop.permute.xlu0 %302
  %304 = vrot.lane.b32.xlu0 %v294, 105
  %v305 = vpop.permute.xlu0 %304
  %306 = vrot.lane.b32.xlu0 %v295, 105
  %v307 = vpop.permute.xlu0 %306
  %vm308 = vcmask 859136
  %v309 = vsel %vm308, %v301, %v303
  %v310 = vsel %vm308, %v303, %v305
  %v311 = vsel %vm308, %v305, %v307
  %315 = vst.msk [vmem:[#allocation3 + $0x38] sm:$0xff] %vm45, %v309
  %316 = vst [vmem:[#allocation3 + $0x40] sm:$0xff] %v310
  %317 = vst [vmem:[#allocation3 + $0x48] sm:$0xff] %v311
  %v318 = vld [vmem:[#allocation2] sm:$0xff]
  %v319 = vld [vmem:[#allocation2 + $0x8] sm:$0xff]
  %v320 = vld [vmem:[#allocation2 + $0x10] sm:$0xff]
  %v321 = vld [vmem:[#allocation2 + $0x18] sm:$0xff]
  %326 = vrot.lane.b32.xlu0 %v318, 40
  %v327 = vpop.permute.xlu0 %326
  %328 = vrot.lane.b32.xlu0 %v319, 40
  %v329 = vpop.permute.xlu0 %328
  %330 = vrot.lane.b32.xlu0 %v320, 40
  %v331 = vpop.permute.xlu0 %330
  %332 = vrot.lane.b32.xlu0 %v321, 40
  %v333 = vpop.permute.xlu0 %332
  %vm334 = vcmask 326656
  %v335 = vsel %vm334, %v327, %v329
  %v336 = vsel %vm334, %v329, %v331
  %v337 = vsel %vm334, %v331, %v333
  %341 = vst [vmem:[#allocation3 + $0x50] sm:$0xff] %v335
  %342 = vst [vmem:[#allocation3 + $0x58] sm:$0xff] %v336
  %343 = vst.msk [vmem:[#allocation3 + $0x60] sm:$0xff] %vm195, %v337
  %v344 = vld [vmem:[#allocation2 + $0x28] sm:$0xff]
  %v345 = vld [vmem:[#allocation2 + $0x30] sm:$0xff]
  %v346 = vld [vmem:[#allocation2 + $0x38] sm:$0xff]
  %v347 = vld [vmem:[#allocation2 + $0x40] sm:$0xff]
  %352 = vrot.lane.b32.xlu0 %v344, 104
  %v353 = vpop.permute.xlu0 %352
  %354 = vrot.lane.b32.xlu0 %v345, 104
  %v355 = vpop.permute.xlu0 %354
  %356 = vrot.lane.b32.xlu0 %v346, 104
  %v357 = vpop.permute.xlu0 %356
  %358 = vrot.lane.b32.xlu0 %v347, 104
  %v359 = vpop.permute.xlu0 %358
  %vm360 = vcmask 850944
  %v361 = vsel %vm360, %v353, %v355
  %v362 = vsel %vm360, %v355, %v357
  %v363 = vsel %vm360, %v357, %v359
  %367 = vst.msk [vmem:[#allocation3 + $0x60] sm:$0xff] %vm45, %v361
  %368 = vst [vmem:[#allocation3 + $0x68] sm:$0xff] %v362
  %369 = vst [vmem:[#allocation3 + $0x70] sm:$0xff] %v363
  %v370 = vld [vmem:[#allocation2] sm:$0xff]
  %v371 = vld [vmem:[#allocation2 + $0x8] sm:$0xff]
  %v372 = vld [vmem:[#allocation2 + $0x10] sm:$0xff]
  %v373 = vld [vmem:[#allocation2 + $0x18] sm:$0xff]
  %378 = vrot.lane.b32.xlu0 %v370, 39
  %v379 = vpop.permute.xlu0 %378
  %380 = vrot.lane.b32.xlu0 %v371, 39
  %v381 = vpop.permute.xlu0 %380
  %382 = vrot.lane.b32.xlu0 %v372, 39
  %v383 = vpop.permute.xlu0 %382
  %384 = vrot.lane.b32.xlu0 %v373, 39
  %v385 = vpop.permute.xlu0 %384
  %vm386 = vcmask 318464
  %v387 = vsel %vm386, %v379, %v381
  %v388 = vsel %vm386, %v381, %v383
  %v389 = vsel %vm386, %v383, %v385
  %393 = vst [vmem:[#allocation3 + $0x78] sm:$0xff] %v387
  %394 = vst [vmem:[#allocation3 + $0x80] sm:$0xff] %v388
  %395 = vst.msk [vmem:[#allocation3 + $0x88] sm:$0xff] %vm195, %v389
  %v396 = vld [vmem:[#allocation2 + $0x28] sm:$0xff]
  %v397 = vld [vmem:[#allocation2 + $0x30] sm:$0xff]
  %v398 = vld [vmem:[#allocation2 + $0x38] sm:$0xff]
  %v399 = vld [vmem:[#allocation2 + $0x40] sm:$0xff]
  %404 = vrot.lane.b32.xlu0 %v396, 103
  %v405 = vpop.permute.xlu0 %404
  %406 = vrot.lane.b32.xlu0 %v397, 103
  %v407 = vpop.permute.xlu0 %406
  %408 = vrot.lane.b32.xlu0 %v398, 103
  %v409 = vpop.permute.xlu0 %408
  %410 = vrot.lane.b32.xlu0 %v399, 103
  %v411 = vpop.permute.xlu0 %410
  %vm412 = vcmask 842752
  %v413 = vsel %vm412, %v405, %v407
  %v414 = vsel %vm412, %v407, %v409
  %v415 = vsel %vm412, %v409, %v411
  %419 = vst.msk [vmem:[#allocation3 + $0x88] sm:$0xff] %vm45, %v413
  %420 = vst [vmem:[#allocation3 + $0x90] sm:$0xff] %v414
  %421 = vst [vmem:[#allocation3 + $0x98] sm:$0xff] %v415
  %v422 = vld [vmem:[#allocation2] sm:$0xff]
  %v423 = vld [vmem:[#allocation2 + $0x8] sm:$0xff]
  %v424 = vld [vmem:[#allocation2 + $0x10] sm:$0xff]
  %v425 = vld [vmem:[#allocation2 + $0x18] sm:$0xff]
  %430 = vrot.lane.b32.xlu0 %v422, 38
  %v431 = vpop.permute.xlu0 %430
  %432 = vrot.lane.b32.xlu0 %v423, 38
  %v433 = vpop.permute.xlu0 %432
  %434 = vrot.lane.b32.xlu0 %v424, 38
  %v435 = vpop.permute.xlu0 %434
  %436 = vrot.lane.b32.xlu0 %v425, 38
  %v437 = vpop.permute.xlu0 %436
  %vm438 = vcmask 310272
  %v439 = vsel %vm438, %v431, %v433
  %v440 = vsel %vm438, %v433, %v435
  %v441 = vsel %vm438, %v435, %v437
  %445 = vst [vmem:[#allocation3 + $0xa0] sm:$0xff] %v439
  %446 = vst [vmem:[#allocation3 + $0xa8] sm:$0xff] %v440
  %447 = vst.msk [vmem:[#allocation3 + $0xb0] sm:$0xff] %vm195, %v441
  %v448 = vld [vmem:[#allocation2 + $0x28] sm:$0xff]
  %v449 = vld [vmem:[#allocation2 + $0x30] sm:$0xff]
  %v450 = vld [vmem:[#allocation2 + $0x38] sm:$0xff]
  %v451 = vld [vmem:[#allocation2 + $0x40] sm:$0xff]
  %456 = vrot.lane.b32.xlu0 %v448, 102
  %v457 = vpop.permute.xlu0 %456
  %458 = vrot.lane.b32.xlu0 %v449, 102
  %v459 = vpop.permute.xlu0 %458
  %460 = vrot.lane.b32.xlu0 %v450, 102
  %v461 = vpop.permute.xlu0 %460
  %462 = vrot.lane.b32.xlu0 %v451, 102
  %v463 = vpop.permute.xlu0 %462
  %vm464 = vcmask 834560
  %v465 = vsel %vm464, %v457, %v459
  %v466 = vsel %vm464, %v459, %v461
  %v467 = vsel %vm464, %v461, %v463
  %471 = vst.msk [vmem:[#allocation3 + $0xb0] sm:$0xff] %vm45, %v465
  %472 = vst [vmem:[#allocation3 + $0xb8] sm:$0xff] %v466
  %473 = vst [vmem:[#allocation3 + $0xc0] sm:$0xff] %v467
  %v474 = vld [vmem:[#allocation2] sm:$0xff]
  %v475 = vld [vmem:[#allocation2 + $0x8] sm:$0xff]
  %v476 = vld [vmem:[#allocation2 + $0x10] sm:$0xff]
  %v477 = vld [vmem:[#allocation2 + $0x18] sm:$0xff]
  %482 = vrot.lane.b32.xlu0 %v474, 22
  %v483 = vpop.permute.xlu0 %482
  %484 = vrot.lane.b32.xlu0 %v475, 22
  %v485 = vpop.permute.xlu0 %484
  %486 = vrot.lane.b32.xlu0 %v476, 22
  %v487 = vpop.permute.xlu0 %486
  %488 = vrot.lane.b32.xlu0 %v477, 22
  %v489 = vpop.permute.xlu0 %488
  %vm490 = vcmask 179200
  %v491 = vsel %vm490, %v483, %v485
  %v492 = vsel %vm490, %v485, %v487
  %v493 = vsel %vm490, %v487, %v489
  %497 = vst [vmem:[#allocation3 + $0xc8] sm:$0xff] %v491
  %498 = vst [vmem:[#allocation3 + $0xd0] sm:$0xff] %v492
  %499 = vst.msk [vmem:[#allocation3 + $0xd8] sm:$0xff] %vm195, %v493
  %v500 = vld [vmem:[#allocation2 + $0x28] sm:$0xff]
  %v501 = vld [vmem:[#allocation2 + $0x30] sm:$0xff]
  %v502 = vld [vmem:[#allocation2 + $0x38] sm:$0xff]
  %v503 = vld [vmem:[#allocation2 + $0x40] sm:$0xff]
  %508 = vrot.lane.b32.xlu0 %v500, 86
  %v509 = vpop.permute.xlu0 %508
  %510 = vrot.lane.b32.xlu0 %v501, 86
  %v511 = vpop.permute.xlu0 %510
  %512 = vrot.lane.b32.xlu0 %v502, 86
  %v513 = vpop.permute.xlu0 %512
  %514 = vrot.lane.b32.xlu0 %v503, 86
  %v515 = vpop.permute.xlu0 %514
  %vm516 = vcmask 703488
  %v517 = vsel %vm516, %v509, %v511
  %v518 = vsel %vm516, %v511, %v513
  %v519 = vsel %vm516, %v513, %v515
  %523 = vst.msk [vmem:[#allocation3 + $0xd8] sm:$0xff] %vm45, %v517
  %524 = vst [vmem:[#allocation3 + $0xe0] sm:$0xff] %v518
  %525 = vst [vmem:[#allocation3 + $0xe8] sm:$0xff] %v519
  %v526 = vld [vmem:[#allocation2] sm:$0xff]
  %v527 = vld [vmem:[#allocation2 + $0x8] sm:$0xff]
  %v528 = vld [vmem:[#allocation2 + $0x10] sm:$0xff]
  %v529 = vld [vmem:[#allocation2 + $0x18] sm:$0xff]
  %534 = vrot.lane.b32.xlu0 %v526, 21
  %v535 = vpop.permute.xlu0 %534
  %536 = vrot.lane.b32.xlu0 %v527, 21
  %v537 = vpop.permute.xlu0 %536
  %538 = vrot.lane.b32.xlu0 %v528, 21
  %v539 = vpop.permute.xlu0 %538
  %540 = vrot.lane.b32.xlu0 %v529, 21
  %v541 = vpop.permute.xlu0 %540
  %vm542 = vcmask 171008
  %v543 = vsel %vm542, %v535, %v537
  %v544 = vsel %vm542, %v537, %v539
  %v545 = vsel %vm542, %v539, %v541
  %549 = vst [vmem:[#allocation3 + $0xf0] sm:$0xff] %v543
  %550 = vst [vmem:[#allocation3 + $0xf8] sm:$0xff] %v544
  %551 = vst.msk [vmem:[#allocation3 + $0x100] sm:$0xff] %vm195, %v545
  %v552 = vld [vmem:[#allocation2 + $0x28] sm:$0xff]
  %v553 = vld [vmem:[#allocation2 + $0x30] sm:$0xff]
  %v554 = vld [vmem:[#allocation2 + $0x38] sm:$0xff]
  %v555 = vld [vmem:[#allocation2 + $0x40] sm:$0xff]
  %560 = vrot.lane.b32.xlu0 %v552, 85
  %v561 = vpop.permute.xlu0 %560
  %562 = vrot.lane.b32.xlu0 %v553, 85
  %v563 = vpop.permute.xlu0 %562
  %564 = vrot.lane.b32.xlu0 %v554, 85
  %v565 = vpop.permute.xlu0 %564
  %566 = vrot.lane.b32.xlu0 %v555, 85
  %v567 = vpop.permute.xlu0 %566
  %vm568 = vcmask 695296
  %v569 = vsel %vm568, %v561, %v563
  %v570 = vsel %vm568, %v563, %v565
  %v571 = vsel %vm568, %v565, %v567
  %575 = vst.msk [vmem:[#allocation3 + $0x100] sm:$0xff] %vm45, %v569
  %576 = vst [vmem:[#allocation3 + $0x108] sm:$0xff] %v570
  %577 = vst [vmem:[#allocation3 + $0x110] sm:$0xff] %v571
  %v578 = vld [vmem:[#allocation2] sm:$0xff]
  %v579 = vld [vmem:[#allocation2 + $0x8] sm:$0xff]
  %v580 = vld [vmem:[#allocation2 + $0x10] sm:$0xff]
  %v581 = vld [vmem:[#allocation2 + $0x18] sm:$0xff]
  %586 = vrot.lane.b32.xlu0 %v578, 20
  %v587 = vpop.permute.xlu0 %586
  %588 = vrot.lane.b32.xlu0 %v579, 20
  %v589 = vpop.permute.xlu0 %588
  %590 = vrot.lane.b32.xlu0 %v580, 20
  %v591 = vpop.permute.xlu0 %590
  %592 = vrot.lane.b32.xlu0 %v581, 20
  %v593 = vpop.permute.xlu0 %592
  %vm594 = vcmask 162816
  %v595 = vsel %vm594, %v587, %v589
  %v596 = vsel %vm594, %v589, %v591
  %v597 = vsel %vm594, %v591, %v593
  %601 = vst [vmem:[#allocation3 + $0x118] sm:$0xff] %v595
  %602 = vst [vmem:[#allocation3 + $0x120] sm:$0xff] %v596
  %603 = vst.msk [vmem:[#allocation3 + $0x128] sm:$0xff] %vm195, %v597
  %v604 = vld [vmem:[#allocation2 + $0x28] sm:$0xff]
  %v605 = vld [vmem:[#allocation2 + $0x30] sm:$0xff]
  %v606 = vld [vmem:[#allocation2 + $0x38] sm:$0xff]
  %v607 = vld [vmem:[#allocation2 + $0x40] sm:$0xff]
  %612 = vrot.lane.b32.xlu0 %v604, 84
  %v613 = vpop.permute.xlu0 %612
  %614 = vrot.lane.b32.xlu0 %v605, 84
  %v615 = vpop.permute.xlu0 %614
  %616 = vrot.lane.b32.xlu0 %v606, 84
  %v617 = vpop.permute.xlu0 %616
  %618 = vrot.lane.b32.xlu0 %v607, 84
  %v619 = vpop.permute.xlu0 %618
  %vm620 = vcmask 687104
  %v621 = vsel %vm620, %v613, %v615
  %v622 = vsel %vm620, %v615, %v617
  %v623 = vsel %vm620, %v617, %v619
  %627 = vst.msk [vmem:[#allocation3 + $0x128] sm:$0xff] %vm45, %v621
  %628 = vst [vmem:[#allocation3 + $0x130] sm:$0xff] %v622
  %629 = vst [vmem:[#allocation3 + $0x138] sm:$0xff] %v623
  %v630 = vld [vmem:[#allocation2] sm:$0xff]
  %v631 = vld [vmem:[#allocation2 + $0x8] sm:$0xff]
  %v632 = vld [vmem:[#allocation2 + $0x10] sm:$0xff]
  %v633 = vld [vmem:[#allocation2 + $0x18] sm:$0xff]
  %638 = vrot.lane.b32.xlu0 %v630, 19
  %v639 = vpop.permute.xlu0 %638
  %640 = vrot.lane.b32.xlu0 %v631, 19
  %v641 = vpop.permute.xlu0 %640
  %642 = vrot.lane.b32.xlu0 %v632, 19
  %v643 = vpop.permute.xlu0 %642
  %644 = vrot.lane.b32.xlu0 %v633, 19
  %v645 = vpop.permute.xlu0 %644
  %vm646 = vcmask 154624
  %v647 = vsel %vm646, %v639, %v641
  %v648 = vsel %vm646, %v641, %v643
  %v649 = vsel %vm646, %v643, %v645
  %653 = vst [vmem:[#allocation3 + $0x140] sm:$0xff] %v647
  %654 = vst [vmem:[#allocation3 + $0x148] sm:$0xff] %v648
  %655 = vst.msk [vmem:[#allocation3 + $0x150] sm:$0xff] %vm195, %v649
  %v656 = vld [vmem:[#allocation2 + $0x28] sm:$0xff]
  %v657 = vld [vmem:[#allocation2 + $0x30] sm:$0xff]
  %v658 = vld [vmem:[#allocation2 + $0x38] sm:$0xff]
  %v659 = vld [vmem:[#allocation2 + $0x40] sm:$0xff]
  %664 = vrot.lane.b32.xlu0 %v656, 83
  %v665 = vpop.permute.xlu0 %664
  %666 = vrot.lane.b32.xlu0 %v657, 83
  %v667 = vpop.permute.xlu0 %666
  %668 = vrot.lane.b32.xlu0 %v658, 83
  %v669 = vpop.permute.xlu0 %668
  %670 = vrot.lane.b32.xlu0 %v659, 83
  %v671 = vpop.permute.xlu0 %670
  %vm672 = vcmask 678912
  %v673 = vsel %vm672, %v665, %v667
  %v674 = vsel %vm672, %v667, %v669
  %v675 = vsel %vm672, %v669, %v671
  %679 = vst.msk [vmem:[#allocation3 + $0x150] sm:$0xff] %vm45, %v673
  %680 = vst [vmem:[#allocation3 + $0x158] sm:$0xff] %v674
  %681 = vst [vmem:[#allocation3 + $0x160] sm:$0xff] %v675
  %v682 = vld [vmem:[#allocation2] sm:$0xff]
  %v683 = vld [vmem:[#allocation2 + $0x8] sm:$0xff]
  %v684 = vld [vmem:[#allocation2 + $0x10] sm:$0xff]
  %v685 = vld [vmem:[#allocation2 + $0x18] sm:$0xff]
  %690 = vrot.lane.b32.xlu0 %v682, 18
  %v691 = vpop.permute.xlu0 %690
  %692 = vrot.lane.b32.xlu0 %v683, 18
  %v693 = vpop.permute.xlu0 %692
  %694 = vrot.lane.b32.xlu0 %v684, 18
  %v695 = vpop.permute.xlu0 %694
  %696 = vrot.lane.b32.xlu0 %v685, 18
  %v697 = vpop.permute.xlu0 %696
  %vm698 = vcmask 146432
  %v699 = vsel %vm698, %v691, %v693
  %v700 = vsel %vm698, %v693, %v695
  %v701 = vsel %vm698, %v695, %v697
  %705 = vst [vmem:[#allocation3 + $0x168] sm:$0xff] %v699
  %706 = vst [vmem:[#allocation3 + $0x170] sm:$0xff] %v700
  %707 = vst.msk [vmem:[#allocation3 + $0x178] sm:$0xff] %vm195, %v701
  %v708 = vld [vmem:[#allocation2 + $0x28] sm:$0xff]
  %v709 = vld [vmem:[#allocation2 + $0x30] sm:$0xff]
  %v710 = vld [vmem:[#allocation2 + $0x38] sm:$0xff]
  %v711 = vld [vmem:[#allocation2 + $0x40] sm:$0xff]
  %716 = vrot.lane.b32.xlu0 %v708, 82
  %v717 = vpop.permute.xlu0 %716
  %718 = vrot.lane.b32.xlu0 %v709, 82
  %v719 = vpop.permute.xlu0 %718
  %720 = vrot.lane.b32.xlu0 %v710, 82
  %v721 = vpop.permute.xlu0 %720
  %722 = vrot.lane.b32.xlu0 %v711, 82
  %v723 = vpop.permute.xlu0 %722
  %vm724 = vcmask 670720
  %v725 = vsel %vm724, %v717, %v719
  %v726 = vsel %vm724, %v719, %v721
  %v727 = vsel %vm724, %v721, %v723
  %731 = vst.msk [vmem:[#allocation3 + $0x178] sm:$0xff] %vm45, %v725
  %732 = vst [vmem:[#allocation3 + $0x180] sm:$0xff] %v726
  %733 = vst [vmem:[#allocation3 + $0x188] sm:$0xff] %v727
  %v734 = vld [vmem:[#allocation2] sm:$0xff]
  %v735 = vld [vmem:[#allocation2 + $0x8] sm:$0xff]
  %v736 = vld [vmem:[#allocation2 + $0x10] sm:$0xff]
  %v737 = vld [vmem:[#allocation2 + $0x18] sm:$0xff]
  %742 = vrot.lane.b32.xlu0 %v734, 2
  %v743 = vpop.permute.xlu0 %742
  %744 = vrot.lane.b32.xlu0 %v735, 2
  %v745 = vpop.permute.xlu0 %744
  %746 = vrot.lane.b32.xlu0 %v736, 2
  %v747 = vpop.permute.xlu0 %746
  %748 = vrot.lane.b32.xlu0 %v737, 2
  %v749 = vpop.permute.xlu0 %748
  %vm750 = vcmask 15360
  %v751 = vsel %vm750, %v743, %v745
  %v752 = vsel %vm750, %v745, %v747
  %v753 = vsel %vm750, %v747, %v749
  %757 = vst [vmem:[#allocation3 + $0x190] sm:$0xff] %v751
  %758 = vst [vmem:[#allocation3 + $0x198] sm:$0xff] %v752
  %759 = vst.msk [vmem:[#allocation3 + $0x1a0] sm:$0xff] %vm195, %v753
  %v760 = vld [vmem:[#allocation2 + $0x28] sm:$0xff]
  %v761 = vld [vmem:[#allocation2 + $0x30] sm:$0xff]
  %v762 = vld [vmem:[#allocation2 + $0x38] sm:$0xff]
  %v763 = vld [vmem:[#allocation2 + $0x40] sm:$0xff]
  %768 = vrot.lane.b32.xlu0 %v760, 66
  %v769 = vpop.permute.xlu0 %768
  %770 = vrot.lane.b32.xlu0 %v761, 66
  %v771 = vpop.permute.xlu0 %770
  %772 = vrot.lane.b32.xlu0 %v762, 66
  %v773 = vpop.permute.xlu0 %772
  %774 = vrot.lane.b32.xlu0 %v763, 66
  %v775 = vpop.permute.xlu0 %774
  %vm776 = vcmask 539648
  %v777 = vsel %vm776, %v769, %v771
  %v778 = vsel %vm776, %v771, %v773
  %v779 = vsel %vm776, %v773, %v775
  %783 = vst.msk [vmem:[#allocation3 + $0x1a0] sm:$0xff] %vm45, %v777
  %784 = vst [vmem:[#allocation3 + $0x1a8] sm:$0xff] %v778
  %785 = vst [vmem:[#allocation3 + $0x1b0] sm:$0xff] %v779
  %v786 = vld [vmem:[#allocation2] sm:$0xff]
  %v787 = vld [vmem:[#allocation2 + $0x8] sm:$0xff]
  %v788 = vld [vmem:[#allocation2 + $0x10] sm:$0xff]
  %v789 = vld [vmem:[#allocation2 + $0x18] sm:$0xff]
  %794 = vrot.lane.b32.xlu0 %v786, 1
  %v795 = vpop.permute.xlu0 %794
  %796 = vrot.lane.b32.xlu0 %v787, 1
  %v797 = vpop.permute.xlu0 %796
  %798 = vrot.lane.b32.xlu0 %v788, 1
  %v799 = vpop.permute.xlu0 %798
  %800 = vrot.lane.b32.xlu0 %v789, 1
  %v801 = vpop.permute.xlu0 %800
  %vm802 = vcmask 7168
  %v803 = vsel %vm802, %v795, %v797
  %v804 = vsel %vm802, %v797, %v799
  %v805 = vsel %vm802, %v799, %v801
  %809 = vst [vmem:[#allocation3 + $0x1b8] sm:$0xff] %v803
  %810 = vst [vmem:[#allocation3 + $0x1c0] sm:$0xff] %v804
  %811 = vst.msk [vmem:[#allocation3 + $0x1c8] sm:$0xff] %vm195, %v805
  %v812 = vld [vmem:[#allocation2 + $0x28] sm:$0xff]
  %v813 = vld [vmem:[#allocation2 + $0x30] sm:$0xff]
  %v814 = vld [vmem:[#allocation2 + $0x38] sm:$0xff]
  %v815 = vld [vmem:[#allocation2 + $0x40] sm:$0xff]
  %820 = vrot.lane.b32.xlu0 %v812, 65
  %v821 = vpop.permute.xlu0 %820
  %822 = vrot.lane.b32.xlu0 %v813, 65
  %v823 = vpop.permute.xlu0 %822
  %824 = vrot.lane.b32.xlu0 %v814, 65
  %v825 = vpop.permute.xlu0 %824
  %826 = vrot.lane.b32.xlu0 %v815, 65
  %v827 = vpop.permute.xlu0 %826
  %vm828 = vcmask 531456
  %v829 = vsel %vm828, %v821, %v823
  %v830 = vsel %vm828, %v823, %v825
  %v831 = vsel %vm828, %v825, %v827
  %835 = vst.msk [vmem:[#allocation3 + $0x1c8] sm:$0xff] %vm45, %v829
  %836 = vst [vmem:[#allocation3 + $0x1d0] sm:$0xff] %v830
  %837 = vst [vmem:[#allocation3 + $0x1d8] sm:$0xff] %v831
  %v838 = vld [vmem:[#allocation2 + $0x8] sm:$0xff]
  %v839 = vld [vmem:[#allocation2 + $0x10] sm:$0xff]
  %v840 = vld [vmem:[#allocation2 + $0x18] sm:$0xff]
  %841 = vst [vmem:[#allocation3 + $0x1e0] sm:$0xff] %v838
  %842 = vst [vmem:[#allocation3 + $0x1e8] sm:$0xff] %v839
  %843 = vst.msk [vmem:[#allocation3 + $0x1f0] sm:$0xff] %vm195, %v840
  %v844 = vld [vmem:[#allocation2 + $0x30] sm:$0xff]
  %v845 = vld [vmem:[#allocation2 + $0x38] sm:$0xff]
  %v846 = vld [vmem:[#allocation2 + $0x40] sm:$0xff]
  %850 = vrot.lane.b32.xlu0 %v844, 64
  %v851 = vpop.permute.xlu0 %850
  %852 = vrot.lane.b32.xlu0 %v845, 64
  %v853 = vpop.permute.xlu0 %852
  %854 = vrot.lane.b32.xlu0 %v846, 64
  %v855 = vpop.permute.xlu0 %854
  %v856 = vsel %vm195, %v851, %v853
  %v857 = vsel %vm195, %v853, %v855
  %861 = vst.msk [vmem:[#allocation3 + $0x1f0] sm:$0xff] %vm45, %v851
  %862 = vst [vmem:[#allocation3 + $0x1f8] sm:$0xff] %v856
  %863 = vst [vmem:[#allocation3 + $0x200] sm:$0xff] %v857
  %v864 = vld [vmem:[#allocation2 + $0x8] sm:$0xff]
  %v865 = vld [vmem:[#allocation2 + $0x10] sm:$0xff]
  %v866 = vld [vmem:[#allocation2 + $0x18] sm:$0xff]
  %870 = vrot.lane.b32.xlu0 %v864, 127
  %v871 = vpop.permute.xlu0 %870
  %872 = vrot.lane.b32.xlu0 %v865, 127
  %v873 = vpop.permute.xlu0 %872
  %874 = vrot.lane.b32.xlu0 %v866, 127
  %v875 = vpop.permute.xlu0 %874
  %vm876 = vcmask 1039360
  %v877 = vsel %vm876, %v871, %v873
  %v878 = vsel %vm876, %v873, %v875
  %882 = vst [vmem:[#allocation3 + $0x208] sm:$0xff] %v877
  %883 = vst [vmem:[#allocation3 + $0x210] sm:$0xff] %v878
  %884 = vst.msk [vmem:[#allocation3 + $0x218] sm:$0xff] %vm195, %v875
  %v885 = vld [vmem:[#allocation2 + $0x30] sm:$0xff]
  %v886 = vld [vmem:[#allocation2 + $0x38] sm:$0xff]
  %v887 = vld [vmem:[#allocation2 + $0x40] sm:$0xff]
  %891 = vrot.lane.b32.xlu0 %v885, 63
  %v892 = vpop.permute.xlu0 %891
  %893 = vrot.lane.b32.xlu0 %v886, 63
  %v894 = vpop.permute.xlu0 %893
  %895 = vrot.lane.b32.xlu0 %v887, 63
  %v896 = vpop.permute.xlu0 %895
  %vm897 = vcmask 515072
  %v898 = vsel %vm897, %v892, %v894
  %v899 = vsel %vm897, %v894, %v896
  %903 = vst.msk [vmem:[#allocation3 + $0x218] sm:$0xff] %vm45, %v892
  %904 = vst [vmem:[#allocation3 + $0x220] sm:$0xff] %v898
  %905 = vst [vmem:[#allocation3 + $0x228] sm:$0xff] %v899
  %v906 = vld [vmem:[#allocation2 + $0x8] sm:$0xff]
  %v907 = vld [vmem:[#allocation2 + $0x10] sm:$0xff]
  %v908 = vld [vmem:[#allocation2 + $0x18] sm:$0xff]
  %912 = vrot.lane.b32.xlu0 %v906, 126
  %v913 = vpop.permute.xlu0 %912
  %914 = vrot.lane.b32.xlu0 %v907, 126
  %v915 = vpop.permute.xlu0 %914
  %916 = vrot.lane.b32.xlu0 %v908, 126
  %v917 = vpop.permute.xlu0 %916
  %vm918 = vcmask 1031168
  %v919 = vsel %vm918, %v913, %v915
  %v920 = vsel %vm918, %v915, %v917
  %924 = vst [vmem:[#allocation3 + $0x230] sm:$0xff] %v919
  %925 = vst [vmem:[#allocation3 + $0x238] sm:$0xff] %v920
  %926 = vst.msk [vmem:[#allocation3 + $0x240] sm:$0xff] %vm195, %v917
  %v927 = vld [vmem:[#allocation2 + $0x30] sm:$0xff]
  %v928 = vld [vmem:[#allocation2 + $0x38] sm:$0xff]
  %v929 = vld [vmem:[#allocation2 + $0x40] sm:$0xff]
  %933 = vrot.lane.b32.xlu0 %v927, 62
  %v934 = vpop.permute.xlu0 %933
  %935 = vrot.lane.b32.xlu0 %v928, 62
  %v936 = vpop.permute.xlu0 %935
  %937 = vrot.lane.b32.xlu0 %v929, 62
  %v938 = vpop.permute.xlu0 %937
  %vm939 = vcmask 506880
  %v940 = vsel %vm939, %v934, %v936
  %v941 = vsel %vm939, %v936, %v938
  %945 = vst.msk [vmem:[#allocation3 + $0x240] sm:$0xff] %vm45, %v934
  %946 = vst [vmem:[#allocation3 + $0x248] sm:$0xff] %v940
  %947 = vst [vmem:[#allocation3 + $0x250] sm:$0xff] %v941
  %v948 = vld [vmem:[#allocation2 + $0x8] sm:$0xff]
  %v949 = vld [vmem:[#allocation2 + $0x10] sm:$0xff]
  %v950 = vld [vmem:[#allocation2 + $0x18] sm:$0xff]
  %954 = vrot.lane.b32.xlu0 %v948, 110
  %v955 = vpop.permute.xlu0 %954
  %956 = vrot.lane.b32.xlu0 %v949, 110
  %v957 = vpop.permute.xlu0 %956
  %958 = vrot.lane.b32.xlu0 %v950, 110
  %v959 = vpop.permute.xlu0 %958
  %vm960 = vcmask 900096
  %v961 = vsel %vm960, %v955, %v957
  %v962 = vsel %vm960, %v957, %v959
  %966 = vst [vmem:[#allocation3 + $0x258] sm:$0xff] %v961
  %967 = vst [vmem:[#allocation3 + $0x260] sm:$0xff] %v962
  %968 = vst.msk [vmem:[#allocation3 + $0x268] sm:$0xff] %vm195, %v959
  %v969 = vld [vmem:[#allocation2 + $0x30] sm:$0xff]
  %v970 = vld [vmem:[#allocation2 + $0x38] sm:$0xff]
  %v971 = vld [vmem:[#allocation2 + $0x40] sm:$0xff]
  %975 = vrot.lane.b32.xlu0 %v969, 46
  %v976 = vpop.permute.xlu0 %975
  %977 = vrot.lane.b32.xlu0 %v970, 46
  %v978 = vpop.permute.xlu0 %977
  %979 = vrot.lane.b32.xlu0 %v971, 46
  %v980 = vpop.permute.xlu0 %979
  %vm981 = vcmask 375808
  %v982 = vsel %vm981, %v976, %v978
  %v983 = vsel %vm981, %v978, %v980
  %987 = vst.msk [vmem:[#allocation3 + $0x268] sm:$0xff] %vm45, %v976
  %988 = vst [vmem:[#allocation3 + $0x270] sm:$0xff] %v982
  %989 = vst [vmem:[#allocation3 + $0x278] sm:$0xff] %v983
  %v990 = vld [vmem:[#allocation2 + $0x8] sm:$0xff]
  %v991 = vld [vmem:[#allocation2 + $0x10] sm:$0xff]
  %v992 = vld [vmem:[#allocation2 + $0x18] sm:$0xff]
  %996 = vrot.lane.b32.xlu0 %v990, 109
  %v997 = vpop.permute.xlu0 %996
  %998 = vrot.lane.b32.xlu0 %v991, 109
  %v999 = vpop.permute.xlu0 %998
  %1000 = vrot.lane.b32.xlu0 %v992, 109
  %v1001 = vpop.permute.xlu0 %1000
  %vm1002 = vcmask 891904
  %v1003 = vsel %vm1002, %v997, %v999
  %v1004 = vsel %vm1002, %v999, %v1001
  %1008 = vst [vmem:[#allocation3 + $0x280] sm:$0xff] %v1003
  %1009 = vst [vmem:[#allocation3 + $0x288] sm:$0xff] %v1004
  %1010 = vst.msk [vmem:[#allocation3 + $0x290] sm:$0xff] %vm195, %v1001
  %v1011 = vld [vmem:[#allocation2 + $0x30] sm:$0xff]
  %v1012 = vld [vmem:[#allocation2 + $0x38] sm:$0xff]
  %v1013 = vld [vmem:[#allocation2 + $0x40] sm:$0xff]
  %1017 = vrot.lane.b32.xlu0 %v1011, 45
  %v1018 = vpop.permute.xlu0 %1017
  %1019 = vrot.lane.b32.xlu0 %v1012, 45
  %v1020 = vpop.permute.xlu0 %1019
  %1021 = vrot.lane.b32.xlu0 %v1013, 45
  %v1022 = vpop.permute.xlu0 %1021
  %vm1023 = vcmask 367616
  %v1024 = vsel %vm1023, %v1018, %v1020
  %v1025 = vsel %vm1023, %v1020, %v1022
  %1029 = vst.msk [vmem:[#allocation3 + $0x290] sm:$0xff] %vm45, %v1018
  %1030 = vst [vmem:[#allocation3 + $0x298] sm:$0xff] %v1024
  %1031 = vst [vmem:[#allocation3 + $0x2a0] sm:$0xff] %v1025
  %v1032 = vld [vmem:[#allocation2 + $0x8] sm:$0xff]
  %v1033 = vld [vmem:[#allocation2 + $0x10] sm:$0xff]
  %v1034 = vld [vmem:[#allocation2 + $0x18] sm:$0xff]
  %1038 = vrot.lane.b32.xlu0 %v1032, 108
  %v1039 = vpop.permute.xlu0 %1038
  %1040 = vrot.lane.b32.xlu0 %v1033, 108
  %v1041 = vpop.permute.xlu0 %1040
  %1042 = vrot.lane.b32.xlu0 %v1034, 108
  %v1043 = vpop.permute.xlu0 %1042
  %vm1044 = vcmask 883712
  %v1045 = vsel %vm1044, %v1039, %v1041
  %v1046 = vsel %vm1044, %v1041, %v1043
  %1050 = vst [vmem:[#allocation3 + $0x2a8] sm:$0xff] %v1045
  %1051 = vst [vmem:[#allocation3 + $0x2b0] sm:$0xff] %v1046
  %1052 = vst.msk [vmem:[#allocation3 + $0x2b8] sm:$0xff] %vm195, %v1043
  %v1053 = vld [vmem:[#allocation2 + $0x30] sm:$0xff]
  %v1054 = vld [vmem:[#allocation2 + $0x38] sm:$0xff]
  %v1055 = vld [vmem:[#allocation2 + $0x40] sm:$0xff]
  %1059 = vrot.lane.b32.xlu0 %v1053, 44
  %v1060 = vpop.permute.xlu0 %1059
  %1061 = vrot.lane.b32.xlu0 %v1054, 44
  %v1062 = vpop.permute.xlu0 %1061
  %1063 = vrot.lane.b32.xlu0 %v1055, 44
  %v1064 = vpop.permute.xlu0 %1063
  %vm1065 = vcmask 359424
  %v1066 = vsel %vm1065, %v1060, %v1062
  %v1067 = vsel %vm1065, %v1062, %v1064
  %1071 = vst.msk [vmem:[#allocation3 + $0x2b8] sm:$0xff] %vm45, %v1060
  %1072 = vst [vmem:[#allocation3 + $0x2c0] sm:$0xff] %v1066
  %1073 = vst [vmem:[#allocation3 + $0x2c8] sm:$0xff] %v1067
  %v1074 = vld [vmem:[#allocation2 + $0x8] sm:$0xff]
  %v1075 = vld [vmem:[#allocation2 + $0x10] sm:$0xff]
  %v1076 = vld [vmem:[#allocation2 + $0x18] sm:$0xff]
  %1080 = vrot.lane.b32.xlu0 %v1074, 107
  %v1081 = vpop.permute.xlu0 %1080
  %1082 = vrot.lane.b32.xlu0 %v1075, 107
  %v1083 = vpop.permute.xlu0 %1082
  %1084 = vrot.lane.b32.xlu0 %v1076, 107
  %v1085 = vpop.permute.xlu0 %1084
  %vm1086 = vcmask 875520
  %v1087 = vsel %vm1086, %v1081, %v1083
  %v1088 = vsel %vm1086, %v1083, %v1085
  %1092 = vst [vmem:[#allocation3 + $0x2d0] sm:$0xff] %v1087
  %1093 = vst [vmem:[#allocation3 + $0x2d8] sm:$0xff] %v1088
  %1094 = vst.msk [vmem:[#allocation3 + $0x2e0] sm:$0xff] %vm195, %v1085
  %v1095 = vld [vmem:[#allocation2 + $0x30] sm:$0xff]
  %v1096 = vld [vmem:[#allocation2 + $0x38] sm:$0xff]
  %v1097 = vld [vmem:[#allocation2 + $0x40] sm:$0xff]
  %1101 = vrot.lane.b32.xlu0 %v1095, 43
  %v1102 = vpop.permute.xlu0 %1101
  %1103 = vrot.lane.b32.xlu0 %v1096, 43
  %v1104 = vpop.permute.xlu0 %1103
  %1105 = vrot.lane.b32.xlu0 %v1097, 43
  %v1106 = vpop.permute.xlu0 %1105
  %vm1107 = vcmask 351232
  %v1108 = vsel %vm1107, %v1102, %v1104
  %v1109 = vsel %vm1107, %v1104, %v1106
  %1113 = vst.msk [vmem:[#allocation3 + $0x2e0] sm:$0xff] %vm45, %v1102
  %1114 = vst [vmem:[#allocation3 + $0x2e8] sm:$0xff] %v1108
  %1115 = vst [vmem:[#allocation3 + $0x2f0] sm:$0xff] %v1109
  %v1116 = vld [vmem:[#allocation2 + $0x8] sm:$0xff]
  %v1117 = vld [vmem:[#allocation2 + $0x10] sm:$0xff]
  %v1118 = vld [vmem:[#allocation2 + $0x18] sm:$0xff]
  %1122 = vrot.lane.b32.xlu0 %v1116, 106
  %v1123 = vpop.permute.xlu0 %1122
  %1124 = vrot.lane.b32.xlu0 %v1117, 106
  %v1125 = vpop.permute.xlu0 %1124
  %1126 = vrot.lane.b32.xlu0 %v1118, 106
  %v1127 = vpop.permute.xlu0 %1126
  %v1128 = vsel %vm256, %v1123, %v1125
  %v1129 = vsel %vm256, %v1125, %v1127
  %1133 = vst [vmem:[#allocation3 + $0x2f8] sm:$0xff] %v1128
  %1134 = vst [vmem:[#allocation3 + $0x300] sm:$0xff] %v1129
  %1135 = vst.msk [vmem:[#allocation3 + $0x308] sm:$0xff] %vm195, %v1127
  %v1136 = vld [vmem:[#allocation2 + $0x30] sm:$0xff]
  %v1137 = vld [vmem:[#allocation2 + $0x38] sm:$0xff]
  %v1138 = vld [vmem:[#allocation2 + $0x40] sm:$0xff]
  %1142 = vrot.lane.b32.xlu0 %v1136, 42
  %v1143 = vpop.permute.xlu0 %1142
  %1144 = vrot.lane.b32.xlu0 %v1137, 42
  %v1145 = vpop.permute.xlu0 %1144
  %1146 = vrot.lane.b32.xlu0 %v1138, 42
  %v1147 = vpop.permute.xlu0 %1146
  %v1148 = vsel %vm230, %v1143, %v1145
  %v1149 = vsel %vm230, %v1145, %v1147
  %1153 = vst.msk [vmem:[#allocation3 + $0x308] sm:$0xff] %vm45, %v1143
  %1154 = vst [vmem:[#allocation3 + $0x310] sm:$0xff] %v1148
  %1155 = vst [vmem:[#allocation3 + $0x318] sm:$0xff] %v1149
  %v1156 = vld [vmem:[#allocation2 + $0x8] sm:$0xff]
  %v1157 = vld [vmem:[#allocation2 + $0x10] sm:$0xff]
  %v1158 = vld [vmem:[#allocation2 + $0x18] sm:$0xff]
  %1162 = vrot.lane.b32.xlu0 %v1156, 90
  %v1163 = vpop.permute.xlu0 %1162
  %1164 = vrot.lane.b32.xlu0 %v1157, 90
  %v1165 = vpop.permute.xlu0 %1164
  %1166 = vrot.lane.b32.xlu0 %v1158, 90
  %v1167 = vpop.permute.xlu0 %1166
  %vm1168 = vcmask 736256
  %v1169 = vsel %vm1168, %v1163, %v1165
  %v1170 = vsel %vm1168, %v1165, %v1167
  %1174 = vst [vmem:[#allocation3 + $0x320] sm:$0xff] %v1169
  %1175 = vst [vmem:[#allocation3 + $0x328] sm:$0xff] %v1170
  %1176 = vst.msk [vmem:[#allocation3 + $0x330] sm:$0xff] %vm195, %v1167
  %v1177 = vld [vmem:[#allocation2 + $0x30] sm:$0xff]
  %v1178 = vld [vmem:[#allocation2 + $0x38] sm:$0xff]
  %v1179 = vld [vmem:[#allocation2 + $0x40] sm:$0xff]
  %1183 = vrot.lane.b32.xlu0 %v1177, 26
  %v1184 = vpop.permute.xlu0 %1183
  %1185 = vrot.lane.b32.xlu0 %v1178, 26
  %v1186 = vpop.permute.xlu0 %1185
  %1187 = vrot.lane.b32.xlu0 %v1179, 26
  %v1188 = vpop.permute.xlu0 %1187
  %vm1189 = vcmask 211968
  %v1190 = vsel %vm1189, %v1184, %v1186
  %v1191 = vsel %vm1189, %v1186, %v1188
  %1195 = vst.msk [vmem:[#allocation3 + $0x330] sm:$0xff] %vm45, %v1184
  %1196 = vst [vmem:[#allocation3 + $0x338] sm:$0xff] %v1190
  %1197 = vst [vmem:[#allocation3 + $0x340] sm:$0xff] %v1191
  %v1198 = vld [vmem:[#allocation2 + $0x8] sm:$0xff]
  %v1199 = vld [vmem:[#allocation2 + $0x10] sm:$0xff]
  %v1200 = vld [vmem:[#allocation2 + $0x18] sm:$0xff]
  %1204 = vrot.lane.b32.xlu0 %v1198, 89
  %v1205 = vpop.permute.xlu0 %1204
  %1206 = vrot.lane.b32.xlu0 %v1199, 89
  %v1207 = vpop.permute.xlu0 %1206
  %1208 = vrot.lane.b32.xlu0 %v1200, 89
  %v1209 = vpop.permute.xlu0 %1208
  %vm1210 = vcmask 728064
  %v1211 = vsel %vm1210, %v1205, %v1207
  %v1212 = vsel %vm1210, %v1207, %v1209
  %1216 = vst [vmem:[#allocation3 + $0x348] sm:$0xff] %v1211
  %1217 = vst [vmem:[#allocation3 + $0x350] sm:$0xff] %v1212
  %1218 = vst.msk [vmem:[#allocation3 + $0x358] sm:$0xff] %vm195, %v1209
  %v1219 = vld [vmem:[#allocation2 + $0x30] sm:$0xff]
  %v1220 = vld [vmem:[#allocation2 + $0x38] sm:$0xff]
  %v1221 = vld [vmem:[#allocation2 + $0x40] sm:$0xff]
  %1225 = vrot.lane.b32.xlu0 %v1219, 25
  %v1226 = vpop.permute.xlu0 %1225
  %1227 = vrot.lane.b32.xlu0 %v1220, 25
  %v1228 = vpop.permute.xlu0 %1227
  %1229 = vrot.lane.b32.xlu0 %v1221, 25
  %v1230 = vpop.permute.xlu0 %1229
  %vm1231 = vcmask 203776
  %v1232 = vsel %vm1231, %v1226, %v1228
  %v1233 = vsel %vm1231, %v1228, %v1230
  %1237 = vst.msk [vmem:[#allocation3 + $0x358] sm:$0xff] %vm45, %v1226
  %1238 = vst [vmem:[#allocation3 + $0x360] sm:$0xff] %v1232
  %1239 = vst [vmem:[#allocation3 + $0x368] sm:$0xff] %v1233
  %v1240 = vld [vmem:[#allocation2 + $0x8] sm:$0xff]
  %v1241 = vld [vmem:[#allocation2 + $0x10] sm:$0xff]
  %v1242 = vld [vmem:[#allocation2 + $0x18] sm:$0xff]
  %1246 = vrot.lane.b32.xlu0 %v1240, 88
  %v1247 = vpop.permute.xlu0 %1246
  %1248 = vrot.lane.b32.xlu0 %v1241, 88
  %v1249 = vpop.permute.xlu0 %1248
  %1250 = vrot.lane.b32.xlu0 %v1242, 88
  %v1251 = vpop.permute.xlu0 %1250
  %vm1252 = vcmask 719872
  %v1253 = vsel %vm1252, %v1247, %v1249
  %v1254 = vsel %vm1252, %v1249, %v1251
  %1258 = vst [vmem:[#allocation3 + $0x370] sm:$0xff] %v1253
  %1259 = vst [vmem:[#allocation3 + $0x378] sm:$0xff] %v1254
  %1260 = vst.msk [vmem:[#allocation3 + $0x380] sm:$0xff] %vm195, %v1251
  %v1261 = vld [vmem:[#allocation2 + $0x30] sm:$0xff]
  %v1262 = vld [vmem:[#allocation2 + $0x38] sm:$0xff]
  %v1263 = vld [vmem:[#allocation2 + $0x40] sm:$0xff]
  %1267 = vrot.lane.b32.xlu0 %v1261, 24
  %v1268 = vpop.permute.xlu0 %1267
  %1269 = vrot.lane.b32.xlu0 %v1262, 24
  %v1270 = vpop.permute.xlu0 %1269
  %1271 = vrot.lane.b32.xlu0 %v1263, 24
  %v1272 = vpop.permute.xlu0 %1271
  %vm1273 = vcmask 195584
  %v1274 = vsel %vm1273, %v1268, %v1270
  %v1275 = vsel %vm1273, %v1270, %v1272
  %1279 = vst.msk [vmem:[#allocation3 + $0x380] sm:$0xff] %vm45, %v1268
  %1280 = vst [vmem:[#allocation3 + $0x388] sm:$0xff] %v1274
  %1281 = vst [vmem:[#allocation3 + $0x390] sm:$0xff] %v1275
  %v1282 = vld [vmem:[#allocation2 + $0x8] sm:$0xff]
  %v1283 = vld [vmem:[#allocation2 + $0x10] sm:$0xff]
  %v1284 = vld [vmem:[#allocation2 + $0x18] sm:$0xff]
  %1288 = vrot.lane.b32.xlu0 %v1282, 87
  %v1289 = vpop.permute.xlu0 %1288
  %1290 = vrot.lane.b32.xlu0 %v1283, 87
  %v1291 = vpop.permute.xlu0 %1290
  %1292 = vrot.lane.b32.xlu0 %v1284, 87
  %v1293 = vpop.permute.xlu0 %1292
  %vm1294 = vcmask 711680
  %v1295 = vsel %vm1294, %v1289, %v1291
  %v1296 = vsel %vm1294, %v1291, %v1293
  %1300 = vst [vmem:[#allocation3 + $0x398] sm:$0xff] %v1295
  %1301 = vst [vmem:[#allocation3 + $0x3a0] sm:$0xff] %v1296
  %1302 = vst.msk [vmem:[#allocation3 + $0x3a8] sm:$0xff] %vm195, %v1293
  %v1303 = vld [vmem:[#allocation2 + $0x30] sm:$0xff]
  %v1304 = vld [vmem:[#allocation2 + $0x38] sm:$0xff]
  %v1305 = vld [vmem:[#allocation2 + $0x40] sm:$0xff]
  %1309 = vrot.lane.b32.xlu0 %v1303, 23
  %v1310 = vpop.permute.xlu0 %1309
  %1311 = vrot.lane.b32.xlu0 %v1304, 23
  %v1312 = vpop.permute.xlu0 %1311
  %1313 = vrot.lane.b32.xlu0 %v1305, 23
  %v1314 = vpop.permute.xlu0 %1313
  %vm1315 = vcmask 187392
  %v1316 = vsel %vm1315, %v1310, %v1312
  %v1317 = vsel %vm1315, %v1312, %v1314
  %1321 = vst.msk [vmem:[#allocation3 + $0x3a8] sm:$0xff] %vm45, %v1310
  %1322 = vst [vmem:[#allocation3 + $0x3b0] sm:$0xff] %v1316
  %1323 = vst [vmem:[#allocation3 + $0x3b8] sm:$0xff] %v1317
  %v1324 = vld [vmem:[#allocation2 + $0x8] sm:$0xff]
  %v1325 = vld [vmem:[#allocation2 + $0x10] sm:$0xff]
  %v1326 = vld [vmem:[#allocation2 + $0x18] sm:$0xff]
  %1330 = vrot.lane.b32.xlu0 %v1324, 86
  %v1331 = vpop.permute.xlu0 %1330
  %1332 = vrot.lane.b32.xlu0 %v1325, 86
  %v1333 = vpop.permute.xlu0 %1332
  %1334 = vrot.lane.b32.xlu0 %v1326, 86
  %v1335 = vpop.permute.xlu0 %1334
  %v1336 = vsel %vm516, %v1331, %v1333
  %v1337 = vsel %vm516, %v1333, %v1335
  %1341 = vst [vmem:[#allocation3 + $0x3c0] sm:$0xff] %v1336
  %1342 = vst [vmem:[#allocation3 + $0x3c8] sm:$0xff] %v1337
  %1343 = vst.msk [vmem:[#allocation3 + $0x3d0] sm:$0xff] %vm195, %v1335
  %v1344 = vld [vmem:[#allocation2 + $0x30] sm:$0xff]
  %v1345 = vld [vmem:[#allocation2 + $0x38] sm:$0xff]
  %v1346 = vld [vmem:[#allocation2 + $0x40] sm:$0xff]
  %1350 = vrot.lane.b32.xlu0 %v1344, 22
  %v1351 = vpop.permute.xlu0 %1350
  %1352 = vrot.lane.b32.xlu0 %v1345, 22
  %v1353 = vpop.permute.xlu0 %1352
  %1354 = vrot.lane.b32.xlu0 %v1346, 22
  %v1355 = vpop.permute.xlu0 %1354
  %v1356 = vsel %vm490, %v1351, %v1353
  %v1357 = vsel %vm490, %v1353, %v1355
  %1361 = vst.msk [vmem:[#allocation3 + $0x3d0] sm:$0xff] %vm45, %v1351
  %1362 = vst [vmem:[#allocation3 + $0x3d8] sm:$0xff] %v1356
  %1363 = vst [vmem:[#allocation3 + $0x3e0] sm:$0xff] %v1357
  %v1364 = vld [vmem:[%s3] sm:$0xff]
  %v1365 = vld [vmem:[%s3 + $0x8] sm:$0xff]
  %v1366 = vld [vmem:[%s3 + $0x10] sm:$0xff]
  %v1367 = vld [vmem:[%s3 + $0x18] sm:$0xff]
  %v1368 = vld [vmem:[#allocation3] sm:$0xff]
  %v1369 = vld [vmem:[#allocation3 + $0x8] sm:$0xff]
  %v1370 = vld [vmem:[#allocation3 + $0x10] sm:$0xff]
  %v1371 = vld [vmem:[#allocation3 + $0x18] sm:$0xff]
  %v1372 = vld [vmem:[#allocation3 + $0x20] sm:$0xff]
  %v1373 = vld [vmem:[#allocation3 + $0x28] sm:$0xff]
  %v1374 = vld [vmem:[#allocation3 + $0x30] sm:$0xff]
  %v1375 = vld [vmem:[#allocation3 + $0x38] sm:$0xff]
  %v1376 = vld [vmem:[#allocation3 + $0x40] sm:$0xff]
  %v1377 = vld [vmem:[#allocation3 + $0x48] sm:$0xff]
  %v1378 = vld [vmem:[#allocation3 + $0x50] sm:$0xff]
  %v1379 = vld [vmem:[#allocation3 + $0x58] sm:$0xff]
  %v1380 = vld [vmem:[#allocation3 + $0x60] sm:$0xff]
  %v1381 = vld [vmem:[#allocation3 + $0x68] sm:$0xff]
  %v1382 = vld [vmem:[#allocation3 + $0x70] sm:$0xff]
  %v1383 = vld [vmem:[#allocation3 + $0x78] sm:$0xff]
  %v1384 = vld [vmem:[#allocation3 + $0x80] sm:$0xff]
  %v1385 = vld [vmem:[#allocation3 + $0x88] sm:$0xff]
  %v1386 = vld [vmem:[#allocation3 + $0x90] sm:$0xff]
  %v1387 = vld [vmem:[#allocation3 + $0x98] sm:$0xff]
  %v1388 = vld [vmem:[#allocation3 + $0xa0] sm:$0xff]
  %v1389 = vld [vmem:[#allocation3 + $0xa8] sm:$0xff]
  %v1390 = vld [vmem:[#allocation3 + $0xb0] sm:$0xff]
  %v1391 = vld [vmem:[#allocation3 + $0xb8] sm:$0xff]
  %v1392 = vld [vmem:[#allocation3 + $0xc0] sm:$0xff]
  %v1393 = vld [vmem:[#allocation3 + $0xc8] sm:$0xff]
  %v1394 = vld [vmem:[#allocation3 + $0xd0] sm:$0xff]
  %v1395 = vld [vmem:[#allocation3 + $0xd8] sm:$0xff]
  %v1396 = vld [vmem:[#allocation3 + $0xe0] sm:$0xff]
  %v1397 = vld [vmem:[#allocation3 + $0xe8] sm:$0xff]
  %v1398 = vld [vmem:[#allocation3 + $0xf0] sm:$0xff]
  %v1399 = vld [vmem:[#allocation3 + $0xf8] sm:$0xff]
  %v1400 = vld [vmem:[#allocation3 + $0x100] sm:$0xff]
  %v1401 = vld [vmem:[#allocation3 + $0x108] sm:$0xff]
  %v1402 = vld [vmem:[#allocation3 + $0x110] sm:$0xff]
  %v1403 = vld [vmem:[#allocation3 + $0x118] sm:$0xff]
  %v1404 = vld [vmem:[#allocation3 + $0x120] sm:$0xff]
  %v1405 = vld [vmem:[#allocation3 + $0x128] sm:$0xff]
  %v1406 = vld [vmem:[#allocation3 + $0x130] sm:$0xff]
  %v1407 = vld [vmem:[#allocation3 + $0x138] sm:$0xff]
  %v1408 = vld [vmem:[#allocation3 + $0x140] sm:$0xff]
  %v1409 = vld [vmem:[#allocation3 + $0x148] sm:$0xff]
  %v1410 = vld [vmem:[#allocation3 + $0x150] sm:$0xff]
  %v1411 = vld [vmem:[#allocation3 + $0x158] sm:$0xff]
  %v1412 = vld [vmem:[#allocation3 + $0x160] sm:$0xff]
  %v1413 = vld [vmem:[#allocation3 + $0x168] sm:$0xff]
  %v1414 = vld [vmem:[#allocation3 + $0x170] sm:$0xff]
  %v1415 = vld [vmem:[#allocation3 + $0x178] sm:$0xff]
  %v1416 = vld [vmem:[#allocation3 + $0x180] sm:$0xff]
  %v1417 = vld [vmem:[#allocation3 + $0x188] sm:$0xff]
  %v1418 = vld [vmem:[#allocation3 + $0x190] sm:$0xff]
  %v1419 = vld [vmem:[#allocation3 + $0x198] sm:$0xff]
  %v1420 = vld [vmem:[#allocation3 + $0x1a0] sm:$0xff]
  %v1421 = vld [vmem:[#allocation3 + $0x1a8] sm:$0xff]
  %v1422 = vld [vmem:[#allocation3 + $0x1b0] sm:$0xff]
  %v1423 = vld [vmem:[#allocation3 + $0x1b8] sm:$0xff]
  %v1424 = vld [vmem:[#allocation3 + $0x1c0] sm:$0xff]
  %v1425 = vld [vmem:[#allocation3 + $0x1c8] sm:$0xff]
  %v1426 = vld [vmem:[#allocation3 + $0x1d0] sm:$0xff]
  %v1427 = vld [vmem:[#allocation3 + $0x1d8] sm:$0xff]
  %v1428 = vld [vmem:[#allocation3 + $0x1e0] sm:$0xff]
  %v1429 = vld [vmem:[#allocation3 + $0x1e8] sm:$0xff]
  %v1430 = vld [vmem:[#allocation3 + $0x1f0] sm:$0xff]
  %v1431 = vld [vmem:[#allocation3 + $0x1f8] sm:$0xff]
  %v1432 = vld [vmem:[#allocation3 + $0x200] sm:$0xff]
  %v1433 = vld [vmem:[#allocation3 + $0x208] sm:$0xff]
  %v1434 = vld [vmem:[#allocation3 + $0x210] sm:$0xff]
  %v1435 = vld [vmem:[#allocation3 + $0x218] sm:$0xff]
  %v1436 = vld [vmem:[#allocation3 + $0x220] sm:$0xff]
  %v1437 = vld [vmem:[#allocation3 + $0x228] sm:$0xff]
  %v1438 = vld [vmem:[#allocation3 + $0x230] sm:$0xff]
  %v1439 = vld [vmem:[#allocation3 + $0x238] sm:$0xff]
  %v1440 = vld [vmem:[#allocation3 + $0x240] sm:$0xff]
  %v1441 = vld [vmem:[#allocation3 + $0x248] sm:$0xff]
  %v1442 = vld [vmem:[#allocation3 + $0x250] sm:$0xff]
  %v1443 = vld [vmem:[#allocation3 + $0x258] sm:$0xff]
  %v1444 = vld [vmem:[#allocation3 + $0x260] sm:$0xff]
  %v1445 = vld [vmem:[#allocation3 + $0x268] sm:$0xff]
  %v1446 = vld [vmem:[#allocation3 + $0x270] sm:$0xff]
  %v1447 = vld [vmem:[#allocation3 + $0x278] sm:$0xff]
  %v1448 = vld [vmem:[#allocation3 + $0x280] sm:$0xff]
  %v1449 = vld [vmem:[#allocation3 + $0x288] sm:$0xff]
  %v1450 = vld [vmem:[#allocation3 + $0x290] sm:$0xff]
  %v1451 = vld [vmem:[#allocation3 + $0x298] sm:$0xff]
  %v1452 = vld [vmem:[#allocation3 + $0x2a0] sm:$0xff]
  %v1453 = vld [vmem:[#allocation3 + $0x2a8] sm:$0xff]
  %v1454 = vld [vmem:[#allocation3 + $0x2b0] sm:$0xff]
  %v1455 = vld [vmem:[#allocation3 + $0x2b8] sm:$0xff]
  %v1456 = vld [vmem:[#allocation3 + $0x2c0] sm:$0xff]
  %v1457 = vld [vmem:[#allocation3 + $0x2c8] sm:$0xff]
  %v1458 = vld [vmem:[#allocation3 + $0x2d0] sm:$0xff]
  %v1459 = vld [vmem:[#allocation3 + $0x2d8] sm:$0xff]
  %v1460 = vld [vmem:[#allocation3 + $0x2e0] sm:$0xff]
  %v1461 = vld [vmem:[#allocation3 + $0x2e8] sm:$0xff]
  %v1462 = vld [vmem:[#allocation3 + $0x2f0] sm:$0xff]
  %v1463 = vld [vmem:[#allocation3 + $0x2f8] sm:$0xff]
  %v1464 = vld [vmem:[#allocation3 + $0x300] sm:$0xff]
  %v1465 = vld [vmem:[#allocation3 + $0x308] sm:$0xff]
  %v1466 = vld [vmem:[#allocation3 + $0x310] sm:$0xff]
  %v1467 = vld [vmem:[#allocation3 + $0x318] sm:$0xff]
  %v1468 = vld [vmem:[#allocation3 + $0x320] sm:$0xff]
  %v1469 = vld [vmem:[#allocation3 + $0x328] sm:$0xff]
  %v1470 = vld [vmem:[#allocation3 + $0x330] sm:$0xff]
  %v1471 = vld [vmem:[#allocation3 + $0x338] sm:$0xff]
  %v1472 = vld [vmem:[#allocation3 + $0x340] sm:$0xff]
  %v1473 = vld [vmem:[#allocation3 + $0x348] sm:$0xff]
  %v1474 = vld [vmem:[#allocation3 + $0x350] sm:$0xff]
  %v1475 = vld [vmem:[#allocation3 + $0x358] sm:$0xff]
  %v1476 = vld [vmem:[#allocation3 + $0x360] sm:$0xff]
  %v1477 = vld [vmem:[#allocation3 + $0x368] sm:$0xff]
  %v1478 = vld [vmem:[#allocation3 + $0x370] sm:$0xff]
  %v1479 = vld [vmem:[#allocation3 + $0x378] sm:$0xff]
  %v1480 = vld [vmem:[#allocation3 + $0x380] sm:$0xff]
  %v1481 = vld [vmem:[#allocation3 + $0x388] sm:$0xff]
  %v1482 = vld [vmem:[#allocation3 + $0x390] sm:$0xff]
  %v1483 = vld [vmem:[#allocation3 + $0x398] sm:$0xff]
  %v1484 = vld [vmem:[#allocation3 + $0x3a0] sm:$0xff]
  %v1485 = vld [vmem:[#allocation3 + $0x3a8] sm:$0xff]
  %v1486 = vld [vmem:[#allocation3 + $0x3b0] sm:$0xff]
  %v1487 = vld [vmem:[#allocation3 + $0x3b8] sm:$0xff]
  %v1488 = vld [vmem:[#allocation3 + $0x3c0] sm:$0xff]
  %v1489 = vld [vmem:[#allocation3 + $0x3c8] sm:$0xff]
  %v1490 = vld [vmem:[#allocation3 + $0x3d0] sm:$0xff]
  %v1491 = vld [vmem:[#allocation3 + $0x3d8] sm:$0xff]
  %v1492 = vld [vmem:[#allocation3 + $0x3e0] sm:$0xff]
  %v1493 = vld [vmem:[%s4] sm:$0xff]
  %v1494 = vld [vmem:[%s4 + $0x8] sm:$0xff]
  %1496 = vset.pattern.permute.xlu0 0
  %1497 = vperm.xlu0 %1496, %v1493
  %v1498 = vpop.permute.xlu0 %1497
  %1501 = vset.pattern.permute.xlu0 0
  %1502 = vperm.xlu0 %1501, %v1494
  %v1503 = vpop.permute.xlu0 %1502
  %vm1505 = vcmask 588800
  %v1507 = vsel %vm1505, %v1365, 0
  %v1510 = vsel %vm1505, %v1367, 0
  %1512 = vmatpush.msra.mxu0 %v1443
  %1513 = vmatpush.msra.mxu0 %v1438
  %1514 = vmatpush.msra.mxu0 %v1433
  %1515 = vmatpush.msra.mxu0 %v1428
  %1516 = vmatpush.msra.mxu0 %v1423
  %1517 = vmatpush.msra.mxu0 %v1418
  %1518 = vmatpush.msra.mxu0 %v1413
  %1519 = vmatpush.msra.mxu0 %v1408
  %1520 = vmatpush.msra.mxu0 %v1403
  %1521 = vmatpush.msra.mxu0 %v1398
  %1522 = vmatpush.msra.mxu0 %v1393
  %1523 = vmatpush.msra.mxu0 %v1388
  %1524 = vmatpush.msra.mxu0 %v1383
  %1525 = vmatpush.msra.mxu0 %v1378
  %1526 = vmatpush.msra.mxu0 %v1373
  %1527 = vmatpush.msra.mxu0 %v1368
  %1528 = vmatmul.f32.gmra.mxu0 %v1364
  %v1529 = vpop.f32.mrf.mxu0
  %v1530 = vadd.f32 %v1498, %v1529
  %1531 = vmatmul.f32.gmra.mxu0 %v1366
  %v1532 = vpop.f32.mrf.mxu0
  %v1533 = vadd.f32 %v1503, %v1532
  %1534 = vdwg.mxu0
  %1535 = vmatpush.msra.mxu0 0.0
  %1536 = vmatpush.msra.mxu0 0.0
  %1537 = vmatpush.msra.mxu0 0.0
  %1538 = vmatpush.msra.mxu0 0.0
  %1539 = vmatpush.msra.mxu0 0.0
  %1540 = vmatpush.msra.mxu0 0.0
  %1541 = vmatpush.msra.mxu0 0.0
  %1542 = vmatpush.msra.mxu0 %v1488
  %1543 = vmatpush.msra.mxu0 %v1483
  %1544 = vmatpush.msra.mxu0 %v1478
  %1545 = vmatpush.msra.mxu0 %v1473
  %1546 = vmatpush.msra.mxu0 %v1468
  %1547 = vmatpush.msra.mxu0 %v1463
  %1548 = vmatpush.msra.mxu0 %v1458
  %1549 = vmatpush.msra.mxu0 %v1453
  %1550 = vmatpush.msra.mxu0 %v1448
  %1551 = vmatmul.f32.gmra.mxu0 %v1507
  %v1552 = vpop.f32.mrf.mxu0
  %v1553 = vadd.f32 %v1530, %v1552
  %1554 = vmatmul.f32.gmra.mxu0 %v1510
  %v1555 = vpop.f32.mrf.mxu0
  %v1556 = vadd.f32 %v1533, %v1555
  %1557 = vdwg.mxu0
  %1558 = vmatpush.msra.mxu0 %v1444
  %1559 = vmatpush.msra.mxu0 %v1439
  %1560 = vmatpush.msra.mxu0 %v1434
  %1561 = vmatpush.msra.mxu0 %v1429
  %1562 = vmatpush.msra.mxu0 %v1424
  %1563 = vmatpush.msra.mxu0 %v1419
  %1564 = vmatpush.msra.mxu0 %v1414
  %1565 = vmatpush.msra.mxu0 %v1409
  %1566 = vmatpush.msra.mxu0 %v1404
  %1567 = vmatpush.msra.mxu0 %v1399
  %1568 = vmatpush.msra.mxu0 %v1394
  %1569 = vmatpush.msra.mxu0 %v1389
  %1570 = vmatpush.msra.mxu0 %v1384
  %1571 = vmatpush.msra.mxu0 %v1379
  %1572 = vmatpush.msra.mxu0 %v1374
  %1573 = vmatpush.msra.mxu0 %v1369
  %1574 = vmatmul.f32.gmra.mxu0 %v1364
  %v1575 = vpop.f32.mrf.mxu0
  %v1576 = vadd.f32 %v1498, %v1575
  %1577 = vmatmul.f32.gmra.mxu0 %v1366
  %v1578 = vpop.f32.mrf.mxu0
  %v1579 = vadd.f32 %v1503, %v1578
  %1580 = vdwg.mxu0
  %1581 = vmatpush.msra.mxu0 0.0
  %1582 = vmatpush.msra.mxu0 0.0
  %1583 = vmatpush.msra.mxu0 0.0
  %1584 = vmatpush.msra.mxu0 0.0
  %1585 = vmatpush.msra.mxu0 0.0
  %1586 = vmatpush.msra.mxu0 0.0
  %1587 = vmatpush.msra.mxu0 0.0
  %1588 = vmatpush.msra.mxu0 %v1489
  %1589 = vmatpush.msra.mxu0 %v1484
  %1590 = vmatpush.msra.mxu0 %v1479
  %1591 = vmatpush.msra.mxu0 %v1474
  %1592 = vmatpush.msra.mxu0 %v1469
  %1593 = vmatpush.msra.mxu0 %v1464
  %1594 = vmatpush.msra.mxu0 %v1459
  %1595 = vmatpush.msra.mxu0 %v1454
  %1596 = vmatpush.msra.mxu0 %v1449
  %1597 = vmatmul.f32.gmra.mxu0 %v1507
  %v1598 = vpop.f32.mrf.mxu0
  %v1599 = vadd.f32 %v1576, %v1598
  %1600 = vmatmul.f32.gmra.mxu0 %v1510
  %v1601 = vpop.f32.mrf.mxu0
  %v1602 = vadd.f32 %v1579, %v1601
  %1603 = vdwg.mxu0
  %1604 = vmatpush.msra.mxu0 %v1445
  %1605 = vmatpush.msra.mxu0 %v1440
  %1606 = vmatpush.msra.mxu0 %v1435
  %1607 = vmatpush.msra.mxu0 %v1430
  %1608 = vmatpush.msra.mxu0 %v1425
  %1609 = vmatpush.msra.mxu0 %v1420
  %1610 = vmatpush.msra.mxu0 %v1415
  %1611 = vmatpush.msra.mxu0 %v1410
  %1612 = vmatpush.msra.mxu0 %v1405
  %1613 = vmatpush.msra.mxu0 %v1400
  %1614 = vmatpush.msra.mxu0 %v1395
  %1615 = vmatpush.msra.mxu0 %v1390
  %1616 = vmatpush.msra.mxu0 %v1385
  %1617 = vmatpush.msra.mxu0 %v1380
  %1618 = vmatpush.msra.mxu0 %v1375
  %1619 = vmatpush.msra.mxu0 %v1370
  %1620 = vmatmul.f32.gmra.mxu0 %v1364
  %v1621 = vpop.f32.mrf.mxu0
  %v1622 = vadd.f32 %v1498, %v1621
  %1623 = vmatmul.f32.gmra.mxu0 %v1366
  %v1624 = vpop.f32.mrf.mxu0
  %v1625 = vadd.f32 %v1503, %v1624
  %1626 = vdwg.mxu0
  %1627 = vmatpush.msra.mxu0 0.0
  %1628 = vmatpush.msra.mxu0 0.0
  %1629 = vmatpush.msra.mxu0 0.0
  %1630 = vmatpush.msra.mxu0 0.0
  %1631 = vmatpush.msra.mxu0 0.0
  %1632 = vmatpush.msra.mxu0 0.0
  %1633 = vmatpush.msra.mxu0 0.0
  %1634 = vmatpush.msra.mxu0 %v1490
  %1635 = vmatpush.msra.mxu0 %v1485
  %1636 = vmatpush.msra.mxu0 %v1480
  %1637 = vmatpush.msra.mxu0 %v1475
  %1638 = vmatpush.msra.mxu0 %v1470
  %1639 = vmatpush.msra.mxu0 %v1465
  %1640 = vmatpush.msra.mxu0 %v1460
  %1641 = vmatpush.msra.mxu0 %v1455
  %1642 = vmatpush.msra.mxu0 %v1450
  %1643 = vmatmul.f32.gmra.mxu0 %v1507
  %v1644 = vpop.f32.mrf.mxu0
  %v1645 = vadd.f32 %v1622, %v1644
  %1646 = vmatmul.f32.gmra.mxu0 %v1510
  %v1647 = vpop.f32.mrf.mxu0
  %v1648 = vadd.f32 %v1625, %v1647
  %1649 = vdwg.mxu0
  %1650 = vmatpush.msra.mxu0 %v1446
  %1651 = vmatpush.msra.mxu0 %v1441
  %1652 = vmatpush.msra.mxu0 %v1436
  %1653 = vmatpush.msra.mxu0 %v1431
  %1654 = vmatpush.msra.mxu0 %v1426
  %1655 = vmatpush.msra.mxu0 %v1421
  %1656 = vmatpush.msra.mxu0 %v1416
  %1657 = vmatpush.msra.mxu0 %v1411
  %1658 = vmatpush.msra.mxu0 %v1406
  %1659 = vmatpush.msra.mxu0 %v1401
  %1660 = vmatpush.msra.mxu0 %v1396
  %1661 = vmatpush.msra.mxu0 %v1391
  %1662 = vmatpush.msra.mxu0 %v1386
  %1663 = vmatpush.msra.mxu0 %v1381
  %1664 = vmatpush.msra.mxu0 %v1376
  %1665 = vmatpush.msra.mxu0 %v1371
  %1666 = vmatmul.f32.gmra.mxu0 %v1364
  %v1667 = vpop.f32.mrf.mxu0
  %v1668 = vadd.f32 %v1498, %v1667
  %1669 = vmatmul.f32.gmra.mxu0 %v1366
  %v1670 = vpop.f32.mrf.mxu0
  %v1671 = vadd.f32 %v1503, %v1670
  %1672 = vdwg.mxu0
  %1673 = vmatpush.msra.mxu0 0.0
  %1674 = vmatpush.msra.mxu0 0.0
  %1675 = vmatpush.msra.mxu0 0.0
  %1676 = vmatpush.msra.mxu0 0.0
  %1677 = vmatpush.msra.mxu0 0.0
  %1678 = vmatpush.msra.mxu0 0.0
  %1679 = vmatpush.msra.mxu0 0.0
  %1680 = vmatpush.msra.mxu0 %v1491
  %1681 = vmatpush.msra.mxu0 %v1486
  %1682 = vmatpush.msra.mxu0 %v1481
  %1683 = vmatpush.msra.mxu0 %v1476
  %1684 = vmatpush.msra.mxu0 %v1471
  %1685 = vmatpush.msra.mxu0 %v1466
  %1686 = vmatpush.msra.mxu0 %v1461
  %1687 = vmatpush.msra.mxu0 %v1456
  %1688 = vmatpush.msra.mxu0 %v1451
  %1689 = vmatmul.f32.gmra.mxu0 %v1507
  %v1690 = vpop.f32.mrf.mxu0
  %v1691 = vadd.f32 %v1668, %v1690
  %1692 = vmatmul.f32.gmra.mxu0 %v1510
  %v1693 = vpop.f32.mrf.mxu0
  %v1694 = vadd.f32 %v1671, %v1693
  %1695 = vdwg.mxu0
  %1696 = vmatpush.msra.mxu0 %v1447
  %1697 = vmatpush.msra.mxu0 %v1442
  %1698 = vmatpush.msra.mxu0 %v1437
  %1699 = vmatpush.msra.mxu0 %v1432
  %1700 = vmatpush.msra.mxu0 %v1427
  %1701 = vmatpush.msra.mxu0 %v1422
  %1702 = vmatpush.msra.mxu0 %v1417
  %1703 = vmatpush.msra.mxu0 %v1412
  %1704 = vmatpush.msra.mxu0 %v1407
  %1705 = vmatpush.msra.mxu0 %v1402
  %1706 = vmatpush.msra.mxu0 %v1397
  %1707 = vmatpush.msra.mxu0 %v1392
  %1708 = vmatpush.msra.mxu0 %v1387
  %1709 = vmatpush.msra.mxu0 %v1382
  %1710 = vmatpush.msra.mxu0 %v1377
  %1711 = vmatpush.msra.mxu0 %v1372
  %1712 = vmatmul.f32.gmra.mxu0 %v1364
  %v1713 = vpop.f32.mrf.mxu0
  %v1714 = vadd.f32 %v1498, %v1713
  %1715 = vmatmul.f32.gmra.mxu0 %v1366
  %v1716 = vpop.f32.mrf.mxu0
  %v1717 = vadd.f32 %v1503, %v1716
  %1718 = vdwg.mxu0
  %1719 = vmatpush.msra.mxu0 0.0
  %1720 = vmatpush.msra.mxu0 0.0
  %1721 = vmatpush.msra.mxu0 0.0
  %1722 = vmatpush.msra.mxu0 0.0
  %1723 = vmatpush.msra.mxu0 0.0
  %1724 = vmatpush.msra.mxu0 0.0
  %1725 = vmatpush.msra.mxu0 0.0
  %1726 = vmatpush.msra.mxu0 %v1492
  %1727 = vmatpush.msra.mxu0 %v1487
  %1728 = vmatpush.msra.mxu0 %v1482
  %1729 = vmatpush.msra.mxu0 %v1477
  %1730 = vmatpush.msra.mxu0 %v1472
  %1731 = vmatpush.msra.mxu0 %v1467
  %1732 = vmatpush.msra.mxu0 %v1462
  %1733 = vmatpush.msra.mxu0 %v1457
  %1734 = vmatpush.msra.mxu0 %v1452
  %1735 = vmatmul.f32.gmra.mxu0 %v1507
  %v1736 = vpop.f32.mrf.mxu0
  %v1737 = vadd.f32 %v1714, %v1736
  %1738 = vmatmul.f32.gmra.mxu0 %v1510
  %v1739 = vpop.f32.mrf.mxu0
  %v1740 = vadd.f32 %v1717, %v1739
  %1741 = vdwg.mxu0
  %v1742 = vmul.f32 %v1553, %v178
  %v1743 = vmul.f32 %v1599, %v179
  %v1744 = vmul.f32 %v1645, %v180
  %v1745 = vmul.f32 %v1691, %v181
  %v1746 = vmul.f32 %v1737, %v182
  %v1747 = vmul.f32 %v1556, %v178
  %v1748 = vmul.f32 %v1602, %v179
  %v1749 = vmul.f32 %v1648, %v180
  %v1750 = vmul.f32 %v1694, %v181
  %v1751 = vmul.f32 %v1740, %v182
  %1752 = vst [vmem:[#allocation2 + $0x8] sm:$0xff] %v1742
  %1753 = vst [vmem:[#allocation2 + $0x10] sm:$0xff] %v1743
  %1754 = vst.msk [vmem:[#allocation2 + $0x18] sm:$0xff] %vm195, %v1744
  %1755 = vst [vmem:[#allocation2 + $0x58] sm:$0xff] %v1747
  %1756 = vst [vmem:[#allocation2 + $0x60] sm:$0xff] %v1748
  %1757 = vst.msk [vmem:[#allocation2 + $0x68] sm:$0xff] %vm195, %v1749
  %1764 = vrot.lane.b32.xlu0 %v1744, 64
  %v1765 = vpop.permute.xlu0 %1764
  %1766 = vrot.lane.b32.xlu0 %v1745, 64
  %v1767 = vpop.permute.xlu0 %1766
  %1768 = vrot.lane.b32.xlu0 %v1746, 64
  %v1769 = vpop.permute.xlu0 %1768
  %1770 = vrot.lane.b32.xlu0 %v1749, 64
  %v1771 = vpop.permute.xlu0 %1770
  %1772 = vrot.lane.b32.xlu0 %v1750, 64
  %v1773 = vpop.permute.xlu0 %1772
  %1774 = vrot.lane.b32.xlu0 %v1751, 64
  %v1775 = vpop.permute.xlu0 %1774
  %v1776 = vsel %vm195, %v1765, %v1767
  %v1777 = vsel %vm195, %v1767, %v1769
  %v1778 = vsel %vm195, %v1771, %v1773
  %v1779 = vsel %vm195, %v1773, %v1775
  %1786 = vst [vmem:[#allocation2 + $0x30] sm:$0xff] %v1776
  %1787 = vst [vmem:[#allocation2 + $0x38] sm:$0xff] %v1777
  %1788 = vst.msk [vmem:[#allocation2 + $0x40] sm:$0xff] %vm195, %v1769
  %1789 = vst [vmem:[#allocation2 + $0x80] sm:$0xff] %v1778
  %1790 = vst [vmem:[#allocation2 + $0x88] sm:$0xff] %v1779
  %1791 = vst.msk [vmem:[#allocation2 + $0x90] sm:$0xff] %vm195, %v1775
  %v1792 = vld [vmem:[#allocation2] sm:$0xff]
  %v1793 = vld [vmem:[#allocation2 + $0x8] sm:$0xff]
  %v1794 = vld [vmem:[#allocation2 + $0x10] sm:$0xff]
  %v1795 = vld [vmem:[#allocation2 + $0x18] sm:$0xff]
  %v1796 = vld [vmem:[#allocation2 + $0x50] sm:$0xff]
  %v1797 = vld [vmem:[#allocation2 + $0x58] sm:$0xff]
  %v1798 = vld [vmem:[#allocation2 + $0x60] sm:$0xff]
  %v1799 = vld [vmem:[#allocation2 + $0x68] sm:$0xff]
  %1808 = vrot.lane.b32.xlu0 %v1792, 42
  %v1809 = vpop.permute.xlu0 %1808
  %1810 = vrot.lane.b32.xlu0 %v1793, 42
  %v1811 = vpop.permute.xlu0 %1810
  %1812 = vrot.lane.b32.xlu0 %v1794, 42
  %v1813 = vpop.permute.xlu0 %1812
  %1814 = vrot.lane.b32.xlu0 %v1795, 42
  %v1815 = vpop.permute.xlu0 %1814
  %1816 = vrot.lane.b32.xlu0 %v1796, 42
  %v1817 = vpop.permute.xlu0 %1816
  %1818 = vrot.lane.b32.xlu0 %v1797, 42
  %v1819 = vpop.permute.xlu0 %1818
  %1820 = vrot.lane.b32.xlu0 %v1798, 42
  %v1821 = vpop.permute.xlu0 %1820
  %1822 = vrot.lane.b32.xlu0 %v1799, 42
  %v1823 = vpop.permute.xlu0 %1822
  %v1824 = vsel %vm230, %v1809, %v1811
  %v1825 = vsel %vm230, %v1811, %v1813
  %v1826 = vsel %vm230, %v1813, %v1815
  %v1827 = vsel %vm230, %v1817, %v1819
  %v1828 = vsel %vm230, %v1819, %v1821
  %v1829 = vsel %vm230, %v1821, %v1823
  %1836 = vst [vmem:[#allocation3] sm:$0xff] %v1824
  %1837 = vst [vmem:[#allocation3 + $0x8] sm:$0xff] %v1825
  %1838 = vst.msk [vmem:[#allocation3 + $0x10] sm:$0xff] %vm195, %v1826
  %1839 = vst [vmem:[#allocation3 + $0x28] sm:$0xff] %v1827
  %1840 = vst [vmem:[#allocation3 + $0x30] sm:$0xff] %v1828
  %1841 = vst.msk [vmem:[#allocation3 + $0x38] sm:$0xff] %vm195, %v1829
  %v1842 = vld [vmem:[#allocation2 + $0x28] sm:$0xff]
  %v1843 = vld [vmem:[#allocation2 + $0x30] sm:$0xff]
  %v1844 = vld [vmem:[#allocation2 + $0x38] sm:$0xff]
  %v1845 = vld [vmem:[#allocation2 + $0x40] sm:$0xff]
  %v1846 = vld [vmem:[#allocation2 + $0x78] sm:$0xff]
  %v1847 = vld [vmem:[#allocation2 + $0x80] sm:$0xff]
  %v1848 = vld [vmem:[#allocation2 + $0x88] sm:$0xff]
  %v1849 = vld [vmem:[#allocation2 + $0x90] sm:$0xff]
  %1858 = vrot.lane.b32.xlu0 %v1842, 106
  %v1859 = vpop.permute.xlu0 %1858
  %1860 = vrot.lane.b32.xlu0 %v1843, 106
  %v1861 = vpop.permute.xlu0 %1860
  %1862 = vrot.lane.b32.xlu0 %v1844, 106
  %v1863 = vpop.permute.xlu0 %1862
  %1864 = vrot.lane.b32.xlu0 %v1845, 106
  %v1865 = vpop.permute.xlu0 %1864
  %1866 = vrot.lane.b32.xlu0 %v1846, 106
  %v1867 = vpop.permute.xlu0 %1866
  %1868 = vrot.lane.b32.xlu0 %v1847, 106
  %v1869 = vpop.permute.xlu0 %1868
  %1870 = vrot.lane.b32.xlu0 %v1848, 106
  %v1871 = vpop.permute.xlu0 %1870
  %1872 = vrot.lane.b32.xlu0 %v1849, 106
  %v1873 = vpop.permute.xlu0 %1872
  %v1874 = vsel %vm256, %v1859, %v1861
  %v1875 = vsel %vm256, %v1861, %v1863
  %v1876 = vsel %vm256, %v1863, %v1865
  %v1877 = vsel %vm256, %v1867, %v1869
  %v1878 = vsel %vm256, %v1869, %v1871
  %v1879 = vsel %vm256, %v1871, %v1873
  %1886 = vst.msk [vmem:[#allocation3 + $0x10] sm:$0xff] %vm45, %v1874
  %1887 = vst [vmem:[#allocation3 + $0x18] sm:$0xff] %v1875
  %1888 = vst [vmem:[#allocation3 + $0x20] sm:$0xff] %v1876
  %1889 = vst.msk [vmem:[#allocation3 + $0x38] sm:$0xff] %vm45, %v1877
  %1890 = vst [vmem:[#allocation3 + $0x40] sm:$0xff] %v1878
  %1891 = vst [vmem:[#allocation3 + $0x48] sm:$0xff] %v1879
  %v1892 = vld [vmem:[#allocation2] sm:$0xff]
  %v1893 = vld [vmem:[#allocation2 + $0x8] sm:$0xff]
  %v1894 = vld [vmem:[#allocation2 + $0x10] sm:$0xff]
  %v1895 = vld [vmem:[#allocation2 + $0x18] sm:$0xff]
  %v1896 = vld [vmem:[#allocation2 + $0x50] sm:$0xff]
  %v1897 = vld [vmem:[#allocation2 + $0x58] sm:$0xff]
  %v1898 = vld [vmem:[#allocation2 + $0x60] sm:$0xff]
  %v1899 = vld [vmem:[#allocation2 + $0x68] sm:$0xff]
  %1908 = vrot.lane.b32.xlu0 %v1892, 41
  %v1909 = vpop.permute.xlu0 %1908
  %1910 = vrot.lane.b32.xlu0 %v1893, 41
  %v1911 = vpop.permute.xlu0 %1910
  %1912 = vrot.lane.b32.xlu0 %v1894, 41
  %v1913 = vpop.permute.xlu0 %1912
  %1914 = vrot.lane.b32.xlu0 %v1895, 41
  %v1915 = vpop.permute.xlu0 %1914
  %1916 = vrot.lane.b32.xlu0 %v1896, 41
  %v1917 = vpop.permute.xlu0 %1916
  %1918 = vrot.lane.b32.xlu0 %v1897, 41
  %v1919 = vpop.permute.xlu0 %1918
  %1920 = vrot.lane.b32.xlu0 %v1898, 41
  %v1921 = vpop.permute.xlu0 %1920
  %1922 = vrot.lane.b32.xlu0 %v1899, 41
  %v1923 = vpop.permute.xlu0 %1922
  %v1924 = vsel %vm282, %v1909, %v1911
  %v1925 = vsel %vm282, %v1911, %v1913
  %v1926 = vsel %vm282, %v1913, %v1915
  %v1927 = vsel %vm282, %v1917, %v1919
  %v1928 = vsel %vm282, %v1919, %v1921
  %v1929 = vsel %vm282, %v1921, %v1923
  %1936 = vst [vmem:[#allocation3 + $0x50] sm:$0xff] %v1924
  %1937 = vst [vmem:[#allocation3 + $0x58] sm:$0xff] %v1925
  %1938 = vst.msk [vmem:[#allocation3 + $0x60] sm:$0xff] %vm195, %v1926
  %1939 = vst [vmem:[#allocation3 + $0x78] sm:$0xff] %v1927
  %1940 = vst [vmem:[#allocation3 + $0x80] sm:$0xff] %v1928
  %1941 = vst.msk [vmem:[#allocation3 + $0x88] sm:$0xff] %vm195, %v1929
  %v1942 = vld [vmem:[#allocation2 + $0x28] sm:$0xff]
  %v1943 = vld [vmem:[#allocation2 + $0x30] sm:$0xff]
  %v1944 = vld [vmem:[#allocation2 + $0x38] sm:$0xff]
  %v1945 = vld [vmem:[#allocation2 + $0x40] sm:$0xff]
  %v1946 = vld [vmem:[#allocation2 + $0x78] sm:$0xff]
  %v1947 = vld [vmem:[#allocation2 + $0x80] sm:$0xff]
  %v1948 = vld [vmem:[#allocation2 + $0x88] sm:$0xff]
  %v1949 = vld [vmem:[#allocation2 + $0x90] sm:$0xff]
  %1958 = vrot.lane.b32.xlu0 %v1942, 105
  %v1959 = vpop.permute.xlu0 %1958
  %1960 = vrot.lane.b32.xlu0 %v1943, 105
  %v1961 = vpop.permute.xlu0 %1960
  %1962 = vrot.lane.b32.xlu0 %v1944, 105
  %v1963 = vpop.permute.xlu0 %1962
  %1964 = vrot.lane.b32.xlu0 %v1945, 105
  %v1965 = vpop.permute.xlu0 %1964
  %1966 = vrot.lane.b32.xlu0 %v1946, 105
  %v1967 = vpop.permute.xlu0 %1966
  %1968 = vrot.lane.b32.xlu0 %v1947, 105
  %v1969 = vpop.permute.xlu0 %1968
  %1970 = vrot.lane.b32.xlu0 %v1948, 105
  %v1971 = vpop.permute.xlu0 %1970
  %1972 = vrot.lane.b32.xlu0 %v1949, 105
  %v1973 = vpop.permute.xlu0 %1972
  %v1974 = vsel %vm308, %v1959, %v1961
  %v1975 = vsel %vm308, %v1961, %v1963
  %v1976 = vsel %vm308, %v1963, %v1965
  %v1977 = vsel %vm308, %v1967, %v1969
  %v1978 = vsel %vm308, %v1969, %v1971
  %v1979 = vsel %vm308, %v1971, %v1973
  %1986 = vst.msk [vmem:[#allocation3 + $0x60] sm:$0xff] %vm45, %v1974
  %1987 = vst [vmem:[#allocation3 + $0x68] sm:$0xff] %v1975
  %1988 = vst [vmem:[#allocation3 + $0x70] sm:$0xff] %v1976
  %1989 = vst.msk [vmem:[#allocation3 + $0x88] sm:$0xff] %vm45, %v1977
  %1990 = vst [vmem:[#allocation3 + $0x90] sm:$0xff] %v1978
  %1991 = vst [vmem:[#allocation3 + $0x98] sm:$0xff] %v1979
  %v1992 = vld [vmem:[#allocation2] sm:$0xff]
  %v1993 = vld [vmem:[#allocation2 + $0x8] sm:$0xff]
  %v1994 = vld [vmem:[#allocation2 + $0x10] sm:$0xff]
  %v1995 = vld [vmem:[#allocation2 + $0x18] sm:$0xff]
  %v1996 = vld [vmem:[#allocation2 + $0x50] sm:$0xff]
  %v1997 = vld [vmem:[#allocation2 + $0x58] sm:$0xff]
  %v1998 = vld [vmem:[#allocation2 + $0x60] sm:$0xff]
  %v1999 = vld [vmem:[#allocation2 + $0x68] sm:$0xff]
  %2008 = vrot.lane.b32.xlu0 %v1992, 40
  %v2009 = vpop.permute.xlu0 %2008
  %2010 = vrot.lane.b32.xlu0 %v1993, 40
  %v2011 = vpop.permute.xlu0 %2010
  %2012 = vrot.lane.b32.xlu0 %v1994, 40
  %v2013 = vpop.permute.xlu0 %2012
  %2014 = vrot.lane.b32.xlu0 %v1995, 40
  %v2015 = vpop.permute.xlu0 %2014
  %2016 = vrot.lane.b32.xlu0 %v1996, 40
  %v2017 = vpop.permute.xlu0 %2016
  %2018 = vrot.lane.b32.xlu0 %v1997, 40
  %v2019 = vpop.permute.xlu0 %2018
  %2020 = vrot.lane.b32.xlu0 %v1998, 40
  %v2021 = vpop.permute.xlu0 %2020
  %2022 = vrot.lane.b32.xlu0 %v1999, 40
  %v2023 = vpop.permute.xlu0 %2022
  %v2024 = vsel %vm334, %v2009, %v2011
  %v2025 = vsel %vm334, %v2011, %v2013
  %v2026 = vsel %vm334, %v2013, %v2015
  %v2027 = vsel %vm334, %v2017, %v2019
  %v2028 = vsel %vm334, %v2019, %v2021
  %v2029 = vsel %vm334, %v2021, %v2023
  %2036 = vst [vmem:[#allocation3 + $0xa0] sm:$0xff] %v2024
  %2037 = vst [vmem:[#allocation3 + $0xa8] sm:$0xff] %v2025
  %2038 = vst.msk [vmem:[#allocation3 + $0xb0] sm:$0xff] %vm195, %v2026
  %2039 = vst [vmem:[#allocation3 + $0xc8] sm:$0xff] %v2027
  %2040 = vst [vmem:[#allocation3 + $0xd0] sm:$0xff] %v2028
  %2041 = vst.msk [vmem:[#allocation3 + $0xd8] sm:$0xff] %vm195, %v2029
  %v2042 = vld [vmem:[#allocation2 + $0x28] sm:$0xff]
  %v2043 = vld [vmem:[#allocation2 + $0x30] sm:$0xff]
  %v2044 = vld [vmem:[#allocation2 + $0x38] sm:$0xff]
  %v2045 = vld [vmem:[#allocation2 + $0x40] sm:$0xff]
  %v2046 = vld [vmem:[#allocation2 + $0x78] sm:$0xff]
  %v2047 = vld [vmem:[#allocation2 + $0x80] sm:$0xff]
  %v2048 = vld [vmem:[#allocation2 + $0x88] sm:$0xff]
  %v2049 = vld [vmem:[#allocation2 + $0x90] sm:$0xff]
  %2058 = vrot.lane.b32.xlu0 %v2042, 104
  %v2059 = vpop.permute.xlu0 %2058
  %2060 = vrot.lane.b32.xlu0 %v2043, 104
  %v2061 = vpop.permute.xlu0 %2060
  %2062 = vrot.lane.b32.xlu0 %v2044, 104
  %v2063 = vpop.permute.xlu0 %2062
  %2064 = vrot.lane.b32.xlu0 %v2045, 104
  %v2065 = vpop.permute.xlu0 %2064
  %2066 = vrot.lane.b32.xlu0 %v2046, 104
  %v2067 = vpop.permute.xlu0 %2066
  %2068 = vrot.lane.b32.xlu0 %v2047, 104
  %v2069 = vpop.permute.xlu0 %2068
  %2070 = vrot.lane.b32.xlu0 %v2048, 104
  %v2071 = vpop.permute.xlu0 %2070
  %2072 = vrot.lane.b32.xlu0 %v2049, 104
  %v2073 = vpop.permute.xlu0 %2072
  %v2074 = vsel %vm360, %v2059, %v2061
  %v2075 = vsel %vm360, %v2061, %v2063
  %v2076 = vsel %vm360, %v2063, %v2065
  %v2077 = vsel %vm360, %v2067, %v2069
  %v2078 = vsel %vm360, %v2069, %v2071
  %v2079 = vsel %vm360, %v2071, %v2073
  %2086 = vst.msk [vmem:[#allocation3 + $0xb0] sm:$0xff] %vm45, %v2074
  %2087 = vst [vmem:[#allocation3 + $0xb8] sm:$0xff] %v2075
  %2088 = vst [vmem:[#allocation3 + $0xc0] sm:$0xff] %v2076
  %2089 = vst.msk [vmem:[#allocation3 + $0xd8] sm:$0xff] %vm45, %v2077
  %2090 = vst [vmem:[#allocation3 + $0xe0] sm:$0xff] %v2078
  %2091 = vst [vmem:[#allocation3 + $0xe8] sm:$0xff] %v2079
  %v2092 = vld [vmem:[#allocation2] sm:$0xff]
  %v2093 = vld [vmem:[#allocation2 + $0x8] sm:$0xff]
  %v2094 = vld [vmem:[#allocation2 + $0x10] sm:$0xff]
  %v2095 = vld [vmem:[#allocation2 + $0x18] sm:$0xff]
  %v2096 = vld [vmem:[#allocation2 + $0x50] sm:$0xff]
  %v2097 = vld [vmem:[#allocation2 + $0x58] sm:$0xff]
  %v2098 = vld [vmem:[#allocation2 + $0x60] sm:$0xff]
  %v2099 = vld [vmem:[#allocation2 + $0x68] sm:$0xff]
  %2108 = vrot.lane.b32.xlu0 %v2092, 39
  %v2109 = vpop.permute.xlu0 %2108
  %2110 = vrot.lane.b32.xlu0 %v2093, 39
  %v2111 = vpop.permute.xlu0 %2110
  %2112 = vrot.lane.b32.xlu0 %v2094, 39
  %v2113 = vpop.permute.xlu0 %2112
  %2114 = vrot.lane.b32.xlu0 %v2095, 39
  %v2115 = vpop.permute.xlu0 %2114
  %2116 = vrot.lane.b32.xlu0 %v2096, 39
  %v2117 = vpop.permute.xlu0 %2116
  %2118 = vrot.lane.b32.xlu0 %v2097, 39
  %v2119 = vpop.permute.xlu0 %2118
  %2120 = vrot.lane.b32.xlu0 %v2098, 39
  %v2121 = vpop.permute.xlu0 %2120
  %2122 = vrot.lane.b32.xlu0 %v2099, 39
  %v2123 = vpop.permute.xlu0 %2122
  %v2124 = vsel %vm386, %v2109, %v2111
  %v2125 = vsel %vm386, %v2111, %v2113
  %v2126 = vsel %vm386, %v2113, %v2115
  %v2127 = vsel %vm386, %v2117, %v2119
  %v2128 = vsel %vm386, %v2119, %v2121
  %v2129 = vsel %vm386, %v2121, %v2123
  %2136 = vst [vmem:[#allocation3 + $0xf0] sm:$0xff] %v2124
  %2137 = vst [vmem:[#allocation3 + $0xf8] sm:$0xff] %v2125
  %2138 = vst.msk [vmem:[#allocation3 + $0x100] sm:$0xff] %vm195, %v2126
  %2139 = vst [vmem:[#allocation3 + $0x118] sm:$0xff] %v2127
  %2140 = vst [vmem:[#allocation3 + $0x120] sm:$0xff] %v2128
  %2141 = vst.msk [vmem:[#allocation3 + $0x128] sm:$0xff] %vm195, %v2129
  %v2142 = vld [vmem:[#allocation2 + $0x28] sm:$0xff]
  %v2143 = vld [vmem:[#allocation2 + $0x30] sm:$0xff]
  %v2144 = vld [vmem:[#allocation2 + $0x38] sm:$0xff]
  %v2145 = vld [vmem:[#allocation2 + $0x40] sm:$0xff]
  %v2146 = vld [vmem:[#allocation2 + $0x78] sm:$0xff]
  %v2147 = vld [vmem:[#allocation2 + $0x80] sm:$0xff]
  %v2148 = vld [vmem:[#allocation2 + $0x88] sm:$0xff]
  %v2149 = vld [vmem:[#allocation2 + $0x90] sm:$0xff]
  %2158 = vrot.lane.b32.xlu0 %v2142, 103
  %v2159 = vpop.permute.xlu0 %2158
  %2160 = vrot.lane.b32.xlu0 %v2143, 103
  %v2161 = vpop.permute.xlu0 %2160
  %2162 = vrot.lane.b32.xlu0 %v2144, 103
  %v2163 = vpop.permute.xlu0 %2162
  %2164 = vrot.lane.b32.xlu0 %v2145, 103
  %v2165 = vpop.permute.xlu0 %2164
  %2166 = vrot.lane.b32.xlu0 %v2146, 103
  %v2167 = vpop.permute.xlu0 %2166
  %2168 = vrot.lane.b32.xlu0 %v2147, 103
  %v2169 = vpop.permute.xlu0 %2168
  %2170 = vrot.lane.b32.xlu0 %v2148, 103
  %v2171 = vpop.permute.xlu0 %2170
  %2172 = vrot.lane.b32.xlu0 %v2149, 103
  %v2173 = vpop.permute.xlu0 %2172
  %v2174 = vsel %vm412, %v2159, %v2161
  %v2175 = vsel %vm412, %v2161, %v2163
  %v2176 = vsel %vm412, %v2163, %v2165
  %v2177 = vsel %vm412, %v2167, %v2169
  %v2178 = vsel %vm412, %v2169, %v2171
  %v2179 = vsel %vm412, %v2171, %v2173
  %2186 = vst.msk [vmem:[#allocation3 + $0x100] sm:$0xff] %vm45, %v2174
  %2187 = vst [vmem:[#allocation3 + $0x108] sm:$0xff] %v2175
  %2188 = vst [vmem:[#allocation3 + $0x110] sm:$0xff] %v2176
  %2189 = vst.msk [vmem:[#allocation3 + $0x128] sm:$0xff] %vm45, %v2177
  %2190 = vst [vmem:[#allocation3 + $0x130] sm:$0xff] %v2178
  %2191 = vst [vmem:[#allocation3 + $0x138] sm:$0xff] %v2179
  %v2192 = vld [vmem:[#allocation2] sm:$0xff]
  %v2193 = vld [vmem:[#allocation2 + $0x8] sm:$0xff]
  %v2194 = vld [vmem:[#allocation2 + $0x10] sm:$0xff]
  %v2195 = vld [vmem:[#allocation2 + $0x18] sm:$0xff]
  %v2196 = vld [vmem:[#allocation2 + $0x50] sm:$0xff]
  %v2197 = vld [vmem:[#allocation2 + $0x58] sm:$0xff]
  %v2198 = vld [vmem:[#allocation2 + $0x60] sm:$0xff]
  %v2199 = vld [vmem:[#allocation2 + $0x68] sm:$0xff]
  %2208 = vrot.lane.b32.xlu0 %v2192, 38
  %v2209 = vpop.permute.xlu0 %2208
  %2210 = vrot.lane.b32.xlu0 %v2193, 38
  %v2211 = vpop.permute.xlu0 %2210
  %2212 = vrot.lane.b32.xlu0 %v2194, 38
  %v2213 = vpop.permute.xlu0 %2212
  %2214 = vrot.lane.b32.xlu0 %v2195, 38
  %v2215 = vpop.permute.xlu0 %2214
  %2216 = vrot.lane.b32.xlu0 %v2196, 38
  %v2217 = vpop.permute.xlu0 %2216
  %2218 = vrot.lane.b32.xlu0 %v2197, 38
  %v2219 = vpop.permute.xlu0 %2218
  %2220 = vrot.lane.b32.xlu0 %v2198, 38
  %v2221 = vpop.permute.xlu0 %2220
  %2222 = vrot.lane.b32.xlu0 %v2199, 38
  %v2223 = vpop.permute.xlu0 %2222
  %v2224 = vsel %vm438, %v2209, %v2211
  %v2225 = vsel %vm438, %v2211, %v2213
  %v2226 = vsel %vm438, %v2213, %v2215
  %v2227 = vsel %vm438, %v2217, %v2219
  %v2228 = vsel %vm438, %v2219, %v2221
  %v2229 = vsel %vm438, %v2221, %v2223
  %2236 = vst [vmem:[#allocation3 + $0x140] sm:$0xff] %v2224
  %2237 = vst [vmem:[#allocation3 + $0x148] sm:$0xff] %v2225
  %2238 = vst.msk [vmem:[#allocation3 + $0x150] sm:$0xff] %vm195, %v2226
  %2239 = vst [vmem:[#allocation3 + $0x168] sm:$0xff] %v2227
  %2240 = vst [vmem:[#allocation3 + $0x170] sm:$0xff] %v2228
  %2241 = vst.msk [vmem:[#allocation3 + $0x178] sm:$0xff] %vm195, %v2229
  %v2242 = vld [vmem:[#allocation2 + $0x28] sm:$0xff]
  %v2243 = vld [vmem:[#allocation2 + $0x30] sm:$0xff]
  %v2244 = vld [vmem:[#allocation2 + $0x38] sm:$0xff]
  %v2245 = vld [vmem:[#allocation2 + $0x40] sm:$0xff]
  %v2246 = vld [vmem:[#allocation2 + $0x78] sm:$0xff]
  %v2247 = vld [vmem:[#allocation2 + $0x80] sm:$0xff]
  %v2248 = vld [vmem:[#allocation2 + $0x88] sm:$0xff]
  %v2249 = vld [vmem:[#allocation2 + $0x90] sm:$0xff]
  %2258 = vrot.lane.b32.xlu0 %v2242, 102
  %v2259 = vpop.permute.xlu0 %2258
  %2260 = vrot.lane.b32.xlu0 %v2243, 102
  %v2261 = vpop.permute.xlu0 %2260
  %2262 = vrot.lane.b32.xlu0 %v2244, 102
  %v2263 = vpop.permute.xlu0 %2262
  %2264 = vrot.lane.b32.xlu0 %v2245, 102
  %v2265 = vpop.permute.xlu0 %2264
  %2266 = vrot.lane.b32.xlu0 %v2246, 102
  %v2267 = vpop.permute.xlu0 %2266
  %2268 = vrot.lane.b32.xlu0 %v2247, 102
  %v2269 = vpop.permute.xlu0 %2268
  %2270 = vrot.lane.b32.xlu0 %v2248, 102
  %v2271 = vpop.permute.xlu0 %2270
  %2272 = vrot.lane.b32.xlu0 %v2249, 102
  %v2273 = vpop.permute.xlu0 %2272
  %v2274 = vsel %vm464, %v2259, %v2261
  %v2275 = vsel %vm464, %v2261, %v2263
  %v2276 = vsel %vm464, %v2263, %v2265
  %v2277 = vsel %vm464, %v2267, %v2269
  %v2278 = vsel %vm464, %v2269, %v2271
  %v2279 = vsel %vm464, %v2271, %v2273
  %2286 = vst.msk [vmem:[#allocation3 + $0x150] sm:$0xff] %vm45, %v2274
  %2287 = vst [vmem:[#allocation3 + $0x158] sm:$0xff] %v2275
  %2288 = vst [vmem:[#allocation3 + $0x160] sm:$0xff] %v2276
  %2289 = vst.msk [vmem:[#allocation3 + $0x178] sm:$0xff] %vm45, %v2277
  %2290 = vst [vmem:[#allocation3 + $0x180] sm:$0xff] %v2278
  %2291 = vst [vmem:[#allocation3 + $0x188] sm:$0xff] %v2279
  %v2292 = vld [vmem:[#allocation2] sm:$0xff]
  %v2293 = vld [vmem:[#allocation2 + $0x8] sm:$0xff]
  %v2294 = vld [vmem:[#allocation2 + $0x10] sm:$0xff]
  %v2295 = vld [vmem:[#allocation2 + $0x18] sm:$0xff]
  %v2296 = vld [vmem:[#allocation2 + $0x50] sm:$0xff]
  %v2297 = vld [vmem:[#allocation2 + $0x58] sm:$0xff]
  %v2298 = vld [vmem:[#allocation2 + $0x60] sm:$0xff]
  %v2299 = vld [vmem:[#allocation2 + $0x68] sm:$0xff]
  %2308 = vrot.lane.b32.xlu0 %v2292, 22
  %v2309 = vpop.permute.xlu0 %2308
  %2310 = vrot.lane.b32.xlu0 %v2293, 22
  %v2311 = vpop.permute.xlu0 %2310
  %2312 = vrot.lane.b32.xlu0 %v2294, 22
  %v2313 = vpop.permute.xlu0 %2312
  %2314 = vrot.lane.b32.xlu0 %v2295, 22
  %v2315 = vpop.permute.xlu0 %2314
  %2316 = vrot.lane.b32.xlu0 %v2296, 22
  %v2317 = vpop.permute.xlu0 %2316
  %2318 = vrot.lane.b32.xlu0 %v2297, 22
  %v2319 = vpop.permute.xlu0 %2318
  %2320 = vrot.lane.b32.xlu0 %v2298, 22
  %v2321 = vpop.permute.xlu0 %2320
  %2322 = vrot.lane.b32.xlu0 %v2299, 22
  %v2323 = vpop.permute.xlu0 %2322
  %v2324 = vsel %vm490, %v2309, %v2311
  %v2325 = vsel %vm490, %v2311, %v2313
  %v2326 = vsel %vm490, %v2313, %v2315
  %v2327 = vsel %vm490, %v2317, %v2319
  %v2328 = vsel %vm490, %v2319, %v2321
  %v2329 = vsel %vm490, %v2321, %v2323
  %2336 = vst [vmem:[#allocation3 + $0x190] sm:$0xff] %v2324
  %2337 = vst [vmem:[#allocation3 + $0x198] sm:$0xff] %v2325
  %2338 = vst.msk [vmem:[#allocation3 + $0x1a0] sm:$0xff] %vm195, %v2326
  %2339 = vst [vmem:[#allocation3 + $0x1b8] sm:$0xff] %v2327
  %2340 = vst [vmem:[#allocation3 + $0x1c0] sm:$0xff] %v2328
  %2341 = vst.msk [vmem:[#allocation3 + $0x1c8] sm:$0xff] %vm195, %v2329
  %v2342 = vld [vmem:[#allocation2 + $0x28] sm:$0xff]
  %v2343 = vld [vmem:[#allocation2 + $0x30] sm:$0xff]
  %v2344 = vld [vmem:[#allocation2 + $0x38] sm:$0xff]
  %v2345 = vld [vmem:[#allocation2 + $0x40] sm:$0xff]
  %v2346 = vld [vmem:[#allocation2 + $0x78] sm:$0xff]
  %v2347 = vld [vmem:[#allocation2 + $0x80] sm:$0xff]
  %v2348 = vld [vmem:[#allocation2 + $0x88] sm:$0xff]
  %v2349 = vld [vmem:[#allocation2 + $0x90] sm:$0xff]
  %2358 = vrot.lane.b32.xlu0 %v2342, 86
  %v2359 = vpop.permute.xlu0 %2358
  %2360 = vrot.lane.b32.xlu0 %v2343, 86
  %v2361 = vpop.permute.xlu0 %2360
  %2362 = vrot.lane.b32.xlu0 %v2344, 86
  %v2363 = vpop.permute.xlu0 %2362
  %2364 = vrot.lane.b32.xlu0 %v2345, 86
  %v2365 = vpop.permute.xlu0 %2364
  %2366 = vrot.lane.b32.xlu0 %v2346, 86
  %v2367 = vpop.permute.xlu0 %2366
  %2368 = vrot.lane.b32.xlu0 %v2347, 86
  %v2369 = vpop.permute.xlu0 %2368
  %2370 = vrot.lane.b32.xlu0 %v2348, 86
  %v2371 = vpop.permute.xlu0 %2370
  %2372 = vrot.lane.b32.xlu0 %v2349, 86
  %v2373 = vpop.permute.xlu0 %2372
  %v2374 = vsel %vm516, %v2359, %v2361
  %v2375 = vsel %vm516, %v2361, %v2363
  %v2376 = vsel %vm516, %v2363, %v2365
  %v2377 = vsel %vm516, %v2367, %v2369
  %v2378 = vsel %vm516, %v2369, %v2371
  %v2379 = vsel %vm516, %v2371, %v2373
  %2386 = vst.msk [vmem:[#allocation3 + $0x1a0] sm:$0xff] %vm45, %v2374
  %2387 = vst [vmem:[#allocation3 + $0x1a8] sm:$0xff] %v2375
  %2388 = vst [vmem:[#allocation3 + $0x1b0] sm:$0xff] %v2376
  %2389 = vst.msk [vmem:[#allocation3 + $0x1c8] sm:$0xff] %vm45, %v2377
  %2390 = vst [vmem:[#allocation3 + $0x1d0] sm:$0xff] %v2378
  %2391 = vst [vmem:[#allocation3 + $0x1d8] sm:$0xff] %v2379
  %v2392 = vld [vmem:[#allocation2] sm:$0xff]
  %v2393 = vld [vmem:[#allocation2 + $0x8] sm:$0xff]
  %v2394 = vld [vmem:[#allocation2 + $0x10] sm:$0xff]
  %v2395 = vld [vmem:[#allocation2 + $0x18] sm:$0xff]
  %v2396 = vld [vmem:[#allocation2 + $0x50] sm:$0xff]
  %v2397 = vld [vmem:[#allocation2 + $0x58] sm:$0xff]
  %v2398 = vld [vmem:[#allocation2 + $0x60] sm:$0xff]
  %v2399 = vld [vmem:[#allocation2 + $0x68] sm:$0xff]
  %2408 = vrot.lane.b32.xlu0 %v2392, 21
  %v2409 = vpop.permute.xlu0 %2408
  %2410 = vrot.lane.b32.xlu0 %v2393, 21
  %v2411 = vpop.permute.xlu0 %2410
  %2412 = vrot.lane.b32.xlu0 %v2394, 21
  %v2413 = vpop.permute.xlu0 %2412
  %2414 = vrot.lane.b32.xlu0 %v2395, 21
  %v2415 = vpop.permute.xlu0 %2414
  %2416 = vrot.lane.b32.xlu0 %v2396, 21
  %v2417 = vpop.permute.xlu0 %2416
  %2418 = vrot.lane.b32.xlu0 %v2397, 21
  %v2419 = vpop.permute.xlu0 %2418
  %2420 = vrot.lane.b32.xlu0 %v2398, 21
  %v2421 = vpop.permute.xlu0 %2420
  %2422 = vrot.lane.b32.xlu0 %v2399, 21
  %v2423 = vpop.permute.xlu0 %2422
  %v2424 = vsel %vm542, %v2409, %v2411
  %v2425 = vsel %vm542, %v2411, %v2413
  %v2426 = vsel %vm542, %v2413, %v2415
  %v2427 = vsel %vm542, %v2417, %v2419
  %v2428 = vsel %vm542, %v2419, %v2421
  %v2429 = vsel %vm542, %v2421, %v2423
  %2436 = vst [vmem:[#allocation3 + $0x1e0] sm:$0xff] %v2424
  %2437 = vst [vmem:[#allocation3 + $0x1e8] sm:$0xff] %v2425
  %2438 = vst.msk [vmem:[#allocation3 + $0x1f0] sm:$0xff] %vm195, %v2426
  %2439 = vst [vmem:[#allocation3 + $0x208] sm:$0xff] %v2427
  %2440 = vst [vmem:[#allocation3 + $0x210] sm:$0xff] %v2428
  %2441 = vst.msk [vmem:[#allocation3 + $0x218] sm:$0xff] %vm195, %v2429
  %v2442 = vld [vmem:[#allocation2 + $0x28] sm:$0xff]
  %v2443 = vld [vmem:[#allocation2 + $0x30] sm:$0xff]
  %v2444 = vld [vmem:[#allocation2 + $0x38] sm:$0xff]
  %v2445 = vld [vmem:[#allocation2 + $0x40] sm:$0xff]
  %v2446 = vld [vmem:[#allocation2 + $0x78] sm:$0xff]
  %v2447 = vld [vmem:[#allocation2 + $0x80] sm:$0xff]
  %v2448 = vld [vmem:[#allocation2 + $0x88] sm:$0xff]
  %v2449 = vld [vmem:[#allocation2 + $0x90] sm:$0xff]
  %2458 = vrot.lane.b32.xlu0 %v2442, 85
  %v2459 = vpop.permute.xlu0 %2458
  %2460 = vrot.lane.b32.xlu0 %v2443, 85
  %v2461 = vpop.permute.xlu0 %2460
  %2462 = vrot.lane.b32.xlu0 %v2444, 85
  %v2463 = vpop.permute.xlu0 %2462
  %2464 = vrot.lane.b32.xlu0 %v2445, 85
  %v2465 = vpop.permute.xlu0 %2464
  %2466 = vrot.lane.b32.xlu0 %v2446, 85
  %v2467 = vpop.permute.xlu0 %2466
  %2468 = vrot.lane.b32.xlu0 %v2447, 85
  %v2469 = vpop.permute.xlu0 %2468
  %2470 = vrot.lane.b32.xlu0 %v2448, 85
  %v2471 = vpop.permute.xlu0 %2470
  %2472 = vrot.lane.b32.xlu0 %v2449, 85
  %v2473 = vpop.permute.xlu0 %2472
  %v2474 = vsel %vm568, %v2459, %v2461
  %v2475 = vsel %vm568, %v2461, %v2463
  %v2476 = vsel %vm568, %v2463, %v2465
  %v2477 = vsel %vm568, %v2467, %v2469
  %v2478 = vsel %vm568, %v2469, %v2471
  %v2479 = vsel %vm568, %v2471, %v2473
  %2486 = vst.msk [vmem:[#allocation3 + $0x1f0] sm:$0xff] %vm45, %v2474
  %2487 = vst [vmem:[#allocation3 + $0x1f8] sm:$0xff] %v2475
  %2488 = vst [vmem:[#allocation3 + $0x200] sm:$0xff] %v2476
  %2489 = vst.msk [vmem:[#allocation3 + $0x218] sm:$0xff] %vm45, %v2477
  %2490 = vst [vmem:[#allocation3 + $0x220] sm:$0xff] %v2478
  %2491 = vst [vmem:[#allocation3 + $0x228] sm:$0xff] %v2479
  %v2492 = vld [vmem:[#allocation2] sm:$0xff]
  %v2493 = vld [vmem:[#allocation2 + $0x8] sm:$0xff]
  %v2494 = vld [vmem:[#allocation2 + $0x10] sm:$0xff]
  %v2495 = vld [vmem:[#allocation2 + $0x18] sm:$0xff]
  %v2496 = vld [vmem:[#allocation2 + $0x50] sm:$0xff]
  %v2497 = vld [vmem:[#allocation2 + $0x58] sm:$0xff]
  %v2498 = vld [vmem:[#allocation2 + $0x60] sm:$0xff]
  %v2499 = vld [vmem:[#allocation2 + $0x68] sm:$0xff]
  %2508 = vrot.lane.b32.xlu0 %v2492, 20
  %v2509 = vpop.permute.xlu0 %2508
  %2510 = vrot.lane.b32.xlu0 %v2493, 20
  %v2511 = vpop.permute.xlu0 %2510
  %2512 = vrot.lane.b32.xlu0 %v2494, 20
  %v2513 = vpop.permute.xlu0 %2512
  %2514 = vrot.lane.b32.xlu0 %v2495, 20
  %v2515 = vpop.permute.xlu0 %2514
  %2516 = vrot.lane.b32.xlu0 %v2496, 20
  %v2517 = vpop.permute.xlu0 %2516
  %2518 = vrot.lane.b32.xlu0 %v2497, 20
  %v2519 = vpop.permute.xlu0 %2518
  %2520 = vrot.lane.b32.xlu0 %v2498, 20
  %v2521 = vpop.permute.xlu0 %2520
  %2522 = vrot.lane.b32.xlu0 %v2499, 20
  %v2523 = vpop.permute.xlu0 %2522
  %v2524 = vsel %vm594, %v2509, %v2511
  %v2525 = vsel %vm594, %v2511, %v2513
  %v2526 = vsel %vm594, %v2513, %v2515
  %v2527 = vsel %vm594, %v2517, %v2519
  %v2528 = vsel %vm594, %v2519, %v2521
  %v2529 = vsel %vm594, %v2521, %v2523
  %2536 = vst [vmem:[#allocation3 + $0x230] sm:$0xff] %v2524
  %2537 = vst [vmem:[#allocation3 + $0x238] sm:$0xff] %v2525
  %2538 = vst.msk [vmem:[#allocation3 + $0x240] sm:$0xff] %vm195, %v2526
  %2539 = vst [vmem:[#allocation3 + $0x258] sm:$0xff] %v2527
  %2540 = vst [vmem:[#allocation3 + $0x260] sm:$0xff] %v2528
  %2541 = vst.msk [vmem:[#allocation3 + $0x268] sm:$0xff] %vm195, %v2529
  %v2542 = vld [vmem:[#allocation2 + $0x28] sm:$0xff]
  %v2543 = vld [vmem:[#allocation2 + $0x30] sm:$0xff]
  %v2544 = vld [vmem:[#allocation2 + $0x38] sm:$0xff]
  %v2545 = vld [vmem:[#allocation2 + $0x40] sm:$0xff]
  %v2546 = vld [vmem:[#allocation2 + $0x78] sm:$0xff]
  %v2547 = vld [vmem:[#allocation2 + $0x80] sm:$0xff]
  %v2548 = vld [vmem:[#allocation2 + $0x88] sm:$0xff]
  %v2549 = vld [vmem:[#allocation2 + $0x90] sm:$0xff]
  %2558 = vrot.lane.b32.xlu0 %v2542, 84
  %v2559 = vpop.permute.xlu0 %2558
  %2560 = vrot.lane.b32.xlu0 %v2543, 84
  %v2561 = vpop.permute.xlu0 %2560
  %2562 = vrot.lane.b32.xlu0 %v2544, 84
  %v2563 = vpop.permute.xlu0 %2562
  %2564 = vrot.lane.b32.xlu0 %v2545, 84
  %v2565 = vpop.permute.xlu0 %2564
  %2566 = vrot.lane.b32.xlu0 %v2546, 84
  %v2567 = vpop.permute.xlu0 %2566
  %2568 = vrot.lane.b32.xlu0 %v2547, 84
  %v2569 = vpop.permute.xlu0 %2568
  %2570 = vrot.lane.b32.xlu0 %v2548, 84
  %v2571 = vpop.permute.xlu0 %2570
  %2572 = vrot.lane.b32.xlu0 %v2549, 84
  %v2573 = vpop.permute.xlu0 %2572
  %v2574 = vsel %vm620, %v2559, %v2561
  %v2575 = vsel %vm620, %v2561, %v2563
  %v2576 = vsel %vm620, %v2563, %v2565
  %v2577 = vsel %vm620, %v2567, %v2569
  %v2578 = vsel %vm620, %v2569, %v2571
  %v2579 = vsel %vm620, %v2571, %v2573
  %2586 = vst.msk [vmem:[#allocation3 + $0x240] sm:$0xff] %vm45, %v2574
  %2587 = vst [vmem:[#allocation3 + $0x248] sm:$0xff] %v2575
  %2588 = vst [vmem:[#allocation3 + $0x250] sm:$0xff] %v2576
  %2589 = vst.msk [vmem:[#allocation3 + $0x268] sm:$0xff] %vm45, %v2577
  %2590 = vst [vmem:[#allocation3 + $0x270] sm:$0xff] %v2578
  %2591 = vst [vmem:[#allocation3 + $0x278] sm:$0xff] %v2579
  %v2592 = vld [vmem:[#allocation2] sm:$0xff]
  %v2593 = vld [vmem:[#allocation2 + $0x8] sm:$0xff]
  %v2594 = vld [vmem:[#allocation2 + $0x10] sm:$0xff]
  %v2595 = vld [vmem:[#allocation2 + $0x18] sm:$0xff]
  %v2596 = vld [vmem:[#allocation2 + $0x50] sm:$0xff]
  %v2597 = vld [vmem:[#allocation2 + $0x58] sm:$0xff]
  %v2598 = vld [vmem:[#allocation2 + $0x60] sm:$0xff]
  %v2599 = vld [vmem:[#allocation2 + $0x68] sm:$0xff]
  %2608 = vrot.lane.b32.xlu0 %v2592, 19
  %v2609 = vpop.permute.xlu0 %2608
  %2610 = vrot.lane.b32.xlu0 %v2593, 19
  %v2611 = vpop.permute.xlu0 %2610
  %2612 = vrot.lane.b32.xlu0 %v2594, 19
  %v2613 = vpop.permute.xlu0 %2612
  %2614 = vrot.lane.b32.xlu0 %v2595, 19
  %v2615 = vpop.permute.xlu0 %2614
  %2616 = vrot.lane.b32.xlu0 %v2596, 19
  %v2617 = vpop.permute.xlu0 %2616
  %2618 = vrot.lane.b32.xlu0 %v2597, 19
  %v2619 = vpop.permute.xlu0 %2618
  %2620 = vrot.lane.b32.xlu0 %v2598, 19
  %v2621 = vpop.permute.xlu0 %2620
  %2622 = vrot.lane.b32.xlu0 %v2599, 19
  %v2623 = vpop.permute.xlu0 %2622
  %v2624 = vsel %vm646, %v2609, %v2611
  %v2625 = vsel %vm646, %v2611, %v2613
  %v2626 = vsel %vm646, %v2613, %v2615
  %v2627 = vsel %vm646, %v2617, %v2619
  %v2628 = vsel %vm646, %v2619, %v2621
  %v2629 = vsel %vm646, %v2621, %v2623
  %2636 = vst [vmem:[#allocation3 + $0x280] sm:$0xff] %v2624
  %2637 = vst [vmem:[#allocation3 + $0x288] sm:$0xff] %v2625
  %2638 = vst.msk [vmem:[#allocation3 + $0x290] sm:$0xff] %vm195, %v2626
  %2639 = vst [vmem:[#allocation3 + $0x2a8] sm:$0xff] %v2627
  %2640 = vst [vmem:[#allocation3 + $0x2b0] sm:$0xff] %v2628
  %2641 = vst.msk [vmem:[#allocation3 + $0x2b8] sm:$0xff] %vm195, %v2629
  %v2642 = vld [vmem:[#allocation2 + $0x28] sm:$0xff]
  %v2643 = vld [vmem:[#allocation2 + $0x30] sm:$0xff]
  %v2644 = vld [vmem:[#allocation2 + $0x38] sm:$0xff]
  %v2645 = vld [vmem:[#allocation2 + $0x40] sm:$0xff]
  %v2646 = vld [vmem:[#allocation2 + $0x78] sm:$0xff]
  %v2647 = vld [vmem:[#allocation2 + $0x80] sm:$0xff]
  %v2648 = vld [vmem:[#allocation2 + $0x88] sm:$0xff]
  %v2649 = vld [vmem:[#allocation2 + $0x90] sm:$0xff]
  %2658 = vrot.lane.b32.xlu0 %v2642, 83
  %v2659 = vpop.permute.xlu0 %2658
  %2660 = vrot.lane.b32.xlu0 %v2643, 83
  %v2661 = vpop.permute.xlu0 %2660
  %2662 = vrot.lane.b32.xlu0 %v2644, 83
  %v2663 = vpop.permute.xlu0 %2662
  %2664 = vrot.lane.b32.xlu0 %v2645, 83
  %v2665 = vpop.permute.xlu0 %2664
  %2666 = vrot.lane.b32.xlu0 %v2646, 83
  %v2667 = vpop.permute.xlu0 %2666
  %2668 = vrot.lane.b32.xlu0 %v2647, 83
  %v2669 = vpop.permute.xlu0 %2668
  %2670 = vrot.lane.b32.xlu0 %v2648, 83
  %v2671 = vpop.permute.xlu0 %2670
  %2672 = vrot.lane.b32.xlu0 %v2649, 83
  %v2673 = vpop.permute.xlu0 %2672
  %v2674 = vsel %vm672, %v2659, %v2661
  %v2675 = vsel %vm672, %v2661, %v2663
  %v2676 = vsel %vm672, %v2663, %v2665
  %v2677 = vsel %vm672, %v2667, %v2669
  %v2678 = vsel %vm672, %v2669, %v2671
  %v2679 = vsel %vm672, %v2671, %v2673
  %2686 = vst.msk [vmem:[#allocation3 + $0x290] sm:$0xff] %vm45, %v2674
  %2687 = vst [vmem:[#allocation3 + $0x298] sm:$0xff] %v2675
  %2688 = vst [vmem:[#allocation3 + $0x2a0] sm:$0xff] %v2676
  %2689 = vst.msk [vmem:[#allocation3 + $0x2b8] sm:$0xff] %vm45, %v2677
  %2690 = vst [vmem:[#allocation3 + $0x2c0] sm:$0xff] %v2678
  %2691 = vst [vmem:[#allocation3 + $0x2c8] sm:$0xff] %v2679
  %v2692 = vld [vmem:[#allocation2] sm:$0xff]
  %v2693 = vld [vmem:[#allocation2 + $0x8] sm:$0xff]
  %v2694 = vld [vmem:[#allocation2 + $0x10] sm:$0xff]
  %v2695 = vld [vmem:[#allocation2 + $0x18] sm:$0xff]
  %v2696 = vld [vmem:[#allocation2 + $0x50] sm:$0xff]
  %v2697 = vld [vmem:[#allocation2 + $0x58] sm:$0xff]
  %v2698 = vld [vmem:[#allocation2 + $0x60] sm:$0xff]
  %v2699 = vld [vmem:[#allocation2 + $0x68] sm:$0xff]
  %2708 = vrot.lane.b32.xlu0 %v2692, 18
  %v2709 = vpop.permute.xlu0 %2708
  %2710 = vrot.lane.b32.xlu0 %v2693, 18
  %v2711 = vpop.permute.xlu0 %2710
  %2712 = vrot.lane.b32.xlu0 %v2694, 18
  %v2713 = vpop.permute.xlu0 %2712
  %2714 = vrot.lane.b32.xlu0 %v2695, 18
  %v2715 = vpop.permute.xlu0 %2714
  %2716 = vrot.lane.b32.xlu0 %v2696, 18
  %v2717 = vpop.permute.xlu0 %2716
  %2718 = vrot.lane.b32.xlu0 %v2697, 18
  %v2719 = vpop.permute.xlu0 %2718
  %2720 = vrot.lane.b32.xlu0 %v2698, 18
  %v2721 = vpop.permute.xlu0 %2720
  %2722 = vrot.lane.b32.xlu0 %v2699, 18
  %v2723 = vpop.permute.xlu0 %2722
  %v2724 = vsel %vm698, %v2709, %v2711
  %v2725 = vsel %vm698, %v2711, %v2713
  %v2726 = vsel %vm698, %v2713, %v2715
  %v2727 = vsel %vm698, %v2717, %v2719
  %v2728 = vsel %vm698, %v2719, %v2721
  %v2729 = vsel %vm698, %v2721, %v2723
  %2736 = vst [vmem:[#allocation3 + $0x2d0] sm:$0xff] %v2724
  %2737 = vst [vmem:[#allocation3 + $0x2d8] sm:$0xff] %v2725
  %2738 = vst.msk [vmem:[#allocation3 + $0x2e0] sm:$0xff] %vm195, %v2726
  %2739 = vst [vmem:[#allocation3 + $0x2f8] sm:$0xff] %v2727
  %2740 = vst [vmem:[#allocation3 + $0x300] sm:$0xff] %v2728
  %2741 = vst.msk [vmem:[#allocation3 + $0x308] sm:$0xff] %vm195, %v2729
  %v2742 = vld [vmem:[#allocation2 + $0x28] sm:$0xff]
  %v2743 = vld [vmem:[#allocation2 + $0x30] sm:$0xff]
  %v2744 = vld [vmem:[#allocation2 + $0x38] sm:$0xff]
  %v2745 = vld [vmem:[#allocation2 + $0x40] sm:$0xff]
  %v2746 = vld [vmem:[#allocation2 + $0x78] sm:$0xff]
  %v2747 = vld [vmem:[#allocation2 + $0x80] sm:$0xff]
  %v2748 = vld [vmem:[#allocation2 + $0x88] sm:$0xff]
  %v2749 = vld [vmem:[#allocation2 + $0x90] sm:$0xff]
  %2758 = vrot.lane.b32.xlu0 %v2742, 82
  %v2759 = vpop.permute.xlu0 %2758
  %2760 = vrot.lane.b32.xlu0 %v2743, 82
  %v2761 = vpop.permute.xlu0 %2760
  %2762 = vrot.lane.b32.xlu0 %v2744, 82
  %v2763 = vpop.permute.xlu0 %2762
  %2764 = vrot.lane.b32.xlu0 %v2745, 82
  %v2765 = vpop.permute.xlu0 %2764
  %2766 = vrot.lane.b32.xlu0 %v2746, 82
  %v2767 = vpop.permute.xlu0 %2766
  %2768 = vrot.lane.b32.xlu0 %v2747, 82
  %v2769 = vpop.permute.xlu0 %2768
  %2770 = vrot.lane.b32.xlu0 %v2748, 82
  %v2771 = vpop.permute.xlu0 %2770
  %2772 = vrot.lane.b32.xlu0 %v2749, 82
  %v2773 = vpop.permute.xlu0 %2772
  %v2774 = vsel %vm724, %v2759, %v2761
  %v2775 = vsel %vm724, %v2761, %v2763
  %v2776 = vsel %vm724, %v2763, %v2765
  %v2777 = vsel %vm724, %v2767, %v2769
  %v2778 = vsel %vm724, %v2769, %v2771
  %v2779 = vsel %vm724, %v2771, %v2773
  %2786 = vst.msk [vmem:[#allocation3 + $0x2e0] sm:$0xff] %vm45, %v2774
  %2787 = vst [vmem:[#allocation3 + $0x2e8] sm:$0xff] %v2775
  %2788 = vst [vmem:[#allocation3 + $0x2f0] sm:$0xff] %v2776
  %2789 = vst.msk [vmem:[#allocation3 + $0x308] sm:$0xff] %vm45, %v2777
  %2790 = vst [vmem:[#allocation3 + $0x310] sm:$0xff] %v2778
  %2791 = vst [vmem:[#allocation3 + $0x318] sm:$0xff] %v2779
  %v2792 = vld [vmem:[#allocation2] sm:$0xff]
  %v2793 = vld [vmem:[#allocation2 + $0x8] sm:$0xff]
  %v2794 = vld [vmem:[#allocation2 + $0x10] sm:$0xff]
  %v2795 = vld [vmem:[#allocation2 + $0x18] sm:$0xff]
  %v2796 = vld [vmem:[#allocation2 + $0x50] sm:$0xff]
  %v2797 = vld [vmem:[#allocation2 + $0x58] sm:$0xff]
  %v2798 = vld [vmem:[#allocation2 + $0x60] sm:$0xff]
  %v2799 = vld [vmem:[#allocation2 + $0x68] sm:$0xff]
  %2808 = vrot.lane.b32.xlu0 %v2792, 2
  %v2809 = vpop.permute.xlu0 %2808
  %2810 = vrot.lane.b32.xlu0 %v2793, 2
  %v2811 = vpop.permute.xlu0 %2810
  %2812 = vrot.lane.b32.xlu0 %v2794, 2
  %v2813 = vpop.permute.xlu0 %2812
  %2814 = vrot.lane.b32.xlu0 %v2795, 2
  %v2815 = vpop.permute.xlu0 %2814
  %2816 = vrot.lane.b32.xlu0 %v2796, 2
  %v2817 = vpop.permute.xlu0 %2816
  %2818 = vrot.lane.b32.xlu0 %v2797, 2
  %v2819 = vpop.permute.xlu0 %2818
  %2820 = vrot.lane.b32.xlu0 %v2798, 2
  %v2821 = vpop.permute.xlu0 %2820
  %2822 = vrot.lane.b32.xlu0 %v2799, 2
  %v2823 = vpop.permute.xlu0 %2822
  %v2824 = vsel %vm750, %v2809, %v2811
  %v2825 = vsel %vm750, %v2811, %v2813
  %v2826 = vsel %vm750, %v2813, %v2815
  %v2827 = vsel %vm750, %v2817, %v2819
  %v2828 = vsel %vm750, %v2819, %v2821
  %v2829 = vsel %vm750, %v2821, %v2823
  %2836 = vst [vmem:[#allocation3 + $0x320] sm:$0xff] %v2824
  %2837 = vst [vmem:[#allocation3 + $0x328] sm:$0xff] %v2825
  %2838 = vst.msk [vmem:[#allocation3 + $0x330] sm:$0xff] %vm195, %v2826
  %2839 = vst [vmem:[#allocation3 + $0x348] sm:$0xff] %v2827
  %2840 = vst [vmem:[#allocation3 + $0x350] sm:$0xff] %v2828
  %2841 = vst.msk [vmem:[#allocation3 + $0x358] sm:$0xff] %vm195, %v2829
  %v2842 = vld [vmem:[#allocation2 + $0x28] sm:$0xff]
  %v2843 = vld [vmem:[#allocation2 + $0x30] sm:$0xff]
  %v2844 = vld [vmem:[#allocation2 + $0x38] sm:$0xff]
  %v2845 = vld [vmem:[#allocation2 + $0x40] sm:$0xff]
  %v2846 = vld [vmem:[#allocation2 + $0x78] sm:$0xff]
  %v2847 = vld [vmem:[#allocation2 + $0x80] sm:$0xff]
  %v2848 = vld [vmem:[#allocation2 + $0x88] sm:$0xff]
  %v2849 = vld [vmem:[#allocation2 + $0x90] sm:$0xff]
  %2858 = vrot.lane.b32.xlu0 %v2842, 66
  %v2859 = vpop.permute.xlu0 %2858
  %2860 = vrot.lane.b32.xlu0 %v2843, 66
  %v2861 = vpop.permute.xlu0 %2860
  %2862 = vrot.lane.b32.xlu0 %v2844, 66
  %v2863 = vpop.permute.xlu0 %2862
  %2864 = vrot.lane.b32.xlu0 %v2845, 66
  %v2865 = vpop.permute.xlu0 %2864
  %2866 = vrot.lane.b32.xlu0 %v2846, 66
  %v2867 = vpop.permute.xlu0 %2866
  %2868 = vrot.lane.b32.xlu0 %v2847, 66
  %v2869 = vpop.permute.xlu0 %2868
  %2870 = vrot.lane.b32.xlu0 %v2848, 66
  %v2871 = vpop.permute.xlu0 %2870
  %2872 = vrot.lane.b32.xlu0 %v2849, 66
  %v2873 = vpop.permute.xlu0 %2872
  %v2874 = vsel %vm776, %v2859, %v2861
  %v2875 = vsel %vm776, %v2861, %v2863
  %v2876 = vsel %vm776, %v2863, %v2865
  %v2877 = vsel %vm776, %v2867, %v2869
  %v2878 = vsel %vm776, %v2869, %v2871
  %v2879 = vsel %vm776, %v2871, %v2873
  %2886 = vst.msk [vmem:[#allocation3 + $0x330] sm:$0xff] %vm45, %v2874
  %2887 = vst [vmem:[#allocation3 + $0x338] sm:$0xff] %v2875
  %2888 = vst [vmem:[#allocation3 + $0x340] sm:$0xff] %v2876
  %2889 = vst.msk [vmem:[#allocation3 + $0x358] sm:$0xff] %vm45, %v2877
  %2890 = vst [vmem:[#allocation3 + $0x360] sm:$0xff] %v2878
  %2891 = vst [vmem:[#allocation3 + $0x368] sm:$0xff] %v2879
  %v2892 = vld [vmem:[#allocation2] sm:$0xff]
  %v2893 = vld [vmem:[#allocation2 + $0x8] sm:$0xff]
  %v2894 = vld [vmem:[#allocation2 + $0x10] sm:$0xff]
  %v2895 = vld [vmem:[#allocation2 + $0x18] sm:$0xff]
  %v2896 = vld [vmem:[#allocation2 + $0x50] sm:$0xff]
  %v2897 = vld [vmem:[#allocation2 + $0x58] sm:$0xff]
  %v2898 = vld [vmem:[#allocation2 + $0x60] sm:$0xff]
  %v2899 = vld [vmem:[#allocation2 + $0x68] sm:$0xff]
  %2908 = vrot.lane.b32.xlu0 %v2892, 1
  %v2909 = vpop.permute.xlu0 %2908
  %2910 = vrot.lane.b32.xlu0 %v2893, 1
  %v2911 = vpop.permute.xlu0 %2910
  %2912 = vrot.lane.b32.xlu0 %v2894, 1
  %v2913 = vpop.permute.xlu0 %2912
  %2914 = vrot.lane.b32.xlu0 %v2895, 1
  %v2915 = vpop.permute.xlu0 %2914
  %2916 = vrot.lane.b32.xlu0 %v2896, 1
  %v2917 = vpop.permute.xlu0 %2916
  %2918 = vrot.lane.b32.xlu0 %v2897, 1
  %v2919 = vpop.permute.xlu0 %2918
  %2920 = vrot.lane.b32.xlu0 %v2898, 1
  %v2921 = vpop.permute.xlu0 %2920
  %2922 = vrot.lane.b32.xlu0 %v2899, 1
  %v2923 = vpop.permute.xlu0 %2922
  %v2924 = vsel %vm802, %v2909, %v2911
  %v2925 = vsel %vm802, %v2911, %v2913
  %v2926 = vsel %vm802, %v2913, %v2915
  %v2927 = vsel %vm802, %v2917, %v2919
  %v2928 = vsel %vm802, %v2919, %v2921
  %v2929 = vsel %vm802, %v2921, %v2923
  %2936 = vst [vmem:[#allocation3 + $0x370] sm:$0xff] %v2924
  %2937 = vst [vmem:[#allocation3 + $0x378] sm:$0xff] %v2925
  %2938 = vst.msk [vmem:[#allocation3 + $0x380] sm:$0xff] %vm195, %v2926
  %2939 = vst [vmem:[#allocation3 + $0x398] sm:$0xff] %v2927
  %2940 = vst [vmem:[#allocation3 + $0x3a0] sm:$0xff] %v2928
  %2941 = vst.msk [vmem:[#allocation3 + $0x3a8] sm:$0xff] %vm195, %v2929
  %v2942 = vld [vmem:[#allocation2 + $0x28] sm:$0xff]
  %v2943 = vld [vmem:[#allocation2 + $0x30] sm:$0xff]
  %v2944 = vld [vmem:[#allocation2 + $0x38] sm:$0xff]
  %v2945 = vld [vmem:[#allocation2 + $0x40] sm:$0xff]
  %v2946 = vld [vmem:[#allocation2 + $0x78] sm:$0xff]
  %v2947 = vld [vmem:[#allocation2 + $0x80] sm:$0xff]
  %v2948 = vld [vmem:[#allocation2 + $0x88] sm:$0xff]
  %v2949 = vld [vmem:[#allocation2 + $0x90] sm:$0xff]
  %2958 = vrot.lane.b32.xlu0 %v2942, 65
  %v2959 = vpop.permute.xlu0 %2958
  %2960 = vrot.lane.b32.xlu0 %v2943, 65
  %v2961 = vpop.permute.xlu0 %2960
  %2962 = vrot.lane.b32.xlu0 %v2944, 65
  %v2963 = vpop.permute.xlu0 %2962
  %2964 = vrot.lane.b32.xlu0 %v2945, 65
  %v2965 = vpop.permute.xlu0 %2964
  %2966 = vrot.lane.b32.xlu0 %v2946, 65
  %v2967 = vpop.permute.xlu0 %2966
  %2968 = vrot.lane.b32.xlu0 %v2947, 65
  %v2969 = vpop.permute.xlu0 %2968
  %2970 = vrot.lane.b32.xlu0 %v2948, 65
  %v2971 = vpop.permute.xlu0 %2970
  %2972 = vrot.lane.b32.xlu0 %v2949, 65
  %v2973 = vpop.permute.xlu0 %2972
  %v2974 = vsel %vm828, %v2959, %v2961
  %v2975 = vsel %vm828, %v2961, %v2963
  %v2976 = vsel %vm828, %v2963, %v2965
  %v2977 = vsel %vm828, %v2967, %v2969
  %v2978 = vsel %vm828, %v2969, %v2971
  %v2979 = vsel %vm828, %v2971, %v2973
  %2986 = vst.msk [vmem:[#allocation3 + $0x380] sm:$0xff] %vm45, %v2974
  %2987 = vst [vmem:[#allocation3 + $0x388] sm:$0xff] %v2975
  %2988 = vst [vmem:[#allocation3 + $0x390] sm:$0xff] %v2976
  %2989 = vst.msk [vmem:[#allocation3 + $0x3a8] sm:$0xff] %vm45, %v2977
  %2990 = vst [vmem:[#allocation3 + $0x3b0] sm:$0xff] %v2978
  %2991 = vst [vmem:[#allocation3 + $0x3b8] sm:$0xff] %v2979
  %v2992 = vld [vmem:[#allocation2 + $0x8] sm:$0xff]
  %v2993 = vld [vmem:[#allocation2 + $0x10] sm:$0xff]
  %v2994 = vld [vmem:[#allocation2 + $0x18] sm:$0xff]
  %v2995 = vld [vmem:[#allocation2 + $0x58] sm:$0xff]
  %v2996 = vld [vmem:[#allocation2 + $0x60] sm:$0xff]
  %v2997 = vld [vmem:[#allocation2 + $0x68] sm:$0xff]
  %2998 = vst [vmem:[#allocation3 + $0x3c0] sm:$0xff] %v2992
  %2999 = vst [vmem:[#allocation3 + $0x3c8] sm:$0xff] %v2993
  %3000 = vst.msk [vmem:[#allocation3 + $0x3d0] sm:$0xff] %vm195, %v2994
  %3001 = vst [vmem:[#allocation3 + $0x3e8] sm:$0xff] %v2995
  %3002 = vst [vmem:[#allocation3 + $0x3f0] sm:$0xff] %v2996
  %3003 = vst.msk [vmem:[#allocation3 + $0x3f8] sm:$0xff] %vm195, %v2997
  %v3004 = vld [vmem:[#allocation2 + $0x30] sm:$0xff]
  %v3005 = vld [vmem:[#allocation2 + $0x38] sm:$0xff]
  %v3006 = vld [vmem:[#allocation2 + $0x40] sm:$0xff]
  %v3007 = vld [vmem:[#allocation2 + $0x80] sm:$0xff]
  %v3008 = vld [vmem:[#allocation2 + $0x88] sm:$0xff]
  %v3009 = vld [vmem:[#allocation2 + $0x90] sm:$0xff]
  %3016 = vrot.lane.b32.xlu0 %v3004, 64
  %v3017 = vpop.permute.xlu0 %3016
  %3018 = vrot.lane.b32.xlu0 %v3005, 64
  %v3019 = vpop.permute.xlu0 %3018
  %3020 = vrot.lane.b32.xlu0 %v3006, 64
  %v3021 = vpop.permute.xlu0 %3020
  %3022 = vrot.lane.b32.xlu0 %v3007, 64
  %v3023 = vpop.permute.xlu0 %3022
  %3024 = vrot.lane.b32.xlu0 %v3008, 64
  %v3025 = vpop.permute.xlu0 %3024
  %3026 = vrot.lane.b32.xlu0 %v3009, 64
  %v3027 = vpop.permute.xlu0 %3026
  %v3028 = vsel %vm195, %v3017, %v3019
  %v3029 = vsel %vm195, %v3019, %v3021
  %v3030 = vsel %vm195, %v3023, %v3025
  %v3031 = vsel %vm195, %v3025, %v3027
  %3038 = vst.msk [vmem:[#allocation3 + $0x3d0] sm:$0xff] %vm45, %v3017
  %3039 = vst [vmem:[#allocation3 + $0x3d8] sm:$0xff] %v3028
  %3040 = vst [vmem:[#allocation3 + $0x3e0] sm:$0xff] %v3029
  %3041 = vst.msk [vmem:[#allocation3 + $0x3f8] sm:$0xff] %vm45, %v3023
  %3042 = vst [vmem:[#allocation3 + $0x400] sm:$0xff] %v3030
  %3043 = vst [vmem:[#allocation3 + $0x408] sm:$0xff] %v3031
  %v3044 = vld [vmem:[#allocation2 + $0x8] sm:$0xff]
  %v3045 = vld [vmem:[#allocation2 + $0x10] sm:$0xff]
  %v3046 = vld [vmem:[#allocation2 + $0x18] sm:$0xff]
  %v3047 = vld [vmem:[#allocation2 + $0x58] sm:$0xff]
  %v3048 = vld [vmem:[#allocation2 + $0x60] sm:$0xff]
  %v3049 = vld [vmem:[#allocation2 + $0x68] sm:$0xff]
  %3056 = vrot.lane.b32.xlu0 %v3044, 127
  %v3057 = vpop.permute.xlu0 %3056
  %3058 = vrot.lane.b32.xlu0 %v3045, 127
  %v3059 = vpop.permute.xlu0 %3058
  %3060 = vrot.lane.b32.xlu0 %v3046, 127
  %v3061 = vpop.permute.xlu0 %3060
  %3062 = vrot.lane.b32.xlu0 %v3047, 127
  %v3063 = vpop.permute.xlu0 %3062
  %3064 = vrot.lane.b32.xlu0 %v3048, 127
  %v3065 = vpop.permute.xlu0 %3064
  %3066 = vrot.lane.b32.xlu0 %v3049, 127
  %v3067 = vpop.permute.xlu0 %3066
  %v3068 = vsel %vm876, %v3057, %v3059
  %v3069 = vsel %vm876, %v3059, %v3061
  %v3070 = vsel %vm876, %v3063, %v3065
  %v3071 = vsel %vm876, %v3065, %v3067
  %3078 = vst [vmem:[#allocation3 + $0x410] sm:$0xff] %v3068
  %3079 = vst [vmem:[#allocation3 + $0x418] sm:$0xff] %v3069
  %3080 = vst.msk [vmem:[#allocation3 + $0x420] sm:$0xff] %vm195, %v3061
  %3081 = vst [vmem:[#allocation3 + $0x438] sm:$0xff] %v3070
  %3082 = vst [vmem:[#allocation3 + $0x440] sm:$0xff] %v3071
  %3083 = vst.msk [vmem:[#allocation3 + $0x448] sm:$0xff] %vm195, %v3067
  %v3084 = vld [vmem:[#allocation2 + $0x30] sm:$0xff]
  %v3085 = vld [vmem:[#allocation2 + $0x38] sm:$0xff]
  %v3086 = vld [vmem:[#allocation2 + $0x40] sm:$0xff]
  %v3087 = vld [vmem:[#allocation2 + $0x80] sm:$0xff]
  %v3088 = vld [vmem:[#allocation2 + $0x88] sm:$0xff]
  %v3089 = vld [vmem:[#allocation2 + $0x90] sm:$0xff]
  %3096 = vrot.lane.b32.xlu0 %v3084, 63
  %v3097 = vpop.permute.xlu0 %3096
  %3098 = vrot.lane.b32.xlu0 %v3085, 63
  %v3099 = vpop.permute.xlu0 %3098
  %3100 = vrot.lane.b32.xlu0 %v3086, 63
  %v3101 = vpop.permute.xlu0 %3100
  %3102 = vrot.lane.b32.xlu0 %v3087, 63
  %v3103 = vpop.permute.xlu0 %3102
  %3104 = vrot.lane.b32.xlu0 %v3088, 63
  %v3105 = vpop.permute.xlu0 %3104
  %3106 = vrot.lane.b32.xlu0 %v3089, 63
  %v3107 = vpop.permute.xlu0 %3106
  %v3108 = vsel %vm897, %v3097, %v3099
  %v3109 = vsel %vm897, %v3099, %v3101
  %v3110 = vsel %vm897, %v3103, %v3105
  %v3111 = vsel %vm897, %v3105, %v3107
  %3118 = vst.msk [vmem:[#allocation3 + $0x420] sm:$0xff] %vm45, %v3097
  %3119 = vst [vmem:[#allocation3 + $0x428] sm:$0xff] %v3108
  %3120 = vst [vmem:[#allocation3 + $0x430] sm:$0xff] %v3109
  %3121 = vst.msk [vmem:[#allocation3 + $0x448] sm:$0xff] %vm45, %v3103
  %3122 = vst [vmem:[#allocation3 + $0x450] sm:$0xff] %v3110
  %3123 = vst [vmem:[#allocation3 + $0x458] sm:$0xff] %v3111
  %v3124 = vld [vmem:[#allocation2 + $0x8] sm:$0xff]
  %v3125 = vld [vmem:[#allocation2 + $0x10] sm:$0xff]
  %v3126 = vld [vmem:[#allocation2 + $0x18] sm:$0xff]
  %v3127 = vld [vmem:[#allocation2 + $0x58] sm:$0xff]
  %v3128 = vld [vmem:[#allocation2 + $0x60] sm:$0xff]
  %v3129 = vld [vmem:[#allocation2 + $0x68] sm:$0xff]
  %3136 = vrot.lane.b32.xlu0 %v3124, 126
  %v3137 = vpop.permute.xlu0 %3136
  %3138 = vrot.lane.b32.xlu0 %v3125, 126
  %v3139 = vpop.permute.xlu0 %3138
  %3140 = vrot.lane.b32.xlu0 %v3126, 126
  %v3141 = vpop.permute.xlu0 %3140
  %3142 = vrot.lane.b32.xlu0 %v3127, 126
  %v3143 = vpop.permute.xlu0 %3142
  %3144 = vrot.lane.b32.xlu0 %v3128, 126
  %v3145 = vpop.permute.xlu0 %3144
  %3146 = vrot.lane.b32.xlu0 %v3129, 126
  %v3147 = vpop.permute.xlu0 %3146
  %v3148 = vsel %vm918, %v3137, %v3139
  %v3149 = vsel %vm918, %v3139, %v3141
  %v3150 = vsel %vm918, %v3143, %v3145
  %v3151 = vsel %vm918, %v3145, %v3147
  %3158 = vst [vmem:[#allocation3 + $0x460] sm:$0xff] %v3148
  %3159 = vst [vmem:[#allocation3 + $0x468] sm:$0xff] %v3149
  %3160 = vst.msk [vmem:[#allocation3 + $0x470] sm:$0xff] %vm195, %v3141
  %3161 = vst [vmem:[#allocation3 + $0x488] sm:$0xff] %v3150
  %3162 = vst [vmem:[#allocation3 + $0x490] sm:$0xff] %v3151
  %3163 = vst.msk [vmem:[#allocation3 + $0x498] sm:$0xff] %vm195, %v3147
  %v3164 = vld [vmem:[#allocation2 + $0x30] sm:$0xff]
  %v3165 = vld [vmem:[#allocation2 + $0x38] sm:$0xff]
  %v3166 = vld [vmem:[#allocation2 + $0x40] sm:$0xff]
  %v3167 = vld [vmem:[#allocation2 + $0x80] sm:$0xff]
  %v3168 = vld [vmem:[#allocation2 + $0x88] sm:$0xff]
  %v3169 = vld [vmem:[#allocation2 + $0x90] sm:$0xff]
  %3176 = vrot.lane.b32.xlu0 %v3164, 62
  %v3177 = vpop.permute.xlu0 %3176
  %3178 = vrot.lane.b32.xlu0 %v3165, 62
  %v3179 = vpop.permute.xlu0 %3178
  %3180 = vrot.lane.b32.xlu0 %v3166, 62
  %v3181 = vpop.permute.xlu0 %3180
  %3182 = vrot.lane.b32.xlu0 %v3167, 62
  %v3183 = vpop.permute.xlu0 %3182
  %3184 = vrot.lane.b32.xlu0 %v3168, 62
  %v3185 = vpop.permute.xlu0 %3184
  %3186 = vrot.lane.b32.xlu0 %v3169, 62
  %v3187 = vpop.permute.xlu0 %3186
  %v3188 = vsel %vm939, %v3177, %v3179
  %v3189 = vsel %vm939, %v3179, %v3181
  %v3190 = vsel %vm939, %v3183, %v3185
  %v3191 = vsel %vm939, %v3185, %v3187
  %3198 = vst.msk [vmem:[#allocation3 + $0x470] sm:$0xff] %vm45, %v3177
  %3199 = vst [vmem:[#allocation3 + $0x478] sm:$0xff] %v3188
  %3200 = vst [vmem:[#allocation3 + $0x480] sm:$0xff] %v3189
  %3201 = vst.msk [vmem:[#allocation3 + $0x498] sm:$0xff] %vm45, %v3183
  %3202 = vst [vmem:[#allocation3 + $0x4a0] sm:$0xff] %v3190
  %3203 = vst [vmem:[#allocation3 + $0x4a8] sm:$0xff] %v3191
  %v3204 = vld [vmem:[#allocation2 + $0x8] sm:$0xff]
  %v3205 = vld [vmem:[#allocation2 + $0x10] sm:$0xff]
  %v3206 = vld [vmem:[#allocation2 + $0x18] sm:$0xff]
  %v3207 = vld [vmem:[#allocation2 + $0x58] sm:$0xff]
  %v3208 = vld [vmem:[#allocation2 + $0x60] sm:$0xff]
  %v3209 = vld [vmem:[#allocation2 + $0x68] sm:$0xff]
  %3216 = vrot.lane.b32.xlu0 %v3204, 110
  %v3217 = vpop.permute.xlu0 %3216
  %3218 = vrot.lane.b32.xlu0 %v3205, 110
  %v3219 = vpop.permute.xlu0 %3218
  %3220 = vrot.lane.b32.xlu0 %v3206, 110
  %v3221 = vpop.permute.xlu0 %3220
  %3222 = vrot.lane.b32.xlu0 %v3207, 110
  %v3223 = vpop.permute.xlu0 %3222
  %3224 = vrot.lane.b32.xlu0 %v3208, 110
  %v3225 = vpop.permute.xlu0 %3224
  %3226 = vrot.lane.b32.xlu0 %v3209, 110
  %v3227 = vpop.permute.xlu0 %3226
  %v3228 = vsel %vm960, %v3217, %v3219
  %v3229 = vsel %vm960, %v3219, %v3221
  %v3230 = vsel %vm960, %v3223, %v3225
  %v3231 = vsel %vm960, %v3225, %v3227
  %3238 = vst [vmem:[#allocation3 + $0x4b0] sm:$0xff] %v3228
  %3239 = vst [vmem:[#allocation3 + $0x4b8] sm:$0xff] %v3229
  %3240 = vst.msk [vmem:[#allocation3 + $0x4c0] sm:$0xff] %vm195, %v3221
  %3241 = vst [vmem:[#allocation3 + $0x4d8] sm:$0xff] %v3230
  %3242 = vst [vmem:[#allocation3 + $0x4e0] sm:$0xff] %v3231
  %3243 = vst.msk [vmem:[#allocation3 + $0x4e8] sm:$0xff] %vm195, %v3227
  %v3244 = vld [vmem:[#allocation2 + $0x30] sm:$0xff]
  %v3245 = vld [vmem:[#allocation2 + $0x38] sm:$0xff]
  %v3246 = vld [vmem:[#allocation2 + $0x40] sm:$0xff]
  %v3247 = vld [vmem:[#allocation2 + $0x80] sm:$0xff]
  %v3248 = vld [vmem:[#allocation2 + $0x88] sm:$0xff]
  %v3249 = vld [vmem:[#allocation2 + $0x90] sm:$0xff]
  %3256 = vrot.lane.b32.xlu0 %v3244, 46
  %v3257 = vpop.permute.xlu0 %3256
  %3258 = vrot.lane.b32.xlu0 %v3245, 46
  %v3259 = vpop.permute.xlu0 %3258
  %3260 = vrot.lane.b32.xlu0 %v3246, 46
  %v3261 = vpop.permute.xlu0 %3260
  %3262 = vrot.lane.b32.xlu0 %v3247, 46
  %v3263 = vpop.permute.xlu0 %3262
  %3264 = vrot.lane.b32.xlu0 %v3248, 46
  %v3265 = vpop.permute.xlu0 %3264
  %3266 = vrot.lane.b32.xlu0 %v3249, 46
  %v3267 = vpop.permute.xlu0 %3266
  %v3268 = vsel %vm981, %v3257, %v3259
  %v3269 = vsel %vm981, %v3259, %v3261
  %v3270 = vsel %vm981, %v3263, %v3265
  %v3271 = vsel %vm981, %v3265, %v3267
  %3278 = vst.msk [vmem:[#allocation3 + $0x4c0] sm:$0xff] %vm45, %v3257
  %3279 = vst [vmem:[#allocation3 + $0x4c8] sm:$0xff] %v3268
  %3280 = vst [vmem:[#allocation3 + $0x4d0] sm:$0xff] %v3269
  %3281 = vst.msk [vmem:[#allocation3 + $0x4e8] sm:$0xff] %vm45, %v3263
  %3282 = vst [vmem:[#allocation3 + $0x4f0] sm:$0xff] %v3270
  %3283 = vst [vmem:[#allocation3 + $0x4f8] sm:$0xff] %v3271
  %v3284 = vld [vmem:[#allocation2 + $0x8] sm:$0xff]
  %v3285 = vld [vmem:[#allocation2 + $0x10] sm:$0xff]
  %v3286 = vld [vmem:[#allocation2 + $0x18] sm:$0xff]
  %v3287 = vld [vmem:[#allocation2 + $0x58] sm:$0xff]
  %v3288 = vld [vmem:[#allocation2 + $0x60] sm:$0xff]
  %v3289 = vld [vmem:[#allocation2 + $0x68] sm:$0xff]
  %3296 = vrot.lane.b32.xlu0 %v3284, 109
  %v3297 = vpop.permute.xlu0 %3296
  %3298 = vrot.lane.b32.xlu0 %v3285, 109
  %v3299 = vpop.permute.xlu0 %3298
  %3300 = vrot.lane.b32.xlu0 %v3286, 109
  %v3301 = vpop.permute.xlu0 %3300
  %3302 = vrot.lane.b32.xlu0 %v3287, 109
  %v3303 = vpop.permute.xlu0 %3302
  %3304 = vrot.lane.b32.xlu0 %v3288, 109
  %v3305 = vpop.permute.xlu0 %3304
  %3306 = vrot.lane.b32.xlu0 %v3289, 109
  %v3307 = vpop.permute.xlu0 %3306
  %v3308 = vsel %vm1002, %v3297, %v3299
  %v3309 = vsel %vm1002, %v3299, %v3301
  %v3310 = vsel %vm1002, %v3303, %v3305
  %v3311 = vsel %vm1002, %v3305, %v3307
  %3318 = vst [vmem:[#allocation3 + $0x500] sm:$0xff] %v3308
  %3319 = vst [vmem:[#allocation3 + $0x508] sm:$0xff] %v3309
  %3320 = vst.msk [vmem:[#allocation3 + $0x510] sm:$0xff] %vm195, %v3301
  %3321 = vst [vmem:[#allocation3 + $0x528] sm:$0xff] %v3310
  %3322 = vst [vmem:[#allocation3 + $0x530] sm:$0xff] %v3311
  %3323 = vst.msk [vmem:[#allocation3 + $0x538] sm:$0xff] %vm195, %v3307
  %v3324 = vld [vmem:[#allocation2 + $0x30] sm:$0xff]
  %v3325 = vld [vmem:[#allocation2 + $0x38] sm:$0xff]
  %v3326 = vld [vmem:[#allocation2 + $0x40] sm:$0xff]
  %v3327 = vld [vmem:[#allocation2 + $0x80] sm:$0xff]
  %v3328 = vld [vmem:[#allocation2 + $0x88] sm:$0xff]
  %v3329 = vld [vmem:[#allocation2 + $0x90] sm:$0xff]
  %3336 = vrot.lane.b32.xlu0 %v3324, 45
  %v3337 = vpop.permute.xlu0 %3336
  %3338 = vrot.lane.b32.xlu0 %v3325, 45
  %v3339 = vpop.permute.xlu0 %3338
  %3340 = vrot.lane.b32.xlu0 %v3326, 45
  %v3341 = vpop.permute.xlu0 %3340
  %3342 = vrot.lane.b32.xlu0 %v3327, 45
  %v3343 = vpop.permute.xlu0 %3342
  %3344 = vrot.lane.b32.xlu0 %v3328, 45
  %v3345 = vpop.permute.xlu0 %3344
  %3346 = vrot.lane.b32.xlu0 %v3329, 45
  %v3347 = vpop.permute.xlu0 %3346
  %v3348 = vsel %vm1023, %v3337, %v3339
  %v3349 = vsel %vm1023, %v3339, %v3341
  %v3350 = vsel %vm1023, %v3343, %v3345
  %v3351 = vsel %vm1023, %v3345, %v3347
  %3358 = vst.msk [vmem:[#allocation3 + $0x510] sm:$0xff] %vm45, %v3337
  %3359 = vst [vmem:[#allocation3 + $0x518] sm:$0xff] %v3348
  %3360 = vst [vmem:[#allocation3 + $0x520] sm:$0xff] %v3349
  %3361 = vst.msk [vmem:[#allocation3 + $0x538] sm:$0xff] %vm45, %v3343
  %3362 = vst [vmem:[#allocation3 + $0x540] sm:$0xff] %v3350
  %3363 = vst [vmem:[#allocation3 + $0x548] sm:$0xff] %v3351
  %v3364 = vld [vmem:[#allocation2 + $0x8] sm:$0xff]
  %v3365 = vld [vmem:[#allocation2 + $0x10] sm:$0xff]
  %v3366 = vld [vmem:[#allocation2 + $0x18] sm:$0xff]
  %v3367 = vld [vmem:[#allocation2 + $0x58] sm:$0xff]
  %v3368 = vld [vmem:[#allocation2 + $0x60] sm:$0xff]
  %v3369 = vld [vmem:[#allocation2 + $0x68] sm:$0xff]
  %3376 = vrot.lane.b32.xlu0 %v3364, 108
  %v3377 = vpop.permute.xlu0 %3376
  %3378 = vrot.lane.b32.xlu0 %v3365, 108
  %v3379 = vpop.permute.xlu0 %3378
  %3380 = vrot.lane.b32.xlu0 %v3366, 108
  %v3381 = vpop.permute.xlu0 %3380
  %3382 = vrot.lane.b32.xlu0 %v3367, 108
  %v3383 = vpop.permute.xlu0 %3382
  %3384 = vrot.lane.b32.xlu0 %v3368, 108
  %v3385 = vpop.permute.xlu0 %3384
  %3386 = vrot.lane.b32.xlu0 %v3369, 108
  %v3387 = vpop.permute.xlu0 %3386
  %v3388 = vsel %vm1044, %v3377, %v3379
  %v3389 = vsel %vm1044, %v3379, %v3381
  %v3390 = vsel %vm1044, %v3383, %v3385
  %v3391 = vsel %vm1044, %v3385, %v3387
  %3398 = vst [vmem:[#allocation3 + $0x550] sm:$0xff] %v3388
  %3399 = vst [vmem:[#allocation3 + $0x558] sm:$0xff] %v3389
  %3400 = vst.msk [vmem:[#allocation3 + $0x560] sm:$0xff] %vm195, %v3381
  %3401 = vst [vmem:[#allocation3 + $0x578] sm:$0xff] %v3390
  %3402 = vst [vmem:[#allocation3 + $0x580] sm:$0xff] %v3391
  %3403 = vst.msk [vmem:[#allocation3 + $0x588] sm:$0xff] %vm195, %v3387
  %v3404 = vld [vmem:[#allocation2 + $0x30] sm:$0xff]
  %v3405 = vld [vmem:[#allocation2 + $0x38] sm:$0xff]
  %v3406 = vld [vmem:[#allocation2 + $0x40] sm:$0xff]
  %v3407 = vld [vmem:[#allocation2 + $0x80] sm:$0xff]
  %v3408 = vld [vmem:[#allocation2 + $0x88] sm:$0xff]
  %v3409 = vld [vmem:[#allocation2 + $0x90] sm:$0xff]
  %3416 = vrot.lane.b32.xlu0 %v3404, 44
  %v3417 = vpop.permute.xlu0 %3416
  %3418 = vrot.lane.b32.xlu0 %v3405, 44
  %v3419 = vpop.permute.xlu0 %3418
  %3420 = vrot.lane.b32.xlu0 %v3406, 44
  %v3421 = vpop.permute.xlu0 %3420
  %3422 = vrot.lane.b32.xlu0 %v3407, 44
  %v3423 = vpop.permute.xlu0 %3422
  %3424 = vrot.lane.b32.xlu0 %v3408, 44
  %v3425 = vpop.permute.xlu0 %3424
  %3426 = vrot.lane.b32.xlu0 %v3409, 44
  %v3427 = vpop.permute.xlu0 %3426
  %v3428 = vsel %vm1065, %v3417, %v3419
  %v3429 = vsel %vm1065, %v3419, %v3421
  %v3430 = vsel %vm1065, %v3423, %v3425
  %v3431 = vsel %vm1065, %v3425, %v3427
  %3438 = vst.msk [vmem:[#allocation3 + $0x560] sm:$0xff] %vm45, %v3417
  %3439 = vst [vmem:[#allocation3 + $0x568] sm:$0xff] %v3428
  %3440 = vst [vmem:[#allocation3 + $0x570] sm:$0xff] %v3429
  %3441 = vst.msk [vmem:[#allocation3 + $0x588] sm:$0xff] %vm45, %v3423
  %3442 = vst [vmem:[#allocation3 + $0x590] sm:$0xff] %v3430
  %3443 = vst [vmem:[#allocation3 + $0x598] sm:$0xff] %v3431
  %v3444 = vld [vmem:[#allocation2 + $0x8] sm:$0xff]
  %v3445 = vld [vmem:[#allocation2 + $0x10] sm:$0xff]
  %v3446 = vld [vmem:[#allocation2 + $0x18] sm:$0xff]
  %v3447 = vld [vmem:[#allocation2 + $0x58] sm:$0xff]
  %v3448 = vld [vmem:[#allocation2 + $0x60] sm:$0xff]
  %v3449 = vld [vmem:[#allocation2 + $0x68] sm:$0xff]
  %3456 = vrot.lane.b32.xlu0 %v3444, 107
  %v3457 = vpop.permute.xlu0 %3456
  %3458 = vrot.lane.b32.xlu0 %v3445, 107
  %v3459 = vpop.permute.xlu0 %3458
  %3460 = vrot.lane.b32.xlu0 %v3446, 107
  %v3461 = vpop.permute.xlu0 %3460
  %3462 = vrot.lane.b32.xlu0 %v3447, 107
  %v3463 = vpop.permute.xlu0 %3462
  %3464 = vrot.lane.b32.xlu0 %v3448, 107
  %v3465 = vpop.permute.xlu0 %3464
  %3466 = vrot.lane.b32.xlu0 %v3449, 107
  %v3467 = vpop.permute.xlu0 %3466
  %v3468 = vsel %vm1086, %v3457, %v3459
  %v3469 = vsel %vm1086, %v3459, %v3461
  %v3470 = vsel %vm1086, %v3463, %v3465
  %v3471 = vsel %vm1086, %v3465, %v3467
  %3478 = vst [vmem:[#allocation3 + $0x5a0] sm:$0xff] %v3468
  %3479 = vst [vmem:[#allocation3 + $0x5a8] sm:$0xff] %v3469
  %3480 = vst.msk [vmem:[#allocation3 + $0x5b0] sm:$0xff] %vm195, %v3461
  %3481 = vst [vmem:[#allocation3 + $0x5c8] sm:$0xff] %v3470
  %3482 = vst [vmem:[#allocation3 + $0x5d0] sm:$0xff] %v3471
  %3483 = vst.msk [vmem:[#allocation3 + $0x5d8] sm:$0xff] %vm195, %v3467
  %v3484 = vld [vmem:[#allocation2 + $0x30] sm:$0xff]
  %v3485 = vld [vmem:[#allocation2 + $0x38] sm:$0xff]
  %v3486 = vld [vmem:[#allocation2 + $0x40] sm:$0xff]
  %v3487 = vld [vmem:[#allocation2 + $0x80] sm:$0xff]
  %v3488 = vld [vmem:[#allocation2 + $0x88] sm:$0xff]
  %v3489 = vld [vmem:[#allocation2 + $0x90] sm:$0xff]
  %3496 = vrot.lane.b32.xlu0 %v3484, 43
  %v3497 = vpop.permute.xlu0 %3496
  %3498 = vrot.lane.b32.xlu0 %v3485, 43
  %v3499 = vpop.permute.xlu0 %3498
  %3500 = vrot.lane.b32.xlu0 %v3486, 43
  %v3501 = vpop.permute.xlu0 %3500
  %3502 = vrot.lane.b32.xlu0 %v3487, 43
  %v3503 = vpop.permute.xlu0 %3502
  %3504 = vrot.lane.b32.xlu0 %v3488, 43
  %v3505 = vpop.permute.xlu0 %3504
  %3506 = vrot.lane.b32.xlu0 %v3489, 43
  %v3507 = vpop.permute.xlu0 %3506
  %v3508 = vsel %vm1107, %v3497, %v3499
  %v3509 = vsel %vm1107, %v3499, %v3501
  %v3510 = vsel %vm1107, %v3503, %v3505
  %v3511 = vsel %vm1107, %v3505, %v3507
  %3518 = vst.msk [vmem:[#allocation3 + $0x5b0] sm:$0xff] %vm45, %v3497
  %3519 = vst [vmem:[#allocation3 + $0x5b8] sm:$0xff] %v3508
  %3520 = vst [vmem:[#allocation3 + $0x5c0] sm:$0xff] %v3509
  %3521 = vst.msk [vmem:[#allocation3 + $0x5d8] sm:$0xff] %vm45, %v3503
  %3522 = vst [vmem:[#allocation3 + $0x5e0] sm:$0xff] %v3510
  %3523 = vst [vmem:[#allocation3 + $0x5e8] sm:$0xff] %v3511
  %v3524 = vld [vmem:[#allocation2 + $0x8] sm:$0xff]
  %v3525 = vld [vmem:[#allocation2 + $0x10] sm:$0xff]
  %v3526 = vld [vmem:[#allocation2 + $0x18] sm:$0xff]
  %v3527 = vld [vmem:[#allocation2 + $0x58] sm:$0xff]
  %v3528 = vld [vmem:[#allocation2 + $0x60] sm:$0xff]
  %v3529 = vld [vmem:[#allocation2 + $0x68] sm:$0xff]
  %3536 = vrot.lane.b32.xlu0 %v3524, 106
  %v3537 = vpop.permute.xlu0 %3536
  %3538 = vrot.lane.b32.xlu0 %v3525, 106
  %v3539 = vpop.permute.xlu0 %3538
  %3540 = vrot.lane.b32.xlu0 %v3526, 106
  %v3541 = vpop.permute.xlu0 %3540
  %3542 = vrot.lane.b32.xlu0 %v3527, 106
  %v3543 = vpop.permute.xlu0 %3542
  %3544 = vrot.lane.b32.xlu0 %v3528, 106
  %v3545 = vpop.permute.xlu0 %3544
  %3546 = vrot.lane.b32.xlu0 %v3529, 106
  %v3547 = vpop.permute.xlu0 %3546
  %v3548 = vsel %vm256, %v3537, %v3539
  %v3549 = vsel %vm256, %v3539, %v3541
  %v3550 = vsel %vm256, %v3543, %v3545
  %v3551 = vsel %vm256, %v3545, %v3547
  %3558 = vst [vmem:[#allocation3 + $0x5f0] sm:$0xff] %v3548
  %3559 = vst [vmem:[#allocation3 + $0x5f8] sm:$0xff] %v3549
  %3560 = vst.msk [vmem:[#allocation3 + $0x600] sm:$0xff] %vm195, %v3541
  %3561 = vst [vmem:[#allocation3 + $0x618] sm:$0xff] %v3550
  %3562 = vst [vmem:[#allocation3 + $0x620] sm:$0xff] %v3551
  %3563 = vst.msk [vmem:[#allocation3 + $0x628] sm:$0xff] %vm195, %v3547
  %v3564 = vld [vmem:[#allocation2 + $0x30] sm:$0xff]
  %v3565 = vld [vmem:[#allocation2 + $0x38] sm:$0xff]
  %v3566 = vld [vmem:[#allocation2 + $0x40] sm:$0xff]
  %v3567 = vld [vmem:[#allocation2 + $0x80] sm:$0xff]
  %v3568 = vld [vmem:[#allocation2 + $0x88] sm:$0xff]
  %v3569 = vld [vmem:[#allocation2 + $0x90] sm:$0xff]
  %3576 = vrot.lane.b32.xlu0 %v3564, 42
  %v3577 = vpop.permute.xlu0 %3576
  %3578 = vrot.lane.b32.xlu0 %v3565, 42
  %v3579 = vpop.permute.xlu0 %3578
  %3580 = vrot.lane.b32.xlu0 %v3566, 42
  %v3581 = vpop.permute.xlu0 %3580
  %3582 = vrot.lane.b32.xlu0 %v3567, 42
  %v3583 = vpop.permute.xlu0 %3582
  %3584 = vrot.lane.b32.xlu0 %v3568, 42
  %v3585 = vpop.permute.xlu0 %3584
  %3586 = vrot.lane.b32.xlu0 %v3569, 42
  %v3587 = vpop.permute.xlu0 %3586
  %v3588 = vsel %vm230, %v3577, %v3579
  %v3589 = vsel %vm230, %v3579, %v3581
  %v3590 = vsel %vm230, %v3583, %v3585
  %v3591 = vsel %vm230, %v3585, %v3587
  %3598 = vst.msk [vmem:[#allocation3 + $0x600] sm:$0xff] %vm45, %v3577
  %3599 = vst [vmem:[#allocation3 + $0x608] sm:$0xff] %v3588
  %3600 = vst [vmem:[#allocation3 + $0x610] sm:$0xff] %v3589
  %3601 = vst.msk [vmem:[#allocation3 + $0x628] sm:$0xff] %vm45, %v3583
  %3602 = vst [vmem:[#allocation3 + $0x630] sm:$0xff] %v3590
  %3603 = vst [vmem:[#allocation3 + $0x638] sm:$0xff] %v3591
  %v3604 = vld [vmem:[#allocation2 + $0x8] sm:$0xff]
  %v3605 = vld [vmem:[#allocation2 + $0x10] sm:$0xff]
  %v3606 = vld [vmem:[#allocation2 + $0x18] sm:$0xff]
  %v3607 = vld [vmem:[#allocation2 + $0x58] sm:$0xff]
  %v3608 = vld [vmem:[#allocation2 + $0x60] sm:$0xff]
  %v3609 = vld [vmem:[#allocation2 + $0x68] sm:$0xff]
  %3616 = vrot.lane.b32.xlu0 %v3604, 90
  %v3617 = vpop.permute.xlu0 %3616
  %3618 = vrot.lane.b32.xlu0 %v3605, 90
  %v3619 = vpop.permute.xlu0 %3618
  %3620 = vrot.lane.b32.xlu0 %v3606, 90
  %v3621 = vpop.permute.xlu0 %3620
  %3622 = vrot.lane.b32.xlu0 %v3607, 90
  %v3623 = vpop.permute.xlu0 %3622
  %3624 = vrot.lane.b32.xlu0 %v3608, 90
  %v3625 = vpop.permute.xlu0 %3624
  %3626 = vrot.lane.b32.xlu0 %v3609, 90
  %v3627 = vpop.permute.xlu0 %3626
  %v3628 = vsel %vm1168, %v3617, %v3619
  %v3629 = vsel %vm1168, %v3619, %v3621
  %v3630 = vsel %vm1168, %v3623, %v3625
  %v3631 = vsel %vm1168, %v3625, %v3627
  %3638 = vst [vmem:[#allocation3 + $0x640] sm:$0xff] %v3628
  %3639 = vst [vmem:[#allocation3 + $0x648] sm:$0xff] %v3629
  %3640 = vst.msk [vmem:[#allocation3 + $0x650] sm:$0xff] %vm195, %v3621
  %3641 = vst [vmem:[#allocation3 + $0x668] sm:$0xff] %v3630
  %3642 = vst [vmem:[#allocation3 + $0x670] sm:$0xff] %v3631
  %3643 = vst.msk [vmem:[#allocation3 + $0x678] sm:$0xff] %vm195, %v3627
  %v3644 = vld [vmem:[#allocation2 + $0x30] sm:$0xff]
  %v3645 = vld [vmem:[#allocation2 + $0x38] sm:$0xff]
  %v3646 = vld [vmem:[#allocation2 + $0x40] sm:$0xff]
  %v3647 = vld [vmem:[#allocation2 + $0x80] sm:$0xff]
  %v3648 = vld [vmem:[#allocation2 + $0x88] sm:$0xff]
  %v3649 = vld [vmem:[#allocation2 + $0x90] sm:$0xff]
  %3656 = vrot.lane.b32.xlu0 %v3644, 26
  %v3657 = vpop.permute.xlu0 %3656
  %3658 = vrot.lane.b32.xlu0 %v3645, 26
  %v3659 = vpop.permute.xlu0 %3658
  %3660 = vrot.lane.b32.xlu0 %v3646, 26
  %v3661 = vpop.permute.xlu0 %3660
  %3662 = vrot.lane.b32.xlu0 %v3647, 26
  %v3663 = vpop.permute.xlu0 %3662
  %3664 = vrot.lane.b32.xlu0 %v3648, 26
  %v3665 = vpop.permute.xlu0 %3664
  %3666 = vrot.lane.b32.xlu0 %v3649, 26
  %v3667 = vpop.permute.xlu0 %3666
  %v3668 = vsel %vm1189, %v3657, %v3659
  %v3669 = vsel %vm1189, %v3659, %v3661
  %v3670 = vsel %vm1189, %v3663, %v3665
  %v3671 = vsel %vm1189, %v3665, %v3667
  %3678 = vst.msk [vmem:[#allocation3 + $0x650] sm:$0xff] %vm45, %v3657
  %3679 = vst [vmem:[#allocation3 + $0x658] sm:$0xff] %v3668
  %3680 = vst [vmem:[#allocation3 + $0x660] sm:$0xff] %v3669
  %3681 = vst.msk [vmem:[#allocation3 + $0x678] sm:$0xff] %vm45, %v3663
  %3682 = vst [vmem:[#allocation3 + $0x680] sm:$0xff] %v3670
  %3683 = vst [vmem:[#allocation3 + $0x688] sm:$0xff] %v3671
  %v3684 = vld [vmem:[#allocation2 + $0x8] sm:$0xff]
  %v3685 = vld [vmem:[#allocation2 + $0x10] sm:$0xff]
  %v3686 = vld [vmem:[#allocation2 + $0x18] sm:$0xff]
  %v3687 = vld [vmem:[#allocation2 + $0x58] sm:$0xff]
  %v3688 = vld [vmem:[#allocation2 + $0x60] sm:$0xff]
  %v3689 = vld [vmem:[#allocation2 + $0x68] sm:$0xff]
  %3696 = vrot.lane.b32.xlu0 %v3684, 89
  %v3697 = vpop.permute.xlu0 %3696
  %3698 = vrot.lane.b32.xlu0 %v3685, 89
  %v3699 = vpop.permute.xlu0 %3698
  %3700 = vrot.lane.b32.xlu0 %v3686, 89
  %v3701 = vpop.permute.xlu0 %3700
  %3702 = vrot.lane.b32.xlu0 %v3687, 89
  %v3703 = vpop.permute.xlu0 %3702
  %3704 = vrot.lane.b32.xlu0 %v3688, 89
  %v3705 = vpop.permute.xlu0 %3704
  %3706 = vrot.lane.b32.xlu0 %v3689, 89
  %v3707 = vpop.permute.xlu0 %3706
  %v3708 = vsel %vm1210, %v3697, %v3699
  %v3709 = vsel %vm1210, %v3699, %v3701
  %v3710 = vsel %vm1210, %v3703, %v3705
  %v3711 = vsel %vm1210, %v3705, %v3707
  %3718 = vst [vmem:[#allocation3 + $0x690] sm:$0xff] %v3708
  %3719 = vst [vmem:[#allocation3 + $0x698] sm:$0xff] %v3709
  %3720 = vst.msk [vmem:[#allocation3 + $0x6a0] sm:$0xff] %vm195, %v3701
  %3721 = vst [vmem:[#allocation3 + $0x6b8] sm:$0xff] %v3710
  %3722 = vst [vmem:[#allocation3 + $0x6c0] sm:$0xff] %v3711
  %3723 = vst.msk [vmem:[#allocation3 + $0x6c8] sm:$0xff] %vm195, %v3707
  %v3724 = vld [vmem:[#allocation2 + $0x30] sm:$0xff]
  %v3725 = vld [vmem:[#allocation2 + $0x38] sm:$0xff]
  %v3726 = vld [vmem:[#allocation2 + $0x40] sm:$0xff]
  %v3727 = vld [vmem:[#allocation2 + $0x80] sm:$0xff]
  %v3728 = vld [vmem:[#allocation2 + $0x88] sm:$0xff]
  %v3729 = vld [vmem:[#allocation2 + $0x90] sm:$0xff]
  %3736 = vrot.lane.b32.xlu0 %v3724, 25
  %v3737 = vpop.permute.xlu0 %3736
  %3738 = vrot.lane.b32.xlu0 %v3725, 25
  %v3739 = vpop.permute.xlu0 %3738
  %3740 = vrot.lane.b32.xlu0 %v3726, 25
  %v3741 = vpop.permute.xlu0 %3740
  %3742 = vrot.lane.b32.xlu0 %v3727, 25
  %v3743 = vpop.permute.xlu0 %3742
  %3744 = vrot.lane.b32.xlu0 %v3728, 25
  %v3745 = vpop.permute.xlu0 %3744
  %3746 = vrot.lane.b32.xlu0 %v3729, 25
  %v3747 = vpop.permute.xlu0 %3746
  %v3748 = vsel %vm1231, %v3737, %v3739
  %v3749 = vsel %vm1231, %v3739, %v3741
  %v3750 = vsel %vm1231, %v3743, %v3745
  %v3751 = vsel %vm1231, %v3745, %v3747
  %3758 = vst.msk [vmem:[#allocation3 + $0x6a0] sm:$0xff] %vm45, %v3737
  %3759 = vst [vmem:[#allocation3 + $0x6a8] sm:$0xff] %v3748
  %3760 = vst [vmem:[#allocation3 + $0x6b0] sm:$0xff] %v3749
  %3761 = vst.msk [vmem:[#allocation3 + $0x6c8] sm:$0xff] %vm45, %v3743
  %3762 = vst [vmem:[#allocation3 + $0x6d0] sm:$0xff] %v3750
  %3763 = vst [vmem:[#allocation3 + $0x6d8] sm:$0xff] %v3751
  %v3764 = vld [vmem:[#allocation2 + $0x8] sm:$0xff]
  %v3765 = vld [vmem:[#allocation2 + $0x10] sm:$0xff]
  %v3766 = vld [vmem:[#allocation2 + $0x18] sm:$0xff]
  %v3767 = vld [vmem:[#allocation2 + $0x58] sm:$0xff]
  %v3768 = vld [vmem:[#allocation2 + $0x60] sm:$0xff]
  %v3769 = vld [vmem:[#allocation2 + $0x68] sm:$0xff]
  %3776 = vrot.lane.b32.xlu0 %v3764, 88
  %v3777 = vpop.permute.xlu0 %3776
  %3778 = vrot.lane.b32.xlu0 %v3765, 88
  %v3779 = vpop.permute.xlu0 %3778
  %3780 = vrot.lane.b32.xlu0 %v3766, 88
  %v3781 = vpop.permute.xlu0 %3780
  %3782 = vrot.lane.b32.xlu0 %v3767, 88
  %v3783 = vpop.permute.xlu0 %3782
  %3784 = vrot.lane.b32.xlu0 %v3768, 88
  %v3785 = vpop.permute.xlu0 %3784
  %3786 = vrot.lane.b32.xlu0 %v3769, 88
  %v3787 = vpop.permute.xlu0 %3786
  %v3788 = vsel %vm1252, %v3777, %v3779
  %v3789 = vsel %vm1252, %v3779, %v3781
  %v3790 = vsel %vm1252, %v3783, %v3785
  %v3791 = vsel %vm1252, %v3785, %v3787
  %3798 = vst [vmem:[#allocation3 + $0x6e0] sm:$0xff] %v3788
  %3799 = vst [vmem:[#allocation3 + $0x6e8] sm:$0xff] %v3789
  %3800 = vst.msk [vmem:[#allocation3 + $0x6f0] sm:$0xff] %vm195, %v3781
  %3801 = vst [vmem:[#allocation3 + $0x708] sm:$0xff] %v3790
  %3802 = vst [vmem:[#allocation3 + $0x710] sm:$0xff] %v3791
  %3803 = vst.msk [vmem:[#allocation3 + $0x718] sm:$0xff] %vm195, %v3787
  %v3804 = vld [vmem:[#allocation2 + $0x30] sm:$0xff]
  %v3805 = vld [vmem:[#allocation2 + $0x38] sm:$0xff]
  %v3806 = vld [vmem:[#allocation2 + $0x40] sm:$0xff]
  %v3807 = vld [vmem:[#allocation2 + $0x80] sm:$0xff]
  %v3808 = vld [vmem:[#allocation2 + $0x88] sm:$0xff]
  %v3809 = vld [vmem:[#allocation2 + $0x90] sm:$0xff]
  %3816 = vrot.lane.b32.xlu0 %v3804, 24
  %v3817 = vpop.permute.xlu0 %3816
  %3818 = vrot.lane.b32.xlu0 %v3805, 24
  %v3819 = vpop.permute.xlu0 %3818
  %3820 = vrot.lane.b32.xlu0 %v3806, 24
  %v3821 = vpop.permute.xlu0 %3820
  %3822 = vrot.lane.b32.xlu0 %v3807, 24
  %v3823 = vpop.permute.xlu0 %3822
  %3824 = vrot.lane.b32.xlu0 %v3808, 24
  %v3825 = vpop.permute.xlu0 %3824
  %3826 = vrot.lane.b32.xlu0 %v3809, 24
  %v3827 = vpop.permute.xlu0 %3826
  %v3828 = vsel %vm1273, %v3817, %v3819
  %v3829 = vsel %vm1273, %v3819, %v3821
  %v3830 = vsel %vm1273, %v3823, %v3825
  %v3831 = vsel %vm1273, %v3825, %v3827
  %3838 = vst.msk [vmem:[#allocation3 + $0x6f0] sm:$0xff] %vm45, %v3817
  %3839 = vst [vmem:[#allocation3 + $0x6f8] sm:$0xff] %v3828
  %3840 = vst [vmem:[#allocation3 + $0x700] sm:$0xff] %v3829
  %3841 = vst.msk [vmem:[#allocation3 + $0x718] sm:$0xff] %vm45, %v3823
  %3842 = vst [vmem:[#allocation3 + $0x720] sm:$0xff] %v3830
  %3843 = vst [vmem:[#allocation3 + $0x728] sm:$0xff] %v3831
  %v3844 = vld [vmem:[#allocation2 + $0x8] sm:$0xff]
  %v3845 = vld [vmem:[#allocation2 + $0x10] sm:$0xff]
  %v3846 = vld [vmem:[#allocation2 + $0x18] sm:$0xff]
  %v3847 = vld [vmem:[#allocation2 + $0x58] sm:$0xff]
  %v3848 = vld [vmem:[#allocation2 + $0x60] sm:$0xff]
  %v3849 = vld [vmem:[#allocation2 + $0x68] sm:$0xff]
  %3856 = vrot.lane.b32.xlu0 %v3844, 87
  %v3857 = vpop.permute.xlu0 %3856
  %3858 = vrot.lane.b32.xlu0 %v3845, 87
  %v3859 = vpop.permute.xlu0 %3858
  %3860 = vrot.lane.b32.xlu0 %v3846, 87
  %v3861 = vpop.permute.xlu0 %3860
  %3862 = vrot.lane.b32.xlu0 %v3847, 87
  %v3863 = vpop.permute.xlu0 %3862
  %3864 = vrot.lane.b32.xlu0 %v3848, 87
  %v3865 = vpop.permute.xlu0 %3864
  %3866 = vrot.lane.b32.xlu0 %v3849, 87
  %v3867 = vpop.permute.xlu0 %3866
  %v3868 = vsel %vm1294, %v3857, %v3859
  %v3869 = vsel %vm1294, %v3859, %v3861
  %v3870 = vsel %vm1294, %v3863, %v3865
  %v3871 = vsel %vm1294, %v3865, %v3867
  %3878 = vst [vmem:[#allocation3 + $0x730] sm:$0xff] %v3868
  %3879 = vst [vmem:[#allocation3 + $0x738] sm:$0xff] %v3869
  %3880 = vst.msk [vmem:[#allocation3 + $0x740] sm:$0xff] %vm195, %v3861
  %3881 = vst [vmem:[#allocation3 + $0x758] sm:$0xff] %v3870
  %3882 = vst [vmem:[#allocation3 + $0x760] sm:$0xff] %v3871
  %3883 = vst.msk [vmem:[#allocation3 + $0x768] sm:$0xff] %vm195, %v3867
  %v3884 = vld [vmem:[#allocation2 + $0x30] sm:$0xff]
  %v3885 = vld [vmem:[#allocation2 + $0x38] sm:$0xff]
  %v3886 = vld [vmem:[#allocation2 + $0x40] sm:$0xff]
  %v3887 = vld [vmem:[#allocation2 + $0x80] sm:$0xff]
  %v3888 = vld [vmem:[#allocation2 + $0x88] sm:$0xff]
  %v3889 = vld [vmem:[#allocation2 + $0x90] sm:$0xff]
  %3896 = vrot.lane.b32.xlu0 %v3884, 23
  %v3897 = vpop.permute.xlu0 %3896
  %3898 = vrot.lane.b32.xlu0 %v3885, 23
  %v3899 = vpop.permute.xlu0 %3898
  %3900 = vrot.lane.b32.xlu0 %v3886, 23
  %v3901 = vpop.permute.xlu0 %3900
  %3902 = vrot.lane.b32.xlu0 %v3887, 23
  %v3903 = vpop.permute.xlu0 %3902
  %3904 = vrot.lane.b32.xlu0 %v3888, 23
  %v3905 = vpop.permute.xlu0 %3904
  %3906 = vrot.lane.b32.xlu0 %v3889, 23
  %v3907 = vpop.permute.xlu0 %3906
  %v3908 = vsel %vm1315, %v3897, %v3899
  %v3909 = vsel %vm1315, %v3899, %v3901
  %v3910 = vsel %vm1315, %v3903, %v3905
  %v3911 = vsel %vm1315, %v3905, %v3907
  %3918 = vst.msk [vmem:[#allocation3 + $0x740] sm:$0xff] %vm45, %v3897
  %3919 = vst [vmem:[#allocation3 + $0x748] sm:$0xff] %v3908
  %3920 = vst [vmem:[#allocation3 + $0x750] sm:$0xff] %v3909
  %3921 = vst.msk [vmem:[#allocation3 + $0x768] sm:$0xff] %vm45, %v3903
  %3922 = vst [vmem:[#allocation3 + $0x770] sm:$0xff] %v3910
  %3923 = vst [vmem:[#allocation3 + $0x778] sm:$0xff] %v3911
  %v3924 = vld [vmem:[#allocation2 + $0x8] sm:$0xff]
  %v3925 = vld [vmem:[#allocation2 + $0x10] sm:$0xff]
  %v3926 = vld [vmem:[#allocation2 + $0x18] sm:$0xff]
  %v3927 = vld [vmem:[#allocation2 + $0x58] sm:$0xff]
  %v3928 = vld [vmem:[#allocation2 + $0x60] sm:$0xff]
  %v3929 = vld [vmem:[#allocation2 + $0x68] sm:$0xff]
  %3936 = vrot.lane.b32.xlu0 %v3924, 86
  %v3937 = vpop.permute.xlu0 %3936
  %3938 = vrot.lane.b32.xlu0 %v3925, 86
  %v3939 = vpop.permute.xlu0 %3938
  %3940 = vrot.lane.b32.xlu0 %v3926, 86
  %v3941 = vpop.permute.xlu0 %3940
  %3942 = vrot.lane.b32.xlu0 %v3927, 86
  %v3943 = vpop.permute.xlu0 %3942
  %3944 = vrot.lane.b32.xlu0 %v3928, 86
  %v3945 = vpop.permute.xlu0 %3944
  %3946 = vrot.lane.b32.xlu0 %v3929, 86
  %v3947 = vpop.permute.xlu0 %3946
  %v3948 = vsel %vm516, %v3937, %v3939
  %v3949 = vsel %vm516, %v3939, %v3941
  %v3950 = vsel %vm516, %v3943, %v3945
  %v3951 = vsel %vm516, %v3945, %v3947
  %3958 = vst [vmem:[#allocation3 + $0x780] sm:$0xff] %v3948
  %3959 = vst [vmem:[#allocation3 + $0x788] sm:$0xff] %v3949
  %3960 = vst.msk [vmem:[#allocation3 + $0x790] sm:$0xff] %vm195, %v3941
  %3961 = vst [vmem:[#allocation3 + $0x7a8] sm:$0xff] %v3950
  %3962 = vst [vmem:[#allocation3 + $0x7b0] sm:$0xff] %v3951
  %3963 = vst.msk [vmem:[#allocation3 + $0x7b8] sm:$0xff] %vm195, %v3947
  %v3964 = vld [vmem:[#allocation2 + $0x30] sm:$0xff]
  %v3965 = vld [vmem:[#allocation2 + $0x38] sm:$0xff]
  %v3966 = vld [vmem:[#allocation2 + $0x40] sm:$0xff]
  %v3967 = vld [vmem:[#allocation2 + $0x80] sm:$0xff]
  %v3968 = vld [vmem:[#allocation2 + $0x88] sm:$0xff]
  %v3969 = vld [vmem:[#allocation2 + $0x90] sm:$0xff]
  %3976 = vrot.lane.b32.xlu0 %v3964, 22
  %v3977 = vpop.permute.xlu0 %3976
  %3978 = vrot.lane.b32.xlu0 %v3965, 22
  %v3979 = vpop.permute.xlu0 %3978
  %3980 = vrot.lane.b32.xlu0 %v3966, 22
  %v3981 = vpop.permute.xlu0 %3980
  %3982 = vrot.lane.b32.xlu0 %v3967, 22
  %v3983 = vpop.permute.xlu0 %3982
  %3984 = vrot.lane.b32.xlu0 %v3968, 22
  %v3985 = vpop.permute.xlu0 %3984
  %3986 = vrot.lane.b32.xlu0 %v3969, 22
  %v3987 = vpop.permute.xlu0 %3986
  %v3988 = vsel %vm490, %v3977, %v3979
  %v3989 = vsel %vm490, %v3979, %v3981
  %v3990 = vsel %vm490, %v3983, %v3985
  %v3991 = vsel %vm490, %v3985, %v3987
  %3998 = vst.msk [vmem:[#allocation3 + $0x790] sm:$0xff] %vm45, %v3977
  %3999 = vst [vmem:[#allocation3 + $0x798] sm:$0xff] %v3988
  %4000 = vst [vmem:[#allocation3 + $0x7a0] sm:$0xff] %v3989
  %4001 = vst.msk [vmem:[#allocation3 + $0x7b8] sm:$0xff] %vm45, %v3983
  %4002 = vst [vmem:[#allocation3 + $0x7c0] sm:$0xff] %v3990
  %4003 = vst [vmem:[#allocation3 + $0x7c8] sm:$0xff] %v3991
  %v4004 = vld [vmem:[%s5] sm:$0xff]
  %v4005 = vld [vmem:[%s5 + $0x8] sm:$0xff]
  %v4006 = vld [vmem:[%s5 + $0x10] sm:$0xff]
  %v4007 = vld [vmem:[%s5 + $0x18] sm:$0xff]
  %v4008 = vld [vmem:[%s5 + $0x20] sm:$0xff]
  %v4009 = vld [vmem:[%s5 + $0x28] sm:$0xff]
  %v4010 = vld [vmem:[%s5 + $0x30] sm:$0xff]
  %v4011 = vld [vmem:[%s5 + $0x38] sm:$0xff]
  %v4012 = vld [vmem:[#allocation3] sm:$0xff]
  %v4013 = vld [vmem:[#allocation3 + $0x8] sm:$0xff]
  %v4014 = vld [vmem:[#allocation3 + $0x10] sm:$0xff]
  %v4015 = vld [vmem:[#allocation3 + $0x18] sm:$0xff]
  %v4016 = vld [vmem:[#allocation3 + $0x20] sm:$0xff]
  %v4017 = vld [vmem:[#allocation3 + $0x28] sm:$0xff]
  %v4018 = vld [vmem:[#allocation3 + $0x30] sm:$0xff]
  %v4019 = vld [vmem:[#allocation3 + $0x38] sm:$0xff]
  %v4020 = vld [vmem:[#allocation3 + $0x40] sm:$0xff]
  %v4021 = vld [vmem:[#allocation3 + $0x48] sm:$0xff]
  %v4022 = vld [vmem:[#allocation3 + $0x50] sm:$0xff]
  %v4023 = vld [vmem:[#allocation3 + $0x58] sm:$0xff]
  %v4024 = vld [vmem:[#allocation3 + $0x60] sm:$0xff]
  %v4025 = vld [vmem:[#allocation3 + $0x68] sm:$0xff]
  %v4026 = vld [vmem:[#allocation3 + $0x70] sm:$0xff]
  %v4027 = vld [vmem:[#allocation3 + $0x78] sm:$0xff]
  %v4028 = vld [vmem:[#allocation3 + $0x80] sm:$0xff]
  %v4029 = vld [vmem:[#allocation3 + $0x88] sm:$0xff]
  %v4030 = vld [vmem:[#allocation3 + $0x90] sm:$0xff]
  %v4031 = vld [vmem:[#allocation3 + $0x98] sm:$0xff]
  %v4032 = vld [vmem:[#allocation3 + $0xa0] sm:$0xff]
  %v4033 = vld [vmem:[#allocation3 + $0xa8] sm:$0xff]
  %v4034 = vld [vmem:[#allocation3 + $0xb0] sm:$0xff]
  %v4035 = vld [vmem:[#allocation3 + $0xb8] sm:$0xff]
  %v4036 = vld [vmem:[#allocation3 + $0xc0] sm:$0xff]
  %v4037 = vld [vmem:[#allocation3 + $0xc8] sm:$0xff]
  %v4038 = vld [vmem:[#allocation3 + $0xd0] sm:$0xff]
  %v4039 = vld [vmem:[#allocation3 + $0xd8] sm:$0xff]
  %v4040 = vld [vmem:[#allocation3 + $0xe0] sm:$0xff]
  %v4041 = vld [vmem:[#allocation3 + $0xe8] sm:$0xff]
  %v4042 = vld [vmem:[#allocation3 + $0xf0] sm:$0xff]
  %v4043 = vld [vmem:[#allocation3 + $0xf8] sm:$0xff]
  %v4044 = vld [vmem:[#allocation3 + $0x100] sm:$0xff]
  %v4045 = vld [vmem:[#allocation3 + $0x108] sm:$0xff]
  %v4046 = vld [vmem:[#allocation3 + $0x110] sm:$0xff]
  %v4047 = vld [vmem:[#allocation3 + $0x118] sm:$0xff]
  %v4048 = vld [vmem:[#allocation3 + $0x120] sm:$0xff]
  %v4049 = vld [vmem:[#allocation3 + $0x128] sm:$0xff]
  %v4050 = vld [vmem:[#allocation3 + $0x130] sm:$0xff]
  %v4051 = vld [vmem:[#allocation3 + $0x138] sm:$0xff]
  %v4052 = vld [vmem:[#allocation3 + $0x140] sm:$0xff]
  %v4053 = vld [vmem:[#allocation3 + $0x148] sm:$0xff]
  %v4054 = vld [vmem:[#allocation3 + $0x150] sm:$0xff]
  %v4055 = vld [vmem:[#allocation3 + $0x158] sm:$0xff]
  %v4056 = vld [vmem:[#allocation3 + $0x160] sm:$0xff]
  %v4057 = vld [vmem:[#allocation3 + $0x168] sm:$0xff]
  %v4058 = vld [vmem:[#allocation3 + $0x170] sm:$0xff]
  %v4059 = vld [vmem:[#allocation3 + $0x178] sm:$0xff]
  %v4060 = vld [vmem:[#allocation3 + $0x180] sm:$0xff]
  %v4061 = vld [vmem:[#allocation3 + $0x188] sm:$0xff]
  %v4062 = vld [vmem:[#allocation3 + $0x190] sm:$0xff]
  %v4063 = vld [vmem:[#allocation3 + $0x198] sm:$0xff]
  %v4064 = vld [vmem:[#allocation3 + $0x1a0] sm:$0xff]
  %v4065 = vld [vmem:[#allocation3 + $0x1a8] sm:$0xff]
  %v4066 = vld [vmem:[#allocation3 + $0x1b0] sm:$0xff]
  %v4067 = vld [vmem:[#allocation3 + $0x1b8] sm:$0xff]
  %v4068 = vld [vmem:[#allocation3 + $0x1c0] sm:$0xff]
  %v4069 = vld [vmem:[#allocation3 + $0x1c8] sm:$0xff]
  %v4070 = vld [vmem:[#allocation3 + $0x1d0] sm:$0xff]
  %v4071 = vld [vmem:[#allocation3 + $0x1d8] sm:$0xff]
  %v4072 = vld [vmem:[#allocation3 + $0x1e0] sm:$0xff]
  %v4073 = vld [vmem:[#allocation3 + $0x1e8] sm:$0xff]
  %v4074 = vld [vmem:[#allocation3 + $0x1f0] sm:$0xff]
  %v4075 = vld [vmem:[#allocation3 + $0x1f8] sm:$0xff]
  %v4076 = vld [vmem:[#allocation3 + $0x200] sm:$0xff]
  %v4077 = vld [vmem:[#allocation3 + $0x208] sm:$0xff]
  %v4078 = vld [vmem:[#allocation3 + $0x210] sm:$0xff]
  %v4079 = vld [vmem:[#allocation3 + $0x218] sm:$0xff]
  %v4080 = vld [vmem:[#allocation3 + $0x220] sm:$0xff]
  %v4081 = vld [vmem:[#allocation3 + $0x228] sm:$0xff]
  %v4082 = vld [vmem:[#allocation3 + $0x230] sm:$0xff]
  %v4083 = vld [vmem:[#allocation3 + $0x238] sm:$0xff]
  %v4084 = vld [vmem:[#allocation3 + $0x240] sm:$0xff]
  %v4085 = vld [vmem:[#allocation3 + $0x248] sm:$0xff]
  %v4086 = vld [vmem:[#allocation3 + $0x250] sm:$0xff]
  %v4087 = vld [vmem:[#allocation3 + $0x258] sm:$0xff]
  %v4088 = vld [vmem:[#allocation3 + $0x260] sm:$0xff]
  %v4089 = vld [vmem:[#allocation3 + $0x268] sm:$0xff]
  %v4090 = vld [vmem:[#allocation3 + $0x270] sm:$0xff]
  %v4091 = vld [vmem:[#allocation3 + $0x278] sm:$0xff]
  %v4092 = vld [vmem:[#allocation3 + $0x280] sm:$0xff]
  %v4093 = vld [vmem:[#allocation3 + $0x288] sm:$0xff]
  %v4094 = vld [vmem:[#allocation3 + $0x290] sm:$0xff]
  %v4095 = vld [vmem:[#allocation3 + $0x298] sm:$0xff]
  %v4096 = vld [vmem:[#allocation3 + $0x2a0] sm:$0xff]
  %v4097 = vld [vmem:[#allocation3 + $0x2a8] sm:$0xff]
  %v4098 = vld [vmem:[#allocation3 + $0x2b0] sm:$0xff]
  %v4099 = vld [vmem:[#allocation3 + $0x2b8] sm:$0xff]
  %v4100 = vld [vmem:[#allocation3 + $0x2c0] sm:$0xff]
  %v4101 = vld [vmem:[#allocation3 + $0x2c8] sm:$0xff]
  %v4102 = vld [vmem:[#allocation3 + $0x2d0] sm:$0xff]
  %v4103 = vld [vmem:[#allocation3 + $0x2d8] sm:$0xff]
  %v4104 = vld [vmem:[#allocation3 + $0x2e0] sm:$0xff]
  %v4105 = vld [vmem:[#allocation3 + $0x2e8] sm:$0xff]
  %v4106 = vld [vmem:[#allocation3 + $0x2f0] sm:$0xff]
  %v4107 = vld [vmem:[#allocation3 + $0x2f8] sm:$0xff]
  %v4108 = vld [vmem:[#allocation3 + $0x300] sm:$0xff]
  %v4109 = vld [vmem:[#allocation3 + $0x308] sm:$0xff]
  %v4110 = vld [vmem:[#allocation3 + $0x310] sm:$0xff]
  %v4111 = vld [vmem:[#allocation3 + $0x318] sm:$0xff]
  %v4112 = vld [vmem:[#allocation3 + $0x320] sm:$0xff]
  %v4113 = vld [vmem:[#allocation3 + $0x328] sm:$0xff]
  %v4114 = vld [vmem:[#allocation3 + $0x330] sm:$0xff]
  %v4115 = vld [vmem:[#allocation3 + $0x338] sm:$0xff]
  %v4116 = vld [vmem:[#allocation3 + $0x340] sm:$0xff]
  %v4117 = vld [vmem:[#allocation3 + $0x348] sm:$0xff]
  %v4118 = vld [vmem:[#allocation3 + $0x350] sm:$0xff]
  %v4119 = vld [vmem:[#allocation3 + $0x358] sm:$0xff]
  %v4120 = vld [vmem:[#allocation3 + $0x360] sm:$0xff]
  %v4121 = vld [vmem:[#allocation3 + $0x368] sm:$0xff]
  %v4122 = vld [vmem:[#allocation3 + $0x370] sm:$0xff]
  %v4123 = vld [vmem:[#allocation3 + $0x378] sm:$0xff]
  %v4124 = vld [vmem:[#allocation3 + $0x380] sm:$0xff]
  %v4125 = vld [vmem:[#allocation3 + $0x388] sm:$0xff]
  %v4126 = vld [vmem:[#allocation3 + $0x390] sm:$0xff]
  %v4127 = vld [vmem:[#allocation3 + $0x398] sm:$0xff]
  %v4128 = vld [vmem:[#allocation3 + $0x3a0] sm:$0xff]
  %v4129 = vld [vmem:[#allocation3 + $0x3a8] sm:$0xff]
  %v4130 = vld [vmem:[#allocation3 + $0x3b0] sm:$0xff]
  %v4131 = vld [vmem:[#allocation3 + $0x3b8] sm:$0xff]
  %v4132 = vld [vmem:[#allocation3 + $0x3c0] sm:$0xff]
  %v4133 = vld [vmem:[#allocation3 + $0x3c8] sm:$0xff]
  %v4134 = vld [vmem:[#allocation3 + $0x3d0] sm:$0xff]
  %v4135 = vld [vmem:[#allocation3 + $0x3d8] sm:$0xff]
  %v4136 = vld [vmem:[#allocation3 + $0x3e0] sm:$0xff]
  %v4137 = vld [vmem:[#allocation3 + $0x3e8] sm:$0xff]
  %v4138 = vld [vmem:[#allocation3 + $0x3f0] sm:$0xff]
  %v4139 = vld [vmem:[#allocation3 + $0x3f8] sm:$0xff]
  %v4140 = vld [vmem:[#allocation3 + $0x400] sm:$0xff]
  %v4141 = vld [vmem:[#allocation3 + $0x408] sm:$0xff]
  %v4142 = vld [vmem:[#allocation3 + $0x410] sm:$0xff]
  %v4143 = vld [vmem:[#allocation3 + $0x418] sm:$0xff]
  %v4144 = vld [vmem:[#allocation3 + $0x420] sm:$0xff]
  %v4145 = vld [vmem:[#allocation3 + $0x428] sm:$0xff]
  %v4146 = vld [vmem:[#allocation3 + $0x430] sm:$0xff]
  %v4147 = vld [vmem:[#allocation3 + $0x438] sm:$0xff]
  %v4148 = vld [vmem:[#allocation3 + $0x440] sm:$0xff]
  %v4149 = vld [vmem:[#allocation3 + $0x448] sm:$0xff]
  %v4150 = vld [vmem:[#allocation3 + $0x450] sm:$0xff]
  %v4151 = vld [vmem:[#allocation3 + $0x458] sm:$0xff]
  %v4152 = vld [vmem:[#allocation3 + $0x460] sm:$0xff]
  %v4153 = vld [vmem:[#allocation3 + $0x468] sm:$0xff]
  %v4154 = vld [vmem:[#allocation3 + $0x470] sm:$0xff]
  %v4155 = vld [vmem:[#allocation3 + $0x478] sm:$0xff]
  %v4156 = vld [vmem:[#allocation3 + $0x480] sm:$0xff]
  %v4157 = vld [vmem:[#allocation3 + $0x488] sm:$0xff]
  %v4158 = vld [vmem:[#allocation3 + $0x490] sm:$0xff]
  %v4159 = vld [vmem:[#allocation3 + $0x498] sm:$0xff]
  %v4160 = vld [vmem:[#allocation3 + $0x4a0] sm:$0xff]
  %v4161 = vld [vmem:[#allocation3 + $0x4a8] sm:$0xff]
  %v4162 = vld [vmem:[#allocation3 + $0x4b0] sm:$0xff]
  %v4163 = vld [vmem:[#allocation3 + $0x4b8] sm:$0xff]
  %v4164 = vld [vmem:[#allocation3 + $0x4c0] sm:$0xff]
  %v4165 = vld [vmem:[#allocation3 + $0x4c8] sm:$0xff]
  %v4166 = vld [vmem:[#allocation3 + $0x4d0] sm:$0xff]
  %v4167 = vld [vmem:[#allocation3 + $0x4d8] sm:$0xff]
  %v4168 = vld [vmem:[#allocation3 + $0x4e0] sm:$0xff]
  %v4169 = vld [vmem:[#allocation3 + $0x4e8] sm:$0xff]
  %v4170 = vld [vmem:[#allocation3 + $0x4f0] sm:$0xff]
  %v4171 = vld [vmem:[#allocation3 + $0x4f8] sm:$0xff]
  %v4172 = vld [vmem:[#allocation3 + $0x500] sm:$0xff]
  %v4173 = vld [vmem:[#allocation3 + $0x508] sm:$0xff]
  %v4174 = vld [vmem:[#allocation3 + $0x510] sm:$0xff]
  %v4175 = vld [vmem:[#allocation3 + $0x518] sm:$0xff]
  %v4176 = vld [vmem:[#allocation3 + $0x520] sm:$0xff]
  %v4177 = vld [vmem:[#allocation3 + $0x528] sm:$0xff]
  %v4178 = vld [vmem:[#allocation3 + $0x530] sm:$0xff]
  %v4179 = vld [vmem:[#allocation3 + $0x538] sm:$0xff]
  %v4180 = vld [vmem:[#allocation3 + $0x540] sm:$0xff]
  %v4181 = vld [vmem:[#allocation3 + $0x548] sm:$0xff]
  %v4182 = vld [vmem:[#allocation3 + $0x550] sm:$0xff]
  %v4183 = vld [vmem:[#allocation3 + $0x558] sm:$0xff]
  %v4184 = vld [vmem:[#allocation3 + $0x560] sm:$0xff]
  %v4185 = vld [vmem:[#allocation3 + $0x568] sm:$0xff]
  %v4186 = vld [vmem:[#allocation3 + $0x570] sm:$0xff]
  %v4187 = vld [vmem:[#allocation3 + $0x578] sm:$0xff]
  %v4188 = vld [vmem:[#allocation3 + $0x580] sm:$0xff]
  %v4189 = vld [vmem:[#allocation3 + $0x588] sm:$0xff]
  %v4190 = vld [vmem:[#allocation3 + $0x590] sm:$0xff]
  %v4191 = vld [vmem:[#allocation3 + $0x598] sm:$0xff]
  %v4192 = vld [vmem:[#allocation3 + $0x5a0] sm:$0xff]
  %v4193 = vld [vmem:[#allocation3 + $0x5a8] sm:$0xff]
  %v4194 = vld [vmem:[#allocation3 + $0x5b0] sm:$0xff]
  %v4195 = vld [vmem:[#allocation3 + $0x5b8] sm:$0xff]
  %v4196 = vld [vmem:[#allocation3 + $0x5c0] sm:$0xff]
  %v4197 = vld [vmem:[#allocation3 + $0x5c8] sm:$0xff]
  %v4198 = vld [vmem:[#allocation3 + $0x5d0] sm:$0xff]
  %v4199 = vld [vmem:[#allocation3 + $0x5d8] sm:$0xff]
  %v4200 = vld [vmem:[#allocation3 + $0x5e0] sm:$0xff]
  %v4201 = vld [vmem:[#allocation3 + $0x5e8] sm:$0xff]
  %v4202 = vld [vmem:[#allocation3 + $0x5f0] sm:$0xff]
  %v4203 = vld [vmem:[#allocation3 + $0x5f8] sm:$0xff]
  %v4204 = vld [vmem:[#allocation3 + $0x600] sm:$0xff]
  %v4205 = vld [vmem:[#allocation3 + $0x608] sm:$0xff]
  %v4206 = vld [vmem:[#allocation3 + $0x610] sm:$0xff]
  %v4207 = vld [vmem:[#allocation3 + $0x618] sm:$0xff]
  %v4208 = vld [vmem:[#allocation3 + $0x620] sm:$0xff]
  %v4209 = vld [vmem:[#allocation3 + $0x628] sm:$0xff]
  %v4210 = vld [vmem:[#allocation3 + $0x630] sm:$0xff]
  %v4211 = vld [vmem:[#allocation3 + $0x638] sm:$0xff]
  %v4212 = vld [vmem:[#allocation3 + $0x640] sm:$0xff]
  %v4213 = vld [vmem:[#allocation3 + $0x648] sm:$0xff]
  %v4214 = vld [vmem:[#allocation3 + $0x650] sm:$0xff]
  %v4215 = vld [vmem:[#allocation3 + $0x658] sm:$0xff]
  %v4216 = vld [vmem:[#allocation3 + $0x660] sm:$0xff]
  %v4217 = vld [vmem:[#allocation3 + $0x668] sm:$0xff]
  %v4218 = vld [vmem:[#allocation3 + $0x670] sm:$0xff]
  %v4219 = vld [vmem:[#allocation3 + $0x678] sm:$0xff]
  %v4220 = vld [vmem:[#allocation3 + $0x680] sm:$0xff]
  %v4221 = vld [vmem:[#allocation3 + $0x688] sm:$0xff]
  %v4222 = vld [vmem:[#allocation3 + $0x690] sm:$0xff]
  %v4223 = vld [vmem:[#allocation3 + $0x698] sm:$0xff]
  %v4224 = vld [vmem:[#allocation3 + $0x6a0] sm:$0xff]
  %v4225 = vld [vmem:[#allocation3 + $0x6a8] sm:$0xff]
  %v4226 = vld [vmem:[#allocation3 + $0x6b0] sm:$0xff]
  %v4227 = vld [vmem:[#allocation3 + $0x6b8] sm:$0xff]
  %v4228 = vld [vmem:[#allocation3 + $0x6c0] sm:$0xff]
  %v4229 = vld [vmem:[#allocation3 + $0x6c8] sm:$0xff]
  %v4230 = vld [vmem:[#allocation3 + $0x6d0] sm:$0xff]
  %v4231 = vld [vmem:[#allocation3 + $0x6d8] sm:$0xff]
  %v4232 = vld [vmem:[#allocation3 + $0x6e0] sm:$0xff]
  %v4233 = vld [vmem:[#allocation3 + $0x6e8] sm:$0xff]
  %v4234 = vld [vmem:[#allocation3 + $0x6f0] sm:$0xff]
  %v4235 = vld [vmem:[#allocation3 + $0x6f8] sm:$0xff]
  %v4236 = vld [vmem:[#allocation3 + $0x700] sm:$0xff]
  %v4237 = vld [vmem:[#allocation3 + $0x708] sm:$0xff]
  %v4238 = vld [vmem:[#allocation3 + $0x710] sm:$0xff]
  %v4239 = vld [vmem:[#allocation3 + $0x718] sm:$0xff]
  %v4240 = vld [vmem:[#allocation3 + $0x720] sm:$0xff]
  %v4241 = vld [vmem:[#allocation3 + $0x728] sm:$0xff]
  %v4242 = vld [vmem:[#allocation3 + $0x730] sm:$0xff]
  %v4243 = vld [vmem:[#allocation3 + $0x738] sm:$0xff]
  %v4244 = vld [vmem:[#allocation3 + $0x740] sm:$0xff]
  %v4245 = vld [vmem:[#allocation3 + $0x748] sm:$0xff]
  %v4246 = vld [vmem:[#allocation3 + $0x750] sm:$0xff]
  %v4247 = vld [vmem:[#allocation3 + $0x758] sm:$0xff]
  %v4248 = vld [vmem:[#allocation3 + $0x760] sm:$0xff]
  %v4249 = vld [vmem:[#allocation3 + $0x768] sm:$0xff]
  %v4250 = vld [vmem:[#allocation3 + $0x770] sm:$0xff]
  %v4251 = vld [vmem:[#allocation3 + $0x778] sm:$0xff]
  %v4252 = vld [vmem:[#allocation3 + $0x780] sm:$0xff]
  %v4253 = vld [vmem:[#allocation3 + $0x788] sm:$0xff]
  %v4254 = vld [vmem:[#allocation3 + $0x790] sm:$0xff]
  %v4255 = vld [vmem:[#allocation3 + $0x798] sm:$0xff]
  %v4256 = vld [vmem:[#allocation3 + $0x7a0] sm:$0xff]
  %v4257 = vld [vmem:[#allocation3 + $0x7a8] sm:$0xff]
  %v4258 = vld [vmem:[#allocation3 + $0x7b0] sm:$0xff]
  %v4259 = vld [vmem:[#allocation3 + $0x7b8] sm:$0xff]
  %v4260 = vld [vmem:[#allocation3 + $0x7c0] sm:$0xff]
  %v4261 = vld [vmem:[#allocation3 + $0x7c8] sm:$0xff]
  %v4262 = vld [vmem:[%s6] sm:$0xff]
  %v4263 = vld [vmem:[%s6 + $0x8] sm:$0xff]
  %4265 = vset.pattern.permute.xlu0 0
  %4266 = vperm.xlu0 %4265, %v4262
  %v4267 = vpop.permute.xlu0 %4266
  %4270 = vset.pattern.permute.xlu0 0
  %4271 = vperm.xlu0 %4270, %v4263
  %v4272 = vpop.permute.xlu0 %4271
  %vm4274 = vcmask 130048
  %v4276 = vsel %vm4274, %v4007, 0
  %v4279 = vsel %vm4274, %v4011, 0
  %4281 = vmatpush.msra.mxu0 %v4087
  %4282 = vmatpush.msra.mxu0 %v4082
  %4283 = vmatpush.msra.mxu0 %v4077
  %4284 = vmatpush.msra.mxu0 %v4072
  %4285 = vmatpush.msra.mxu0 %v4067
  %4286 = vmatpush.msra.mxu0 %v4062
  %4287 = vmatpush.msra.mxu0 %v4057
  %4288 = vmatpush.msra.mxu0 %v4052
  %4289 = vmatpush.msra.mxu0 %v4047
  %4290 = vmatpush.msra.mxu0 %v4042
  %4291 = vmatpush.msra.mxu0 %v4037
  %4292 = vmatpush.msra.mxu0 %v4032
  %4293 = vmatpush.msra.mxu0 %v4027
  %4294 = vmatpush.msra.mxu0 %v4022
  %4295 = vmatpush.msra.mxu0 %v4017
  %4296 = vmatpush.msra.mxu0 %v4012
  %4297 = vmatmul.f32.gmra.mxu0 %v4004
  %v4298 = vpop.f32.mrf.mxu0
  %v4299 = vadd.f32 %v4267, %v4298
  %4300 = vmatmul.f32.gmra.mxu0 %v4008
  %v4301 = vpop.f32.mrf.mxu0
  %v4302 = vadd.f32 %v4272, %v4301
  %4303 = vdwg.mxu0
  %4304 = vmatpush.msra.mxu0 %v4167
  %4305 = vmatpush.msra.mxu0 %v4162
  %4306 = vmatpush.msra.mxu0 %v4157
  %4307 = vmatpush.msra.mxu0 %v4152
  %4308 = vmatpush.msra.mxu0 %v4147
  %4309 = vmatpush.msra.mxu0 %v4142
  %4310 = vmatpush.msra.mxu0 %v4137
  %4311 = vmatpush.msra.mxu0 %v4132
  %4312 = vmatpush.msra.mxu0 %v4127
  %4313 = vmatpush.msra.mxu0 %v4122
  %4314 = vmatpush.msra.mxu0 %v4117
  %4315 = vmatpush.msra.mxu0 %v4112
  %4316 = vmatpush.msra.mxu0 %v4107
  %4317 = vmatpush.msra.mxu0 %v4102
  %4318 = vmatpush.msra.mxu0 %v4097
  %4319 = vmatpush.msra.mxu0 %v4092
  %4320 = vmatmul.f32.gmra.mxu0 %v4005
  %v4321 = vpop.f32.mrf.mxu0
  %v4322 = vadd.f32 %v4299, %v4321
  %4323 = vmatmul.f32.gmra.mxu0 %v4009
  %v4324 = vpop.f32.mrf.mxu0
  %v4325 = vadd.f32 %v4302, %v4324
  %4326 = vdwg.mxu0
  %4327 = vmatpush.msra.mxu0 %v4247
  %4328 = vmatpush.msra.mxu0 %v4242
  %4329 = vmatpush.msra.mxu0 %v4237
  %4330 = vmatpush.msra.mxu0 %v4232
  %4331 = vmatpush.msra.mxu0 %v4227
  %4332 = vmatpush.msra.mxu0 %v4222
  %4333 = vmatpush.msra.mxu0 %v4217
  %4334 = vmatpush.msra.mxu0 %v4212
  %4335 = vmatpush.msra.mxu0 %v4207
  %4336 = vmatpush.msra.mxu0 %v4202
  %4337 = vmatpush.msra.mxu0 %v4197
  %4338 = vmatpush.msra.mxu0 %v4192
  %4339 = vmatpush.msra.mxu0 %v4187
  %4340 = vmatpush.msra.mxu0 %v4182
  %4341 = vmatpush.msra.mxu0 %v4177
  %4342 = vmatpush.msra.mxu0 %v4172
  %4343 = vmatmul.f32.gmra.mxu0 %v4006
  %v4344 = vpop.f32.mrf.mxu0
  %v4345 = vadd.f32 %v4322, %v4344
  %4346 = vmatmul.f32.gmra.mxu0 %v4010
  %v4347 = vpop.f32.mrf.mxu0
  %v4348 = vadd.f32 %v4325, %v4347
  %4349 = vdwg.mxu0
  %4350 = vmatpush.msra.mxu0 0.0
  %4351 = vmatpush.msra.mxu0 0.0
  %4352 = vmatpush.msra.mxu0 0.0
  %4353 = vmatpush.msra.mxu0 0.0
  %4354 = vmatpush.msra.mxu0 0.0
  %4355 = vmatpush.msra.mxu0 0.0
  %4356 = vmatpush.msra.mxu0 0.0
  %4357 = vmatpush.msra.mxu0 0.0
  %4358 = vmatpush.msra.mxu0 0.0
  %4359 = vmatpush.msra.mxu0 0.0
  %4360 = vmatpush.msra.mxu0 0.0
  %4361 = vmatpush.msra.mxu0 0.0
  %4362 = vmatpush.msra.mxu0 0.0
  %4363 = vmatpush.msra.mxu0 0.0
  %4364 = vmatpush.msra.mxu0 %v4257
  %4365 = vmatpush.msra.mxu0 %v4252
  %4366 = vmatmul.f32.gmra.mxu0 %v4276
  %v4367 = vpop.f32.mrf.mxu0
  %v4368 = vadd.f32 %v4345, %v4367
  %4369 = vmatmul.f32.gmra.mxu0 %v4279
  %v4370 = vpop.f32.mrf.mxu0
  %v4371 = vadd.f32 %v4348, %v4370
  %4372 = vdwg.mxu0
  %4373 = vmatpush.msra.mxu0 %v4088
  %4374 = vmatpush.msra.mxu0 %v4083
  %4375 = vmatpush.msra.mxu0 %v4078
  %4376 = vmatpush.msra.mxu0 %v4073
  %4377 = vmatpush.msra.mxu0 %v4068
  %4378 = vmatpush.msra.mxu0 %v4063
  %4379 = vmatpush.msra.mxu0 %v4058
  %4380 = vmatpush.msra.mxu0 %v4053
  %4381 = vmatpush.msra.mxu0 %v4048
  %4382 = vmatpush.msra.mxu0 %v4043
  %4383 = vmatpush.msra.mxu0 %v4038
  %4384 = vmatpush.msra.mxu0 %v4033
  %4385 = vmatpush.msra.mxu0 %v4028
  %4386 = vmatpush.msra.mxu0 %v4023
  %4387 = vmatpush.msra.mxu0 %v4018
  %4388 = vmatpush.msra.mxu0 %v4013
  %4389 = vmatmul.f32.gmra.mxu0 %v4004
  %v4390 = vpop.f32.mrf.mxu0
  %v4391 = vadd.f32 %v4267, %v4390
  %4392 = vmatmul.f32.gmra.mxu0 %v4008
  %v4393 = vpop.f32.mrf.mxu0
  %v4394 = vadd.f32 %v4272, %v4393
  %4395 = vdwg.mxu0
  %4396 = vmatpush.msra.mxu0 %v4168
  %4397 = vmatpush.msra.mxu0 %v4163
  %4398 = vmatpush.msra.mxu0 %v4158
  %4399 = vmatpush.msra.mxu0 %v4153
  %4400 = vmatpush.msra.mxu0 %v4148
  %4401 = vmatpush.msra.mxu0 %v4143
  %4402 = vmatpush.msra.mxu0 %v4138
  %4403 = vmatpush.msra.mxu0 %v4133
  %4404 = vmatpush.msra.mxu0 %v4128
  %4405 = vmatpush.msra.mxu0 %v4123
  %4406 = vmatpush.msra.mxu0 %v4118
  %4407 = vmatpush.msra.mxu0 %v4113
  %4408 = vmatpush.msra.mxu0 %v4108
  %4409 = vmatpush.msra.mxu0 %v4103
  %4410 = vmatpush.msra.mxu0 %v4098
  %4411 = vmatpush.msra.mxu0 %v4093
  %4412 = vmatmul.f32.gmra.mxu0 %v4005
  %v4413 = vpop.f32.mrf.mxu0
  %v4414 = vadd.f32 %v4391, %v4413
  %4415 = vmatmul.f32.gmra.mxu0 %v4009
  %v4416 = vpop.f32.mrf.mxu0
  %v4417 = vadd.f32 %v4394, %v4416
  %4418 = vdwg.mxu0
  %4419 = vmatpush.msra.mxu0 %v4248
  %4420 = vmatpush.msra.mxu0 %v4243
  %4421 = vmatpush.msra.mxu0 %v4238
  %4422 = vmatpush.msra.mxu0 %v4233
  %4423 = vmatpush.msra.mxu0 %v4228
  %4424 = vmatpush.msra.mxu0 %v4223
  %4425 = vmatpush.msra.mxu0 %v4218
  %4426 = vmatpush.msra.mxu0 %v4213
  %4427 = vmatpush.msra.mxu0 %v4208
  %4428 = vmatpush.msra.mxu0 %v4203
  %4429 = vmatpush.msra.mxu0 %v4198
  %4430 = vmatpush.msra.mxu0 %v4193
  %4431 = vmatpush.msra.mxu0 %v4188
  %4432 = vmatpush.msra.mxu0 %v4183
  %4433 = vmatpush.msra.mxu0 %v4178
  %4434 = vmatpush.msra.mxu0 %v4173
  %4435 = vmatmul.f32.gmra.mxu0 %v4006
  %v4436 = vpop.f32.mrf.mxu0
  %v4437 = vadd.f32 %v4414, %v4436
  %4438 = vmatmul.f32.gmra.mxu0 %v4010
  %v4439 = vpop.f32.mrf.mxu0
  %v4440 = vadd.f32 %v4417, %v4439
  %4441 = vdwg.mxu0
  %4442 = vmatpush.msra.mxu0 0.0
  %4443 = vmatpush.msra.mxu0 0.0
  %4444 = vmatpush.msra.mxu0 0.0
  %4445 = vmatpush.msra.mxu0 0.0
  %4446 = vmatpush.msra.mxu0 0.0
  %4447 = vmatpush.msra.mxu0 0.0
  %4448 = vmatpush.msra.mxu0 0.0
  %4449 = vmatpush.msra.mxu0 0.0
  %4450 = vmatpush.msra.mxu0 0.0
  %4451 = vmatpush.msra.mxu0 0.0
  %4452 = vmatpush.msra.mxu0 0.0
  %4453 = vmatpush.msra.mxu0 0.0
  %4454 = vmatpush.msra.mxu0 0.0
  %4455 = vmatpush.msra.mxu0 0.0
  %4456 = vmatpush.msra.mxu0 %v4258
  %4457 = vmatpush.msra.mxu0 %v4253
  %4458 = vmatmul.f32.gmra.mxu0 %v4276
  %v4459 = vpop.f32.mrf.mxu0
  %v4460 = vadd.f32 %v4437, %v4459
  %4461 = vmatmul.f32.gmra.mxu0 %v4279
  %v4462 = vpop.f32.mrf.mxu0
  %v4463 = vadd.f32 %v4440, %v4462
  %4464 = vdwg.mxu0
  %4465 = vmatpush.msra.mxu0 %v4089
  %4466 = vmatpush.msra.mxu0 %v4084
  %4467 = vmatpush.msra.mxu0 %v4079
  %4468 = vmatpush.msra.mxu0 %v4074
  %4469 = vmatpush.msra.mxu0 %v4069
  %4470 = vmatpush.msra.mxu0 %v4064
  %4471 = vmatpush.msra.mxu0 %v4059
  %4472 = vmatpush.msra.mxu0 %v4054
  %4473 = vmatpush.msra.mxu0 %v4049
  %4474 = vmatpush.msra.mxu0 %v4044
  %4475 = vmatpush.msra.mxu0 %v4039
  %4476 = vmatpush.msra.mxu0 %v4034
  %4477 = vmatpush.msra.mxu0 %v4029
  %4478 = vmatpush.msra.mxu0 %v4024
  %4479 = vmatpush.msra.mxu0 %v4019
  %4480 = vmatpush.msra.mxu0 %v4014
  %4481 = vmatmul.f32.gmra.mxu0 %v4004
  %v4482 = vpop.f32.mrf.mxu0
  %v4483 = vadd.f32 %v4267, %v4482
  %4484 = vmatmul.f32.gmra.mxu0 %v4008
  %v4485 = vpop.f32.mrf.mxu0
  %v4486 = vadd.f32 %v4272, %v4485
  %4487 = vdwg.mxu0
  %4488 = vmatpush.msra.mxu0 %v4169
  %4489 = vmatpush.msra.mxu0 %v4164
  %4490 = vmatpush.msra.mxu0 %v4159
  %4491 = vmatpush.msra.mxu0 %v4154
  %4492 = vmatpush.msra.mxu0 %v4149
  %4493 = vmatpush.msra.mxu0 %v4144
  %4494 = vmatpush.msra.mxu0 %v4139
  %4495 = vmatpush.msra.mxu0 %v4134
  %4496 = vmatpush.msra.mxu0 %v4129
  %4497 = vmatpush.msra.mxu0 %v4124
  %4498 = vmatpush.msra.mxu0 %v4119
  %4499 = vmatpush.msra.mxu0 %v4114
  %4500 = vmatpush.msra.mxu0 %v4109
  %4501 = vmatpush.msra.mxu0 %v4104
  %4502 = vmatpush.msra.mxu0 %v4099
  %4503 = vmatpush.msra.mxu0 %v4094
  %4504 = vmatmul.f32.gmra.mxu0 %v4005
  %v4505 = vpop.f32.mrf.mxu0
  %v4506 = vadd.f32 %v4483, %v4505
  %4507 = vmatmul.f32.gmra.mxu0 %v4009
  %v4508 = vpop.f32.mrf.mxu0
  %v4509 = vadd.f32 %v4486, %v4508
  %4510 = vdwg.mxu0
  %4511 = vmatpush.msra.mxu0 %v4249
  %4512 = vmatpush.msra.mxu0 %v4244
  %4513 = vmatpush.msra.mxu0 %v4239
  %4514 = vmatpush.msra.mxu0 %v4234
  %4515 = vmatpush.msra.mxu0 %v4229
  %4516 = vmatpush.msra.mxu0 %v4224
  %4517 = vmatpush.msra.mxu0 %v4219
  %4518 = vmatpush.msra.mxu0 %v4214
  %4519 = vmatpush.msra.mxu0 %v4209
  %4520 = vmatpush.msra.mxu0 %v4204
  %4521 = vmatpush.msra.mxu0 %v4199
  %4522 = vmatpush.msra.mxu0 %v4194
  %4523 = vmatpush.msra.mxu0 %v4189
  %4524 = vmatpush.msra.mxu0 %v4184
  %4525 = vmatpush.msra.mxu0 %v4179
  %4526 = vmatpush.msra.mxu0 %v4174
  %4527 = vmatmul.f32.gmra.mxu0 %v4006
  %v4528 = vpop.f32.mrf.mxu0
  %v4529 = vadd.f32 %v4506, %v4528
  %4530 = vmatmul.f32.gmra.mxu0 %v4010
  %v4531 = vpop.f32.mrf.mxu0
  %v4532 = vadd.f32 %v4509, %v4531
  %4533 = vdwg.mxu0
  %4534 = vmatpush.msra.mxu0 0.0
  %4535 = vmatpush.msra.mxu0 0.0
  %4536 = vmatpush.msra.mxu0 0.0
  %4537 = vmatpush.msra.mxu0 0.0
  %4538 = vmatpush.msra.mxu0 0.0
  %4539 = vmatpush.msra.mxu0 0.0
  %4540 = vmatpush.msra.mxu0 0.0
  %4541 = vmatpush.msra.mxu0 0.0
  %4542 = vmatpush.msra.mxu0 0.0
  %4543 = vmatpush.msra.mxu0 0.0
  %4544 = vmatpush.msra.mxu0 0.0
  %4545 = vmatpush.msra.mxu0 0.0
  %4546 = vmatpush.msra.mxu0 0.0
  %4547 = vmatpush.msra.mxu0 0.0
  %4548 = vmatpush.msra.mxu0 %v4259
  %4549 = vmatpush.msra.mxu0 %v4254
  %4550 = vmatmul.f32.gmra.mxu0 %v4276
  %v4551 = vpop.f32.mrf.mxu0
  %v4552 = vadd.f32 %v4529, %v4551
  %4553 = vmatmul.f32.gmra.mxu0 %v4279
  %v4554 = vpop.f32.mrf.mxu0
  %v4555 = vadd.f32 %v4532, %v4554
  %4556 = vdwg.mxu0
  %4557 = vmatpush.msra.mxu0 %v4090
  %4558 = vmatpush.msra.mxu0 %v4085
  %4559 = vmatpush.msra.mxu0 %v4080
  %4560 = vmatpush.msra.mxu0 %v4075
  %4561 = vmatpush.msra.mxu0 %v4070
  %4562 = vmatpush.msra.mxu0 %v4065
  %4563 = vmatpush.msra.mxu0 %v4060
  %4564 = vmatpush.msra.mxu0 %v4055
  %4565 = vmatpush.msra.mxu0 %v4050
  %4566 = vmatpush.msra.mxu0 %v4045
  %4567 = vmatpush.msra.mxu0 %v4040
  %4568 = vmatpush.msra.mxu0 %v4035
  %4569 = vmatpush.msra.mxu0 %v4030
  %4570 = vmatpush.msra.mxu0 %v4025
  %4571 = vmatpush.msra.mxu0 %v4020
  %4572 = vmatpush.msra.mxu0 %v4015
  %4573 = vmatmul.f32.gmra.mxu0 %v4004
  %v4574 = vpop.f32.mrf.mxu0
  %v4575 = vadd.f32 %v4267, %v4574
  %4576 = vmatmul.f32.gmra.mxu0 %v4008
  %v4577 = vpop.f32.mrf.mxu0
  %v4578 = vadd.f32 %v4272, %v4577
  %4579 = vdwg.mxu0
  %4580 = vmatpush.msra.mxu0 %v4170
  %4581 = vmatpush.msra.mxu0 %v4165
  %4582 = vmatpush.msra.mxu0 %v4160
  %4583 = vmatpush.msra.mxu0 %v4155
  %4584 = vmatpush.msra.mxu0 %v4150
  %4585 = vmatpush.msra.mxu0 %v4145
  %4586 = vmatpush.msra.mxu0 %v4140
  %4587 = vmatpush.msra.mxu0 %v4135
  %4588 = vmatpush.msra.mxu0 %v4130
  %4589 = vmatpush.msra.mxu0 %v4125
  %4590 = vmatpush.msra.mxu0 %v4120
  %4591 = vmatpush.msra.mxu0 %v4115
  %4592 = vmatpush.msra.mxu0 %v4110
  %4593 = vmatpush.msra.mxu0 %v4105
  %4594 = vmatpush.msra.mxu0 %v4100
  %4595 = vmatpush.msra.mxu0 %v4095
  %4596 = vmatmul.f32.gmra.mxu0 %v4005
  %v4597 = vpop.f32.mrf.mxu0
  %v4598 = vadd.f32 %v4575, %v4597
  %4599 = vmatmul.f32.gmra.mxu0 %v4009
  %v4600 = vpop.f32.mrf.mxu0
  %v4601 = vadd.f32 %v4578, %v4600
  %4602 = vdwg.mxu0
  %4603 = vmatpush.msra.mxu0 %v4250
  %4604 = vmatpush.msra.mxu0 %v4245
  %4605 = vmatpush.msra.mxu0 %v4240
  %4606 = vmatpush.msra.mxu0 %v4235
  %4607 = vmatpush.msra.mxu0 %v4230
  %4608 = vmatpush.msra.mxu0 %v4225
  %4609 = vmatpush.msra.mxu0 %v4220
  %4610 = vmatpush.msra.mxu0 %v4215
  %4611 = vmatpush.msra.mxu0 %v4210
  %4612 = vmatpush.msra.mxu0 %v4205
  %4613 = vmatpush.msra.mxu0 %v4200
  %4614 = vmatpush.msra.mxu0 %v4195
  %4615 = vmatpush.msra.mxu0 %v4190
  %4616 = vmatpush.msra.mxu0 %v4185
  %4617 = vmatpush.msra.mxu0 %v4180
  %4618 = vmatpush.msra.mxu0 %v4175
  %4619 = vmatmul.f32.gmra.mxu0 %v4006
  %v4620 = vpop.f32.mrf.mxu0
  %v4621 = vadd.f32 %v4598, %v4620
  %4622 = vmatmul.f32.gmra.mxu0 %v4010
  %v4623 = vpop.f32.mrf.mxu0
  %v4624 = vadd.f32 %v4601, %v4623
  %4625 = vdwg.mxu0
  %4626 = vmatpush.msra.mxu0 0.0
  %4627 = vmatpush.msra.mxu0 0.0
  %4628 = vmatpush.msra.mxu0 0.0
  %4629 = vmatpush.msra.mxu0 0.0
  %4630 = vmatpush.msra.mxu0 0.0
  %4631 = vmatpush.msra.mxu0 0.0
  %4632 = vmatpush.msra.mxu0 0.0
  %4633 = vmatpush.msra.mxu0 0.0
  %4634 = vmatpush.msra.mxu0 0.0
  %4635 = vmatpush.msra.mxu0 0.0
  %4636 = vmatpush.msra.mxu0 0.0
  %4637 = vmatpush.msra.mxu0 0.0
  %4638 = vmatpush.msra.mxu0 0.0
  %4639 = vmatpush.msra.mxu0 0.0
  %4640 = vmatpush.msra.mxu0 %v4260
  %4641 = vmatpush.msra.mxu0 %v4255
  %4642 = vmatmul.f32.gmra.mxu0 %v4276
  %v4643 = vpop.f32.mrf.mxu0
  %v4644 = vadd.f32 %v4621, %v4643
  %4645 = vmatmul.f32.gmra.mxu0 %v4279
  %v4646 = vpop.f32.mrf.mxu0
  %v4647 = vadd.f32 %v4624, %v4646
  %4648 = vdwg.mxu0
  %4649 = vmatpush.msra.mxu0 %v4091
  %4650 = vmatpush.msra.mxu0 %v4086
  %4651 = vmatpush.msra.mxu0 %v4081
  %4652 = vmatpush.msra.mxu0 %v4076
  %4653 = vmatpush.msra.mxu0 %v4071
  %4654 = vmatpush.msra.mxu0 %v4066
  %4655 = vmatpush.msra.mxu0 %v4061
  %4656 = vmatpush.msra.mxu0 %v4056
  %4657 = vmatpush.msra.mxu0 %v4051
  %4658 = vmatpush.msra.mxu0 %v4046
  %4659 = vmatpush.msra.mxu0 %v4041
  %4660 = vmatpush.msra.mxu0 %v4036
  %4661 = vmatpush.msra.mxu0 %v4031
  %4662 = vmatpush.msra.mxu0 %v4026
  %4663 = vmatpush.msra.mxu0 %v4021
  %4664 = vmatpush.msra.mxu0 %v4016
  %4665 = vmatmul.f32.gmra.mxu0 %v4004
  %v4666 = vpop.f32.mrf.mxu0
  %v4667 = vadd.f32 %v4267, %v4666
  %4668 = vmatmul.f32.gmra.mxu0 %v4008
  %v4669 = vpop.f32.mrf.mxu0
  %v4670 = vadd.f32 %v4272, %v4669
  %4671 = vdwg.mxu0
  %4672 = vmatpush.msra.mxu0 %v4171
  %4673 = vmatpush.msra.mxu0 %v4166
  %4674 = vmatpush.msra.mxu0 %v4161
  %4675 = vmatpush.msra.mxu0 %v4156
  %4676 = vmatpush.msra.mxu0 %v4151
  %4677 = vmatpush.msra.mxu0 %v4146
  %4678 = vmatpush.msra.mxu0 %v4141
  %4679 = vmatpush.msra.mxu0 %v4136
  %4680 = vmatpush.msra.mxu0 %v4131
  %4681 = vmatpush.msra.mxu0 %v4126
  %4682 = vmatpush.msra.mxu0 %v4121
  %4683 = vmatpush.msra.mxu0 %v4116
  %4684 = vmatpush.msra.mxu0 %v4111
  %4685 = vmatpush.msra.mxu0 %v4106
  %4686 = vmatpush.msra.mxu0 %v4101
  %4687 = vmatpush.msra.mxu0 %v4096
  %4688 = vmatmul.f32.gmra.mxu0 %v4005
  %v4689 = vpop.f32.mrf.mxu0
  %v4690 = vadd.f32 %v4667, %v4689
  %4691 = vmatmul.f32.gmra.mxu0 %v4009
  %v4692 = vpop.f32.mrf.mxu0
  %v4693 = vadd.f32 %v4670, %v4692
  %4694 = vdwg.mxu0
  %4695 = vmatpush.msra.mxu0 %v4251
  %4696 = vmatpush.msra.mxu0 %v4246
  %4697 = vmatpush.msra.mxu0 %v4241
  %4698 = vmatpush.msra.mxu0 %v4236
  %4699 = vmatpush.msra.mxu0 %v4231
  %4700 = vmatpush.msra.mxu0 %v4226
  %4701 = vmatpush.msra.mxu0 %v4221
  %4702 = vmatpush.msra.mxu0 %v4216
  %4703 = vmatpush.msra.mxu0 %v4211
  %4704 = vmatpush.msra.mxu0 %v4206
  %4705 = vmatpush.msra.mxu0 %v4201
  %4706 = vmatpush.msra.mxu0 %v4196
  %4707 = vmatpush.msra.mxu0 %v4191
  %4708 = vmatpush.msra.mxu0 %v4186
  %4709 = vmatpush.msra.mxu0 %v4181
  %4710 = vmatpush.msra.mxu0 %v4176
  %4711 = vmatmul.f32.gmra.mxu0 %v4006
  %v4712 = vpop.f32.mrf.mxu0
  %v4713 = vadd.f32 %v4690, %v4712
  %4714 = vmatmul.f32.gmra.mxu0 %v4010
  %v4715 = vpop.f32.mrf.mxu0
  %v4716 = vadd.f32 %v4693, %v4715
  %4717 = vdwg.mxu0
  %4718 = vmatpush.msra.mxu0 0.0
  %4719 = vmatpush.msra.mxu0 0.0
  %4720 = vmatpush.msra.mxu0 0.0
  %4721 = vmatpush.msra.mxu0 0.0
  %4722 = vmatpush.msra.mxu0 0.0
  %4723 = vmatpush.msra.mxu0 0.0
  %4724 = vmatpush.msra.mxu0 0.0
  %4725 = vmatpush.msra.mxu0 0.0
  %4726 = vmatpush.msra.mxu0 0.0
  %4727 = vmatpush.msra.mxu0 0.0
  %4728 = vmatpush.msra.mxu0 0.0
  %4729 = vmatpush.msra.mxu0 0.0
  %4730 = vmatpush.msra.mxu0 0.0
  %4731 = vmatpush.msra.mxu0 0.0
  %4732 = vmatpush.msra.mxu0 %v4261
  %4733 = vmatpush.msra.mxu0 %v4256
  %4734 = vmatmul.f32.gmra.mxu0 %v4276
  %v4735 = vpop.f32.mrf.mxu0
  %v4736 = vadd.f32 %v4713, %v4735
  %4737 = vmatmul.f32.gmra.mxu0 %v4279
  %v4738 = vpop.f32.mrf.mxu0
  %v4739 = vadd.f32 %v4716, %v4738
  %4740 = vdwg.mxu0
  %v4741 = vmul.f32 %v4368, %v4371
  %v4742 = vmul.f32 %v4460, %v4463
  %v4743 = vmul.f32 %v4552, %v4555
  %v4744 = vmul.f32 %v4644, %v4647
  %v4745 = vmul.f32 %v4736, %v4739
  %v4746 = vmul.f32 %v4741, %v178
  %v4747 = vmul.f32 %v4742, %v179
  %v4748 = vmul.f32 %v4743, %v180
  %v4749 = vmul.f32 %v4744, %v181
  %v4750 = vmul.f32 %v4745, %v182
  %4751 = vst [vmem:[#allocation2 + $0xa8] sm:$0xff] %v4746
  %4752 = vst [vmem:[#allocation2 + $0xb0] sm:$0xff] %v4747
  %4753 = vst.msk [vmem:[#allocation2 + $0xb8] sm:$0xff] %vm195, %v4748
  %4757 = vrot.lane.b32.xlu0 %v4748, 64
  %v4758 = vpop.permute.xlu0 %4757
  %4759 = vrot.lane.b32.xlu0 %v4749, 64
  %v4760 = vpop.permute.xlu0 %4759
  %4761 = vrot.lane.b32.xlu0 %v4750, 64
  %v4762 = vpop.permute.xlu0 %4761
  %v4763 = vsel %vm195, %v4758, %v4760
  %v4764 = vsel %vm195, %v4760, %v4762
  %4768 = vst [vmem:[#allocation2 + $0xd0] sm:$0xff] %v4763
  %4769 = vst [vmem:[#allocation2 + $0xd8] sm:$0xff] %v4764
  %4770 = vst.msk [vmem:[#allocation2 + $0xe0] sm:$0xff] %vm195, %v4762
  %v4771 = vld [vmem:[#allocation2] sm:$0xff]
  %v4772 = vld [vmem:[#allocation2 + $0x8] sm:$0xff]
  %v4773 = vld [vmem:[#allocation2 + $0x10] sm:$0xff]
  %v4774 = vld [vmem:[#allocation2 + $0x18] sm:$0xff]
  %v4775 = vld [vmem:[#allocation2 + $0x50] sm:$0xff]
  %v4776 = vld [vmem:[#allocation2 + $0x58] sm:$0xff]
  %v4777 = vld [vmem:[#allocation2 + $0x60] sm:$0xff]
  %v4778 = vld [vmem:[#allocation2 + $0x68] sm:$0xff]
  %v4779 = vld [vmem:[#allocation2 + $0xa0] sm:$0xff]
  %v4780 = vld [vmem:[#allocation2 + $0xa8] sm:$0xff]
  %v4781 = vld [vmem:[#allocation2 + $0xb0] sm:$0xff]
  %v4782 = vld [vmem:[#allocation2 + $0xb8] sm:$0xff]
  %4795 = vrot.lane.b32.xlu0 %v4771, 21
  %v4796 = vpop.permute.xlu0 %4795
  %4797 = vrot.lane.b32.xlu0 %v4772, 21
  %v4798 = vpop.permute.xlu0 %4797
  %4799 = vrot.lane.b32.xlu0 %v4773, 21
  %v4800 = vpop.permute.xlu0 %4799
  %4801 = vrot.lane.b32.xlu0 %v4774, 21
  %v4802 = vpop.permute.xlu0 %4801
  %4803 = vrot.lane.b32.xlu0 %v4775, 21
  %v4804 = vpop.permute.xlu0 %4803
  %4805 = vrot.lane.b32.xlu0 %v4776, 21
  %v4806 = vpop.permute.xlu0 %4805
  %4807 = vrot.lane.b32.xlu0 %v4777, 21
  %v4808 = vpop.permute.xlu0 %4807
  %4809 = vrot.lane.b32.xlu0 %v4778, 21
  %v4810 = vpop.permute.xlu0 %4809
  %4811 = vrot.lane.b32.xlu0 %v4779, 21
  %v4812 = vpop.permute.xlu0 %4811
  %4813 = vrot.lane.b32.xlu0 %v4780, 21
  %v4814 = vpop.permute.xlu0 %4813
  %4815 = vrot.lane.b32.xlu0 %v4781, 21
  %v4816 = vpop.permute.xlu0 %4815
  %4817 = vrot.lane.b32.xlu0 %v4782, 21
  %v4818 = vpop.permute.xlu0 %4817
  %v4819 = vsel %vm542, %v4796, %v4798
  %v4820 = vsel %vm542, %v4798, %v4800
  %v4821 = vsel %vm542, %v4800, %v4802
  %v4822 = vsel %vm542, %v4804, %v4806
  %v4823 = vsel %vm542, %v4806, %v4808
  %v4824 = vsel %vm542, %v4808, %v4810
  %v4825 = vsel %vm542, %v4812, %v4814
  %v4826 = vsel %vm542, %v4814, %v4816
  %v4827 = vsel %vm542, %v4816, %v4818
  %4837 = vst [vmem:[#allocation3] sm:$0xff] %v4819
  %4838 = vst [vmem:[#allocation3 + $0x8] sm:$0xff] %v4820
  %4839 = vst.msk [vmem:[#allocation3 + $0x10] sm:$0xff] %vm195, %v4821
  %4840 = vst [vmem:[#allocation3 + $0x28] sm:$0xff] %v4822
  %4841 = vst [vmem:[#allocation3 + $0x30] sm:$0xff] %v4823
  %4842 = vst.msk [vmem:[#allocation3 + $0x38] sm:$0xff] %vm195, %v4824
  %4843 = vst [vmem:[#allocation3 + $0x50] sm:$0xff] %v4825
  %4844 = vst [vmem:[#allocation3 + $0x58] sm:$0xff] %v4826
  %4845 = vst.msk [vmem:[#allocation3 + $0x60] sm:$0xff] %vm195, %v4827
  %v4846 = vld [vmem:[#allocation2 + $0x28] sm:$0xff]
  %v4847 = vld [vmem:[#allocation2 + $0x30] sm:$0xff]
  %v4848 = vld [vmem:[#allocation2 + $0x38] sm:$0xff]
  %v4849 = vld [vmem:[#allocation2 + $0x40] sm:$0xff]
  %v4850 = vld [vmem:[#allocation2 + $0x78] sm:$0xff]
  %v4851 = vld [vmem:[#allocation2 + $0x80] sm:$0xff]
  %v4852 = vld [vmem:[#allocation2 + $0x88] sm:$0xff]
  %v4853 = vld [vmem:[#allocation2 + $0x90] sm:$0xff]
  %v4854 = vld [vmem:[#allocation2 + $0xc8] sm:$0xff]
  %v4855 = vld [vmem:[#allocation2 + $0xd0] sm:$0xff]
  %v4856 = vld [vmem:[#allocation2 + $0xd8] sm:$0xff]
  %v4857 = vld [vmem:[#allocation2 + $0xe0] sm:$0xff]
  %4870 = vrot.lane.b32.xlu0 %v4846, 85
  %v4871 = vpop.permute.xlu0 %4870
  %4872 = vrot.lane.b32.xlu0 %v4847, 85
  %v4873 = vpop.permute.xlu0 %4872
  %4874 = vrot.lane.b32.xlu0 %v4848, 85
  %v4875 = vpop.permute.xlu0 %4874
  %4876 = vrot.lane.b32.xlu0 %v4849, 85
  %v4877 = vpop.permute.xlu0 %4876
  %4878 = vrot.lane.b32.xlu0 %v4850, 85
  %v4879 = vpop.permute.xlu0 %4878
  %4880 = vrot.lane.b32.xlu0 %v4851, 85
  %v4881 = vpop.permute.xlu0 %4880
  %4882 = vrot.lane.b32.xlu0 %v4852, 85
  %v4883 = vpop.permute.xlu0 %4882
  %4884 = vrot.lane.b32.xlu0 %v4853, 85
  %v4885 = vpop.permute.xlu0 %4884
  %4886 = vrot.lane.b32.xlu0 %v4854, 85
  %v4887 = vpop.permute.xlu0 %4886
  %4888 = vrot.lane.b32.xlu0 %v4855, 85
  %v4889 = vpop.permute.xlu0 %4888
  %4890 = vrot.lane.b32.xlu0 %v4856, 85
  %v4891 = vpop.permute.xlu0 %4890
  %4892 = vrot.lane.b32.xlu0 %v4857, 85
  %v4893 = vpop.permute.xlu0 %4892
  %v4894 = vsel %vm568, %v4871, %v4873
  %v4895 = vsel %vm568, %v4873, %v4875
  %v4896 = vsel %vm568, %v4875, %v4877
  %v4897 = vsel %vm568, %v4879, %v4881
  %v4898 = vsel %vm568, %v4881, %v4883
  %v4899 = vsel %vm568, %v4883, %v4885
  %v4900 = vsel %vm568, %v4887, %v4889
  %v4901 = vsel %vm568, %v4889, %v4891
  %v4902 = vsel %vm568, %v4891, %v4893
  %4912 = vst.msk [vmem:[#allocation3 + $0x10] sm:$0xff] %vm45, %v4894
  %4913 = vst [vmem:[#allocation3 + $0x18] sm:$0xff] %v4895
  %4914 = vst [vmem:[#allocation3 + $0x20] sm:$0xff] %v4896
  %4915 = vst.msk [vmem:[#allocation3 + $0x38] sm:$0xff] %vm45, %v4897
  %4916 = vst [vmem:[#allocation3 + $0x40] sm:$0xff] %v4898
  %4917 = vst [vmem:[#allocation3 + $0x48] sm:$0xff] %v4899
  %4918 = vst.msk [vmem:[#allocation3 + $0x60] sm:$0xff] %vm45, %v4900
  %4919 = vst [vmem:[#allocation3 + $0x68] sm:$0xff] %v4901
  %4920 = vst [vmem:[#allocation3 + $0x70] sm:$0xff] %v4902
  %v4921 = vld [vmem:[#allocation2] sm:$0xff]
  %v4922 = vld [vmem:[#allocation2 + $0x8] sm:$0xff]
  %v4923 = vld [vmem:[#allocation2 + $0x10] sm:$0xff]
  %v4924 = vld [vmem:[#allocation2 + $0x18] sm:$0xff]
  %v4925 = vld [vmem:[#allocation2 + $0x50] sm:$0xff]
  %v4926 = vld [vmem:[#allocation2 + $0x58] sm:$0xff]
  %v4927 = vld [vmem:[#allocation2 + $0x60] sm:$0xff]
  %v4928 = vld [vmem:[#allocation2 + $0x68] sm:$0xff]
  %v4929 = vld [vmem:[#allocation2 + $0xa0] sm:$0xff]
  %v4930 = vld [vmem:[#allocation2 + $0xa8] sm:$0xff]
  %v4931 = vld [vmem:[#allocation2 + $0xb0] sm:$0xff]
  %v4932 = vld [vmem:[#allocation2 + $0xb8] sm:$0xff]
  %4945 = vrot.lane.b32.xlu0 %v4921, 20
  %v4946 = vpop.permute.xlu0 %4945
  %4947 = vrot.lane.b32.xlu0 %v4922, 20
  %v4948 = vpop.permute.xlu0 %4947
  %4949 = vrot.lane.b32.xlu0 %v4923, 20
  %v4950 = vpop.permute.xlu0 %4949
  %4951 = vrot.lane.b32.xlu0 %v4924, 20
  %v4952 = vpop.permute.xlu0 %4951
  %4953 = vrot.lane.b32.xlu0 %v4925, 20
  %v4954 = vpop.permute.xlu0 %4953
  %4955 = vrot.lane.b32.xlu0 %v4926, 20
  %v4956 = vpop.permute.xlu0 %4955
  %4957 = vrot.lane.b32.xlu0 %v4927, 20
  %v4958 = vpop.permute.xlu0 %4957
  %4959 = vrot.lane.b32.xlu0 %v4928, 20
  %v4960 = vpop.permute.xlu0 %4959
  %4961 = vrot.lane.b32.xlu0 %v4929, 20
  %v4962 = vpop.permute.xlu0 %4961
  %4963 = vrot.lane.b32.xlu0 %v4930, 20
  %v4964 = vpop.permute.xlu0 %4963
  %4965 = vrot.lane.b32.xlu0 %v4931, 20
  %v4966 = vpop.permute.xlu0 %4965
  %4967 = vrot.lane.b32.xlu0 %v4932, 20
  %v4968 = vpop.permute.xlu0 %4967
  %v4969 = vsel %vm594, %v4946, %v4948
  %v4970 = vsel %vm594, %v4948, %v4950
  %v4971 = vsel %vm594, %v4950, %v4952
  %v4972 = vsel %vm594, %v4954, %v4956
  %v4973 = vsel %vm594, %v4956, %v4958
  %v4974 = vsel %vm594, %v4958, %v4960
  %v4975 = vsel %vm594, %v4962, %v4964
  %v4976 = vsel %vm594, %v4964, %v4966
  %v4977 = vsel %vm594, %v4966, %v4968
  %4987 = vst [vmem:[#allocation3 + $0x78] sm:$0xff] %v4969
  %4988 = vst [vmem:[#allocation3 + $0x80] sm:$0xff] %v4970
  %4989 = vst.msk [vmem:[#allocation3 + $0x88] sm:$0xff] %vm195, %v4971
  %4990 = vst [vmem:[#allocation3 + $0xa0] sm:$0xff] %v4972
  %4991 = vst [vmem:[#allocation3 + $0xa8] sm:$0xff] %v4973
  %4992 = vst.msk [vmem:[#allocation3 + $0xb0] sm:$0xff] %vm195, %v4974
  %4993 = vst [vmem:[#allocation3 + $0xc8] sm:$0xff] %v4975
  %4994 = vst [vmem:[#allocation3 + $0xd0] sm:$0xff] %v4976
  %4995 = vst.msk [vmem:[#allocation3 + $0xd8] sm:$0xff] %vm195, %v4977
  %v4996 = vld [vmem:[#allocation2 + $0x28] sm:$0xff]
  %v4997 = vld [vmem:[#allocation2 + $0x30] sm:$0xff]
  %v4998 = vld [vmem:[#allocation2 + $0x38] sm:$0xff]
  %v4999 = vld [vmem:[#allocation2 + $0x40] sm:$0xff]
  %v5000 = vld [vmem:[#allocation2 + $0x78] sm:$0xff]
  %v5001 = vld [vmem:[#allocation2 + $0x80] sm:$0xff]
  %v5002 = vld [vmem:[#allocation2 + $0x88] sm:$0xff]
  %v5003 = vld [vmem:[#allocation2 + $0x90] sm:$0xff]
  %v5004 = vld [vmem:[#allocation2 + $0xc8] sm:$0xff]
  %v5005 = vld [vmem:[#allocation2 + $0xd0] sm:$0xff]
  %v5006 = vld [vmem:[#allocation2 + $0xd8] sm:$0xff]
  %v5007 = vld [vmem:[#allocation2 + $0xe0] sm:$0xff]
  %5020 = vrot.lane.b32.xlu0 %v4996, 84
  %v5021 = vpop.permute.xlu0 %5020
  %5022 = vrot.lane.b32.xlu0 %v4997, 84
  %v5023 = vpop.permute.xlu0 %5022
  %5024 = vrot.lane.b32.xlu0 %v4998, 84
  %v5025 = vpop.permute.xlu0 %5024
  %5026 = vrot.lane.b32.xlu0 %v4999, 84
  %v5027 = vpop.permute.xlu0 %5026
  %5028 = vrot.lane.b32.xlu0 %v5000, 84
  %v5029 = vpop.permute.xlu0 %5028
  %5030 = vrot.lane.b32.xlu0 %v5001, 84
  %v5031 = vpop.permute.xlu0 %5030
  %5032 = vrot.lane.b32.xlu0 %v5002, 84
  %v5033 = vpop.permute.xlu0 %5032
  %5034 = vrot.lane.b32.xlu0 %v5003, 84
  %v5035 = vpop.permute.xlu0 %5034
  %5036 = vrot.lane.b32.xlu0 %v5004, 84
  %v5037 = vpop.permute.xlu0 %5036
  %5038 = vrot.lane.b32.xlu0 %v5005, 84
  %v5039 = vpop.permute.xlu0 %5038
  %5040 = vrot.lane.b32.xlu0 %v5006, 84
  %v5041 = vpop.permute.xlu0 %5040
  %5042 = vrot.lane.b32.xlu0 %v5007, 84
  %v5043 = vpop.permute.xlu0 %5042
  %v5044 = vsel %vm620, %v5021, %v5023
  %v5045 = vsel %vm620, %v5023, %v5025
  %v5046 = vsel %vm620, %v5025, %v5027
  %v5047 = vsel %vm620, %v5029, %v5031
  %v5048 = vsel %vm620, %v5031, %v5033
  %v5049 = vsel %vm620, %v5033, %v5035
  %v5050 = vsel %vm620, %v5037, %v5039
  %v5051 = vsel %vm620, %v5039, %v5041
  %v5052 = vsel %vm620, %v5041, %v5043
  %5062 = vst.msk [vmem:[#allocation3 + $0x88] sm:$0xff] %vm45, %v5044
  %5063 = vst [vmem:[#allocation3 + $0x90] sm:$0xff] %v5045
  %5064 = vst [vmem:[#allocation3 + $0x98] sm:$0xff] %v5046
  %5065 = vst.msk [vmem:[#allocation3 + $0xb0] sm:$0xff] %vm45, %v5047
  %5066 = vst [vmem:[#allocation3 + $0xb8] sm:$0xff] %v5048
  %5067 = vst [vmem:[#allocation3 + $0xc0] sm:$0xff] %v5049
  %5068 = vst.msk [vmem:[#allocation3 + $0xd8] sm:$0xff] %vm45, %v5050
  %5069 = vst [vmem:[#allocation3 + $0xe0] sm:$0xff] %v5051
  %5070 = vst [vmem:[#allocation3 + $0xe8] sm:$0xff] %v5052
  %v5071 = vld [vmem:[#allocation2] sm:$0xff]
  %v5072 = vld [vmem:[#allocation2 + $0x8] sm:$0xff]
  %v5073 = vld [vmem:[#allocation2 + $0x10] sm:$0xff]
  %v5074 = vld [vmem:[#allocation2 + $0x18] sm:$0xff]
  %v5075 = vld [vmem:[#allocation2 + $0x50] sm:$0xff]
  %v5076 = vld [vmem:[#allocation2 + $0x58] sm:$0xff]
  %v5077 = vld [vmem:[#allocation2 + $0x60] sm:$0xff]
  %v5078 = vld [vmem:[#allocation2 + $0x68] sm:$0xff]
  %v5079 = vld [vmem:[#allocation2 + $0xa0] sm:$0xff]
  %v5080 = vld [vmem:[#allocation2 + $0xa8] sm:$0xff]
  %v5081 = vld [vmem:[#allocation2 + $0xb0] sm:$0xff]
  %v5082 = vld [vmem:[#allocation2 + $0xb8] sm:$0xff]
  %5095 = vrot.lane.b32.xlu0 %v5071, 19
  %v5096 = vpop.permute.xlu0 %5095
  %5097 = vrot.lane.b32.xlu0 %v5072, 19
  %v5098 = vpop.permute.xlu0 %5097
  %5099 = vrot.lane.b32.xlu0 %v5073, 19
  %v5100 = vpop.permute.xlu0 %5099
  %5101 = vrot.lane.b32.xlu0 %v5074, 19
  %v5102 = vpop.permute.xlu0 %5101
  %5103 = vrot.lane.b32.xlu0 %v5075, 19
  %v5104 = vpop.permute.xlu0 %5103
  %5105 = vrot.lane.b32.xlu0 %v5076, 19
  %v5106 = vpop.permute.xlu0 %5105
  %5107 = vrot.lane.b32.xlu0 %v5077, 19
  %v5108 = vpop.permute.xlu0 %5107
  %5109 = vrot.lane.b32.xlu0 %v5078, 19
  %v5110 = vpop.permute.xlu0 %5109
  %5111 = vrot.lane.b32.xlu0 %v5079, 19
  %v5112 = vpop.permute.xlu0 %5111
  %5113 = vrot.lane.b32.xlu0 %v5080, 19
  %v5114 = vpop.permute.xlu0 %5113
  %5115 = vrot.lane.b32.xlu0 %v5081, 19
  %v5116 = vpop.permute.xlu0 %5115
  %5117 = vrot.lane.b32.xlu0 %v5082, 19
  %v5118 = vpop.permute.xlu0 %5117
  %v5119 = vsel %vm646, %v5096, %v5098
  %v5120 = vsel %vm646, %v5098, %v5100
  %v5121 = vsel %vm646, %v5100, %v5102
  %v5122 = vsel %vm646, %v5104, %v5106
  %v5123 = vsel %vm646, %v5106, %v5108
  %v5124 = vsel %vm646, %v5108, %v5110
  %v5125 = vsel %vm646, %v5112, %v5114
  %v5126 = vsel %vm646, %v5114, %v5116
  %v5127 = vsel %vm646, %v5116, %v5118
  %5137 = vst [vmem:[#allocation3 + $0xf0] sm:$0xff] %v5119
  %5138 = vst [vmem:[#allocation3 + $0xf8] sm:$0xff] %v5120
  %5139 = vst.msk [vmem:[#allocation3 + $0x100] sm:$0xff] %vm195, %v5121
  %5140 = vst [vmem:[#allocation3 + $0x118] sm:$0xff] %v5122
  %5141 = vst [vmem:[#allocation3 + $0x120] sm:$0xff] %v5123
  %5142 = vst.msk [vmem:[#allocation3 + $0x128] sm:$0xff] %vm195, %v5124
  %5143 = vst [vmem:[#allocation3 + $0x140] sm:$0xff] %v5125
  %5144 = vst [vmem:[#allocation3 + $0x148] sm:$0xff] %v5126
  %5145 = vst.msk [vmem:[#allocation3 + $0x150] sm:$0xff] %vm195, %v5127
  %v5146 = vld [vmem:[#allocation2 + $0x28] sm:$0xff]
  %v5147 = vld [vmem:[#allocation2 + $0x30] sm:$0xff]
  %v5148 = vld [vmem:[#allocation2 + $0x38] sm:$0xff]
  %v5149 = vld [vmem:[#allocation2 + $0x40] sm:$0xff]
  %v5150 = vld [vmem:[#allocation2 + $0x78] sm:$0xff]
  %v5151 = vld [vmem:[#allocation2 + $0x80] sm:$0xff]
  %v5152 = vld [vmem:[#allocation2 + $0x88] sm:$0xff]
  %v5153 = vld [vmem:[#allocation2 + $0x90] sm:$0xff]
  %v5154 = vld [vmem:[#allocation2 + $0xc8] sm:$0xff]
  %v5155 = vld [vmem:[#allocation2 + $0xd0] sm:$0xff]
  %v5156 = vld [vmem:[#allocation2 + $0xd8] sm:$0xff]
  %v5157 = vld [vmem:[#allocation2 + $0xe0] sm:$0xff]
  %5170 = vrot.lane.b32.xlu0 %v5146, 83
  %v5171 = vpop.permute.xlu0 %5170
  %5172 = vrot.lane.b32.xlu0 %v5147, 83
  %v5173 = vpop.permute.xlu0 %5172
  %5174 = vrot.lane.b32.xlu0 %v5148, 83
  %v5175 = vpop.permute.xlu0 %5174
  %5176 = vrot.lane.b32.xlu0 %v5149, 83
  %v5177 = vpop.permute.xlu0 %5176
  %5178 = vrot.lane.b32.xlu0 %v5150, 83
  %v5179 = vpop.permute.xlu0 %5178
  %5180 = vrot.lane.b32.xlu0 %v5151, 83
  %v5181 = vpop.permute.xlu0 %5180
  %5182 = vrot.lane.b32.xlu0 %v5152, 83
  %v5183 = vpop.permute.xlu0 %5182
  %5184 = vrot.lane.b32.xlu0 %v5153, 83
  %v5185 = vpop.permute.xlu0 %5184
  %5186 = vrot.lane.b32.xlu0 %v5154, 83
  %v5187 = vpop.permute.xlu0 %5186
  %5188 = vrot.lane.b32.xlu0 %v5155, 83
  %v5189 = vpop.permute.xlu0 %5188
  %5190 = vrot.lane.b32.xlu0 %v5156, 83
  %v5191 = vpop.permute.xlu0 %5190
  %5192 = vrot.lane.b32.xlu0 %v5157, 83
  %v5193 = vpop.permute.xlu0 %5192
  %v5194 = vsel %vm672, %v5171, %v5173
  %v5195 = vsel %vm672, %v5173, %v5175
  %v5196 = vsel %vm672, %v5175, %v5177
  %v5197 = vsel %vm672, %v5179, %v5181
  %v5198 = vsel %vm672, %v5181, %v5183
  %v5199 = vsel %vm672, %v5183, %v5185
  %v5200 = vsel %vm672, %v5187, %v5189
  %v5201 = vsel %vm672, %v5189, %v5191
  %v5202 = vsel %vm672, %v5191, %v5193
  %5212 = vst.msk [vmem:[#allocation3 + $0x100] sm:$0xff] %vm45, %v5194
  %5213 = vst [vmem:[#allocation3 + $0x108] sm:$0xff] %v5195
  %5214 = vst [vmem:[#allocation3 + $0x110] sm:$0xff] %v5196
  %5215 = vst.msk [vmem:[#allocation3 + $0x128] sm:$0xff] %vm45, %v5197
  %5216 = vst [vmem:[#allocation3 + $0x130] sm:$0xff] %v5198
  %5217 = vst [vmem:[#allocation3 + $0x138] sm:$0xff] %v5199
  %5218 = vst.msk [vmem:[#allocation3 + $0x150] sm:$0xff] %vm45, %v5200
  %5219 = vst [vmem:[#allocation3 + $0x158] sm:$0xff] %v5201
  %5220 = vst [vmem:[#allocation3 + $0x160] sm:$0xff] %v5202
  %v5221 = vld [vmem:[#allocation2] sm:$0xff]
  %v5222 = vld [vmem:[#allocation2 + $0x8] sm:$0xff]
  %v5223 = vld [vmem:[#allocation2 + $0x10] sm:$0xff]
  %v5224 = vld [vmem:[#allocation2 + $0x18] sm:$0xff]
  %v5225 = vld [vmem:[#allocation2 + $0x50] sm:$0xff]
  %v5226 = vld [vmem:[#allocation2 + $0x58] sm:$0xff]
  %v5227 = vld [vmem:[#allocation2 + $0x60] sm:$0xff]
  %v5228 = vld [vmem:[#allocation2 + $0x68] sm:$0xff]
  %v5229 = vld [vmem:[#allocation2 + $0xa0] sm:$0xff]
  %v5230 = vld [vmem:[#allocation2 + $0xa8] sm:$0xff]
  %v5231 = vld [vmem:[#allocation2 + $0xb0] sm:$0xff]
  %v5232 = vld [vmem:[#allocation2 + $0xb8] sm:$0xff]
  %5245 = vrot.lane.b32.xlu0 %v5221, 1
  %v5246 = vpop.permute.xlu0 %5245
  %5247 = vrot.lane.b32.xlu0 %v5222, 1
  %v5248 = vpop.permute.xlu0 %5247
  %5249 = vrot.lane.b32.xlu0 %v5223, 1
  %v5250 = vpop.permute.xlu0 %5249
  %5251 = vrot.lane.b32.xlu0 %v5224, 1
  %v5252 = vpop.permute.xlu0 %5251
  %5253 = vrot.lane.b32.xlu0 %v5225, 1
  %v5254 = vpop.permute.xlu0 %5253
  %5255 = vrot.lane.b32.xlu0 %v5226, 1
  %v5256 = vpop.permute.xlu0 %5255
  %5257 = vrot.lane.b32.xlu0 %v5227, 1
  %v5258 = vpop.permute.xlu0 %5257
  %5259 = vrot.lane.b32.xlu0 %v5228, 1
  %v5260 = vpop.permute.xlu0 %5259
  %5261 = vrot.lane.b32.xlu0 %v5229, 1
  %v5262 = vpop.permute.xlu0 %5261
  %5263 = vrot.lane.b32.xlu0 %v5230, 1
  %v5264 = vpop.permute.xlu0 %5263
  %5265 = vrot.lane.b32.xlu0 %v5231, 1
  %v5266 = vpop.permute.xlu0 %5265
  %5267 = vrot.lane.b32.xlu0 %v5232, 1
  %v5268 = vpop.permute.xlu0 %5267
  %v5269 = vsel %vm802, %v5246, %v5248
  %v5270 = vsel %vm802, %v5248, %v5250
  %v5271 = vsel %vm802, %v5250, %v5252
  %v5272 = vsel %vm802, %v5254, %v5256
  %v5273 = vsel %vm802, %v5256, %v5258
  %v5274 = vsel %vm802, %v5258, %v5260
  %v5275 = vsel %vm802, %v5262, %v5264
  %v5276 = vsel %vm802, %v5264, %v5266
  %v5277 = vsel %vm802, %v5266, %v5268
  %5287 = vst [vmem:[#allocation3 + $0x168] sm:$0xff] %v5269
  %5288 = vst [vmem:[#allocation3 + $0x170] sm:$0xff] %v5270
  %5289 = vst.msk [vmem:[#allocation3 + $0x178] sm:$0xff] %vm195, %v5271
  %5290 = vst [vmem:[#allocation3 + $0x190] sm:$0xff] %v5272
  %5291 = vst [vmem:[#allocation3 + $0x198] sm:$0xff] %v5273
  %5292 = vst.msk [vmem:[#allocation3 + $0x1a0] sm:$0xff] %vm195, %v5274
  %5293 = vst [vmem:[#allocation3 + $0x1b8] sm:$0xff] %v5275
  %5294 = vst [vmem:[#allocation3 + $0x1c0] sm:$0xff] %v5276
  %5295 = vst.msk [vmem:[#allocation3 + $0x1c8] sm:$0xff] %vm195, %v5277
  %v5296 = vld [vmem:[#allocation2 + $0x28] sm:$0xff]
  %v5297 = vld [vmem:[#allocation2 + $0x30] sm:$0xff]
  %v5298 = vld [vmem:[#allocation2 + $0x38] sm:$0xff]
  %v5299 = vld [vmem:[#allocation2 + $0x40] sm:$0xff]
  %v5300 = vld [vmem:[#allocation2 + $0x78] sm:$0xff]
  %v5301 = vld [vmem:[#allocation2 + $0x80] sm:$0xff]
  %v5302 = vld [vmem:[#allocation2 + $0x88] sm:$0xff]
  %v5303 = vld [vmem:[#allocation2 + $0x90] sm:$0xff]
  %v5304 = vld [vmem:[#allocation2 + $0xc8] sm:$0xff]
  %v5305 = vld [vmem:[#allocation2 + $0xd0] sm:$0xff]
  %v5306 = vld [vmem:[#allocation2 + $0xd8] sm:$0xff]
  %v5307 = vld [vmem:[#allocation2 + $0xe0] sm:$0xff]
  %5320 = vrot.lane.b32.xlu0 %v5296, 65
  %v5321 = vpop.permute.xlu0 %5320
  %5322 = vrot.lane.b32.xlu0 %v5297, 65
  %v5323 = vpop.permute.xlu0 %5322
  %5324 = vrot.lane.b32.xlu0 %v5298, 65
  %v5325 = vpop.permute.xlu0 %5324
  %5326 = vrot.lane.b32.xlu0 %v5299, 65
  %v5327 = vpop.permute.xlu0 %5326
  %5328 = vrot.lane.b32.xlu0 %v5300, 65
  %v5329 = vpop.permute.xlu0 %5328
  %5330 = vrot.lane.b32.xlu0 %v5301, 65
  %v5331 = vpop.permute.xlu0 %5330
  %5332 = vrot.lane.b32.xlu0 %v5302, 65
  %v5333 = vpop.permute.xlu0 %5332
  %5334 = vrot.lane.b32.xlu0 %v5303, 65
  %v5335 = vpop.permute.xlu0 %5334
  %5336 = vrot.lane.b32.xlu0 %v5304, 65
  %v5337 = vpop.permute.xlu0 %5336
  %5338 = vrot.lane.b32.xlu0 %v5305, 65
  %v5339 = vpop.permute.xlu0 %5338
  %5340 = vrot.lane.b32.xlu0 %v5306, 65
  %v5341 = vpop.permute.xlu0 %5340
  %5342 = vrot.lane.b32.xlu0 %v5307, 65
  %v5343 = vpop.permute.xlu0 %5342
  %v5344 = vsel %vm828, %v5321, %v5323
  %v5345 = vsel %vm828, %v5323, %v5325
  %v5346 = vsel %vm828, %v5325, %v5327
  %v5347 = vsel %vm828, %v5329, %v5331
  %v5348 = vsel %vm828, %v5331, %v5333
  %v5349 = vsel %vm828, %v5333, %v5335
  %v5350 = vsel %vm828, %v5337, %v5339
  %v5351 = vsel %vm828, %v5339, %v5341
  %v5352 = vsel %vm828, %v5341, %v5343
  %5362 = vst.msk [vmem:[#allocation3 + $0x178] sm:$0xff] %vm45, %v5344
  %5363 = vst [vmem:[#allocation3 + $0x180] sm:$0xff] %v5345
  %5364 = vst [vmem:[#allocation3 + $0x188] sm:$0xff] %v5346
  %5365 = vst.msk [vmem:[#allocation3 + $0x1a0] sm:$0xff] %vm45, %v5347
  %5366 = vst [vmem:[#allocation3 + $0x1a8] sm:$0xff] %v5348
  %5367 = vst [vmem:[#allocation3 + $0x1b0] sm:$0xff] %v5349
  %5368 = vst.msk [vmem:[#allocation3 + $0x1c8] sm:$0xff] %vm45, %v5350
  %5369 = vst [vmem:[#allocation3 + $0x1d0] sm:$0xff] %v5351
  %5370 = vst [vmem:[#allocation3 + $0x1d8] sm:$0xff] %v5352
  %v5371 = vld [vmem:[#allocation2 + $0x8] sm:$0xff]
  %v5372 = vld [vmem:[#allocation2 + $0x10] sm:$0xff]
  %v5373 = vld [vmem:[#allocation2 + $0x18] sm:$0xff]
  %v5374 = vld [vmem:[#allocation2 + $0x58] sm:$0xff]
  %v5375 = vld [vmem:[#allocation2 + $0x60] sm:$0xff]
  %v5376 = vld [vmem:[#allocation2 + $0x68] sm:$0xff]
  %v5377 = vld [vmem:[#allocation2 + $0xa8] sm:$0xff]
  %v5378 = vld [vmem:[#allocation2 + $0xb0] sm:$0xff]
  %v5379 = vld [vmem:[#allocation2 + $0xb8] sm:$0xff]
  %5380 = vst [vmem:[#allocation3 + $0x1e0] sm:$0xff] %v5371
  %5381 = vst [vmem:[#allocation3 + $0x1e8] sm:$0xff] %v5372
  %5382 = vst.msk [vmem:[#allocation3 + $0x1f0] sm:$0xff] %vm195, %v5373
  %5383 = vst [vmem:[#allocation3 + $0x208] sm:$0xff] %v5374
  %5384 = vst [vmem:[#allocation3 + $0x210] sm:$0xff] %v5375
  %5385 = vst.msk [vmem:[#allocation3 + $0x218] sm:$0xff] %vm195, %v5376
  %5386 = vst [vmem:[#allocation3 + $0x230] sm:$0xff] %v5377
  %5387 = vst [vmem:[#allocation3 + $0x238] sm:$0xff] %v5378
  %5388 = vst.msk [vmem:[#allocation3 + $0x240] sm:$0xff] %vm195, %v5379
  %v5389 = vld [vmem:[#allocation2 + $0x30] sm:$0xff]
  %v5390 = vld [vmem:[#allocation2 + $0x38] sm:$0xff]
  %v5391 = vld [vmem:[#allocation2 + $0x40] sm:$0xff]
  %v5392 = vld [vmem:[#allocation2 + $0x80] sm:$0xff]
  %v5393 = vld [vmem:[#allocation2 + $0x88] sm:$0xff]
  %v5394 = vld [vmem:[#allocation2 + $0x90] sm:$0xff]
  %v5395 = vld [vmem:[#allocation2 + $0xd0] sm:$0xff]
  %v5396 = vld [vmem:[#allocation2 + $0xd8] sm:$0xff]
  %v5397 = vld [vmem:[#allocation2 + $0xe0] sm:$0xff]
  %5407 = vrot.lane.b32.xlu0 %v5389, 64
  %v5408 = vpop.permute.xlu0 %5407
  %5409 = vrot.lane.b32.xlu0 %v5390, 64
  %v5410 = vpop.permute.xlu0 %5409
  %5411 = vrot.lane.b32.xlu0 %v5391, 64
  %v5412 = vpop.permute.xlu0 %5411
  %5413 = vrot.lane.b32.xlu0 %v5392, 64
  %v5414 = vpop.permute.xlu0 %5413
  %5415 = vrot.lane.b32.xlu0 %v5393, 64
  %v5416 = vpop.permute.xlu0 %5415
  %5417 = vrot.lane.b32.xlu0 %v5394, 64
  %v5418 = vpop.permute.xlu0 %5417
  %5419 = vrot.lane.b32.xlu0 %v5395, 64
  %v5420 = vpop.permute.xlu0 %5419
  %5421 = vrot.lane.b32.xlu0 %v5396, 64
  %v5422 = vpop.permute.xlu0 %5421
  %5423 = vrot.lane.b32.xlu0 %v5397, 64
  %v5424 = vpop.permute.xlu0 %5423
  %v5425 = vsel %vm195, %v5408, %v5410
  %v5426 = vsel %vm195, %v5410, %v5412
  %v5427 = vsel %vm195, %v5414, %v5416
  %v5428 = vsel %vm195, %v5416, %v5418
  %v5429 = vsel %vm195, %v5420, %v5422
  %v5430 = vsel %vm195, %v5422, %v5424
  %5440 = vst.msk [vmem:[#allocation3 + $0x1f0] sm:$0xff] %vm45, %v5408
  %5441 = vst [vmem:[#allocation3 + $0x1f8] sm:$0xff] %v5425
  %5442 = vst [vmem:[#allocation3 + $0x200] sm:$0xff] %v5426
  %5443 = vst.msk [vmem:[#allocation3 + $0x218] sm:$0xff] %vm45, %v5414
  %5444 = vst [vmem:[#allocation3 + $0x220] sm:$0xff] %v5427
  %5445 = vst [vmem:[#allocation3 + $0x228] sm:$0xff] %v5428
  %5446 = vst.msk [vmem:[#allocation3 + $0x240] sm:$0xff] %vm45, %v5420
  %5447 = vst [vmem:[#allocation3 + $0x248] sm:$0xff] %v5429
  %5448 = vst [vmem:[#allocation3 + $0x250] sm:$0xff] %v5430
  %v5449 = vld [vmem:[#allocation2 + $0x8] sm:$0xff]
  %v5450 = vld [vmem:[#allocation2 + $0x10] sm:$0xff]
  %v5451 = vld [vmem:[#allocation2 + $0x18] sm:$0xff]
  %v5452 = vld [vmem:[#allocation2 + $0x58] sm:$0xff]
  %v5453 = vld [vmem:[#allocation2 + $0x60] sm:$0xff]
  %v5454 = vld [vmem:[#allocation2 + $0x68] sm:$0xff]
  %v5455 = vld [vmem:[#allocation2 + $0xa8] sm:$0xff]
  %v5456 = vld [vmem:[#allocation2 + $0xb0] sm:$0xff]
  %v5457 = vld [vmem:[#allocation2 + $0xb8] sm:$0xff]
  %5467 = vrot.lane.b32.xlu0 %v5449, 127
  %v5468 = vpop.permute.xlu0 %5467
  %5469 = vrot.lane.b32.xlu0 %v5450, 127
  %v5470 = vpop.permute.xlu0 %5469
  %5471 = vrot.lane.b32.xlu0 %v5451, 127
  %v5472 = vpop.permute.xlu0 %5471
  %5473 = vrot.lane.b32.xlu0 %v5452, 127
  %v5474 = vpop.permute.xlu0 %5473
  %5475 = vrot.lane.b32.xlu0 %v5453, 127
  %v5476 = vpop.permute.xlu0 %5475
  %5477 = vrot.lane.b32.xlu0 %v5454, 127
  %v5478 = vpop.permute.xlu0 %5477
  %5479 = vrot.lane.b32.xlu0 %v5455, 127
  %v5480 = vpop.permute.xlu0 %5479
  %5481 = vrot.lane.b32.xlu0 %v5456, 127
  %v5482 = vpop.permute.xlu0 %5481
  %5483 = vrot.lane.b32.xlu0 %v5457, 127
  %v5484 = vpop.permute.xlu0 %5483
  %v5485 = vsel %vm876, %v5468, %v5470
  %v5486 = vsel %vm876, %v5470, %v5472
  %v5487 = vsel %vm876, %v5474, %v5476
  %v5488 = vsel %vm876, %v5476, %v5478
  %v5489 = vsel %vm876, %v5480, %v5482
  %v5490 = vsel %vm876, %v5482, %v5484
  %5500 = vst [vmem:[#allocation3 + $0x258] sm:$0xff] %v5485
  %5501 = vst [vmem:[#allocation3 + $0x260] sm:$0xff] %v5486
  %5502 = vst.msk [vmem:[#allocation3 + $0x268] sm:$0xff] %vm195, %v5472
  %5503 = vst [vmem:[#allocation3 + $0x280] sm:$0xff] %v5487
  %5504 = vst [vmem:[#allocation3 + $0x288] sm:$0xff] %v5488
  %5505 = vst.msk [vmem:[#allocation3 + $0x290] sm:$0xff] %vm195, %v5478
  %5506 = vst [vmem:[#allocation3 + $0x2a8] sm:$0xff] %v5489
  %5507 = vst [vmem:[#allocation3 + $0x2b0] sm:$0xff] %v5490
  %5508 = vst.msk [vmem:[#allocation3 + $0x2b8] sm:$0xff] %vm195, %v5484
  %v5509 = vld [vmem:[#allocation2 + $0x30] sm:$0xff]
  %v5510 = vld [vmem:[#allocation2 + $0x38] sm:$0xff]
  %v5511 = vld [vmem:[#allocation2 + $0x40] sm:$0xff]
  %v5512 = vld [vmem:[#allocation2 + $0x80] sm:$0xff]
  %v5513 = vld [vmem:[#allocation2 + $0x88] sm:$0xff]
  %v5514 = vld [vmem:[#allocation2 + $0x90] sm:$0xff]
  %v5515 = vld [vmem:[#allocation2 + $0xd0] sm:$0xff]
  %v5516 = vld [vmem:[#allocation2 + $0xd8] sm:$0xff]
  %v5517 = vld [vmem:[#allocation2 + $0xe0] sm:$0xff]
  %5527 = vrot.lane.b32.xlu0 %v5509, 63
  %v5528 = vpop.permute.xlu0 %5527
  %5529 = vrot.lane.b32.xlu0 %v5510, 63
  %v5530 = vpop.permute.xlu0 %5529
  %5531 = vrot.lane.b32.xlu0 %v5511, 63
  %v5532 = vpop.permute.xlu0 %5531
  %5533 = vrot.lane.b32.xlu0 %v5512, 63
  %v5534 = vpop.permute.xlu0 %5533
  %5535 = vrot.lane.b32.xlu0 %v5513, 63
  %v5536 = vpop.permute.xlu0 %5535
  %5537 = vrot.lane.b32.xlu0 %v5514, 63
  %v5538 = vpop.permute.xlu0 %5537
  %5539 = vrot.lane.b32.xlu0 %v5515, 63
  %v5540 = vpop.permute.xlu0 %5539
  %5541 = vrot.lane.b32.xlu0 %v5516, 63
  %v5542 = vpop.permute.xlu0 %5541
  %5543 = vrot.lane.b32.xlu0 %v5517, 63
  %v5544 = vpop.permute.xlu0 %5543
  %v5545 = vsel %vm897, %v5528, %v5530
  %v5546 = vsel %vm897, %v5530, %v5532
  %v5547 = vsel %vm897, %v5534, %v5536
  %v5548 = vsel %vm897, %v5536, %v5538
  %v5549 = vsel %vm897, %v5540, %v5542
  %v5550 = vsel %vm897, %v5542, %v5544
  %5560 = vst.msk [vmem:[#allocation3 + $0x268] sm:$0xff] %vm45, %v5528
  %5561 = vst [vmem:[#allocation3 + $0x270] sm:$0xff] %v5545
  %5562 = vst [vmem:[#allocation3 + $0x278] sm:$0xff] %v5546
  %5563 = vst.msk [vmem:[#allocation3 + $0x290] sm:$0xff] %vm45, %v5534
  %5564 = vst [vmem:[#allocation3 + $0x298] sm:$0xff] %v5547
  %5565 = vst [vmem:[#allocation3 + $0x2a0] sm:$0xff] %v5548
  %5566 = vst.msk [vmem:[#allocation3 + $0x2b8] sm:$0xff] %vm45, %v5540
  %5567 = vst [vmem:[#allocation3 + $0x2c0] sm:$0xff] %v5549
  %5568 = vst [vmem:[#allocation3 + $0x2c8] sm:$0xff] %v5550
  %v5569 = vld [vmem:[#allocation2 + $0x8] sm:$0xff]
  %v5570 = vld [vmem:[#allocation2 + $0x10] sm:$0xff]
  %v5571 = vld [vmem:[#allocation2 + $0x18] sm:$0xff]
  %v5572 = vld [vmem:[#allocation2 + $0x58] sm:$0xff]
  %v5573 = vld [vmem:[#allocation2 + $0x60] sm:$0xff]
  %v5574 = vld [vmem:[#allocation2 + $0x68] sm:$0xff]
  %v5575 = vld [vmem:[#allocation2 + $0xa8] sm:$0xff]
  %v5576 = vld [vmem:[#allocation2 + $0xb0] sm:$0xff]
  %v5577 = vld [vmem:[#allocation2 + $0xb8] sm:$0xff]
  %5587 = vrot.lane.b32.xlu0 %v5569, 109
  %v5588 = vpop.permute.xlu0 %5587
  %5589 = vrot.lane.b32.xlu0 %v5570, 109
  %v5590 = vpop.permute.xlu0 %5589
  %5591 = vrot.lane.b32.xlu0 %v5571, 109
  %v5592 = vpop.permute.xlu0 %5591
  %5593 = vrot.lane.b32.xlu0 %v5572, 109
  %v5594 = vpop.permute.xlu0 %5593
  %5595 = vrot.lane.b32.xlu0 %v5573, 109
  %v5596 = vpop.permute.xlu0 %5595
  %5597 = vrot.lane.b32.xlu0 %v5574, 109
  %v5598 = vpop.permute.xlu0 %5597
  %5599 = vrot.lane.b32.xlu0 %v5575, 109
  %v5600 = vpop.permute.xlu0 %5599
  %5601 = vrot.lane.b32.xlu0 %v5576, 109
  %v5602 = vpop.permute.xlu0 %5601
  %5603 = vrot.lane.b32.xlu0 %v5577, 109
  %v5604 = vpop.permute.xlu0 %5603
  %v5605 = vsel %vm1002, %v5588, %v5590
  %v5606 = vsel %vm1002, %v5590, %v5592
  %v5607 = vsel %vm1002, %v5594, %v5596
  %v5608 = vsel %vm1002, %v5596, %v5598
  %v5609 = vsel %vm1002, %v5600, %v5602
  %v5610 = vsel %vm1002, %v5602, %v5604
  %5620 = vst [vmem:[#allocation3 + $0x2d0] sm:$0xff] %v5605
  %5621 = vst [vmem:[#allocation3 + $0x2d8] sm:$0xff] %v5606
  %5622 = vst.msk [vmem:[#allocation3 + $0x2e0] sm:$0xff] %vm195, %v5592
  %5623 = vst [vmem:[#allocation3 + $0x2f8] sm:$0xff] %v5607
  %5624 = vst [vmem:[#allocation3 + $0x300] sm:$0xff] %v5608
  %5625 = vst.msk [vmem:[#allocation3 + $0x308] sm:$0xff] %vm195, %v5598
  %5626 = vst [vmem:[#allocation3 + $0x320] sm:$0xff] %v5609
  %5627 = vst [vmem:[#allocation3 + $0x328] sm:$0xff] %v5610
  %5628 = vst.msk [vmem:[#allocation3 + $0x330] sm:$0xff] %vm195, %v5604
  %v5629 = vld [vmem:[#allocation2 + $0x30] sm:$0xff]
  %v5630 = vld [vmem:[#allocation2 + $0x38] sm:$0xff]
  %v5631 = vld [vmem:[#allocation2 + $0x40] sm:$0xff]
  %v5632 = vld [vmem:[#allocation2 + $0x80] sm:$0xff]
  %v5633 = vld [vmem:[#allocation2 + $0x88] sm:$0xff]
  %v5634 = vld [vmem:[#allocation2 + $0x90] sm:$0xff]
  %v5635 = vld [vmem:[#allocation2 + $0xd0] sm:$0xff]
  %v5636 = vld [vmem:[#allocation2 + $0xd8] sm:$0xff]
  %v5637 = vld [vmem:[#allocation2 + $0xe0] sm:$0xff]
  %5647 = vrot.lane.b32.xlu0 %v5629, 45
  %v5648 = vpop.permute.xlu0 %5647
  %5649 = vrot.lane.b32.xlu0 %v5630, 45
  %v5650 = vpop.permute.xlu0 %5649
  %5651 = vrot.lane.b32.xlu0 %v5631, 45
  %v5652 = vpop.permute.xlu0 %5651
  %5653 = vrot.lane.b32.xlu0 %v5632, 45
  %v5654 = vpop.permute.xlu0 %5653
  %5655 = vrot.lane.b32.xlu0 %v5633, 45
  %v5656 = vpop.permute.xlu0 %5655
  %5657 = vrot.lane.b32.xlu0 %v5634, 45
  %v5658 = vpop.permute.xlu0 %5657
  %5659 = vrot.lane.b32.xlu0 %v5635, 45
  %v5660 = vpop.permute.xlu0 %5659
  %5661 = vrot.lane.b32.xlu0 %v5636, 45
  %v5662 = vpop.permute.xlu0 %5661
  %5663 = vrot.lane.b32.xlu0 %v5637, 45
  %v5664 = vpop.permute.xlu0 %5663
  %v5665 = vsel %vm1023, %v5648, %v5650
  %v5666 = vsel %vm1023, %v5650, %v5652
  %v5667 = vsel %vm1023, %v5654, %v5656
  %v5668 = vsel %vm1023, %v5656, %v5658
  %v5669 = vsel %vm1023, %v5660, %v5662
  %v5670 = vsel %vm1023, %v5662, %v5664
  %5680 = vst.msk [vmem:[#allocation3 + $0x2e0] sm:$0xff] %vm45, %v5648
  %5681 = vst [vmem:[#allocation3 + $0x2e8] sm:$0xff] %v5665
  %5682 = vst [vmem:[#allocation3 + $0x2f0] sm:$0xff] %v5666
  %5683 = vst.msk [vmem:[#allocation3 + $0x308] sm:$0xff] %vm45, %v5654
  %5684 = vst [vmem:[#allocation3 + $0x310] sm:$0xff] %v5667
  %5685 = vst [vmem:[#allocation3 + $0x318] sm:$0xff] %v5668
  %5686 = vst.msk [vmem:[#allocation3 + $0x330] sm:$0xff] %vm45, %v5660
  %5687 = vst [vmem:[#allocation3 + $0x338] sm:$0xff] %v5669
  %5688 = vst [vmem:[#allocation3 + $0x340] sm:$0xff] %v5670
  %v5689 = vld [vmem:[#allocation2 + $0x8] sm:$0xff]
  %v5690 = vld [vmem:[#allocation2 + $0x10] sm:$0xff]
  %v5691 = vld [vmem:[#allocation2 + $0x18] sm:$0xff]
  %v5692 = vld [vmem:[#allocation2 + $0x58] sm:$0xff]
  %v5693 = vld [vmem:[#allocation2 + $0x60] sm:$0xff]
  %v5694 = vld [vmem:[#allocation2 + $0x68] sm:$0xff]
  %v5695 = vld [vmem:[#allocation2 + $0xa8] sm:$0xff]
  %v5696 = vld [vmem:[#allocation2 + $0xb0] sm:$0xff]
  %v5697 = vld [vmem:[#allocation2 + $0xb8] sm:$0xff]
  %5707 = vrot.lane.b32.xlu0 %v5689, 108
  %v5708 = vpop.permute.xlu0 %5707
  %5709 = vrot.lane.b32.xlu0 %v5690, 108
  %v5710 = vpop.permute.xlu0 %5709
  %5711 = vrot.lane.b32.xlu0 %v5691, 108
  %v5712 = vpop.permute.xlu0 %5711
  %5713 = vrot.lane.b32.xlu0 %v5692, 108
  %v5714 = vpop.permute.xlu0 %5713
  %5715 = vrot.lane.b32.xlu0 %v5693, 108
  %v5716 = vpop.permute.xlu0 %5715
  %5717 = vrot.lane.b32.xlu0 %v5694, 108
  %v5718 = vpop.permute.xlu0 %5717
  %5719 = vrot.lane.b32.xlu0 %v5695, 108
  %v5720 = vpop.permute.xlu0 %5719
  %5721 = vrot.lane.b32.xlu0 %v5696, 108
  %v5722 = vpop.permute.xlu0 %5721
  %5723 = vrot.lane.b32.xlu0 %v5697, 108
  %v5724 = vpop.permute.xlu0 %5723
  %v5725 = vsel %vm1044, %v5708, %v5710
  %v5726 = vsel %vm1044, %v5710, %v5712
  %v5727 = vsel %vm1044, %v5714, %v5716
  %v5728 = vsel %vm1044, %v5716, %v5718
  %v5729 = vsel %vm1044, %v5720, %v5722
  %v5730 = vsel %vm1044, %v5722, %v5724
  %5740 = vst [vmem:[#allocation3 + $0x348] sm:$0xff] %v5725
  %5741 = vst [vmem:[#allocation3 + $0x350] sm:$0xff] %v5726
  %5742 = vst.msk [vmem:[#allocation3 + $0x358] sm:$0xff] %vm195, %v5712
  %5743 = vst [vmem:[#allocation3 + $0x370] sm:$0xff] %v5727
  %5744 = vst [vmem:[#allocation3 + $0x378] sm:$0xff] %v5728
  %5745 = vst.msk [vmem:[#allocation3 + $0x380] sm:$0xff] %vm195, %v5718
  %5746 = vst [vmem:[#allocation3 + $0x398] sm:$0xff] %v5729
  %5747 = vst [vmem:[#allocation3 + $0x3a0] sm:$0xff] %v5730
  %5748 = vst.msk [vmem:[#allocation3 + $0x3a8] sm:$0xff] %vm195, %v5724
  %v5749 = vld [vmem:[#allocation2 + $0x30] sm:$0xff]
  %v5750 = vld [vmem:[#allocation2 + $0x38] sm:$0xff]
  %v5751 = vld [vmem:[#allocation2 + $0x40] sm:$0xff]
  %v5752 = vld [vmem:[#allocation2 + $0x80] sm:$0xff]
  %v5753 = vld [vmem:[#allocation2 + $0x88] sm:$0xff]
  %v5754 = vld [vmem:[#allocation2 + $0x90] sm:$0xff]
  %v5755 = vld [vmem:[#allocation2 + $0xd0] sm:$0xff]
  %v5756 = vld [vmem:[#allocation2 + $0xd8] sm:$0xff]
  %v5757 = vld [vmem:[#allocation2 + $0xe0] sm:$0xff]
  %5767 = vrot.lane.b32.xlu0 %v5749, 44
  %v5768 = vpop.permute.xlu0 %5767
  %5769 = vrot.lane.b32.xlu0 %v5750, 44
  %v5770 = vpop.permute.xlu0 %5769
  %5771 = vrot.lane.b32.xlu0 %v5751, 44
  %v5772 = vpop.permute.xlu0 %5771
  %5773 = vrot.lane.b32.xlu0 %v5752, 44
  %v5774 = vpop.permute.xlu0 %5773
  %5775 = vrot.lane.b32.xlu0 %v5753, 44
  %v5776 = vpop.permute.xlu0 %5775
  %5777 = vrot.lane.b32.xlu0 %v5754, 44
  %v5778 = vpop.permute.xlu0 %5777
  %5779 = vrot.lane.b32.xlu0 %v5755, 44
  %v5780 = vpop.permute.xlu0 %5779
  %5781 = vrot.lane.b32.xlu0 %v5756, 44
  %v5782 = vpop.permute.xlu0 %5781
  %5783 = vrot.lane.b32.xlu0 %v5757, 44
  %v5784 = vpop.permute.xlu0 %5783
  %v5785 = vsel %vm1065, %v5768, %v5770
  %v5786 = vsel %vm1065, %v5770, %v5772
  %v5787 = vsel %vm1065, %v5774, %v5776
  %v5788 = vsel %vm1065, %v5776, %v5778
  %v5789 = vsel %vm1065, %v5780, %v5782
  %v5790 = vsel %vm1065, %v5782, %v5784
  %5800 = vst.msk [vmem:[#allocation3 + $0x358] sm:$0xff] %vm45, %v5768
  %5801 = vst [vmem:[#allocation3 + $0x360] sm:$0xff] %v5785
  %5802 = vst [vmem:[#allocation3 + $0x368] sm:$0xff] %v5786
  %5803 = vst.msk [vmem:[#allocation3 + $0x380] sm:$0xff] %vm45, %v5774
  %5804 = vst [vmem:[#allocation3 + $0x388] sm:$0xff] %v5787
  %5805 = vst [vmem:[#allocation3 + $0x390] sm:$0xff] %v5788
  %5806 = vst.msk [vmem:[#allocation3 + $0x3a8] sm:$0xff] %vm45, %v5780
  %5807 = vst [vmem:[#allocation3 + $0x3b0] sm:$0xff] %v5789
  %5808 = vst [vmem:[#allocation3 + $0x3b8] sm:$0xff] %v5790
  %v5809 = vld [vmem:[#allocation2 + $0x8] sm:$0xff]
  %v5810 = vld [vmem:[#allocation2 + $0x10] sm:$0xff]
  %v5811 = vld [vmem:[#allocation2 + $0x18] sm:$0xff]
  %v5812 = vld [vmem:[#allocation2 + $0x58] sm:$0xff]
  %v5813 = vld [vmem:[#allocation2 + $0x60] sm:$0xff]
  %v5814 = vld [vmem:[#allocation2 + $0x68] sm:$0xff]
  %v5815 = vld [vmem:[#allocation2 + $0xa8] sm:$0xff]
  %v5816 = vld [vmem:[#allocation2 + $0xb0] sm:$0xff]
  %v5817 = vld [vmem:[#allocation2 + $0xb8] sm:$0xff]
  %5827 = vrot.lane.b32.xlu0 %v5809, 107
  %v5828 = vpop.permute.xlu0 %5827
  %5829 = vrot.lane.b32.xlu0 %v5810, 107
  %v5830 = vpop.permute.xlu0 %5829
  %5831 = vrot.lane.b32.xlu0 %v5811, 107
  %v5832 = vpop.permute.xlu0 %5831
  %5833 = vrot.lane.b32.xlu0 %v5812, 107
  %v5834 = vpop.permute.xlu0 %5833
  %5835 = vrot.lane.b32.xlu0 %v5813, 107
  %v5836 = vpop.permute.xlu0 %5835
  %5837 = vrot.lane.b32.xlu0 %v5814, 107
  %v5838 = vpop.permute.xlu0 %5837
  %5839 = vrot.lane.b32.xlu0 %v5815, 107
  %v5840 = vpop.permute.xlu0 %5839
  %5841 = vrot.lane.b32.xlu0 %v5816, 107
  %v5842 = vpop.permute.xlu0 %5841
  %5843 = vrot.lane.b32.xlu0 %v5817, 107
  %v5844 = vpop.permute.xlu0 %5843
  %v5845 = vsel %vm1086, %v5828, %v5830
  %v5846 = vsel %vm1086, %v5830, %v5832
  %v5847 = vsel %vm1086, %v5834, %v5836
  %v5848 = vsel %vm1086, %v5836, %v5838
  %v5849 = vsel %vm1086, %v5840, %v5842
  %v5850 = vsel %vm1086, %v5842, %v5844
  %5860 = vst [vmem:[#allocation3 + $0x3c0] sm:$0xff] %v5845
  %5861 = vst [vmem:[#allocation3 + $0x3c8] sm:$0xff] %v5846
  %5862 = vst.msk [vmem:[#allocation3 + $0x3d0] sm:$0xff] %vm195, %v5832
  %5863 = vst [vmem:[#allocation3 + $0x3e8] sm:$0xff] %v5847
  %5864 = vst [vmem:[#allocation3 + $0x3f0] sm:$0xff] %v5848
  %5865 = vst.msk [vmem:[#allocation3 + $0x3f8] sm:$0xff] %vm195, %v5838
  %5866 = vst [vmem:[#allocation3 + $0x410] sm:$0xff] %v5849
  %5867 = vst [vmem:[#allocation3 + $0x418] sm:$0xff] %v5850
  %5868 = vst.msk [vmem:[#allocation3 + $0x420] sm:$0xff] %vm195, %v5844
  %v5869 = vld [vmem:[#allocation2 + $0x30] sm:$0xff]
  %v5870 = vld [vmem:[#allocation2 + $0x38] sm:$0xff]
  %v5871 = vld [vmem:[#allocation2 + $0x40] sm:$0xff]
  %v5872 = vld [vmem:[#allocation2 + $0x80] sm:$0xff]
  %v5873 = vld [vmem:[#allocation2 + $0x88] sm:$0xff]
  %v5874 = vld [vmem:[#allocation2 + $0x90] sm:$0xff]
  %v5875 = vld [vmem:[#allocation2 + $0xd0] sm:$0xff]
  %v5876 = vld [vmem:[#allocation2 + $0xd8] sm:$0xff]
  %v5877 = vld [vmem:[#allocation2 + $0xe0] sm:$0xff]
  %5887 = vrot.lane.b32.xlu0 %v5869, 43
  %v5888 = vpop.permute.xlu0 %5887
  %5889 = vrot.lane.b32.xlu0 %v5870, 43
  %v5890 = vpop.permute.xlu0 %5889
  %5891 = vrot.lane.b32.xlu0 %v5871, 43
  %v5892 = vpop.permute.xlu0 %5891
  %5893 = vrot.lane.b32.xlu0 %v5872, 43
  %v5894 = vpop.permute.xlu0 %5893
  %5895 = vrot.lane.b32.xlu0 %v5873, 43
  %v5896 = vpop.permute.xlu0 %5895
  %5897 = vrot.lane.b32.xlu0 %v5874, 43
  %v5898 = vpop.permute.xlu0 %5897
  %5899 = vrot.lane.b32.xlu0 %v5875, 43
  %v5900 = vpop.permute.xlu0 %5899
  %5901 = vrot.lane.b32.xlu0 %v5876, 43
  %v5902 = vpop.permute.xlu0 %5901
  %5903 = vrot.lane.b32.xlu0 %v5877, 43
  %v5904 = vpop.permute.xlu0 %5903
  %v5905 = vsel %vm1107, %v5888, %v5890
  %v5906 = vsel %vm1107, %v5890, %v5892
  %v5907 = vsel %vm1107, %v5894, %v5896
  %v5908 = vsel %vm1107, %v5896, %v5898
  %v5909 = vsel %vm1107, %v5900, %v5902
  %v5910 = vsel %vm1107, %v5902, %v5904
  %5920 = vst.msk [vmem:[#allocation3 + $0x3d0] sm:$0xff] %vm45, %v5888
  %5921 = vst [vmem:[#allocation3 + $0x3d8] sm:$0xff] %v5905
  %5922 = vst [vmem:[#allocation3 + $0x3e0] sm:$0xff] %v5906
  %5923 = vst.msk [vmem:[#allocation3 + $0x3f8] sm:$0xff] %vm45, %v5894
  %5924 = vst [vmem:[#allocation3 + $0x400] sm:$0xff] %v5907
  %5925 = vst [vmem:[#allocation3 + $0x408] sm:$0xff] %v5908
  %5926 = vst.msk [vmem:[#allocation3 + $0x420] sm:$0xff] %vm45, %v5900
  %5927 = vst [vmem:[#allocation3 + $0x428] sm:$0xff] %v5909
  %5928 = vst [vmem:[#allocation3 + $0x430] sm:$0xff] %v5910
  %v5929 = vld [vmem:[%s7] sm:$0xff]
  %v5930 = vld [vmem:[%s7 + $0x8] sm:$0xff]
  %v5931 = vld [vmem:[#allocation3] sm:$0xff]
  %v5932 = vld [vmem:[#allocation3 + $0x8] sm:$0xff]
  %v5933 = vld [vmem:[#allocation3 + $0x10] sm:$0xff]
  %v5934 = vld [vmem:[#allocation3 + $0x18] sm:$0xff]
  %v5935 = vld [vmem:[#allocation3 + $0x20] sm:$0xff]
  %v5936 = vld [vmem:[#allocation3 + $0x28] sm:$0xff]
  %v5937 = vld [vmem:[#allocation3 + $0x30] sm:$0xff]
  %v5938 = vld [vmem:[#allocation3 + $0x38] sm:$0xff]
  %v5939 = vld [vmem:[#allocation3 + $0x40] sm:$0xff]
  %v5940 = vld [vmem:[#allocation3 + $0x48] sm:$0xff]
  %v5941 = vld [vmem:[#allocation3 + $0x50] sm:$0xff]
  %v5942 = vld [vmem:[#allocation3 + $0x58] sm:$0xff]
  %v5943 = vld [vmem:[#allocation3 + $0x60] sm:$0xff]
  %v5944 = vld [vmem:[#allocation3 + $0x68] sm:$0xff]
  %v5945 = vld [vmem:[#allocation3 + $0x70] sm:$0xff]
  %v5946 = vld [vmem:[#allocation3 + $0x78] sm:$0xff]
  %v5947 = vld [vmem:[#allocation3 + $0x80] sm:$0xff]
  %v5948 = vld [vmem:[#allocation3 + $0x88] sm:$0xff]
  %v5949 = vld [vmem:[#allocation3 + $0x90] sm:$0xff]
  %v5950 = vld [vmem:[#allocation3 + $0x98] sm:$0xff]
  %v5951 = vld [vmem:[#allocation3 + $0xa0] sm:$0xff]
  %v5952 = vld [vmem:[#allocation3 + $0xa8] sm:$0xff]
  %v5953 = vld [vmem:[#allocation3 + $0xb0] sm:$0xff]
  %v5954 = vld [vmem:[#allocation3 + $0xb8] sm:$0xff]
  %v5955 = vld [vmem:[#allocation3 + $0xc0] sm:$0xff]
  %v5956 = vld [vmem:[#allocation3 + $0xc8] sm:$0xff]
  %v5957 = vld [vmem:[#allocation3 + $0xd0] sm:$0xff]
  %v5958 = vld [vmem:[#allocation3 + $0xd8] sm:$0xff]
  %v5959 = vld [vmem:[#allocation3 + $0xe0] sm:$0xff]
  %v5960 = vld [vmem:[#allocation3 + $0xe8] sm:$0xff]
  %v5961 = vld [vmem:[#allocation3 + $0xf0] sm:$0xff]
  %v5962 = vld [vmem:[#allocation3 + $0xf8] sm:$0xff]
  %v5963 = vld [vmem:[#allocation3 + $0x100] sm:$0xff]
  %v5964 = vld [vmem:[#allocation3 + $0x108] sm:$0xff]
  %v5965 = vld [vmem:[#allocation3 + $0x110] sm:$0xff]
  %v5966 = vld [vmem:[#allocation3 + $0x118] sm:$0xff]
  %v5967 = vld [vmem:[#allocation3 + $0x120] sm:$0xff]
  %v5968 = vld [vmem:[#allocation3 + $0x128] sm:$0xff]
  %v5969 = vld [vmem:[#allocation3 + $0x130] sm:$0xff]
  %v5970 = vld [vmem:[#allocation3 + $0x138] sm:$0xff]
  %v5971 = vld [vmem:[#allocation3 + $0x140] sm:$0xff]
  %v5972 = vld [vmem:[#allocation3 + $0x148] sm:$0xff]
  %v5973 = vld [vmem:[#allocation3 + $0x150] sm:$0xff]
  %v5974 = vld [vmem:[#allocation3 + $0x158] sm:$0xff]
  %v5975 = vld [vmem:[#allocation3 + $0x160] sm:$0xff]
  %v5976 = vld [vmem:[#allocation3 + $0x168] sm:$0xff]
  %v5977 = vld [vmem:[#allocation3 + $0x170] sm:$0xff]
  %v5978 = vld [vmem:[#allocation3 + $0x178] sm:$0xff]
  %v5979 = vld [vmem:[#allocation3 + $0x180] sm:$0xff]
  %v5980 = vld [vmem:[#allocation3 + $0x188] sm:$0xff]
  %v5981 = vld [vmem:[#allocation3 + $0x190] sm:$0xff]
  %v5982 = vld [vmem:[#allocation3 + $0x198] sm:$0xff]
  %v5983 = vld [vmem:[#allocation3 + $0x1a0] sm:$0xff]
  %v5984 = vld [vmem:[#allocation3 + $0x1a8] sm:$0xff]
  %v5985 = vld [vmem:[#allocation3 + $0x1b0] sm:$0xff]
  %v5986 = vld [vmem:[#allocation3 + $0x1b8] sm:$0xff]
  %v5987 = vld [vmem:[#allocation3 + $0x1c0] sm:$0xff]
  %v5988 = vld [vmem:[#allocation3 + $0x1c8] sm:$0xff]
  %v5989 = vld [vmem:[#allocation3 + $0x1d0] sm:$0xff]
  %v5990 = vld [vmem:[#allocation3 + $0x1d8] sm:$0xff]
  %v5991 = vld [vmem:[#allocation3 + $0x1e0] sm:$0xff]
  %v5992 = vld [vmem:[#allocation3 + $0x1e8] sm:$0xff]
  %v5993 = vld [vmem:[#allocation3 + $0x1f0] sm:$0xff]
  %v5994 = vld [vmem:[#allocation3 + $0x1f8] sm:$0xff]
  %v5995 = vld [vmem:[#allocation3 + $0x200] sm:$0xff]
  %v5996 = vld [vmem:[#allocation3 + $0x208] sm:$0xff]
  %v5997 = vld [vmem:[#allocation3 + $0x210] sm:$0xff]
  %v5998 = vld [vmem:[#allocation3 + $0x218] sm:$0xff]
  %v5999 = vld [vmem:[#allocation3 + $0x220] sm:$0xff]
  %v6000 = vld [vmem:[#allocation3 + $0x228] sm:$0xff]
  %v6001 = vld [vmem:[#allocation3 + $0x230] sm:$0xff]
  %v6002 = vld [vmem:[#allocation3 + $0x238] sm:$0xff]
  %v6003 = vld [vmem:[#allocation3 + $0x240] sm:$0xff]
  %v6004 = vld [vmem:[#allocation3 + $0x248] sm:$0xff]
  %v6005 = vld [vmem:[#allocation3 + $0x250] sm:$0xff]
  %v6006 = vld [vmem:[#allocation3 + $0x258] sm:$0xff]
  %v6007 = vld [vmem:[#allocation3 + $0x260] sm:$0xff]
  %v6008 = vld [vmem:[#allocation3 + $0x268] sm:$0xff]
  %v6009 = vld [vmem:[#allocation3 + $0x270] sm:$0xff]
  %v6010 = vld [vmem:[#allocation3 + $0x278] sm:$0xff]
  %v6011 = vld [vmem:[#allocation3 + $0x280] sm:$0xff]
  %v6012 = vld [vmem:[#allocation3 + $0x288] sm:$0xff]
  %v6013 = vld [vmem:[#allocation3 + $0x290] sm:$0xff]
  %v6014 = vld [vmem:[#allocation3 + $0x298] sm:$0xff]
  %v6015 = vld [vmem:[#allocation3 + $0x2a0] sm:$0xff]
  %v6016 = vld [vmem:[#allocation3 + $0x2a8] sm:$0xff]
  %v6017 = vld [vmem:[#allocation3 + $0x2b0] sm:$0xff]
  %v6018 = vld [vmem:[#allocation3 + $0x2b8] sm:$0xff]
  %v6019 = vld [vmem:[#allocation3 + $0x2c0] sm:$0xff]
  %v6020 = vld [vmem:[#allocation3 + $0x2c8] sm:$0xff]
  %v6021 = vld [vmem:[#allocation3 + $0x2d0] sm:$0xff]
  %v6022 = vld [vmem:[#allocation3 + $0x2d8] sm:$0xff]
  %v6023 = vld [vmem:[#allocation3 + $0x2e0] sm:$0xff]
  %v6024 = vld [vmem:[#allocation3 + $0x2e8] sm:$0xff]
  %v6025 = vld [vmem:[#allocation3 + $0x2f0] sm:$0xff]
  %v6026 = vld [vmem:[#allocation3 + $0x2f8] sm:$0xff]
  %v6027 = vld [vmem:[#allocation3 + $0x300] sm:$0xff]
  %v6028 = vld [vmem:[#allocation3 + $0x308] sm:$0xff]
  %v6029 = vld [vmem:[#allocation3 + $0x310] sm:$0xff]
  %v6030 = vld [vmem:[#allocation3 + $0x318] sm:$0xff]
  %v6031 = vld [vmem:[#allocation3 + $0x320] sm:$0xff]
  %v6032 = vld [vmem:[#allocation3 + $0x328] sm:$0xff]
  %v6033 = vld [vmem:[#allocation3 + $0x330] sm:$0xff]
  %v6034 = vld [vmem:[#allocation3 + $0x338] sm:$0xff]
  %v6035 = vld [vmem:[#allocation3 + $0x340] sm:$0xff]
  %v6036 = vld [vmem:[#allocation3 + $0x348] sm:$0xff]
  %v6037 = vld [vmem:[#allocation3 + $0x350] sm:$0xff]
  %v6038 = vld [vmem:[#allocation3 + $0x358] sm:$0xff]
  %v6039 = vld [vmem:[#allocation3 + $0x360] sm:$0xff]
  %v6040 = vld [vmem:[#allocation3 + $0x368] sm:$0xff]
  %v6041 = vld [vmem:[#allocation3 + $0x370] sm:$0xff]
  %v6042 = vld [vmem:[#allocation3 + $0x378] sm:$0xff]
  %v6043 = vld [vmem:[#allocation3 + $0x380] sm:$0xff]
  %v6044 = vld [vmem:[#allocation3 + $0x388] sm:$0xff]
  %v6045 = vld [vmem:[#allocation3 + $0x390] sm:$0xff]
  %v6046 = vld [vmem:[#allocation3 + $0x398] sm:$0xff]
  %v6047 = vld [vmem:[#allocation3 + $0x3a0] sm:$0xff]
  %v6048 = vld [vmem:[#allocation3 + $0x3a8] sm:$0xff]
  %v6049 = vld [vmem:[#allocation3 + $0x3b0] sm:$0xff]
  %v6050 = vld [vmem:[#allocation3 + $0x3b8] sm:$0xff]
  %v6051 = vld [vmem:[#allocation3 + $0x3c0] sm:$0xff]
  %v6052 = vld [vmem:[#allocation3 + $0x3c8] sm:$0xff]
  %v6053 = vld [vmem:[#allocation3 + $0x3d0] sm:$0xff]
  %v6054 = vld [vmem:[#allocation3 + $0x3d8] sm:$0xff]
  %v6055 = vld [vmem:[#allocation3 + $0x3e0] sm:$0xff]
  %v6056 = vld [vmem:[#allocation3 + $0x3e8] sm:$0xff]
  %v6057 = vld [vmem:[#allocation3 + $0x3f0] sm:$0xff]
  %v6058 = vld [vmem:[#allocation3 + $0x3f8] sm:$0xff]
  %v6059 = vld [vmem:[#allocation3 + $0x400] sm:$0xff]
  %v6060 = vld [vmem:[#allocation3 + $0x408] sm:$0xff]
  %v6061 = vld [vmem:[#allocation3 + $0x410] sm:$0xff]
  %v6062 = vld [vmem:[#allocation3 + $0x418] sm:$0xff]
  %v6063 = vld [vmem:[#allocation3 + $0x420] sm:$0xff]
  %v6064 = vld [vmem:[#allocation3 + $0x428] sm:$0xff]
  %v6065 = vld [vmem:[#allocation3 + $0x430] sm:$0xff]
  %v6066 = vld [vmem:[%s8] sm:$0xff]
  %6068 = vset.pattern.permute.xlu0 0
  %6069 = vperm.xlu0 %6068, %v6066
  %v6070 = vpop.permute.xlu0 %6069
  %v6073 = vsel %vm1252, %v5930, 0
  %6075 = vmatpush.msra.mxu0 %v6006
  %6076 = vmatpush.msra.mxu0 %v6001
  %6077 = vmatpush.msra.mxu0 %v5996
  %6078 = vmatpush.msra.mxu0 %v5991
  %6079 = vmatpush.msra.mxu0 %v5986
  %6080 = vmatpush.msra.mxu0 %v5981
  %6081 = vmatpush.msra.mxu0 %v5976
  %6082 = vmatpush.msra.mxu0 %v5971
  %6083 = vmatpush.msra.mxu0 %v5966
  %6084 = vmatpush.msra.mxu0 %v5961
  %6085 = vmatpush.msra.mxu0 %v5956
  %6086 = vmatpush.msra.mxu0 %v5951
  %6087 = vmatpush.msra.mxu0 %v5946
  %6088 = vmatpush.msra.mxu0 %v5941
  %6089 = vmatpush.msra.mxu0 %v5936
  %6090 = vmatpush.msra.mxu0 %v5931
  %6091 = vmatmul.f32.gmra.mxu0 %v5929
  %v6092 = vpop.f32.mrf.mxu0
  %v6093 = vadd.f32 %v6070, %v6092
  %6094 = vdwg.mxu0
  %6095 = vmatpush.msra.mxu0 0.0
  %6096 = vmatpush.msra.mxu0 0.0
  %6097 = vmatpush.msra.mxu0 0.0
  %6098 = vmatpush.msra.mxu0 0.0
  %6099 = vmatpush.msra.mxu0 0.0
  %6100 = vmatpush.msra.mxu0 %v6061
  %6101 = vmatpush.msra.mxu0 %v6056
  %6102 = vmatpush.msra.mxu0 %v6051
  %6103 = vmatpush.msra.mxu0 %v6046
  %6104 = vmatpush.msra.mxu0 %v6041
  %6105 = vmatpush.msra.mxu0 %v6036
  %6106 = vmatpush.msra.mxu0 %v6031
  %6107 = vmatpush.msra.mxu0 %v6026
  %6108 = vmatpush.msra.mxu0 %v6021
  %6109 = vmatpush.msra.mxu0 %v6016
  %6110 = vmatpush.msra.mxu0 %v6011
  %6111 = vmatmul.f32.gmra.mxu0 %v6073
  %v6112 = vpop.f32.mrf.mxu0
  %v6113 = vadd.f32 %v6093, %v6112
  %6114 = vdwg.mxu0
  %6115 = vmatpush.msra.mxu0 %v6007
  %6116 = vmatpush.msra.mxu0 %v6002
  %6117 = vmatpush.msra.mxu0 %v5997
  %6118 = vmatpush.msra.mxu0 %v5992
  %6119 = vmatpush.msra.mxu0 %v5987
  %6120 = vmatpush.msra.mxu0 %v5982
  %6121 = vmatpush.msra.mxu0 %v5977
  %6122 = vmatpush.msra.mxu0 %v5972
  %6123 = vmatpush.msra.mxu0 %v5967
  %6124 = vmatpush.msra.mxu0 %v5962
  %6125 = vmatpush.msra.mxu0 %v5957
  %6126 = vmatpush.msra.mxu0 %v5952
  %6127 = vmatpush.msra.mxu0 %v5947
  %6128 = vmatpush.msra.mxu0 %v5942
  %6129 = vmatpush.msra.mxu0 %v5937
  %6130 = vmatpush.msra.mxu0 %v5932
  %6131 = vmatmul.f32.gmra.mxu0 %v5929
  %v6132 = vpop.f32.mrf.mxu0
  %v6133 = vadd.f32 %v6070, %v6132
  %6134 = vdwg.mxu0
  %6135 = vmatpush.msra.mxu0 0.0
  %6136 = vmatpush.msra.mxu0 0.0
  %6137 = vmatpush.msra.mxu0 0.0
  %6138 = vmatpush.msra.mxu0 0.0
  %6139 = vmatpush.msra.mxu0 0.0
  %6140 = vmatpush.msra.mxu0 %v6062
  %6141 = vmatpush.msra.mxu0 %v6057
  %6142 = vmatpush.msra.mxu0 %v6052
  %6143 = vmatpush.msra.mxu0 %v6047
  %6144 = vmatpush.msra.mxu0 %v6042
  %6145 = vmatpush.msra.mxu0 %v6037
  %6146 = vmatpush.msra.mxu0 %v6032
  %6147 = vmatpush.msra.mxu0 %v6027
  %6148 = vmatpush.msra.mxu0 %v6022
  %6149 = vmatpush.msra.mxu0 %v6017
  %6150 = vmatpush.msra.mxu0 %v6012
  %6151 = vmatmul.f32.gmra.mxu0 %v6073
  %v6152 = vpop.f32.mrf.mxu0
  %v6153 = vadd.f32 %v6133, %v6152
  %6154 = vdwg.mxu0
  %6155 = vmatpush.msra.mxu0 %v6008
  %6156 = vmatpush.msra.mxu0 %v6003
  %6157 = vmatpush.msra.mxu0 %v5998
  %6158 = vmatpush.msra.mxu0 %v5993
  %6159 = vmatpush.msra.mxu0 %v5988
  %6160 = vmatpush.msra.mxu0 %v5983
  %6161 = vmatpush.msra.mxu0 %v5978
  %6162 = vmatpush.msra.mxu0 %v5973
  %6163 = vmatpush.msra.mxu0 %v5968
  %6164 = vmatpush.msra.mxu0 %v5963
  %6165 = vmatpush.msra.mxu0 %v5958
  %6166 = vmatpush.msra.mxu0 %v5953
  %6167 = vmatpush.msra.mxu0 %v5948
  %6168 = vmatpush.msra.mxu0 %v5943
  %6169 = vmatpush.msra.mxu0 %v5938
  %6170 = vmatpush.msra.mxu0 %v5933
  %6171 = vmatmul.f32.gmra.mxu0 %v5929
  %v6172 = vpop.f32.mrf.mxu0
  %v6173 = vadd.f32 %v6070, %v6172
  %6174 = vdwg.mxu0
  %6175 = vmatpush.msra.mxu0 0.0
  %6176 = vmatpush.msra.mxu0 0.0
  %6177 = vmatpush.msra.mxu0 0.0
  %6178 = vmatpush.msra.mxu0 0.0
  %6179 = vmatpush.msra.mxu0 0.0
  %6180 = vmatpush.msra.mxu0 %v6063
  %6181 = vmatpush.msra.mxu0 %v6058
  %6182 = vmatpush.msra.mxu0 %v6053
  %6183 = vmatpush.msra.mxu0 %v6048
  %6184 = vmatpush.msra.mxu0 %v6043
  %6185 = vmatpush.msra.mxu0 %v6038
  %6186 = vmatpush.msra.mxu0 %v6033
  %6187 = vmatpush.msra.mxu0 %v6028
  %6188 = vmatpush.msra.mxu0 %v6023
  %6189 = vmatpush.msra.mxu0 %v6018
  %6190 = vmatpush.msra.mxu0 %v6013
  %6191 = vmatmul.f32.gmra.mxu0 %v6073
  %v6192 = vpop.f32.mrf.mxu0
  %v6193 = vadd.f32 %v6173, %v6192
  %6194 = vdwg.mxu0
  %6195 = vmatpush.msra.mxu0 %v6009
  %6196 = vmatpush.msra.mxu0 %v6004
  %6197 = vmatpush.msra.mxu0 %v5999
  %6198 = vmatpush.msra.mxu0 %v5994
  %6199 = vmatpush.msra.mxu0 %v5989
  %6200 = vmatpush.msra.mxu0 %v5984
  %6201 = vmatpush.msra.mxu0 %v5979
  %6202 = vmatpush.msra.mxu0 %v5974
  %6203 = vmatpush.msra.mxu0 %v5969
  %6204 = vmatpush.msra.mxu0 %v5964
  %6205 = vmatpush.msra.mxu0 %v5959
  %6206 = vmatpush.msra.mxu0 %v5954
  %6207 = vmatpush.msra.mxu0 %v5949
  %6208 = vmatpush.msra.mxu0 %v5944
  %6209 = vmatpush.msra.mxu0 %v5939
  %6210 = vmatpush.msra.mxu0 %v5934
  %6211 = vmatmul.f32.gmra.mxu0 %v5929
  %v6212 = vpop.f32.mrf.mxu0
  %v6213 = vadd.f32 %v6070, %v6212
  %6214 = vdwg.mxu0
  %6215 = vmatpush.msra.mxu0 0.0
  %6216 = vmatpush.msra.mxu0 0.0
  %6217 = vmatpush.msra.mxu0 0.0
  %6218 = vmatpush.msra.mxu0 0.0
  %6219 = vmatpush.msra.mxu0 0.0
  %6220 = vmatpush.msra.mxu0 %v6064
  %6221 = vmatpush.msra.mxu0 %v6059
  %6222 = vmatpush.msra.mxu0 %v6054
  %6223 = vmatpush.msra.mxu0 %v6049
  %6224 = vmatpush.msra.mxu0 %v6044
  %6225 = vmatpush.msra.mxu0 %v6039
  %6226 = vmatpush.msra.mxu0 %v6034
  %6227 = vmatpush.msra.mxu0 %v6029
  %6228 = vmatpush.msra.mxu0 %v6024
  %6229 = vmatpush.msra.mxu0 %v6019
  %6230 = vmatpush.msra.mxu0 %v6014
  %6231 = vmatmul.f32.gmra.mxu0 %v6073
  %v6232 = vpop.f32.mrf.mxu0
  %v6233 = vadd.f32 %v6213, %v6232
  %6234 = vdwg.mxu0
  %6235 = vmatpush.msra.mxu0 %v6010
  %6236 = vmatpush.msra.mxu0 %v6005
  %6237 = vmatpush.msra.mxu0 %v6000
  %6238 = vmatpush.msra.mxu0 %v5995
  %6239 = vmatpush.msra.mxu0 %v5990
  %6240 = vmatpush.msra.mxu0 %v5985
  %6241 = vmatpush.msra.mxu0 %v5980
  %6242 = vmatpush.msra.mxu0 %v5975
  %6243 = vmatpush.msra.mxu0 %v5970
  %6244 = vmatpush.msra.mxu0 %v5965
  %6245 = vmatpush.msra.mxu0 %v5960
  %6246 = vmatpush.msra.mxu0 %v5955
  %6247 = vmatpush.msra.mxu0 %v5950
  %6248 = vmatpush.msra.mxu0 %v5945
  %6249 = vmatpush.msra.mxu0 %v5940
  %6250 = vmatpush.msra.mxu0 %v5935
  %6251 = vmatmul.f32.gmra.mxu0 %v5929
  %v6252 = vpop.f32.mrf.mxu0
  %v6253 = vadd.f32 %v6070, %v6252
  %6254 = vdwg.mxu0
  %6255 = vmatpush.msra.mxu0 0.0
  %6256 = vmatpush.msra.mxu0 0.0
  %6257 = vmatpush.msra.mxu0 0.0
  %6258 = vmatpush.msra.mxu0 0.0
  %6259 = vmatpush.msra.mxu0 0.0
  %6260 = vmatpush.msra.mxu0 %v6065
  %6261 = vmatpush.msra.mxu0 %v6060
  %6262 = vmatpush.msra.mxu0 %v6055
  %6263 = vmatpush.msra.mxu0 %v6050
  %6264 = vmatpush.msra.mxu0 %v6045
  %6265 = vmatpush.msra.mxu0 %v6040
  %6266 = vmatpush.msra.mxu0 %v6035
  %6267 = vmatpush.msra.mxu0 %v6030
  %6268 = vmatpush.msra.mxu0 %v6025
  %6269 = vmatpush.msra.mxu0 %v6020
  %6270 = vmatpush.msra.mxu0 %v6015
  %6271 = vmatmul.f32.gmra.mxu0 %v6073
  %v6272 = vpop.f32.mrf.mxu0
  %v6273 = vadd.f32 %v6253, %v6272
  %6274 = vdwg.mxu0
  %v6275 = vmax.f32 %v6113, 0.0
  %v6276 = vmax.f32 %v6153, 0.0
  %v6277 = vmax.f32 %v6193, 0.0
  %v6278 = vmax.f32 %v6233, 0.0
  %v6279 = vmax.f32 %v6273, 0.0
  %v6280 = vld [vmem:[%s9] sm:$0xff]
  %6282 = vset.pattern.permute.xlu0 0
  %6283 = vperm.xlu0 %6282, %v6280
  %v6284 = vpop.permute.xlu0 %6283
  %v6286 = vmul.f32 %v6275, %v6284
  %v6287 = vmul.f32 %v6276, %v6284
  %v6288 = vmul.f32 %v6277, %v6284
  %v6289 = vmul.f32 %v6278, %v6284
  %v6290 = vmul.f32 %v6279, %v6284
  %v6291 = vld [vmem:[%s10] sm:$0xff]
  %6293 = vset.pattern.permute.xlu0 0
  %6294 = vperm.xlu0 %6293, %v6291
  %v6295 = vpop.permute.xlu0 %6294
  %v6297 = vadd.f32 %v6286, %v6295
  %v6298 = vadd.f32 %v6287, %v6295
  %v6299 = vadd.f32 %v6288, %v6295
  %v6300 = vadd.f32 %v6289, %v6295
  %v6301 = vadd.f32 %v6290, %v6295
  %v6302 = vadd.f32 %v188, %v6297
  %v6303 = vadd.f32 %v189, %v6298
  %v6304 = vadd.f32 %v190, %v6299
  %v6305 = vadd.f32 %v191, %v6300
  %v6306 = vadd.f32 %v192, %v6301
  %6307 = vst [vmem:[%s12] sm:$0xff] %v6302
  %6308 = vst [vmem:[%s12 + $0x8] sm:$0xff] %v6303
  %6309 = vst [vmem:[%s12 + $0x10] sm:$0xff] %v6304
  %6310 = vst [vmem:[%s12 + $0x18] sm:$0xff] %v6305
  %6311 = vst [vmem:[%s12 + $0x20] sm:$0xff] %v6306
  // Predicated region
  $region50: #{ifa_forward.1} parent=0 // pred_check
    _
  $region51: #{ifa_forward.1} parent=0 // pred_check_branch
    %6313 = sbr.rel (0) target = $region53
  $region52: #{ifa_forward.1} parent=0 // pred_region
    _
  $region53: #{ifa_forward.1} parent=0 // pred_fallthru
    _
  // Predicated region
  $region54: #{ifa_forward.1} parent=0 // pred_check
    _
  $region55: #{ifa_forward.1} parent=0 // pred_check_branch
    %6315 = sbr.rel (0) target = $region57
  $region56: #{ifa_forward.1} parent=0 // pred_region
    _
  $region57: #{ifa_forward.1} parent=0 // pred_fallthru
    _

</llo_original>
